<compile_context>
chip_gen: v7x
topology: tpu7x:2x2x1
jax: 0.10.0
libtpu: 0.0.40
codegen_flags: <defaults>
</compile_context>

<pallas_src>
import functools
import math

import jax
import jax.numpy as jnp
from jax import lax
from jax.experimental import pallas as pl
from jax.experimental.pallas import tpu as pltpu


def _pair(v):
    return (v, v) if isinstance(v, int) else tuple(v)


def _round_up(x, m):
    return ((x + m - 1) // m) * m


def _tpu_defaults():
    """(min parallel grid steps, per-step VMEM budget, vmem_limit_bytes)."""
    kind = ""
    try:
        kind = jax.devices()[0].device_kind.lower()
    except Exception:  # pragma: no cover - defensive, e.g. odd backends
        pass
    if "v7" in kind or "7x" in kind:
        # v7x: 64 MiB VMEM / TC but 2 TCs -> keep >= 4 parallel grid steps and
        # a modest per-step footprint.
        return 4, 16 << 20, 40 << 20
    # v5e / v6e: single TC (grid is a serial loop) and 128 MiB physical VMEM
    # -> take the largest block that fits and raise the scoped-VMEM limit.
    return 1, 40 << 20, 96 << 20


def _per_example_vmem_bytes(hx, wx, c_in, ho, wo, k_total, cout, in_isz, out_isz):
    """Conservative per-batch-element VMEM footprint (lane/sublane padded)."""
    x_tile = hx * _round_up(wx, 8) * _round_up(c_in, 128) * in_isz
    out_tile = _round_up(ho * wo, 8) * _round_up(cout, 128) * out_isz
    patches = _round_up(ho * wo, 8) * _round_up(k_total, 128) * in_isz
    acc = _round_up(ho * wo, 8) * _round_up(cout, 128) * 4
    # 2x double-buffered in/out tiles + in-kernel xs copy + patches + f32 acc.
    return 2 * x_tile + 2 * out_tile + x_tile + patches + acc


def _pick_block_n(n, per_example_bytes, budget, min_steps):
    """Largest divisor of n that fits the VMEM budget; honour min_steps if
    possible (v7x megacore), otherwise relax it (single-TC chips)."""
    divisors = [d for d in range(1, n + 1) if n % d == 0]
    fitting = [d for d in divisors if d * per_example_bytes <= budget]
    if not fitting:
        return 1
    good = [d for d in fitting if n // d >= min_steps]
    return max(good) if good else max(fitting)


def _expand_per_example(p, n, m):
    """PyTorch semantics: repeat(p, 'm h -> (m b) h', b=n//m); cat first extras."""
    epe = n // m
    extra = n % m
    rep = jnp.repeat(p, epe, axis=0)
    return jnp.concatenate([rep, rep[:extra]], axis=0)


def _batch_conv2d_kernel(x_ref, w_ref, r_ref, sb_ref, o_ref, *, taps, out_hw):
    """One grid step processes BLOCK_N batch elements.

    x_ref : (BN, Hx, Wx, C)    spatially pre-padded NHWC inputs, or already
                               im2col'ed patches when taps == (1, 1)
    w_ref : (K, Cout)          shared conv weight, K = KH*KW*Cin (kh,kw,cin order)
    r_ref : (1, BN, C)         per-example input scaling  (r_hat)
    sb_ref: (1, BN, 2, Cout)   per-example [s_hat, b_hat]
    o_ref : (BN, Ho*Wo, Cout)  output (no channel padding -> 1x HBM writeback)
    """
    KH, KW = taps
    Ho, Wo = out_hw
    BN, Hx, Wx, C = x_ref.shape
    K, Cout = w_ref.shape
    M = BN * Ho * Wo

    # BatchEnsemble rank-1 input scaling (VPU), in the input's native dtype so
    # bf16 inputs stay bf16 on the MXU.
    x = x_ref[...]                                       # (BN, Hx, Wx, C)
    r = r_ref[0].astype(x.dtype)                         # (BN, C)
    xs = x * r[:, None, None, :]

    # im2col: gather the KH*KW contiguous taps along the channel axis and do a
    # single (M, K) @ (K, Cout) MXU matmul.  The K-accumulation happens inside
    # the MXU -> no per-tap f32 VPU adds, no accumulator round trips.
    if KH == 1 and KW == 1:
        patches = xs                                     # already (BN, Ho, Wo, K)
    else:
        cols = []
        for kh in range(KH):
            for kw in range(KW):
                cols.append(xs[:, kh:kh + Ho, kw:kw + Wo, :])
        patches = jnp.concatenate(cols, axis=-1)         # (BN, Ho, Wo, K)
    # TODO(synk): for Cin << 128 a lane-packed (Wo*Cin) layout with pltpu.roll
    # window shifts would make the scaling / patch build lane-dense.

    acc = jnp.dot(patches.reshape(M, K), w_ref[...],
                  preferred_element_type=jnp.float32)    # (M, Cout) f32

    # Epilogue: per-example output scaling + bias in f32, single store.
    sb = sb_ref[0].astype(jnp.float32)                   # (BN, 2, Cout)
    s = sb[:, 0, :]                                      # (BN, Cout)
    b = sb[:, 1, :]                                      # (BN, Cout)
    out = acc.reshape(BN, Ho * Wo, Cout) * s[:, None, :] + b[:, None, :]
    o_ref[...] = out.astype(o_ref.dtype)


def batch_conv2d(x_nchw, weight_oihw, r_group, s_group, bias, num_estimators,
                 *, stride=1, padding=0, dilation=1, groups=1, block_n=None):
    """BatchConv2d forward. Inputs follow PyTorch conventions (NCHW / OIHW)."""
    if groups != 1:
        # TODO(synk): grouped convolution not implemented.
        raise NotImplementedError("BatchConv2d Pallas kernel: groups > 1")
    if isinstance(padding, str):
        # TODO(synk): 'same'/'valid' string padding not implemented.
        raise NotImplementedError("BatchConv2d Pallas kernel: string padding")

    N, Cin, H, W = x_nchw.shape
    Cout, _, KH, KW = weight_oihw.shape
    sh, sw = _pair(stride)
    ph, pw = _pair(padding)
    dh, dw = _pair(dilation)
    Ho = (H + 2 * ph - dh * (KH - 1) - 1) // sh + 1
    Wo = (W + 2 * pw - dw * (KW - 1) - 1) // sw + 1

    # Per-example rank-1 factors, exactly like the PyTorch module.
    r_per_n = _expand_per_example(r_group, N, num_estimators)      # (N, Cin)
    s_per_n = _expand_per_example(s_group, N, num_estimators)      # (N, Cout)
    if bias is None:
        b_per_n = jnp.zeros((N, Cout), s_per_n.dtype)
    else:
        b_per_n = _expand_per_example(bias, N, num_estimators)     # (N, Cout)

    # Glue (XLA): NCHW -> NHWC, spatial zero-pad, OIHW -> (KH*KW*Cin, Cout)
    # with (kh, kw, cin) channel order matching the in-kernel im2col.
    x_nhwc = jnp.transpose(x_nchw, (0, 2, 3, 1))
    x_pad = jnp.pad(x_nhwc, ((0, 0), (ph, ph), (pw, pw), (0, 0)))
    w2d = jnp.transpose(weight_oihw, (2, 3, 1, 0)).reshape(KH * KW * Cin, Cout)
    k_total = KH * KW * Cin

    if sh == 1 and sw == 1 and dh == 1 and dw == 1:
        x_k, taps, r_k = x_pad, (KH, KW), r_per_n
    else:
        # stride/dilation > 1: extract the taps in the wrapper (XLA strided
        # slices) so the kernel never issues strided sublane slices.
        # TODO(synk): a phase-split layout would cut HBM traffic for large strides.
        cols = []
        for kh in range(KH):
            for kw in range(KW):
                h0, w0 = kh * dh, kw * dw
                cols.append(lax.slice(
                    x_pad, (0, h0, w0, 0),
                    (N, h0 + (Ho - 1) * sh + 1, w0 + (Wo - 1) * sw + 1, Cin),
                    (1, sh, sw, 1)))
        x_k = jnp.concatenate(cols, axis=-1)              # (N, Ho, Wo, k_total)
        taps = (1, 1)
        r_k = jnp.tile(r_per_n, (1, KH * KW))             # r per (kh, kw, cin)

    _, Hx, Wx, Ck = x_k.shape

    min_steps, vmem_budget, vmem_limit = _tpu_defaults()
    per_ex = _per_example_vmem_bytes(
        Hx, Wx, Ck, Ho, Wo, k_total, Cout,
        jnp.dtype(x_k.dtype).itemsize, jnp.dtype(x_nchw.dtype).itemsize)
    if block_n is None:
        block_n = _pick_block_n(N, per_ex, vmem_budget, min_steps)
    assert N % block_n == 0
    grid_n = N // block_n

    # Group the per-example factors so every BlockSpec's last two dims equal
    # the full array dims; merge s and b into one block (one DMA per step).
    r_g = r_k.reshape(grid_n, block_n, Ck)
    sb_g = jnp.stack([s_per_n, b_per_n], axis=1).reshape(grid_n, block_n, 2, Cout)

    kernel = functools.partial(_batch_conv2d_kernel, taps=taps, out_hw=(Ho, Wo))

    out = pl.pallas_call(
        kernel,
        out_shape=jax.ShapeDtypeStruct((N, Ho * Wo, Cout), x_nchw.dtype),
        grid=(grid_n,),
        in_specs=[
            pl.BlockSpec((block_n, Hx, Wx, Ck), lambda n: (n, 0, 0, 0)),
            pl.BlockSpec((k_total, Cout), lambda n: (0, 0)),
            pl.BlockSpec((1, block_n, Ck), lambda n: (n, 0, 0)),
            pl.BlockSpec((1, block_n, 2, Cout), lambda n: (n, 0, 0, 0)),
        ],
        out_specs=pl.BlockSpec((block_n, Ho * Wo, Cout), lambda n: (n, 0, 0)),
        compiler_params=pltpu.CompilerParams(
            dimension_semantics=("parallel",),
            vmem_limit_bytes=vmem_limit,
        ),
    )(x_k, w2d, r_g, sb_g)

    # Glue (XLA): back to NCHW.
    return jnp.transpose(out.reshape(N, Ho, Wo, Cout), (0, 3, 1, 2))


def init_batch_conv2d_params(key, in_channels, out_channels, kernel_size,
                             num_estimators, groups=1, use_bias=True,
                             dtype=jnp.float32):
    """Deterministic parameter init matching the PyTorch module's reset_parameters."""
    KH, KW = _pair(kernel_size)
    k_w, k_r, k_s, k_b = jax.random.split(key, 4)

    fan_in = (in_channels // groups) * KH * KW
    bound = 1.0 / math.sqrt(fan_in) if fan_in > 0 else 0.0

    weight = jax.random.uniform(
        k_w, (out_channels, in_channels // groups, KH, KW),
        minval=-bound, maxval=bound, dtype=dtype)
    r_group = 1.0 + 0.5 * jax.random.normal(k_r, (num_estimators, in_channels), dtype)
    s_group = 1.0 + 0.5 * jax.random.normal(k_s, (num_estimators, out_channels), dtype)
    bias = None
    if use_bias:
        bias = jax.random.uniform(
            k_b, (num_estimators, out_channels),
            minval=-bound, maxval=bound, dtype=dtype)
    return weight, r_group, s_group, bias


def _reference(x, weight, r_per_n, s_per_n, b_per_n, stride, padding, dilation):
    sh, sw = _pair(stride)
    ph, pw = _pair(padding)
    dh, dw = _pair(dilation)
    xr = x * r_per_n[:, :, None, None]
    y = lax.conv_general_dilated(
        xr, weight, window_strides=(sh, sw),
        padding=((ph, ph), (pw, pw)), rhs_dilation=(dh, dw),
        dimension_numbers=("NCHW", "OIHW", "NCHW"))
    return y * s_per_n[:, :, None, None] + b_per_n[:, :, None, None]


def _run_case(key, n, cin, cout, h, w, ksize, num_est, stride, padding, dilation):
    k_x, k_p = jax.random.split(key)
    x = jax.random.normal(k_x, (n, cin, h, w), jnp.float32)
    weight, r_group, s_group, bias = init_batch_conv2d_params(
        k_p, cin, cout, ksize, num_est, use_bias=True)

    out = batch_conv2d(x, weight, r_group, s_group, bias, num_est,
                       stride=stride, padding=padding, dilation=dilation)
    out = jax.block_until_ready(out)

    r_per_n = _expand_per_example(r_group, n, num_est)
    s_per_n = _expand_per_example(s_group, n, num_est)
    b_per_n = _expand_per_example(bias, n, num_est)
    ref = _reference(x, weight, r_per_n, s_per_n, b_per_n,
                     stride, padding, dilation)

    assert out.shape == ref.shape, (out.shape, ref.shape)
    err = float(jnp.max(jnp.abs(out - ref)))
    assert jnp.allclose(out, ref, rtol=2e-4, atol=2e-4), err


if __name__ == "__main__":
    key = jax.random.PRNGKey(0)
    k1, k2 = jax.random.split(key)

    # Case 1: batch=8, Cin=4, Cout=8, 3x3, 4 estimators, 16x16, stride 1, pad 1
    # (in-kernel im2col path).
    _run_case(k1, n=8, cin=4, cout=8, h=16, w=16, ksize=(3, 3), num_est=4,
              stride=1, padding=1, dilation=1)

    # Case 2: batch=6 (N % M != 0 -> 'extra' rows), 18x18, stride 2, pad 0
    # (wrapper tap-extraction path, taps == (1, 1) in the kernel).
    _run_case(k2, n=6, cin=4, cout=8, h=18, w=18, ksize=(3, 3), num_est=4,
              stride=2, padding=0, dilation=1)

    print("KERNEL_OK")
</pallas_src>

<mosaic_0001>
module attributes {stable_mosaic.version = 11 : i64} {
  func.func @_batch_conv2d_kernel(%arg0: i32, %arg1: memref<8x18x18x4xf32, #tpu.memory_space<vmem>>, %arg2: memref<36x8xf32, #tpu.memory_space<vmem>>, %arg3: memref<1x8x4xf32, #tpu.memory_space<vmem>>, %arg4: memref<1x8x2x8xf32, #tpu.memory_space<vmem>>, %arg5: memref<8x256x8xf32, #tpu.memory_space<vmem>>) attributes {dimension_semantics = [#tpu.dimension_semantics<parallel>], iteration_bounds = array<i64: 1>, scalar_prefetch = 0 : i64, scratch_operands = 0 : i64, tpu.core_type = #tpu.core_type<tc>, window_params = [{transform_indices = @transform_0, window_bounds = array<i64: 8, 18, 18, 4>}, {pipeline_mode = #tpu.pipeline_mode<synchronous>, transform_indices = @transform_1, window_bounds = array<i64: 36, 8>}, {transform_indices = @transform_2, window_bounds = array<i64: 1, 8, 4>}, {transform_indices = @transform_3, window_bounds = array<i64: 1, 8, 2, 8>}, {transform_indices = @transform_4, window_bounds = array<i64: 8, 256, 8>}]} {
    %c0 = arith.constant 0 : index
    %c0_0 = arith.constant 0 : index
    %c0_1 = arith.constant 0 : index
    %c0_2 = arith.constant 0 : index
    %0 = vector.load %arg1[%c0, %c0_0, %c0_1, %c0_2] : memref<8x18x18x4xf32, #tpu.memory_space<vmem>>, vector<8x18x18x4xf32>
    %c0_3 = arith.constant 0 : index
    %c0_4 = arith.constant 0 : index
    %c0_5 = arith.constant 0 : index
    %1 = vector.load %arg3[%c0_3, %c0_4, %c0_5] : memref<1x8x4xf32, #tpu.memory_space<vmem>>, vector<1x8x4xf32>
    %2 = vector.shape_cast %1 : vector<1x8x4xf32> to vector<8x4xf32>
    %3 = vector.shape_cast %2 : vector<8x4xf32> to vector<8x1x1x4xf32>
    %4 = vector.broadcast %3 : vector<8x1x1x4xf32> to vector<8x18x18x4xf32>
    %5 = arith.mulf %0, %4 : vector<8x18x18x4xf32>
    %6 = vector.extract_strided_slice %5 {offsets = [0, 0, 0, 0], sizes = [8, 16, 16, 4], strides = [1, 1, 1, 1]} : vector<8x18x18x4xf32> to vector<8x16x16x4xf32>
    %7 = vector.extract_strided_slice %5 {offsets = [0, 0, 1, 0], sizes = [8, 16, 16, 4], strides = [1, 1, 1, 1]} : vector<8x18x18x4xf32> to vector<8x16x16x4xf32>
    %8 = vector.extract_strided_slice %5 {offsets = [0, 0, 2, 0], sizes = [8, 16, 16, 4], strides = [1, 1, 1, 1]} : vector<8x18x18x4xf32> to vector<8x16x16x4xf32>
    %9 = vector.extract_strided_slice %5 {offsets = [0, 1, 0, 0], sizes = [8, 16, 16, 4], strides = [1, 1, 1, 1]} : vector<8x18x18x4xf32> to vector<8x16x16x4xf32>
    %10 = vector.extract_strided_slice %5 {offsets = [0, 1, 1, 0], sizes = [8, 16, 16, 4], strides = [1, 1, 1, 1]} : vector<8x18x18x4xf32> to vector<8x16x16x4xf32>
    %11 = vector.extract_strided_slice %5 {offsets = [0, 1, 2, 0], sizes = [8, 16, 16, 4], strides = [1, 1, 1, 1]} : vector<8x18x18x4xf32> to vector<8x16x16x4xf32>
    %12 = vector.extract_strided_slice %5 {offsets = [0, 2, 0, 0], sizes = [8, 16, 16, 4], strides = [1, 1, 1, 1]} : vector<8x18x18x4xf32> to vector<8x16x16x4xf32>
    %13 = vector.extract_strided_slice %5 {offsets = [0, 2, 1, 0], sizes = [8, 16, 16, 4], strides = [1, 1, 1, 1]} : vector<8x18x18x4xf32> to vector<8x16x16x4xf32>
    %14 = vector.extract_strided_slice %5 {offsets = [0, 2, 2, 0], sizes = [8, 16, 16, 4], strides = [1, 1, 1, 1]} : vector<8x18x18x4xf32> to vector<8x16x16x4xf32>
    %15 = tpu.concatenate %6, %7, %8, %9, %10, %11, %12, %13, %14 in 3 : vector<8x16x16x4xf32>, vector<8x16x16x4xf32>, vector<8x16x16x4xf32>, vector<8x16x16x4xf32>, vector<8x16x16x4xf32>, vector<8x16x16x4xf32>, vector<8x16x16x4xf32>, vector<8x16x16x4xf32>, vector<8x16x16x4xf32> -> vector<8x16x16x36xf32>
    %16 = vector.shape_cast %15 : vector<8x16x16x36xf32> to vector<2048x36xf32>
    %c0_6 = arith.constant 0 : index
    %c0_7 = arith.constant 0 : index
    %17 = vector.load %arg2[%c0_6, %c0_7] : memref<36x8xf32, #tpu.memory_space<vmem>>, vector<36x8xf32>
    %cst = arith.constant dense<0.000000e+00> : vector<2048x8xf32>
    %18 = tpu.matmul %16, %17, %cst {dimension_numbers = #tpu.dot_dimension_numbers<[1], [0], [0], [1], [0, 0, 1, 1], [], []>} : vector<2048x36xf32>, vector<36x8xf32>, vector<2048x8xf32> -> vector<2048x8xf32>
    %c0_8 = arith.constant 0 : index
    %c0_9 = arith.constant 0 : index
    %c0_10 = arith.constant 0 : index
    %c0_11 = arith.constant 0 : index
    %19 = vector.load %arg4[%c0_8, %c0_9, %c0_10, %c0_11] : memref<1x8x2x8xf32, #tpu.memory_space<vmem>>, vector<1x8x2x8xf32>
    %20 = vector.shape_cast %19 : vector<1x8x2x8xf32> to vector<8x2x8xf32>
    %21 = vector.extract_strided_slice %20 {offsets = [0, 0, 0], sizes = [8, 1, 8], strides = [1, 1, 1]} : vector<8x2x8xf32> to vector<8x1x8xf32>
    %22 = vector.shape_cast %21 : vector<8x1x8xf32> to vector<8x8xf32>
    %23 = vector.extract_strided_slice %20 {offsets = [0, 1, 0], sizes = [8, 1, 8], strides = [1, 1, 1]} : vector<8x2x8xf32> to vector<8x1x8xf32>
    %24 = vector.shape_cast %23 : vector<8x1x8xf32> to vector<8x8xf32>
    %25 = vector.shape_cast %18 : vector<2048x8xf32> to vector<8x256x8xf32>
    %26 = vector.shape_cast %22 : vector<8x8xf32> to vector<8x1x8xf32>
    %27 = vector.broadcast %26 : vector<8x1x8xf32> to vector<8x256x8xf32>
    %28 = arith.mulf %25, %27 : vector<8x256x8xf32>
    %29 = vector.shape_cast %24 : vector<8x8xf32> to vector<8x1x8xf32>
    %30 = vector.broadcast %29 : vector<8x1x8xf32> to vector<8x256x8xf32>
    %31 = arith.addf %28, %30 : vector<8x256x8xf32>
    %c0_12 = arith.constant 0 : index
    %c0_13 = arith.constant 0 : index
    %c0_14 = arith.constant 0 : index
    %32 = vector.load %arg5[%c0_12, %c0_13, %c0_14] : memref<8x256x8xf32, #tpu.memory_space<vmem>>, vector<8x256x8xf32>
    tpu.vector_store %arg5[%c0_12, %c0_13, %c0_14], %31 {strides = array<i32>} : memref<8x256x8xf32, #tpu.memory_space<vmem>>, vector<8x256x8xf32>,
    return
  }
  func.func @transform_0(%arg0: i32) -> (i32, i32, i32, i32) {
    %c0_i32 = arith.constant 0 : i32
    %c0_i32_0 = arith.constant 0 : i32
    %c0_i32_1 = arith.constant 0 : i32
    %c0_i32_2 = arith.constant 0 : i32
    return %arg0, %c0_i32, %c0_i32_0, %c0_i32_1 : i32, i32, i32, i32
  }
  func.func @transform_1(%arg0: i32) -> (i32, i32) {
    %c0_i32 = arith.constant 0 : i32
    %c0_i32_0 = arith.constant 0 : i32
    %c0_i32_1 = arith.constant 0 : i32
    return %c0_i32, %c0_i32_0 : i32, i32
  }
  func.func @transform_2(%arg0: i32) -> (i32, i32, i32) {
    %c0_i32 = arith.constant 0 : i32
    %c0_i32_0 = arith.constant 0 : i32
    %c0_i32_1 = arith.constant 0 : i32
    return %arg0, %c0_i32, %c0_i32_0 : i32, i32, i32
  }
  func.func @transform_3(%arg0: i32) -> (i32, i32, i32, i32) {
    %c0_i32 = arith.constant 0 : i32
    %c0_i32_0 = arith.constant 0 : i32
    %c0_i32_1 = arith.constant 0 : i32
    %c0_i32_2 = arith.constant 0 : i32
    return %arg0, %c0_i32, %c0_i32_0, %c0_i32_1 : i32, i32, i32, i32
  }
  func.func @transform_4(%arg0: i32) -> (i32, i32, i32) {
    %c0_i32 = arith.constant 0 : i32
    %c0_i32_0 = arith.constant 0 : i32
    %c0_i32_1 = arith.constant 0 : i32
    return %arg0, %c0_i32, %c0_i32_0 : i32, i32, i32
  }
}

</mosaic_0001>

<llo_original>
// kernel: tpu_custom_call.1
$region0: #{tpu_custom_call.1}
  #allocation0 [shape = 'u32[]', space=smem, size = 0x4, offset = 0x4, fixed_abs, tag = 'smem constant byte address 0x4 - core index']
  #allocation1 [shape = 'u32[144,128]{1,0:T(1,128)}', space=vmem, size = 0x12000, scoped, tag = 'internal scratch']
  %s0 = inlined_call_operand.hbm [shape: f32[8,18,18,4], index: 0, kind: input, shape index: {}]
  %s1 = inlined_call_operand.hbm [shape: f32[36,8], index: 1, kind: input, shape index: {}]
  %s2 = inlined_call_operand.hbm [shape: f32[1,8,4], index: 2, kind: input, shape index: {}]
  %s3 = inlined_call_operand.hbm [shape: f32[1,8,2,8], index: 3, kind: input, shape index: {}]
  %s4 = inlined_call_operand.hbm [shape: f32[8,256,8], index: 4, kind: output, shape index: {}]
  %s5 = sld [smem:[#allocation0]]
  $region42: #{tpu_custom_call.1} parent=0
    _
  %s7 = ssub.s32 1, %s5
  %s8 = scalar_select 0, %s7, %s5
  $region1: #{tpu_custom_call.1} parent=0
    #allocation2 [shape = 'u8[1769472]{0}', space=vmem, size = 0x1b0000, scoped, tag = 'input window, operand 0, single buffered']
    #allocation3 [shape = 's32[1]{0}', space=sflag, size = 0x4, scoped, tag = 'scoped memory for tpu_custom_call.1']
    #allocation4 [shape = 's32[1]{0}', space=sflag, size = 0x4, scoped, tag = 'scoped memory for tpu_custom_call.1']
    #allocation5 [shape = 'u8[20480]{0}', space=vmem, size = 0x5000, scoped, tag = 'input window, operand 1, single buffered']
    #allocation6 [shape = 's32[1]{0}', space=sflag, size = 0x4, scoped, tag = 'scoped memory for tpu_custom_call.1']
    #allocation7 [shape = 'u8[4096]{0}', space=vmem, size = 0x1000, scoped, tag = 'input window, operand 2, single buffered']
    #allocation8 [shape = 'u8[8192]{0}', space=vmem, size = 0x2000, scoped, tag = 'input window, operand 3, single buffered']
    #allocation9 [shape = 's32[1]{0}', space=sflag, size = 0x4, scoped, tag = 'scoped memory for tpu_custom_call.1']
    #allocation10 [shape = 'u8[1048576]{0}', space=vmem, size = 0x100000, scoped, tag = 'output window, operand 0, single buffered']
    %9 = vsyncpa [#allocation3], 0
    %10 = vsyncpa [#allocation6], 0
    %11 = vsyncpa [#allocation9], 0
    %12 = vsyncpa [#allocation4], 0
    // Predicated region
    $region2: #{tpu_custom_call.1} parent=1 // pred_check
      _
    $region3: #{tpu_custom_call.1} parent=1 // pred_check_branch
      %14 = sbr.rel (0) target = $region5
    $region4: #{tpu_custom_call.1} parent=1 // pred_region
      %s16 = ssub.s32 55296, 55296
      %17 = vsyncadd [#allocation3], %s16
      %s18 = sshll.u32 [#allocation2], 4
      %s19 = int_to_ptr.vmem [resolvable:$true] %s18
      %24 = dma.hbm_to_vmem [thread:$0]  %s0, 55296, %s19, [#allocation3], 128, 128, 8
    $region5: #{tpu_custom_call.1} parent=1 // pred_fallthru
      _
    // Predicated region
    $region6: #{tpu_custom_call.1} parent=1 // pred_check
      _
    $region7: #{tpu_custom_call.1} parent=1 // pred_check_branch
      %26 = sbr.rel (0) target = $region9
    $region8: #{tpu_custom_call.1} parent=1 // pred_region
      %s28 = ssub.s32 640, 640
      %29 = vsyncadd [#allocation6], %s28
      %s30 = sshll.u32 [#allocation5], 4
      %s31 = int_to_ptr.vmem [resolvable:$true] %s30
      %36 = dma.hbm_to_vmem [thread:$0]  %s1, 640, %s31, [#allocation6], 128, 128, 8
    $region9: #{tpu_custom_call.1} parent=1 // pred_fallthru
      _
    // Predicated region
    $region10: #{tpu_custom_call.1} parent=1 // pred_check
      _
    $region11: #{tpu_custom_call.1} parent=1 // pred_check_branch
      %38 = sbr.rel (0) target = $region13
    $region12: #{tpu_custom_call.1} parent=1 // pred_region
      %s40 = ssub.s32 128, 128
      %41 = vsyncadd [#allocation6], %s40
      %s43 = sshll.u32 [#allocation7], 4
      %s44 = int_to_ptr.vmem [resolvable:$true] %s43
      %46 = dma.hbm_to_vmem [thread:$0]  %s2, 128, %s44, [#allocation6]
    $region13: #{tpu_custom_call.1} parent=1 // pred_fallthru
      _
    // Predicated region
    $region14: #{tpu_custom_call.1} parent=1 // pred_check
      _
    $region15: #{tpu_custom_call.1} parent=1 // pred_check_branch
      %48 = sbr.rel (0) target = $region17
    $region16: #{tpu_custom_call.1} parent=1 // pred_region
      %s50 = ssub.s32 256, 256
      %51 = vsyncadd [#allocation9], %s50
      %s52 = sshll.u32 [#allocation8], 4
      %s53 = int_to_ptr.vmem [resolvable:$true] %s52
      %58 = dma.hbm_to_vmem [thread:$0]  %s3, 256, %s53, [#allocation9], 32, 32, 2
    $region17: #{tpu_custom_call.1} parent=1 // pred_fallthru
      _
    // Predicated region
    $region18: #{tpu_custom_call.1} parent=1 // pred_check
      _
    $region19: #{tpu_custom_call.1} parent=1 // pred_check_branch
      %60 = sbr.rel (0) target = $region21
    $region20: #{tpu_custom_call.1} parent=1 // pred_region
      %61 = dma.done [#allocation3], 55296
    $region21: #{tpu_custom_call.1} parent=1 // pred_fallthru
      _
    // Predicated region
    $region22: #{tpu_custom_call.1} parent=1 // pred_check
      _
    $region23: #{tpu_custom_call.1} parent=1 // pred_check_branch
      %63 = sbr.rel (0) target = $region25
    $region24: #{tpu_custom_call.1} parent=1 // pred_region
      %64 = dma.done [#allocation6], 640
    $region25: #{tpu_custom_call.1} parent=1 // pred_fallthru
      _
    // Predicated region
    $region26: #{tpu_custom_call.1} parent=1 // pred_check
      _
    $region27: #{tpu_custom_call.1} parent=1 // pred_check_branch
      %66 = sbr.rel (0) target = $region29
    $region28: #{tpu_custom_call.1} parent=1 // pred_region
      %67 = dma.done [#allocation6], 128
    $region29: #{tpu_custom_call.1} parent=1 // pred_fallthru
      _
    // Predicated region
    $region30: #{tpu_custom_call.1} parent=1 // pred_check
      _
    $region31: #{tpu_custom_call.1} parent=1 // pred_check_branch
      %69 = sbr.rel (0) target = $region33
    $region32: #{tpu_custom_call.1} parent=1 // pred_region
      %70 = dma.done [#allocation9], 256
    $region33: #{tpu_custom_call.1} parent=1 // pred_fallthru
      _
    %v71 = vld [vmem:[#allocation2] sm:$0xff]
    %v72 = vld [vmem:[#allocation2 + $0x8] sm:$0xff]
    %v73 = vld [vmem:[#allocation2 + $0x10] sm:$0x3]
    %v74 = vld [vmem:[#allocation2 + $0x18] sm:$0xff]
    %v75 = vld [vmem:[#allocation2 + $0x20] sm:$0xff]
    %v76 = vld [vmem:[#allocation2 + $0x28] sm:$0x3]
    %v77 = vld [vmem:[#allocation2 + $0x30] sm:$0xff]
    %v78 = vld [vmem:[#allocation2 + $0x38] sm:$0xff]
    %v79 = vld [vmem:[#allocation2 + $0x40] sm:$0x3]
    %v80 = vld [vmem:[#allocation2 + $0x48] sm:$0xff]
    %v81 = vld [vmem:[#allocation2 + $0x50] sm:$0xff]
    %v82 = vld [vmem:[#allocation2 + $0x58] sm:$0x3]
    %v83 = vld [vmem:[#allocation2 + $0x60] sm:$0xff]
    %v84 = vld [vmem:[#allocation2 + $0x68] sm:$0xff]
    %v85 = vld [vmem:[#allocation2 + $0x70] sm:$0x3]
    %v86 = vld [vmem:[#allocation2 + $0x78] sm:$0xff]
    %v87 = vld [vmem:[#allocation2 + $0x80] sm:$0xff]
    %v88 = vld [vmem:[#allocation2 + $0x88] sm:$0x3]
    %v89 = vld [vmem:[#allocation2 + $0x90] sm:$0xff]
    %v90 = vld [vmem:[#allocation2 + $0x98] sm:$0xff]
    %v91 = vld [vmem:[#allocation2 + $0xa0] sm:$0x3]
    %v92 = vld [vmem:[#allocation2 + $0xa8] sm:$0xff]
    %v93 = vld [vmem:[#allocation2 + $0xb0] sm:$0xff]
    %v94 = vld [vmem:[#allocation2 + $0xb8] sm:$0x3]
    %v95 = vld [vmem:[#allocation2 + $0xc0] sm:$0xff]
    %v96 = vld [vmem:[#allocation2 + $0xc8] sm:$0xff]
    %v97 = vld [vmem:[#allocation2 + $0xd0] sm:$0x3]
    %v98 = vld [vmem:[#allocation2 + $0xd8] sm:$0xff]
    %v99 = vld [vmem:[#allocation2 + $0xe0] sm:$0xff]
    %v100 = vld [vmem:[#allocation2 + $0xe8] sm:$0x3]
    %v101 = vld [vmem:[#allocation2 + $0xf0] sm:$0xff]
    %v102 = vld [vmem:[#allocation2 + $0xf8] sm:$0xff]
    %v103 = vld [vmem:[#allocation2 + $0x100] sm:$0x3]
    %v104 = vld [vmem:[#allocation2 + $0x108] sm:$0xff]
    %v105 = vld [vmem:[#allocation2 + $0x110] sm:$0xff]
    %v106 = vld [vmem:[#allocation2 + $0x118] sm:$0x3]
    %v107 = vld [vmem:[#allocation2 + $0x120] sm:$0xff]
    %v108 = vld [vmem:[#allocation2 + $0x128] sm:$0xff]
    %v109 = vld [vmem:[#allocation2 + $0x130] sm:$0x3]
    %v110 = vld [vmem:[#allocation2 + $0x138] sm:$0xff]
    %v111 = vld [vmem:[#allocation2 + $0x140] sm:$0xff]
    %v112 = vld [vmem:[#allocation2 + $0x148] sm:$0x3]
    %v113 = vld [vmem:[#allocation2 + $0x150] sm:$0xff]
    %v114 = vld [vmem:[#allocation2 + $0x158] sm:$0xff]
    %v115 = vld [vmem:[#allocation2 + $0x160] sm:$0x3]
    %v116 = vld [vmem:[#allocation2 + $0x168] sm:$0xff]
    %v117 = vld [vmem:[#allocation2 + $0x170] sm:$0xff]
    %v118 = vld [vmem:[#allocation2 + $0x178] sm:$0x3]
    %v119 = vld [vmem:[#allocation2 + $0x180] sm:$0xff]
    %v120 = vld [vmem:[#allocation2 + $0x188] sm:$0xff]
    %v121 = vld [vmem:[#allocation2 + $0x190] sm:$0x3]
    %v122 = vld [vmem:[#allocation2 + $0x198] sm:$0xff]
    %v123 = vld [vmem:[#allocation2 + $0x1a0] sm:$0xff]
    %v124 = vld [vmem:[#allocation2 + $0x1a8] sm:$0x3]
    %v125 = vld [vmem:[#allocation2 + $0x1b0] sm:$0xff]
    %v126 = vld [vmem:[#allocation2 + $0x1b8] sm:$0xff]
    %v127 = vld [vmem:[#allocation2 + $0x1c0] sm:$0x3]
    %v128 = vld [vmem:[#allocation2 + $0x1c8] sm:$0xff]
    %v129 = vld [vmem:[#allocation2 + $0x1d0] sm:$0xff]
    %v130 = vld [vmem:[#allocation2 + $0x1d8] sm:$0x3]
    %v131 = vld [vmem:[#allocation2 + $0x1e0] sm:$0xff]
    %v132 = vld [vmem:[#allocation2 + $0x1e8] sm:$0xff]
    %v133 = vld [vmem:[#allocation2 + $0x1f0] sm:$0x3]
    %v134 = vld [vmem:[#allocation2 + $0x1f8] sm:$0xff]
    %v135 = vld [vmem:[#allocation2 + $0x200] sm:$0xff]
    %v136 = vld [vmem:[#allocation2 + $0x208] sm:$0x3]
    %v137 = vld [vmem:[#allocation2 + $0x210] sm:$0xff]
    %v138 = vld [vmem:[#allocation2 + $0x218] sm:$0xff]
    %v139 = vld [vmem:[#allocation2 + $0x220] sm:$0x3]
    %v140 = vld [vmem:[#allocation2 + $0x228] sm:$0xff]
    %v141 = vld [vmem:[#allocation2 + $0x230] sm:$0xff]
    %v142 = vld [vmem:[#allocation2 + $0x238] sm:$0x3]
    %v143 = vld [vmem:[#allocation2 + $0x240] sm:$0xff]
    %v144 = vld [vmem:[#allocation2 + $0x248] sm:$0xff]
    %v145 = vld [vmem:[#allocation2 + $0x250] sm:$0x3]
    %v146 = vld [vmem:[#allocation2 + $0x258] sm:$0xff]
    %v147 = vld [vmem:[#allocation2 + $0x260] sm:$0xff]
    %v148 = vld [vmem:[#allocation2 + $0x268] sm:$0x3]
    %v149 = vld [vmem:[#allocation2 + $0x270] sm:$0xff]
    %v150 = vld [vmem:[#allocation2 + $0x278] sm:$0xff]
    %v151 = vld [vmem:[#allocation2 + $0x280] sm:$0x3]
    %v152 = vld [vmem:[#allocation2 + $0x288] sm:$0xff]
    %v153 = vld [vmem:[#allocation2 + $0x290] sm:$0xff]
    %v154 = vld [vmem:[#allocation2 + $0x298] sm:$0x3]
    %v155 = vld [vmem:[#allocation2 + $0x2a0] sm:$0xff]
    %v156 = vld [vmem:[#allocation2 + $0x2a8] sm:$0xff]
    %v157 = vld [vmem:[#allocation2 + $0x2b0] sm:$0x3]
    %v158 = vld [vmem:[#allocation2 + $0x2b8] sm:$0xff]
    %v159 = vld [vmem:[#allocation2 + $0x2c0] sm:$0xff]
    %v160 = vld [vmem:[#allocation2 + $0x2c8] sm:$0x3]
    %v161 = vld [vmem:[#allocation2 + $0x2d0] sm:$0xff]
    %v162 = vld [vmem:[#allocation2 + $0x2d8] sm:$0xff]
    %v163 = vld [vmem:[#allocation2 + $0x2e0] sm:$0x3]
    %v164 = vld [vmem:[#allocation2 + $0x2e8] sm:$0xff]
    %v165 = vld [vmem:[#allocation2 + $0x2f0] sm:$0xff]
    %v166 = vld [vmem:[#allocation2 + $0x2f8] sm:$0x3]
    %v167 = vld [vmem:[#allocation2 + $0x300] sm:$0xff]
    %v168 = vld [vmem:[#allocation2 + $0x308] sm:$0xff]
    %v169 = vld [vmem:[#allocation2 + $0x310] sm:$0x3]
    %v170 = vld [vmem:[#allocation2 + $0x318] sm:$0xff]
    %v171 = vld [vmem:[#allocation2 + $0x320] sm:$0xff]
    %v172 = vld [vmem:[#allocation2 + $0x328] sm:$0x3]
    %v173 = vld [vmem:[#allocation2 + $0x330] sm:$0xff]
    %v174 = vld [vmem:[#allocation2 + $0x338] sm:$0xff]
    %v175 = vld [vmem:[#allocation2 + $0x340] sm:$0x3]
    %v176 = vld [vmem:[#allocation2 + $0x348] sm:$0xff]
    %v177 = vld [vmem:[#allocation2 + $0x350] sm:$0xff]
    %v178 = vld [vmem:[#allocation2 + $0x358] sm:$0x3]
    %v179 = vld [vmem:[#allocation2 + $0x360] sm:$0xff]
    %v180 = vld [vmem:[#allocation2 + $0x368] sm:$0xff]
    %v181 = vld [vmem:[#allocation2 + $0x370] sm:$0x3]
    %v182 = vld [vmem:[#allocation2 + $0x378] sm:$0xff]
    %v183 = vld [vmem:[#allocation2 + $0x380] sm:$0xff]
    %v184 = vld [vmem:[#allocation2 + $0x388] sm:$0x3]
    %v185 = vld [vmem:[#allocation2 + $0x390] sm:$0xff]
    %v186 = vld [vmem:[#allocation2 + $0x398] sm:$0xff]
    %v187 = vld [vmem:[#allocation2 + $0x3a0] sm:$0x3]
    %v188 = vld [vmem:[#allocation2 + $0x3a8] sm:$0xff]
    %v189 = vld [vmem:[#allocation2 + $0x3b0] sm:$0xff]
    %v190 = vld [vmem:[#allocation2 + $0x3b8] sm:$0x3]
    %v191 = vld [vmem:[#allocation2 + $0x3c0] sm:$0xff]
    %v192 = vld [vmem:[#allocation2 + $0x3c8] sm:$0xff]
    %v193 = vld [vmem:[#allocation2 + $0x3d0] sm:$0x3]
    %v194 = vld [vmem:[#allocation2 + $0x3d8] sm:$0xff]
    %v195 = vld [vmem:[#allocation2 + $0x3e0] sm:$0xff]
    %v196 = vld [vmem:[#allocation2 + $0x3e8] sm:$0x3]
    %v197 = vld [vmem:[#allocation2 + $0x3f0] sm:$0xff]
    %v198 = vld [vmem:[#allocation2 + $0x3f8] sm:$0xff]
    %v199 = vld [vmem:[#allocation2 + $0x400] sm:$0x3]
    %v200 = vld [vmem:[#allocation2 + $0x408] sm:$0xff]
    %v201 = vld [vmem:[#allocation2 + $0x410] sm:$0xff]
    %v202 = vld [vmem:[#allocation2 + $0x418] sm:$0x3]
    %v203 = vld [vmem:[#allocation2 + $0x420] sm:$0xff]
    %v204 = vld [vmem:[#allocation2 + $0x428] sm:$0xff]
    %v205 = vld [vmem:[#allocation2 + $0x430] sm:$0x3]
    %v206 = vld [vmem:[#allocation2 + $0x438] sm:$0xff]
    %v207 = vld [vmem:[#allocation2 + $0x440] sm:$0xff]
    %v208 = vld [vmem:[#allocation2 + $0x448] sm:$0x3]
    %v209 = vld [vmem:[#allocation2 + $0x450] sm:$0xff]
    %v210 = vld [vmem:[#allocation2 + $0x458] sm:$0xff]
    %v211 = vld [vmem:[#allocation2 + $0x460] sm:$0x3]
    %v212 = vld [vmem:[#allocation2 + $0x468] sm:$0xff]
    %v213 = vld [vmem:[#allocation2 + $0x470] sm:$0xff]
    %v214 = vld [vmem:[#allocation2 + $0x478] sm:$0x3]
    %v215 = vld [vmem:[#allocation2 + $0x480] sm:$0xff]
    %v216 = vld [vmem:[#allocation2 + $0x488] sm:$0xff]
    %v217 = vld [vmem:[#allocation2 + $0x490] sm:$0x3]
    %v218 = vld [vmem:[#allocation2 + $0x498] sm:$0xff]
    %v219 = vld [vmem:[#allocation2 + $0x4a0] sm:$0xff]
    %v220 = vld [vmem:[#allocation2 + $0x4a8] sm:$0x3]
    %v221 = vld [vmem:[#allocation2 + $0x4b0] sm:$0xff]
    %v222 = vld [vmem:[#allocation2 + $0x4b8] sm:$0xff]
    %v223 = vld [vmem:[#allocation2 + $0x4c0] sm:$0x3]
    %v224 = vld [vmem:[#allocation2 + $0x4c8] sm:$0xff]
    %v225 = vld [vmem:[#allocation2 + $0x4d0] sm:$0xff]
    %v226 = vld [vmem:[#allocation2 + $0x4d8] sm:$0x3]
    %v227 = vld [vmem:[#allocation2 + $0x4e0] sm:$0xff]
    %v228 = vld [vmem:[#allocation2 + $0x4e8] sm:$0xff]
    %v229 = vld [vmem:[#allocation2 + $0x4f0] sm:$0x3]
    %v230 = vld [vmem:[#allocation2 + $0x4f8] sm:$0xff]
    %v231 = vld [vmem:[#allocation2 + $0x500] sm:$0xff]
    %v232 = vld [vmem:[#allocation2 + $0x508] sm:$0x3]
    %v233 = vld [vmem:[#allocation2 + $0x510] sm:$0xff]
    %v234 = vld [vmem:[#allocation2 + $0x518] sm:$0xff]
    %v235 = vld [vmem:[#allocation2 + $0x520] sm:$0x3]
    %v236 = vld [vmem:[#allocation2 + $0x528] sm:$0xff]
    %v237 = vld [vmem:[#allocation2 + $0x530] sm:$0xff]
    %v238 = vld [vmem:[#allocation2 + $0x538] sm:$0x3]
    %v239 = vld [vmem:[#allocation2 + $0x540] sm:$0xff]
    %v240 = vld [vmem:[#allocation2 + $0x548] sm:$0xff]
    %v241 = vld [vmem:[#allocation2 + $0x550] sm:$0x3]
    %v242 = vld [vmem:[#allocation2 + $0x558] sm:$0xff]
    %v243 = vld [vmem:[#allocation2 + $0x560] sm:$0xff]
    %v244 = vld [vmem:[#allocation2 + $0x568] sm:$0x3]
    %v245 = vld [vmem:[#allocation2 + $0x570] sm:$0xff]
    %v246 = vld [vmem:[#allocation2 + $0x578] sm:$0xff]
    %v247 = vld [vmem:[#allocation2 + $0x580] sm:$0x3]
    %v248 = vld [vmem:[#allocation2 + $0x588] sm:$0xff]
    %v249 = vld [vmem:[#allocation2 + $0x590] sm:$0xff]
    %v250 = vld [vmem:[#allocation2 + $0x598] sm:$0x3]
    %v251 = vld [vmem:[#allocation2 + $0x5a0] sm:$0xff]
    %v252 = vld [vmem:[#allocation2 + $0x5a8] sm:$0xff]
    %v253 = vld [vmem:[#allocation2 + $0x5b0] sm:$0x3]
    %v254 = vld [vmem:[#allocation2 + $0x5b8] sm:$0xff]
    %v255 = vld [vmem:[#allocation2 + $0x5c0] sm:$0xff]
    %v256 = vld [vmem:[#allocation2 + $0x5c8] sm:$0x3]
    %v257 = vld [vmem:[#allocation2 + $0x5d0] sm:$0xff]
    %v258 = vld [vmem:[#allocation2 + $0x5d8] sm:$0xff]
    %v259 = vld [vmem:[#allocation2 + $0x5e0] sm:$0x3]
    %v260 = vld [vmem:[#allocation2 + $0x5e8] sm:$0xff]
    %v261 = vld [vmem:[#allocation2 + $0x5f0] sm:$0xff]
    %v262 = vld [vmem:[#allocation2 + $0x5f8] sm:$0x3]
    %v263 = vld [vmem:[#allocation2 + $0x600] sm:$0xff]
    %v264 = vld [vmem:[#allocation2 + $0x608] sm:$0xff]
    %v265 = vld [vmem:[#allocation2 + $0x610] sm:$0x3]
    %v266 = vld [vmem:[#allocation2 + $0x618] sm:$0xff]
    %v267 = vld [vmem:[#allocation2 + $0x620] sm:$0xff]
    %v268 = vld [vmem:[#allocation2 + $0x628] sm:$0x3]
    %v269 = vld [vmem:[#allocation2 + $0x630] sm:$0xff]
    %v270 = vld [vmem:[#allocation2 + $0x638] sm:$0xff]
    %v271 = vld [vmem:[#allocation2 + $0x640] sm:$0x3]
    %v272 = vld [vmem:[#allocation2 + $0x648] sm:$0xff]
    %v273 = vld [vmem:[#allocation2 + $0x650] sm:$0xff]
    %v274 = vld [vmem:[#allocation2 + $0x658] sm:$0x3]
    %v275 = vld [vmem:[#allocation2 + $0x660] sm:$0xff]
    %v276 = vld [vmem:[#allocation2 + $0x668] sm:$0xff]
    %v277 = vld [vmem:[#allocation2 + $0x670] sm:$0x3]
    %v278 = vld [vmem:[#allocation2 + $0x678] sm:$0xff]
    %v279 = vld [vmem:[#allocation2 + $0x680] sm:$0xff]
    %v280 = vld [vmem:[#allocation2 + $0x688] sm:$0x3]
    %v281 = vld [vmem:[#allocation2 + $0x690] sm:$0xff]
    %v282 = vld [vmem:[#allocation2 + $0x698] sm:$0xff]
    %v283 = vld [vmem:[#allocation2 + $0x6a0] sm:$0x3]
    %v284 = vld [vmem:[#allocation2 + $0x6a8] sm:$0xff]
    %v285 = vld [vmem:[#allocation2 + $0x6b0] sm:$0xff]
    %v286 = vld [vmem:[#allocation2 + $0x6b8] sm:$0x3]
    %v287 = vld [vmem:[#allocation2 + $0x6c0] sm:$0xff]
    %v288 = vld [vmem:[#allocation2 + $0x6c8] sm:$0xff]
    %v289 = vld [vmem:[#allocation2 + $0x6d0] sm:$0x3]
    %v290 = vld [vmem:[#allocation2 + $0x6d8] sm:$0xff]
    %v291 = vld [vmem:[#allocation2 + $0x6e0] sm:$0xff]
    %v292 = vld [vmem:[#allocation2 + $0x6e8] sm:$0x3]
    %v293 = vld [vmem:[#allocation2 + $0x6f0] sm:$0xff]
    %v294 = vld [vmem:[#allocation2 + $0x6f8] sm:$0xff]
    %v295 = vld [vmem:[#allocation2 + $0x700] sm:$0x3]
    %v296 = vld [vmem:[#allocation2 + $0x708] sm:$0xff]
    %v297 = vld [vmem:[#allocation2 + $0x710] sm:$0xff]
    %v298 = vld [vmem:[#allocation2 + $0x718] sm:$0x3]
    %v299 = vld [vmem:[#allocation2 + $0x720] sm:$0xff]
    %v300 = vld [vmem:[#allocation2 + $0x728] sm:$0xff]
    %v301 = vld [vmem:[#allocation2 + $0x730] sm:$0x3]
    %v302 = vld [vmem:[#allocation2 + $0x738] sm:$0xff]
    %v303 = vld [vmem:[#allocation2 + $0x740] sm:$0xff]
    %v304 = vld [vmem:[#allocation2 + $0x748] sm:$0x3]
    %v305 = vld [vmem:[#allocation2 + $0x750] sm:$0xff]
    %v306 = vld [vmem:[#allocation2 + $0x758] sm:$0xff]
    %v307 = vld [vmem:[#allocation2 + $0x760] sm:$0x3]
    %v308 = vld [vmem:[#allocation2 + $0x768] sm:$0xff]
    %v309 = vld [vmem:[#allocation2 + $0x770] sm:$0xff]
    %v310 = vld [vmem:[#allocation2 + $0x778] sm:$0x3]
    %v311 = vld [vmem:[#allocation2 + $0x780] sm:$0xff]
    %v312 = vld [vmem:[#allocation2 + $0x788] sm:$0xff]
    %v313 = vld [vmem:[#allocation2 + $0x790] sm:$0x3]
    %v314 = vld [vmem:[#allocation2 + $0x798] sm:$0xff]
    %v315 = vld [vmem:[#allocation2 + $0x7a0] sm:$0xff]
    %v316 = vld [vmem:[#allocation2 + $0x7a8] sm:$0x3]
    %v317 = vld [vmem:[#allocation2 + $0x7b0] sm:$0xff]
    %v318 = vld [vmem:[#allocation2 + $0x7b8] sm:$0xff]
    %v319 = vld [vmem:[#allocation2 + $0x7c0] sm:$0x3]
    %v320 = vld [vmem:[#allocation2 + $0x7c8] sm:$0xff]
    %v321 = vld [vmem:[#allocation2 + $0x7d0] sm:$0xff]
    %v322 = vld [vmem:[#allocation2 + $0x7d8] sm:$0x3]
    %v323 = vld [vmem:[#allocation2 + $0x7e0] sm:$0xff]
    %v324 = vld [vmem:[#allocation2 + $0x7e8] sm:$0xff]
    %v325 = vld [vmem:[#allocation2 + $0x7f0] sm:$0x3]
    %v326 = vld [vmem:[#allocation2 + $0x7f8] sm:$0xff]
    %v327 = vld [vmem:[#allocation2 + $0x800] sm:$0xff]
    %v328 = vld [vmem:[#allocation2 + $0x808] sm:$0x3]
    %v329 = vld [vmem:[#allocation2 + $0x810] sm:$0xff]
    %v330 = vld [vmem:[#allocation2 + $0x818] sm:$0xff]
    %v331 = vld [vmem:[#allocation2 + $0x820] sm:$0x3]
    %v332 = vld [vmem:[#allocation2 + $0x828] sm:$0xff]
    %v333 = vld [vmem:[#allocation2 + $0x830] sm:$0xff]
    %v334 = vld [vmem:[#allocation2 + $0x838] sm:$0x3]
    %v335 = vld [vmem:[#allocation2 + $0x840] sm:$0xff]
    %v336 = vld [vmem:[#allocation2 + $0x848] sm:$0xff]
    %v337 = vld [vmem:[#allocation2 + $0x850] sm:$0x3]
    %v338 = vld [vmem:[#allocation2 + $0x858] sm:$0xff]
    %v339 = vld [vmem:[#allocation2 + $0x860] sm:$0xff]
    %v340 = vld [vmem:[#allocation2 + $0x868] sm:$0x3]
    %v341 = vld [vmem:[#allocation2 + $0x870] sm:$0xff]
    %v342 = vld [vmem:[#allocation2 + $0x878] sm:$0xff]
    %v343 = vld [vmem:[#allocation2 + $0x880] sm:$0x3]
    %v344 = vld [vmem:[#allocation2 + $0x888] sm:$0xff]
    %v345 = vld [vmem:[#allocation2 + $0x890] sm:$0xff]
    %v346 = vld [vmem:[#allocation2 + $0x898] sm:$0x3]
    %v347 = vld [vmem:[#allocation2 + $0x8a0] sm:$0xff]
    %v348 = vld [vmem:[#allocation2 + $0x8a8] sm:$0xff]
    %v349 = vld [vmem:[#allocation2 + $0x8b0] sm:$0x3]
    %v350 = vld [vmem:[#allocation2 + $0x8b8] sm:$0xff]
    %v351 = vld [vmem:[#allocation2 + $0x8c0] sm:$0xff]
    %v352 = vld [vmem:[#allocation2 + $0x8c8] sm:$0x3]
    %v353 = vld [vmem:[#allocation2 + $0x8d0] sm:$0xff]
    %v354 = vld [vmem:[#allocation2 + $0x8d8] sm:$0xff]
    %v355 = vld [vmem:[#allocation2 + $0x8e0] sm:$0x3]
    %v356 = vld [vmem:[#allocation2 + $0x8e8] sm:$0xff]
    %v357 = vld [vmem:[#allocation2 + $0x8f0] sm:$0xff]
    %v358 = vld [vmem:[#allocation2 + $0x8f8] sm:$0x3]
    %v359 = vld [vmem:[#allocation2 + $0x900] sm:$0xff]
    %v360 = vld [vmem:[#allocation2 + $0x908] sm:$0xff]
    %v361 = vld [vmem:[#allocation2 + $0x910] sm:$0x3]
    %v362 = vld [vmem:[#allocation2 + $0x918] sm:$0xff]
    %v363 = vld [vmem:[#allocation2 + $0x920] sm:$0xff]
    %v364 = vld [vmem:[#allocation2 + $0x928] sm:$0x3]
    %v365 = vld [vmem:[#allocation2 + $0x930] sm:$0xff]
    %v366 = vld [vmem:[#allocation2 + $0x938] sm:$0xff]
    %v367 = vld [vmem:[#allocation2 + $0x940] sm:$0x3]
    %v368 = vld [vmem:[#allocation2 + $0x948] sm:$0xff]
    %v369 = vld [vmem:[#allocation2 + $0x950] sm:$0xff]
    %v370 = vld [vmem:[#allocation2 + $0x958] sm:$0x3]
    %v371 = vld [vmem:[#allocation2 + $0x960] sm:$0xff]
    %v372 = vld [vmem:[#allocation2 + $0x968] sm:$0xff]
    %v373 = vld [vmem:[#allocation2 + $0x970] sm:$0x3]
    %v374 = vld [vmem:[#allocation2 + $0x978] sm:$0xff]
    %v375 = vld [vmem:[#allocation2 + $0x980] sm:$0xff]
    %v376 = vld [vmem:[#allocation2 + $0x988] sm:$0x3]
    %v377 = vld [vmem:[#allocation2 + $0x990] sm:$0xff]
    %v378 = vld [vmem:[#allocation2 + $0x998] sm:$0xff]
    %v379 = vld [vmem:[#allocation2 + $0x9a0] sm:$0x3]
    %v380 = vld [vmem:[#allocation2 + $0x9a8] sm:$0xff]
    %v381 = vld [vmem:[#allocation2 + $0x9b0] sm:$0xff]
    %v382 = vld [vmem:[#allocation2 + $0x9b8] sm:$0x3]
    %v383 = vld [vmem:[#allocation2 + $0x9c0] sm:$0xff]
    %v384 = vld [vmem:[#allocation2 + $0x9c8] sm:$0xff]
    %v385 = vld [vmem:[#allocation2 + $0x9d0] sm:$0x3]
    %v386 = vld [vmem:[#allocation2 + $0x9d8] sm:$0xff]
    %v387 = vld [vmem:[#allocation2 + $0x9e0] sm:$0xff]
    %v388 = vld [vmem:[#allocation2 + $0x9e8] sm:$0x3]
    %v389 = vld [vmem:[#allocation2 + $0x9f0] sm:$0xff]
    %v390 = vld [vmem:[#allocation2 + $0x9f8] sm:$0xff]
    %v391 = vld [vmem:[#allocation2 + $0xa00] sm:$0x3]
    %v392 = vld [vmem:[#allocation2 + $0xa08] sm:$0xff]
    %v393 = vld [vmem:[#allocation2 + $0xa10] sm:$0xff]
    %v394 = vld [vmem:[#allocation2 + $0xa18] sm:$0x3]
    %v395 = vld [vmem:[#allocation2 + $0xa20] sm:$0xff]
    %v396 = vld [vmem:[#allocation2 + $0xa28] sm:$0xff]
    %v397 = vld [vmem:[#allocation2 + $0xa30] sm:$0x3]
    %v398 = vld [vmem:[#allocation2 + $0xa38] sm:$0xff]
    %v399 = vld [vmem:[#allocation2 + $0xa40] sm:$0xff]
    %v400 = vld [vmem:[#allocation2 + $0xa48] sm:$0x3]
    %v401 = vld [vmem:[#allocation2 + $0xa50] sm:$0xff]
    %v402 = vld [vmem:[#allocation2 + $0xa58] sm:$0xff]
    %v403 = vld [vmem:[#allocation2 + $0xa60] sm:$0x3]
    %v404 = vld [vmem:[#allocation2 + $0xa68] sm:$0xff]
    %v405 = vld [vmem:[#allocation2 + $0xa70] sm:$0xff]
    %v406 = vld [vmem:[#allocation2 + $0xa78] sm:$0x3]
    %v407 = vld [vmem:[#allocation2 + $0xa80] sm:$0xff]
    %v408 = vld [vmem:[#allocation2 + $0xa88] sm:$0xff]
    %v409 = vld [vmem:[#allocation2 + $0xa90] sm:$0x3]
    %v410 = vld [vmem:[#allocation2 + $0xa98] sm:$0xff]
    %v411 = vld [vmem:[#allocation2 + $0xaa0] sm:$0xff]
    %v412 = vld [vmem:[#allocation2 + $0xaa8] sm:$0x3]
    %v413 = vld [vmem:[#allocation2 + $0xab0] sm:$0xff]
    %v414 = vld [vmem:[#allocation2 + $0xab8] sm:$0xff]
    %v415 = vld [vmem:[#allocation2 + $0xac0] sm:$0x3]
    %v416 = vld [vmem:[#allocation2 + $0xac8] sm:$0xff]
    %v417 = vld [vmem:[#allocation2 + $0xad0] sm:$0xff]
    %v418 = vld [vmem:[#allocation2 + $0xad8] sm:$0x3]
    %v419 = vld [vmem:[#allocation2 + $0xae0] sm:$0xff]
    %v420 = vld [vmem:[#allocation2 + $0xae8] sm:$0xff]
    %v421 = vld [vmem:[#allocation2 + $0xaf0] sm:$0x3]
    %v422 = vld [vmem:[#allocation2 + $0xaf8] sm:$0xff]
    %v423 = vld [vmem:[#allocation2 + $0xb00] sm:$0xff]
    %v424 = vld [vmem:[#allocation2 + $0xb08] sm:$0x3]
    %v425 = vld [vmem:[#allocation2 + $0xb10] sm:$0xff]
    %v426 = vld [vmem:[#allocation2 + $0xb18] sm:$0xff]
    %v427 = vld [vmem:[#allocation2 + $0xb20] sm:$0x3]
    %v428 = vld [vmem:[#allocation2 + $0xb28] sm:$0xff]
    %v429 = vld [vmem:[#allocation2 + $0xb30] sm:$0xff]
    %v430 = vld [vmem:[#allocation2 + $0xb38] sm:$0x3]
    %v431 = vld [vmem:[#allocation2 + $0xb40] sm:$0xff]
    %v432 = vld [vmem:[#allocation2 + $0xb48] sm:$0xff]
    %v433 = vld [vmem:[#allocation2 + $0xb50] sm:$0x3]
    %v434 = vld [vmem:[#allocation2 + $0xb58] sm:$0xff]
    %v435 = vld [vmem:[#allocation2 + $0xb60] sm:$0xff]
    %v436 = vld [vmem:[#allocation2 + $0xb68] sm:$0x3]
    %v437 = vld [vmem:[#allocation2 + $0xb70] sm:$0xff]
    %v438 = vld [vmem:[#allocation2 + $0xb78] sm:$0xff]
    %v439 = vld [vmem:[#allocation2 + $0xb80] sm:$0x3]
    %v440 = vld [vmem:[#allocation2 + $0xb88] sm:$0xff]
    %v441 = vld [vmem:[#allocation2 + $0xb90] sm:$0xff]
    %v442 = vld [vmem:[#allocation2 + $0xb98] sm:$0x3]
    %v443 = vld [vmem:[#allocation2 + $0xba0] sm:$0xff]
    %v444 = vld [vmem:[#allocation2 + $0xba8] sm:$0xff]
    %v445 = vld [vmem:[#allocation2 + $0xbb0] sm:$0x3]
    %v446 = vld [vmem:[#allocation2 + $0xbb8] sm:$0xff]
    %v447 = vld [vmem:[#allocation2 + $0xbc0] sm:$0xff]
    %v448 = vld [vmem:[#allocation2 + $0xbc8] sm:$0x3]
    %v449 = vld [vmem:[#allocation2 + $0xbd0] sm:$0xff]
    %v450 = vld [vmem:[#allocation2 + $0xbd8] sm:$0xff]
    %v451 = vld [vmem:[#allocation2 + $0xbe0] sm:$0x3]
    %v452 = vld [vmem:[#allocation2 + $0xbe8] sm:$0xff]
    %v453 = vld [vmem:[#allocation2 + $0xbf0] sm:$0xff]
    %v454 = vld [vmem:[#allocation2 + $0xbf8] sm:$0x3]
    %v455 = vld [vmem:[#allocation2 + $0xc00] sm:$0xff]
    %v456 = vld [vmem:[#allocation2 + $0xc08] sm:$0xff]
    %v457 = vld [vmem:[#allocation2 + $0xc10] sm:$0x3]
    %v458 = vld [vmem:[#allocation2 + $0xc18] sm:$0xff]
    %v459 = vld [vmem:[#allocation2 + $0xc20] sm:$0xff]
    %v460 = vld [vmem:[#allocation2 + $0xc28] sm:$0x3]
    %v461 = vld [vmem:[#allocation2 + $0xc30] sm:$0xff]
    %v462 = vld [vmem:[#allocation2 + $0xc38] sm:$0xff]
    %v463 = vld [vmem:[#allocation2 + $0xc40] sm:$0x3]
    %v464 = vld [vmem:[#allocation2 + $0xc48] sm:$0xff]
    %v465 = vld [vmem:[#allocation2 + $0xc50] sm:$0xff]
    %v466 = vld [vmem:[#allocation2 + $0xc58] sm:$0x3]
    %v467 = vld [vmem:[#allocation2 + $0xc60] sm:$0xff]
    %v468 = vld [vmem:[#allocation2 + $0xc68] sm:$0xff]
    %v469 = vld [vmem:[#allocation2 + $0xc70] sm:$0x3]
    %v470 = vld [vmem:[#allocation2 + $0xc78] sm:$0xff]
    %v471 = vld [vmem:[#allocation2 + $0xc80] sm:$0xff]
    %v472 = vld [vmem:[#allocation2 + $0xc88] sm:$0x3]
    %v473 = vld [vmem:[#allocation2 + $0xc90] sm:$0xff]
    %v474 = vld [vmem:[#allocation2 + $0xc98] sm:$0xff]
    %v475 = vld [vmem:[#allocation2 + $0xca0] sm:$0x3]
    %v476 = vld [vmem:[#allocation2 + $0xca8] sm:$0xff]
    %v477 = vld [vmem:[#allocation2 + $0xcb0] sm:$0xff]
    %v478 = vld [vmem:[#allocation2 + $0xcb8] sm:$0x3]
    %v479 = vld [vmem:[#allocation2 + $0xcc0] sm:$0xff]
    %v480 = vld [vmem:[#allocation2 + $0xcc8] sm:$0xff]
    %v481 = vld [vmem:[#allocation2 + $0xcd0] sm:$0x3]
    %v482 = vld [vmem:[#allocation2 + $0xcd8] sm:$0xff]
    %v483 = vld [vmem:[#allocation2 + $0xce0] sm:$0xff]
    %v484 = vld [vmem:[#allocation2 + $0xce8] sm:$0x3]
    %v485 = vld [vmem:[#allocation2 + $0xcf0] sm:$0xff]
    %v486 = vld [vmem:[#allocation2 + $0xcf8] sm:$0xff]
    %v487 = vld [vmem:[#allocation2 + $0xd00] sm:$0x3]
    %v488 = vld [vmem:[#allocation2 + $0xd08] sm:$0xff]
    %v489 = vld [vmem:[#allocation2 + $0xd10] sm:$0xff]
    %v490 = vld [vmem:[#allocation2 + $0xd18] sm:$0x3]
    %v491 = vld [vmem:[#allocation2 + $0xd20] sm:$0xff]
    %v492 = vld [vmem:[#allocation2 + $0xd28] sm:$0xff]
    %v493 = vld [vmem:[#allocation2 + $0xd30] sm:$0x3]
    %v494 = vld [vmem:[#allocation2 + $0xd38] sm:$0xff]
    %v495 = vld [vmem:[#allocation2 + $0xd40] sm:$0xff]
    %v496 = vld [vmem:[#allocation2 + $0xd48] sm:$0x3]
    %v497 = vld [vmem:[#allocation2 + $0xd50] sm:$0xff]
    %v498 = vld [vmem:[#allocation2 + $0xd58] sm:$0xff]
    %v499 = vld [vmem:[#allocation2 + $0xd60] sm:$0x3]
    %v500 = vld [vmem:[#allocation2 + $0xd68] sm:$0xff]
    %v501 = vld [vmem:[#allocation2 + $0xd70] sm:$0xff]
    %v502 = vld [vmem:[#allocation2 + $0xd78] sm:$0x3]
    %v503 = vld [vmem:[#allocation7] sm:$0xff]
    %v505 = vcombine.high %v503, %v503
    %v507 = vunpack.c.l.s4 1966171168
    %v508 = vunpack.c.0.s8 %v507
    %v509 = vlaneseq
    %v510 = vshrl.u32 %v509, 7
    %v511 = vsub.s32 %v508, %v510
    %v512 = vrot.slane %v503, %v511
    %v514 = vunpack.c.l.s4 1966171168
    %v515 = vunpack.c.0.s8 %v514
    %v516 = vlaneseq
    %v517 = vshrl.u32 %v516, 7
    %v518 = vsub.s32 %v515, %v517
    %v519 = vrot.slane %v505, %v518
    %v520 = vcombine.high %v512, %v512
    %v521 = vcombine.high %v519, %v519
    %v523 = vunpack.c.l.s4 1966171168
    %v524 = vunpack.c.0.s8 %v523
    %v525 = vlaneseq
    %v526 = vshrl.u32 %v525, 7
    %v527 = vsub.s32 %v524, %v526
    %v528 = vrot.slane %v512, %v527
    %v530 = vunpack.c.l.s4 1966171168
    %v531 = vunpack.c.0.s8 %v530
    %v532 = vlaneseq
    %v533 = vshrl.u32 %v532, 7
    %v534 = vsub.s32 %v531, %v533
    %v535 = vrot.slane %v519, %v534
    %v537 = vunpack.c.l.s4 1966171168
    %v538 = vunpack.c.0.s8 %v537
    %v539 = vlaneseq
    %v540 = vshrl.u32 %v539, 7
    %v541 = vsub.s32 %v538, %v540
    %v542 = vrot.slane %v520, %v541
    %v544 = vunpack.c.l.s4 1966171168
    %v545 = vunpack.c.0.s8 %v544
    %v546 = vlaneseq
    %v547 = vshrl.u32 %v546, 7
    %v548 = vsub.s32 %v545, %v547
    %v549 = vrot.slane %v521, %v548
    %v550 = vcombine.high %v528, %v528
    %v551 = vcombine.high %v535, %v535
    %v552 = vcombine.high %v542, %v542
    %v553 = vcombine.high %v549, %v549
    %v554 = vlaneseq
    %v555 = vshrl.u32 %v554, 7
    %v556 = vsub.s32 0, %v555
    %v557 = vrot.slane %v528, %v556
    %v558 = vlaneseq
    %v559 = vshrl.u32 %v558, 7
    %v560 = vsub.s32 0, %v559
    %v561 = vrot.slane %v542, %v560
    %v562 = vlaneseq
    %v563 = vshrl.u32 %v562, 7
    %v564 = vsub.s32 0, %v563
    %v565 = vrot.slane %v550, %v564
    %v566 = vlaneseq
    %v567 = vshrl.u32 %v566, 7
    %v568 = vsub.s32 0, %v567
    %v569 = vrot.slane %v552, %v568
    %v570 = vlaneseq
    %v571 = vshrl.u32 %v570, 7
    %v572 = vsub.s32 0, %v571
    %v573 = vrot.slane %v535, %v572
    %v574 = vlaneseq
    %v575 = vshrl.u32 %v574, 7
    %v576 = vsub.s32 0, %v575
    %v577 = vrot.slane %v549, %v576
    %v578 = vlaneseq
    %v579 = vshrl.u32 %v578, 7
    %v580 = vsub.s32 0, %v579
    %v581 = vrot.slane %v551, %v580
    %v582 = vlaneseq
    %v583 = vshrl.u32 %v582, 7
    %v584 = vsub.s32 0, %v583
    %v585 = vrot.slane %v553, %v584
    %v594 = vmul.f32 %v71, %v557
    %v595 = vmul.f32 %v72, %v557
    %v596 = vmul.f32 %v73, %v557
    %v597 = vmul.f32 %v74, %v557
    %v598 = vmul.f32 %v75, %v557
    %v599 = vmul.f32 %v76, %v557
    %v600 = vmul.f32 %v77, %v557
    %v601 = vmul.f32 %v78, %v557
    %v602 = vmul.f32 %v79, %v557
    %v603 = vmul.f32 %v80, %v557
    %v604 = vmul.f32 %v81, %v557
    %v605 = vmul.f32 %v82, %v557
    %v606 = vmul.f32 %v83, %v557
    %v607 = vmul.f32 %v84, %v557
    %v608 = vmul.f32 %v85, %v557
    %v609 = vmul.f32 %v86, %v557
    %v610 = vmul.f32 %v87, %v557
    %v611 = vmul.f32 %v88, %v557
    %v612 = vmul.f32 %v89, %v557
    %v613 = vmul.f32 %v90, %v557
    %v614 = vmul.f32 %v91, %v557
    %v615 = vmul.f32 %v92, %v557
    %v616 = vmul.f32 %v93, %v557
    %v617 = vmul.f32 %v94, %v557
    %v618 = vmul.f32 %v95, %v557
    %v619 = vmul.f32 %v96, %v557
    %v620 = vmul.f32 %v97, %v557
    %v621 = vmul.f32 %v98, %v557
    %v622 = vmul.f32 %v99, %v557
    %v623 = vmul.f32 %v100, %v557
    %v624 = vmul.f32 %v101, %v557
    %v625 = vmul.f32 %v102, %v557
    %v626 = vmul.f32 %v103, %v557
    %v627 = vmul.f32 %v104, %v557
    %v628 = vmul.f32 %v105, %v557
    %v629 = vmul.f32 %v106, %v557
    %v630 = vmul.f32 %v107, %v557
    %v631 = vmul.f32 %v108, %v557
    %v632 = vmul.f32 %v109, %v557
    %v633 = vmul.f32 %v110, %v557
    %v634 = vmul.f32 %v111, %v557
    %v635 = vmul.f32 %v112, %v557
    %v636 = vmul.f32 %v113, %v557
    %v637 = vmul.f32 %v114, %v557
    %v638 = vmul.f32 %v115, %v557
    %v639 = vmul.f32 %v116, %v557
    %v640 = vmul.f32 %v117, %v557
    %v641 = vmul.f32 %v118, %v557
    %v642 = vmul.f32 %v119, %v557
    %v643 = vmul.f32 %v120, %v557
    %v644 = vmul.f32 %v121, %v557
    %v645 = vmul.f32 %v122, %v557
    %v646 = vmul.f32 %v123, %v557
    %v647 = vmul.f32 %v124, %v557
    %v648 = vmul.f32 %v125, %v561
    %v649 = vmul.f32 %v126, %v561
    %v650 = vmul.f32 %v127, %v561
    %v651 = vmul.f32 %v128, %v561
    %v652 = vmul.f32 %v129, %v561
    %v653 = vmul.f32 %v130, %v561
    %v654 = vmul.f32 %v131, %v561
    %v655 = vmul.f32 %v132, %v561
    %v656 = vmul.f32 %v133, %v561
    %v657 = vmul.f32 %v134, %v561
    %v658 = vmul.f32 %v135, %v561
    %v659 = vmul.f32 %v136, %v561
    %v660 = vmul.f32 %v137, %v561
    %v661 = vmul.f32 %v138, %v561
    %v662 = vmul.f32 %v139, %v561
    %v663 = vmul.f32 %v140, %v561
    %v664 = vmul.f32 %v141, %v561
    %v665 = vmul.f32 %v142, %v561
    %v666 = vmul.f32 %v143, %v561
    %v667 = vmul.f32 %v144, %v561
    %v668 = vmul.f32 %v145, %v561
    %v669 = vmul.f32 %v146, %v561
    %v670 = vmul.f32 %v147, %v561
    %v671 = vmul.f32 %v148, %v561
    %v672 = vmul.f32 %v149, %v561
    %v673 = vmul.f32 %v150, %v561
    %v674 = vmul.f32 %v151, %v561
    %v675 = vmul.f32 %v152, %v561
    %v676 = vmul.f32 %v153, %v561
    %v677 = vmul.f32 %v154, %v561
    %v678 = vmul.f32 %v155, %v561
    %v679 = vmul.f32 %v156, %v561
    %v680 = vmul.f32 %v157, %v561
    %v681 = vmul.f32 %v158, %v561
    %v682 = vmul.f32 %v159, %v561
    %v683 = vmul.f32 %v160, %v561
    %v684 = vmul.f32 %v161, %v561
    %v685 = vmul.f32 %v162, %v561
    %v686 = vmul.f32 %v163, %v561
    %v687 = vmul.f32 %v164, %v561
    %v688 = vmul.f32 %v165, %v561
    %v689 = vmul.f32 %v166, %v561
    %v690 = vmul.f32 %v167, %v561
    %v691 = vmul.f32 %v168, %v561
    %v692 = vmul.f32 %v169, %v561
    %v693 = vmul.f32 %v170, %v561
    %v694 = vmul.f32 %v171, %v561
    %v695 = vmul.f32 %v172, %v561
    %v696 = vmul.f32 %v173, %v561
    %v697 = vmul.f32 %v174, %v561
    %v698 = vmul.f32 %v175, %v561
    %v699 = vmul.f32 %v176, %v561
    %v700 = vmul.f32 %v177, %v561
    %v701 = vmul.f32 %v178, %v561
    %v702 = vmul.f32 %v179, %v565
    %v703 = vmul.f32 %v180, %v565
    %v704 = vmul.f32 %v181, %v565
    %v705 = vmul.f32 %v182, %v565
    %v706 = vmul.f32 %v183, %v565
    %v707 = vmul.f32 %v184, %v565
    %v708 = vmul.f32 %v185, %v565
    %v709 = vmul.f32 %v186, %v565
    %v710 = vmul.f32 %v187, %v565
    %v711 = vmul.f32 %v188, %v565
    %v712 = vmul.f32 %v189, %v565
    %v713 = vmul.f32 %v190, %v565
    %v714 = vmul.f32 %v191, %v565
    %v715 = vmul.f32 %v192, %v565
    %v716 = vmul.f32 %v193, %v565
    %v717 = vmul.f32 %v194, %v565
    %v718 = vmul.f32 %v195, %v565
    %v719 = vmul.f32 %v196, %v565
    %v720 = vmul.f32 %v197, %v565
    %v721 = vmul.f32 %v198, %v565
    %v722 = vmul.f32 %v199, %v565
    %v723 = vmul.f32 %v200, %v565
    %v724 = vmul.f32 %v201, %v565
    %v725 = vmul.f32 %v202, %v565
    %v726 = vmul.f32 %v203, %v565
    %v727 = vmul.f32 %v204, %v565
    %v728 = vmul.f32 %v205, %v565
    %v729 = vmul.f32 %v206, %v565
    %v730 = vmul.f32 %v207, %v565
    %v731 = vmul.f32 %v208, %v565
    %v732 = vmul.f32 %v209, %v565
    %v733 = vmul.f32 %v210, %v565
    %v734 = vmul.f32 %v211, %v565
    %v735 = vmul.f32 %v212, %v565
    %v736 = vmul.f32 %v213, %v565
    %v737 = vmul.f32 %v214, %v565
    %v738 = vmul.f32 %v215, %v565
    %v739 = vmul.f32 %v216, %v565
    %v740 = vmul.f32 %v217, %v565
    %v741 = vmul.f32 %v218, %v565
    %v742 = vmul.f32 %v219, %v565
    %v743 = vmul.f32 %v220, %v565
    %v744 = vmul.f32 %v221, %v565
    %v745 = vmul.f32 %v222, %v565
    %v746 = vmul.f32 %v223, %v565
    %v747 = vmul.f32 %v224, %v565
    %v748 = vmul.f32 %v225, %v565
    %v749 = vmul.f32 %v226, %v565
    %v750 = vmul.f32 %v227, %v565
    %v751 = vmul.f32 %v228, %v565
    %v752 = vmul.f32 %v229, %v565
    %v753 = vmul.f32 %v230, %v565
    %v754 = vmul.f32 %v231, %v565
    %v755 = vmul.f32 %v232, %v565
    %v756 = vmul.f32 %v233, %v569
    %v757 = vmul.f32 %v234, %v569
    %v758 = vmul.f32 %v235, %v569
    %v759 = vmul.f32 %v236, %v569
    %v760 = vmul.f32 %v237, %v569
    %v761 = vmul.f32 %v238, %v569
    %v762 = vmul.f32 %v239, %v569
    %v763 = vmul.f32 %v240, %v569
    %v764 = vmul.f32 %v241, %v569
    %v765 = vmul.f32 %v242, %v569
    %v766 = vmul.f32 %v243, %v569
    %v767 = vmul.f32 %v244, %v569
    %v768 = vmul.f32 %v245, %v569
    %v769 = vmul.f32 %v246, %v569
    %v770 = vmul.f32 %v247, %v569
    %v771 = vmul.f32 %v248, %v569
    %v772 = vmul.f32 %v249, %v569
    %v773 = vmul.f32 %v250, %v569
    %v774 = vmul.f32 %v251, %v569
    %v775 = vmul.f32 %v252, %v569
    %v776 = vmul.f32 %v253, %v569
    %v777 = vmul.f32 %v254, %v569
    %v778 = vmul.f32 %v255, %v569
    %v779 = vmul.f32 %v256, %v569
    %v780 = vmul.f32 %v257, %v569
    %v781 = vmul.f32 %v258, %v569
    %v782 = vmul.f32 %v259, %v569
    %v783 = vmul.f32 %v260, %v569
    %v784 = vmul.f32 %v261, %v569
    %v785 = vmul.f32 %v262, %v569
    %v786 = vmul.f32 %v263, %v569
    %v787 = vmul.f32 %v264, %v569
    %v788 = vmul.f32 %v265, %v569
    %v789 = vmul.f32 %v266, %v569
    %v790 = vmul.f32 %v267, %v569
    %v791 = vmul.f32 %v268, %v569
    %v792 = vmul.f32 %v269, %v569
    %v793 = vmul.f32 %v270, %v569
    %v794 = vmul.f32 %v271, %v569
    %v795 = vmul.f32 %v272, %v569
    %v796 = vmul.f32 %v273, %v569
    %v797 = vmul.f32 %v274, %v569
    %v798 = vmul.f32 %v275, %v569
    %v799 = vmul.f32 %v276, %v569
    %v800 = vmul.f32 %v277, %v569
    %v801 = vmul.f32 %v278, %v569
    %v802 = vmul.f32 %v279, %v569
    %v803 = vmul.f32 %v280, %v569
    %v804 = vmul.f32 %v281, %v569
    %v805 = vmul.f32 %v282, %v569
    %v806 = vmul.f32 %v283, %v569
    %v807 = vmul.f32 %v284, %v569
    %v808 = vmul.f32 %v285, %v569
    %v809 = vmul.f32 %v286, %v569
    %v810 = vmul.f32 %v287, %v573
    %v811 = vmul.f32 %v288, %v573
    %v812 = vmul.f32 %v289, %v573
    %v813 = vmul.f32 %v290, %v573
    %v814 = vmul.f32 %v291, %v573
    %v815 = vmul.f32 %v292, %v573
    %v816 = vmul.f32 %v293, %v573
    %v817 = vmul.f32 %v294, %v573
    %v818 = vmul.f32 %v295, %v573
    %v819 = vmul.f32 %v296, %v573
    %v820 = vmul.f32 %v297, %v573
    %v821 = vmul.f32 %v298, %v573
    %v822 = vmul.f32 %v299, %v573
    %v823 = vmul.f32 %v300, %v573
    %v824 = vmul.f32 %v301, %v573
    %v825 = vmul.f32 %v302, %v573
    %v826 = vmul.f32 %v303, %v573
    %v827 = vmul.f32 %v304, %v573
    %v828 = vmul.f32 %v305, %v573
    %v829 = vmul.f32 %v306, %v573
    %v830 = vmul.f32 %v307, %v573
    %v831 = vmul.f32 %v308, %v573
    %v832 = vmul.f32 %v309, %v573
    %v833 = vmul.f32 %v310, %v573
    %v834 = vmul.f32 %v311, %v573
    %v835 = vmul.f32 %v312, %v573
    %v836 = vmul.f32 %v313, %v573
    %v837 = vmul.f32 %v314, %v573
    %v838 = vmul.f32 %v315, %v573
    %v839 = vmul.f32 %v316, %v573
    %v840 = vmul.f32 %v317, %v573
    %v841 = vmul.f32 %v318, %v573
    %v842 = vmul.f32 %v319, %v573
    %v843 = vmul.f32 %v320, %v573
    %v844 = vmul.f32 %v321, %v573
    %v845 = vmul.f32 %v322, %v573
    %v846 = vmul.f32 %v323, %v573
    %v847 = vmul.f32 %v324, %v573
    %v848 = vmul.f32 %v325, %v573
    %v849 = vmul.f32 %v326, %v573
    %v850 = vmul.f32 %v327, %v573
    %v851 = vmul.f32 %v328, %v573
    %v852 = vmul.f32 %v329, %v573
    %v853 = vmul.f32 %v330, %v573
    %v854 = vmul.f32 %v331, %v573
    %v855 = vmul.f32 %v332, %v573
    %v856 = vmul.f32 %v333, %v573
    %v857 = vmul.f32 %v334, %v573
    %v858 = vmul.f32 %v335, %v573
    %v859 = vmul.f32 %v336, %v573
    %v860 = vmul.f32 %v337, %v573
    %v861 = vmul.f32 %v338, %v573
    %v862 = vmul.f32 %v339, %v573
    %v863 = vmul.f32 %v340, %v573
    %v864 = vmul.f32 %v341, %v577
    %v865 = vmul.f32 %v342, %v577
    %v866 = vmul.f32 %v343, %v577
    %v867 = vmul.f32 %v344, %v577
    %v868 = vmul.f32 %v345, %v577
    %v869 = vmul.f32 %v346, %v577
    %v870 = vmul.f32 %v347, %v577
    %v871 = vmul.f32 %v348, %v577
    %v872 = vmul.f32 %v349, %v577
    %v873 = vmul.f32 %v350, %v577
    %v874 = vmul.f32 %v351, %v577
    %v875 = vmul.f32 %v352, %v577
    %v876 = vmul.f32 %v353, %v577
    %v877 = vmul.f32 %v354, %v577
    %v878 = vmul.f32 %v355, %v577
    %v879 = vmul.f32 %v356, %v577
    %v880 = vmul.f32 %v357, %v577
    %v881 = vmul.f32 %v358, %v577
    %v882 = vmul.f32 %v359, %v577
    %v883 = vmul.f32 %v360, %v577
    %v884 = vmul.f32 %v361, %v577
    %v885 = vmul.f32 %v362, %v577
    %v886 = vmul.f32 %v363, %v577
    %v887 = vmul.f32 %v364, %v577
    %v888 = vmul.f32 %v365, %v577
    %v889 = vmul.f32 %v366, %v577
    %v890 = vmul.f32 %v367, %v577
    %v891 = vmul.f32 %v368, %v577
    %v892 = vmul.f32 %v369, %v577
    %v893 = vmul.f32 %v370, %v577
    %v894 = vmul.f32 %v371, %v577
    %v895 = vmul.f32 %v372, %v577
    %v896 = vmul.f32 %v373, %v577
    %v897 = vmul.f32 %v374, %v577
    %v898 = vmul.f32 %v375, %v577
    %v899 = vmul.f32 %v376, %v577
    %v900 = vmul.f32 %v377, %v577
    %v901 = vmul.f32 %v378, %v577
    %v902 = vmul.f32 %v379, %v577
    %v903 = vmul.f32 %v380, %v577
    %v904 = vmul.f32 %v381, %v577
    %v905 = vmul.f32 %v382, %v577
    %v906 = vmul.f32 %v383, %v577
    %v907 = vmul.f32 %v384, %v577
    %v908 = vmul.f32 %v385, %v577
    %v909 = vmul.f32 %v386, %v577
    %v910 = vmul.f32 %v387, %v577
    %v911 = vmul.f32 %v388, %v577
    %v912 = vmul.f32 %v389, %v577
    %v913 = vmul.f32 %v390, %v577
    %v914 = vmul.f32 %v391, %v577
    %v915 = vmul.f32 %v392, %v577
    %v916 = vmul.f32 %v393, %v577
    %v917 = vmul.f32 %v394, %v577
    %v918 = vmul.f32 %v395, %v581
    %v919 = vmul.f32 %v396, %v581
    %v920 = vmul.f32 %v397, %v581
    %v921 = vmul.f32 %v398, %v581
    %v922 = vmul.f32 %v399, %v581
    %v923 = vmul.f32 %v400, %v581
    %v924 = vmul.f32 %v401, %v581
    %v925 = vmul.f32 %v402, %v581
    %v926 = vmul.f32 %v403, %v581
    %v927 = vmul.f32 %v404, %v581
    %v928 = vmul.f32 %v405, %v581
    %v929 = vmul.f32 %v406, %v581
    %v930 = vmul.f32 %v407, %v581
    %v931 = vmul.f32 %v408, %v581
    %v932 = vmul.f32 %v409, %v581
    %v933 = vmul.f32 %v410, %v581
    %v934 = vmul.f32 %v411, %v581
    %v935 = vmul.f32 %v412, %v581
    %v936 = vmul.f32 %v413, %v581
    %v937 = vmul.f32 %v414, %v581
    %v938 = vmul.f32 %v415, %v581
    %v939 = vmul.f32 %v416, %v581
    %v940 = vmul.f32 %v417, %v581
    %v941 = vmul.f32 %v418, %v581
    %v942 = vmul.f32 %v419, %v581
    %v943 = vmul.f32 %v420, %v581
    %v944 = vmul.f32 %v421, %v581
    %v945 = vmul.f32 %v422, %v581
    %v946 = vmul.f32 %v423, %v581
    %v947 = vmul.f32 %v424, %v581
    %v948 = vmul.f32 %v425, %v581
    %v949 = vmul.f32 %v426, %v581
    %v950 = vmul.f32 %v427, %v581
    %v951 = vmul.f32 %v428, %v581
    %v952 = vmul.f32 %v429, %v581
    %v953 = vmul.f32 %v430, %v581
    %v954 = vmul.f32 %v431, %v581
    %v955 = vmul.f32 %v432, %v581
    %v956 = vmul.f32 %v433, %v581
    %v957 = vmul.f32 %v434, %v581
    %v958 = vmul.f32 %v435, %v581
    %v959 = vmul.f32 %v436, %v581
    %v960 = vmul.f32 %v437, %v581
    %v961 = vmul.f32 %v438, %v581
    %v962 = vmul.f32 %v439, %v581
    %v963 = vmul.f32 %v440, %v581
    %v964 = vmul.f32 %v441, %v581
    %v965 = vmul.f32 %v442, %v581
    %v966 = vmul.f32 %v443, %v581
    %v967 = vmul.f32 %v444, %v581
    %v968 = vmul.f32 %v445, %v581
    %v969 = vmul.f32 %v446, %v581
    %v970 = vmul.f32 %v447, %v581
    %v971 = vmul.f32 %v448, %v581
    %v972 = vmul.f32 %v449, %v585
    %v973 = vmul.f32 %v450, %v585
    %v974 = vmul.f32 %v451, %v585
    %v975 = vmul.f32 %v452, %v585
    %v976 = vmul.f32 %v453, %v585
    %v977 = vmul.f32 %v454, %v585
    %v978 = vmul.f32 %v455, %v585
    %v979 = vmul.f32 %v456, %v585
    %v980 = vmul.f32 %v457, %v585
    %v981 = vmul.f32 %v458, %v585
    %v982 = vmul.f32 %v459, %v585
    %v983 = vmul.f32 %v460, %v585
    %v984 = vmul.f32 %v461, %v585
    %v985 = vmul.f32 %v462, %v585
    %v986 = vmul.f32 %v463, %v585
    %v987 = vmul.f32 %v464, %v585
    %v988 = vmul.f32 %v465, %v585
    %v989 = vmul.f32 %v466, %v585
    %v990 = vmul.f32 %v467, %v585
    %v991 = vmul.f32 %v468, %v585
    %v992 = vmul.f32 %v469, %v585
    %v993 = vmul.f32 %v470, %v585
    %v994 = vmul.f32 %v471, %v585
    %v995 = vmul.f32 %v472, %v585
    %v996 = vmul.f32 %v473, %v585
    %v997 = vmul.f32 %v474, %v585
    %v998 = vmul.f32 %v475, %v585
    %v999 = vmul.f32 %v476, %v585
    %v1000 = vmul.f32 %v477, %v585
    %v1001 = vmul.f32 %v478, %v585
    %v1002 = vmul.f32 %v479, %v585
    %v1003 = vmul.f32 %v480, %v585
    %v1004 = vmul.f32 %v481, %v585
    %v1005 = vmul.f32 %v482, %v585
    %v1006 = vmul.f32 %v483, %v585
    %v1007 = vmul.f32 %v484, %v585
    %v1008 = vmul.f32 %v485, %v585
    %v1009 = vmul.f32 %v486, %v585
    %v1010 = vmul.f32 %v487, %v585
    %v1011 = vmul.f32 %v488, %v585
    %v1012 = vmul.f32 %v489, %v585
    %v1013 = vmul.f32 %v490, %v585
    %v1014 = vmul.f32 %v491, %v585
    %v1015 = vmul.f32 %v492, %v585
    %v1016 = vmul.f32 %v493, %v585
    %v1017 = vmul.f32 %v494, %v585
    %v1018 = vmul.f32 %v495, %v585
    %v1019 = vmul.f32 %v496, %v585
    %v1020 = vmul.f32 %v497, %v585
    %v1021 = vmul.f32 %v498, %v585
    %v1022 = vmul.f32 %v499, %v585
    %v1023 = vmul.f32 %v500, %v585
    %v1024 = vmul.f32 %v501, %v585
    %v1025 = vmul.f32 %v502, %v585
    %vm1410 = vcmask 1046528
    %v1411 = vrot.slane %v594, 1
    %v1412 = vrot.slane %v595, 1
    %v1413 = vsel %vm1410, %v1411, %v1412
    %v1414 = vrot.slane %v596, 1
    %v1415 = vsel %vm1410, %v1412, %v1414
    %v1416 = vrot.slane %v597, 1
    %v1417 = vrot.slane %v598, 1
    %v1418 = vsel %vm1410, %v1416, %v1417
    %v1419 = vrot.slane %v599, 1
    %v1420 = vsel %vm1410, %v1417, %v1419
    %v1421 = vrot.slane %v600, 1
    %v1422 = vrot.slane %v601, 1
    %v1423 = vsel %vm1410, %v1421, %v1422
    %v1424 = vrot.slane %v602, 1
    %v1425 = vsel %vm1410, %v1422, %v1424
    %v1426 = vrot.slane %v603, 1
    %v1427 = vrot.slane %v604, 1
    %v1428 = vsel %vm1410, %v1426, %v1427
    %v1429 = vrot.slane %v605, 1
    %v1430 = vsel %vm1410, %v1427, %v1429
    %v1431 = vrot.slane %v606, 1
    %v1432 = vrot.slane %v607, 1
    %v1433 = vsel %vm1410, %v1431, %v1432
    %v1434 = vrot.slane %v608, 1
    %v1435 = vsel %vm1410, %v1432, %v1434
    %v1436 = vrot.slane %v609, 1
    %v1437 = vrot.slane %v610, 1
    %v1438 = vsel %vm1410, %v1436, %v1437
    %v1439 = vrot.slane %v611, 1
    %v1440 = vsel %vm1410, %v1437, %v1439
    %v1441 = vrot.slane %v612, 1
    %v1442 = vrot.slane %v613, 1
    %v1443 = vsel %vm1410, %v1441, %v1442
    %v1444 = vrot.slane %v614, 1
    %v1445 = vsel %vm1410, %v1442, %v1444
    %v1446 = vrot.slane %v615, 1
    %v1447 = vrot.slane %v616, 1
    %v1448 = vsel %vm1410, %v1446, %v1447
    %v1449 = vrot.slane %v617, 1
    %v1450 = vsel %vm1410, %v1447, %v1449
    %v1451 = vrot.slane %v618, 1
    %v1452 = vrot.slane %v619, 1
    %v1453 = vsel %vm1410, %v1451, %v1452
    %v1454 = vrot.slane %v620, 1
    %v1455 = vsel %vm1410, %v1452, %v1454
    %v1456 = vrot.slane %v621, 1
    %v1457 = vrot.slane %v622, 1
    %v1458 = vsel %vm1410, %v1456, %v1457
    %v1459 = vrot.slane %v623, 1
    %v1460 = vsel %vm1410, %v1457, %v1459
    %v1461 = vrot.slane %v624, 1
    %v1462 = vrot.slane %v625, 1
    %v1463 = vsel %vm1410, %v1461, %v1462
    %v1464 = vrot.slane %v626, 1
    %v1465 = vsel %vm1410, %v1462, %v1464
    %v1466 = vrot.slane %v627, 1
    %v1467 = vrot.slane %v628, 1
    %v1468 = vsel %vm1410, %v1466, %v1467
    %v1469 = vrot.slane %v629, 1
    %v1470 = vsel %vm1410, %v1467, %v1469
    %v1471 = vrot.slane %v630, 1
    %v1472 = vrot.slane %v631, 1
    %v1473 = vsel %vm1410, %v1471, %v1472
    %v1474 = vrot.slane %v632, 1
    %v1475 = vsel %vm1410, %v1472, %v1474
    %v1476 = vrot.slane %v633, 1
    %v1477 = vrot.slane %v634, 1
    %v1478 = vsel %vm1410, %v1476, %v1477
    %v1479 = vrot.slane %v635, 1
    %v1480 = vsel %vm1410, %v1477, %v1479
    %v1481 = vrot.slane %v636, 1
    %v1482 = vrot.slane %v637, 1
    %v1483 = vsel %vm1410, %v1481, %v1482
    %v1484 = vrot.slane %v638, 1
    %v1485 = vsel %vm1410, %v1482, %v1484
    %v1486 = vrot.slane %v639, 1
    %v1487 = vrot.slane %v640, 1
    %v1488 = vsel %vm1410, %v1486, %v1487
    %v1489 = vrot.slane %v641, 1
    %v1490 = vsel %vm1410, %v1487, %v1489
    %v1491 = vrot.slane %v648, 1
    %v1492 = vrot.slane %v649, 1
    %v1493 = vsel %vm1410, %v1491, %v1492
    %v1494 = vrot.slane %v650, 1
    %v1495 = vsel %vm1410, %v1492, %v1494
    %v1496 = vrot.slane %v651, 1
    %v1497 = vrot.slane %v652, 1
    %v1498 = vsel %vm1410, %v1496, %v1497
    %v1499 = vrot.slane %v653, 1
    %v1500 = vsel %vm1410, %v1497, %v1499
    %v1501 = vrot.slane %v654, 1
    %v1502 = vrot.slane %v655, 1
    %v1503 = vsel %vm1410, %v1501, %v1502
    %v1504 = vrot.slane %v656, 1
    %v1505 = vsel %vm1410, %v1502, %v1504
    %v1506 = vrot.slane %v657, 1
    %v1507 = vrot.slane %v658, 1
    %v1508 = vsel %vm1410, %v1506, %v1507
    %v1509 = vrot.slane %v659, 1
    %v1510 = vsel %vm1410, %v1507, %v1509
    %v1511 = vrot.slane %v660, 1
    %v1512 = vrot.slane %v661, 1
    %v1513 = vsel %vm1410, %v1511, %v1512
    %v1514 = vrot.slane %v662, 1
    %v1515 = vsel %vm1410, %v1512, %v1514
    %v1516 = vrot.slane %v663, 1
    %v1517 = vrot.slane %v664, 1
    %v1518 = vsel %vm1410, %v1516, %v1517
    %v1519 = vrot.slane %v665, 1
    %v1520 = vsel %vm1410, %v1517, %v1519
    %v1521 = vrot.slane %v666, 1
    %v1522 = vrot.slane %v667, 1
    %v1523 = vsel %vm1410, %v1521, %v1522
    %v1524 = vrot.slane %v668, 1
    %v1525 = vsel %vm1410, %v1522, %v1524
    %v1526 = vrot.slane %v669, 1
    %v1527 = vrot.slane %v670, 1
    %v1528 = vsel %vm1410, %v1526, %v1527
    %v1529 = vrot.slane %v671, 1
    %v1530 = vsel %vm1410, %v1527, %v1529
    %v1531 = vrot.slane %v672, 1
    %v1532 = vrot.slane %v673, 1
    %v1533 = vsel %vm1410, %v1531, %v1532
    %v1534 = vrot.slane %v674, 1
    %v1535 = vsel %vm1410, %v1532, %v1534
    %v1536 = vrot.slane %v675, 1
    %v1537 = vrot.slane %v676, 1
    %v1538 = vsel %vm1410, %v1536, %v1537
    %v1539 = vrot.slane %v677, 1
    %v1540 = vsel %vm1410, %v1537, %v1539
    %v1541 = vrot.slane %v678, 1
    %v1542 = vrot.slane %v679, 1
    %v1543 = vsel %vm1410, %v1541, %v1542
    %v1544 = vrot.slane %v680, 1
    %v1545 = vsel %vm1410, %v1542, %v1544
    %v1546 = vrot.slane %v681, 1
    %v1547 = vrot.slane %v682, 1
    %v1548 = vsel %vm1410, %v1546, %v1547
    %v1549 = vrot.slane %v683, 1
    %v1550 = vsel %vm1410, %v1547, %v1549
    %v1551 = vrot.slane %v684, 1
    %v1552 = vrot.slane %v685, 1
    %v1553 = vsel %vm1410, %v1551, %v1552
    %v1554 = vrot.slane %v686, 1
    %v1555 = vsel %vm1410, %v1552, %v1554
    %v1556 = vrot.slane %v687, 1
    %v1557 = vrot.slane %v688, 1
    %v1558 = vsel %vm1410, %v1556, %v1557
    %v1559 = vrot.slane %v689, 1
    %v1560 = vsel %vm1410, %v1557, %v1559
    %v1561 = vrot.slane %v690, 1
    %v1562 = vrot.slane %v691, 1
    %v1563 = vsel %vm1410, %v1561, %v1562
    %v1564 = vrot.slane %v692, 1
    %v1565 = vsel %vm1410, %v1562, %v1564
    %v1566 = vrot.slane %v693, 1
    %v1567 = vrot.slane %v694, 1
    %v1568 = vsel %vm1410, %v1566, %v1567
    %v1569 = vrot.slane %v695, 1
    %v1570 = vsel %vm1410, %v1567, %v1569
    %v1571 = vrot.slane %v702, 1
    %v1572 = vrot.slane %v703, 1
    %v1573 = vsel %vm1410, %v1571, %v1572
    %v1574 = vrot.slane %v704, 1
    %v1575 = vsel %vm1410, %v1572, %v1574
    %v1576 = vrot.slane %v705, 1
    %v1577 = vrot.slane %v706, 1
    %v1578 = vsel %vm1410, %v1576, %v1577
    %v1579 = vrot.slane %v707, 1
    %v1580 = vsel %vm1410, %v1577, %v1579
    %v1581 = vrot.slane %v708, 1
    %v1582 = vrot.slane %v709, 1
    %v1583 = vsel %vm1410, %v1581, %v1582
    %v1584 = vrot.slane %v710, 1
    %v1585 = vsel %vm1410, %v1582, %v1584
    %v1586 = vrot.slane %v711, 1
    %v1587 = vrot.slane %v712, 1
    %v1588 = vsel %vm1410, %v1586, %v1587
    %v1589 = vrot.slane %v713, 1
    %v1590 = vsel %vm1410, %v1587, %v1589
    %v1591 = vrot.slane %v714, 1
    %v1592 = vrot.slane %v715, 1
    %v1593 = vsel %vm1410, %v1591, %v1592
    %v1594 = vrot.slane %v716, 1
    %v1595 = vsel %vm1410, %v1592, %v1594
    %v1596 = vrot.slane %v717, 1
    %v1597 = vrot.slane %v718, 1
    %v1598 = vsel %vm1410, %v1596, %v1597
    %v1599 = vrot.slane %v719, 1
    %v1600 = vsel %vm1410, %v1597, %v1599
    %v1601 = vrot.slane %v720, 1
    %v1602 = vrot.slane %v721, 1
    %v1603 = vsel %vm1410, %v1601, %v1602
    %v1604 = vrot.slane %v722, 1
    %v1605 = vsel %vm1410, %v1602, %v1604
    %v1606 = vrot.slane %v723, 1
    %v1607 = vrot.slane %v724, 1
    %v1608 = vsel %vm1410, %v1606, %v1607
    %v1609 = vrot.slane %v725, 1
    %v1610 = vsel %vm1410, %v1607, %v1609
    %v1611 = vrot.slane %v726, 1
    %v1612 = vrot.slane %v727, 1
    %v1613 = vsel %vm1410, %v1611, %v1612
    %v1614 = vrot.slane %v728, 1
    %v1615 = vsel %vm1410, %v1612, %v1614
    %v1616 = vrot.slane %v729, 1
    %v1617 = vrot.slane %v730, 1
    %v1618 = vsel %vm1410, %v1616, %v1617
    %v1619 = vrot.slane %v731, 1
    %v1620 = vsel %vm1410, %v1617, %v1619
    %v1621 = vrot.slane %v732, 1
    %v1622 = vrot.slane %v733, 1
    %v1623 = vsel %vm1410, %v1621, %v1622
    %v1624 = vrot.slane %v734, 1
    %v1625 = vsel %vm1410, %v1622, %v1624
    %v1626 = vrot.slane %v735, 1
    %v1627 = vrot.slane %v736, 1
    %v1628 = vsel %vm1410, %v1626, %v1627
    %v1629 = vrot.slane %v737, 1
    %v1630 = vsel %vm1410, %v1627, %v1629
    %v1631 = vrot.slane %v738, 1
    %v1632 = vrot.slane %v739, 1
    %v1633 = vsel %vm1410, %v1631, %v1632
    %v1634 = vrot.slane %v740, 1
    %v1635 = vsel %vm1410, %v1632, %v1634
    %v1636 = vrot.slane %v741, 1
    %v1637 = vrot.slane %v742, 1
    %v1638 = vsel %vm1410, %v1636, %v1637
    %v1639 = vrot.slane %v743, 1
    %v1640 = vsel %vm1410, %v1637, %v1639
    %v1641 = vrot.slane %v744, 1
    %v1642 = vrot.slane %v745, 1
    %v1643 = vsel %vm1410, %v1641, %v1642
    %v1644 = vrot.slane %v746, 1
    %v1645 = vsel %vm1410, %v1642, %v1644
    %v1646 = vrot.slane %v747, 1
    %v1647 = vrot.slane %v748, 1
    %v1648 = vsel %vm1410, %v1646, %v1647
    %v1649 = vrot.slane %v749, 1
    %v1650 = vsel %vm1410, %v1647, %v1649
    %v1651 = vrot.slane %v756, 1
    %v1652 = vrot.slane %v757, 1
    %v1653 = vsel %vm1410, %v1651, %v1652
    %v1654 = vrot.slane %v758, 1
    %v1655 = vsel %vm1410, %v1652, %v1654
    %v1656 = vrot.slane %v759, 1
    %v1657 = vrot.slane %v760, 1
    %v1658 = vsel %vm1410, %v1656, %v1657
    %v1659 = vrot.slane %v761, 1
    %v1660 = vsel %vm1410, %v1657, %v1659
    %v1661 = vrot.slane %v762, 1
    %v1662 = vrot.slane %v763, 1
    %v1663 = vsel %vm1410, %v1661, %v1662
    %v1664 = vrot.slane %v764, 1
    %v1665 = vsel %vm1410, %v1662, %v1664
    %v1666 = vrot.slane %v765, 1
    %v1667 = vrot.slane %v766, 1
    %v1668 = vsel %vm1410, %v1666, %v1667
    %v1669 = vrot.slane %v767, 1
    %v1670 = vsel %vm1410, %v1667, %v1669
    %v1671 = vrot.slane %v768, 1
    %v1672 = vrot.slane %v769, 1
    %v1673 = vsel %vm1410, %v1671, %v1672
    %v1674 = vrot.slane %v770, 1
    %v1675 = vsel %vm1410, %v1672, %v1674
    %v1676 = vrot.slane %v771, 1
    %v1677 = vrot.slane %v772, 1
    %v1678 = vsel %vm1410, %v1676, %v1677
    %v1679 = vrot.slane %v773, 1
    %v1680 = vsel %vm1410, %v1677, %v1679
    %v1681 = vrot.slane %v774, 1
    %v1682 = vrot.slane %v775, 1
    %v1683 = vsel %vm1410, %v1681, %v1682
    %v1684 = vrot.slane %v776, 1
    %v1685 = vsel %vm1410, %v1682, %v1684
    %v1686 = vrot.slane %v777, 1
    %v1687 = vrot.slane %v778, 1
    %v1688 = vsel %vm1410, %v1686, %v1687
    %v1689 = vrot.slane %v779, 1
    %v1690 = vsel %vm1410, %v1687, %v1689
    %v1691 = vrot.slane %v780, 1
    %v1692 = vrot.slane %v781, 1
    %v1693 = vsel %vm1410, %v1691, %v1692
    %v1694 = vrot.slane %v782, 1
    %v1695 = vsel %vm1410, %v1692, %v1694
    %v1696 = vrot.slane %v783, 1
    %v1697 = vrot.slane %v784, 1
    %v1698 = vsel %vm1410, %v1696, %v1697
    %v1699 = vrot.slane %v785, 1
    %v1700 = vsel %vm1410, %v1697, %v1699
    %v1701 = vrot.slane %v786, 1
    %v1702 = vrot.slane %v787, 1
    %v1703 = vsel %vm1410, %v1701, %v1702
    %v1704 = vrot.slane %v788, 1
    %v1705 = vsel %vm1410, %v1702, %v1704
    %v1706 = vrot.slane %v789, 1
    %v1707 = vrot.slane %v790, 1
    %v1708 = vsel %vm1410, %v1706, %v1707
    %v1709 = vrot.slane %v791, 1
    %v1710 = vsel %vm1410, %v1707, %v1709
    %v1711 = vrot.slane %v792, 1
    %v1712 = vrot.slane %v793, 1
    %v1713 = vsel %vm1410, %v1711, %v1712
    %v1714 = vrot.slane %v794, 1
    %v1715 = vsel %vm1410, %v1712, %v1714
    %v1716 = vrot.slane %v795, 1
    %v1717 = vrot.slane %v796, 1
    %v1718 = vsel %vm1410, %v1716, %v1717
    %v1719 = vrot.slane %v797, 1
    %v1720 = vsel %vm1410, %v1717, %v1719
    %v1721 = vrot.slane %v798, 1
    %v1722 = vrot.slane %v799, 1
    %v1723 = vsel %vm1410, %v1721, %v1722
    %v1724 = vrot.slane %v800, 1
    %v1725 = vsel %vm1410, %v1722, %v1724
    %v1726 = vrot.slane %v801, 1
    %v1727 = vrot.slane %v802, 1
    %v1728 = vsel %vm1410, %v1726, %v1727
    %v1729 = vrot.slane %v803, 1
    %v1730 = vsel %vm1410, %v1727, %v1729
    %v1731 = vrot.slane %v810, 1
    %v1732 = vrot.slane %v811, 1
    %v1733 = vsel %vm1410, %v1731, %v1732
    %v1734 = vrot.slane %v812, 1
    %v1735 = vsel %vm1410, %v1732, %v1734
    %v1736 = vrot.slane %v813, 1
    %v1737 = vrot.slane %v814, 1
    %v1738 = vsel %vm1410, %v1736, %v1737
    %v1739 = vrot.slane %v815, 1
    %v1740 = vsel %vm1410, %v1737, %v1739
    %v1741 = vrot.slane %v816, 1
    %v1742 = vrot.slane %v817, 1
    %v1743 = vsel %vm1410, %v1741, %v1742
    %v1744 = vrot.slane %v818, 1
    %v1745 = vsel %vm1410, %v1742, %v1744
    %v1746 = vrot.slane %v819, 1
    %v1747 = vrot.slane %v820, 1
    %v1748 = vsel %vm1410, %v1746, %v1747
    %v1749 = vrot.slane %v821, 1
    %v1750 = vsel %vm1410, %v1747, %v1749
    %v1751 = vrot.slane %v822, 1
    %v1752 = vrot.slane %v823, 1
    %v1753 = vsel %vm1410, %v1751, %v1752
    %v1754 = vrot.slane %v824, 1
    %v1755 = vsel %vm1410, %v1752, %v1754
    %v1756 = vrot.slane %v825, 1
    %v1757 = vrot.slane %v826, 1
    %v1758 = vsel %vm1410, %v1756, %v1757
    %v1759 = vrot.slane %v827, 1
    %v1760 = vsel %vm1410, %v1757, %v1759
    %v1761 = vrot.slane %v828, 1
    %v1762 = vrot.slane %v829, 1
    %v1763 = vsel %vm1410, %v1761, %v1762
    %v1764 = vrot.slane %v830, 1
    %v1765 = vsel %vm1410, %v1762, %v1764
    %v1766 = vrot.slane %v831, 1
    %v1767 = vrot.slane %v832, 1
    %v1768 = vsel %vm1410, %v1766, %v1767
    %v1769 = vrot.slane %v833, 1
    %v1770 = vsel %vm1410, %v1767, %v1769
    %v1771 = vrot.slane %v834, 1
    %v1772 = vrot.slane %v835, 1
    %v1773 = vsel %vm1410, %v1771, %v1772
    %v1774 = vrot.slane %v836, 1
    %v1775 = vsel %vm1410, %v1772, %v1774
    %v1776 = vrot.slane %v837, 1
    %v1777 = vrot.slane %v838, 1
    %v1778 = vsel %vm1410, %v1776, %v1777
    %v1779 = vrot.slane %v839, 1
    %v1780 = vsel %vm1410, %v1777, %v1779
    %v1781 = vrot.slane %v840, 1
    %v1782 = vrot.slane %v841, 1
    %v1783 = vsel %vm1410, %v1781, %v1782
    %v1784 = vrot.slane %v842, 1
    %v1785 = vsel %vm1410, %v1782, %v1784
    %v1786 = vrot.slane %v843, 1
    %v1787 = vrot.slane %v844, 1
    %v1788 = vsel %vm1410, %v1786, %v1787
    %v1789 = vrot.slane %v845, 1
    %v1790 = vsel %vm1410, %v1787, %v1789
    %v1791 = vrot.slane %v846, 1
    %v1792 = vrot.slane %v847, 1
    %v1793 = vsel %vm1410, %v1791, %v1792
    %v1794 = vrot.slane %v848, 1
    %v1795 = vsel %vm1410, %v1792, %v1794
    %v1796 = vrot.slane %v849, 1
    %v1797 = vrot.slane %v850, 1
    %v1798 = vsel %vm1410, %v1796, %v1797
    %v1799 = vrot.slane %v851, 1
    %v1800 = vsel %vm1410, %v1797, %v1799
    %v1801 = vrot.slane %v852, 1
    %v1802 = vrot.slane %v853, 1
    %v1803 = vsel %vm1410, %v1801, %v1802
    %v1804 = vrot.slane %v854, 1
    %v1805 = vsel %vm1410, %v1802, %v1804
    %v1806 = vrot.slane %v855, 1
    %v1807 = vrot.slane %v856, 1
    %v1808 = vsel %vm1410, %v1806, %v1807
    %v1809 = vrot.slane %v857, 1
    %v1810 = vsel %vm1410, %v1807, %v1809
    %v1811 = vrot.slane %v864, 1
    %v1812 = vrot.slane %v865, 1
    %v1813 = vsel %vm1410, %v1811, %v1812
    %v1814 = vrot.slane %v866, 1
    %v1815 = vsel %vm1410, %v1812, %v1814
    %v1816 = vrot.slane %v867, 1
    %v1817 = vrot.slane %v868, 1
    %v1818 = vsel %vm1410, %v1816, %v1817
    %v1819 = vrot.slane %v869, 1
    %v1820 = vsel %vm1410, %v1817, %v1819
    %v1821 = vrot.slane %v870, 1
    %v1822 = vrot.slane %v871, 1
    %v1823 = vsel %vm1410, %v1821, %v1822
    %v1824 = vrot.slane %v872, 1
    %v1825 = vsel %vm1410, %v1822, %v1824
    %v1826 = vrot.slane %v873, 1
    %v1827 = vrot.slane %v874, 1
    %v1828 = vsel %vm1410, %v1826, %v1827
    %v1829 = vrot.slane %v875, 1
    %v1830 = vsel %vm1410, %v1827, %v1829
    %v1831 = vrot.slane %v876, 1
    %v1832 = vrot.slane %v877, 1
    %v1833 = vsel %vm1410, %v1831, %v1832
    %v1834 = vrot.slane %v878, 1
    %v1835 = vsel %vm1410, %v1832, %v1834
    %v1836 = vrot.slane %v879, 1
    %v1837 = vrot.slane %v880, 1
    %v1838 = vsel %vm1410, %v1836, %v1837
    %v1839 = vrot.slane %v881, 1
    %v1840 = vsel %vm1410, %v1837, %v1839
    %v1841 = vrot.slane %v882, 1
    %v1842 = vrot.slane %v883, 1
    %v1843 = vsel %vm1410, %v1841, %v1842
    %v1844 = vrot.slane %v884, 1
    %v1845 = vsel %vm1410, %v1842, %v1844
    %v1846 = vrot.slane %v885, 1
    %v1847 = vrot.slane %v886, 1
    %v1848 = vsel %vm1410, %v1846, %v1847
    %v1849 = vrot.slane %v887, 1
    %v1850 = vsel %vm1410, %v1847, %v1849
    %v1851 = vrot.slane %v888, 1
    %v1852 = vrot.slane %v889, 1
    %v1853 = vsel %vm1410, %v1851, %v1852
    %v1854 = vrot.slane %v890, 1
    %v1855 = vsel %vm1410, %v1852, %v1854
    %v1856 = vrot.slane %v891, 1
    %v1857 = vrot.slane %v892, 1
    %v1858 = vsel %vm1410, %v1856, %v1857
    %v1859 = vrot.slane %v893, 1
    %v1860 = vsel %vm1410, %v1857, %v1859
    %v1861 = vrot.slane %v894, 1
    %v1862 = vrot.slane %v895, 1
    %v1863 = vsel %vm1410, %v1861, %v1862
    %v1864 = vrot.slane %v896, 1
    %v1865 = vsel %vm1410, %v1862, %v1864
    %v1866 = vrot.slane %v897, 1
    %v1867 = vrot.slane %v898, 1
    %v1868 = vsel %vm1410, %v1866, %v1867
    %v1869 = vrot.slane %v899, 1
    %v1870 = vsel %vm1410, %v1867, %v1869
    %v1871 = vrot.slane %v900, 1
    %v1872 = vrot.slane %v901, 1
    %v1873 = vsel %vm1410, %v1871, %v1872
    %v1874 = vrot.slane %v902, 1
    %v1875 = vsel %vm1410, %v1872, %v1874
    %v1876 = vrot.slane %v903, 1
    %v1877 = vrot.slane %v904, 1
    %v1878 = vsel %vm1410, %v1876, %v1877
    %v1879 = vrot.slane %v905, 1
    %v1880 = vsel %vm1410, %v1877, %v1879
    %v1881 = vrot.slane %v906, 1
    %v1882 = vrot.slane %v907, 1
    %v1883 = vsel %vm1410, %v1881, %v1882
    %v1884 = vrot.slane %v908, 1
    %v1885 = vsel %vm1410, %v1882, %v1884
    %v1886 = vrot.slane %v909, 1
    %v1887 = vrot.slane %v910, 1
    %v1888 = vsel %vm1410, %v1886, %v1887
    %v1889 = vrot.slane %v911, 1
    %v1890 = vsel %vm1410, %v1887, %v1889
    %v1891 = vrot.slane %v918, 1
    %v1892 = vrot.slane %v919, 1
    %v1893 = vsel %vm1410, %v1891, %v1892
    %v1894 = vrot.slane %v920, 1
    %v1895 = vsel %vm1410, %v1892, %v1894
    %v1896 = vrot.slane %v921, 1
    %v1897 = vrot.slane %v922, 1
    %v1898 = vsel %vm1410, %v1896, %v1897
    %v1899 = vrot.slane %v923, 1
    %v1900 = vsel %vm1410, %v1897, %v1899
    %v1901 = vrot.slane %v924, 1
    %v1902 = vrot.slane %v925, 1
    %v1903 = vsel %vm1410, %v1901, %v1902
    %v1904 = vrot.slane %v926, 1
    %v1905 = vsel %vm1410, %v1902, %v1904
    %v1906 = vrot.slane %v927, 1
    %v1907 = vrot.slane %v928, 1
    %v1908 = vsel %vm1410, %v1906, %v1907
    %v1909 = vrot.slane %v929, 1
    %v1910 = vsel %vm1410, %v1907, %v1909
    %v1911 = vrot.slane %v930, 1
    %v1912 = vrot.slane %v931, 1
    %v1913 = vsel %vm1410, %v1911, %v1912
    %v1914 = vrot.slane %v932, 1
    %v1915 = vsel %vm1410, %v1912, %v1914
    %v1916 = vrot.slane %v933, 1
    %v1917 = vrot.slane %v934, 1
    %v1918 = vsel %vm1410, %v1916, %v1917
    %v1919 = vrot.slane %v935, 1
    %v1920 = vsel %vm1410, %v1917, %v1919
    %v1921 = vrot.slane %v936, 1
    %v1922 = vrot.slane %v937, 1
    %v1923 = vsel %vm1410, %v1921, %v1922
    %v1924 = vrot.slane %v938, 1
    %v1925 = vsel %vm1410, %v1922, %v1924
    %v1926 = vrot.slane %v939, 1
    %v1927 = vrot.slane %v940, 1
    %v1928 = vsel %vm1410, %v1926, %v1927
    %v1929 = vrot.slane %v941, 1
    %v1930 = vsel %vm1410, %v1927, %v1929
    %v1931 = vrot.slane %v942, 1
    %v1932 = vrot.slane %v943, 1
    %v1933 = vsel %vm1410, %v1931, %v1932
    %v1934 = vrot.slane %v944, 1
    %v1935 = vsel %vm1410, %v1932, %v1934
    %v1936 = vrot.slane %v945, 1
    %v1937 = vrot.slane %v946, 1
    %v1938 = vsel %vm1410, %v1936, %v1937
    %v1939 = vrot.slane %v947, 1
    %v1940 = vsel %vm1410, %v1937, %v1939
    %v1941 = vrot.slane %v948, 1
    %v1942 = vrot.slane %v949, 1
    %v1943 = vsel %vm1410, %v1941, %v1942
    %v1944 = vrot.slane %v950, 1
    %v1945 = vsel %vm1410, %v1942, %v1944
    %v1946 = vrot.slane %v951, 1
    %v1947 = vrot.slane %v952, 1
    %v1948 = vsel %vm1410, %v1946, %v1947
    %v1949 = vrot.slane %v953, 1
    %v1950 = vsel %vm1410, %v1947, %v1949
    %v1951 = vrot.slane %v954, 1
    %v1952 = vrot.slane %v955, 1
    %v1953 = vsel %vm1410, %v1951, %v1952
    %v1954 = vrot.slane %v956, 1
    %v1955 = vsel %vm1410, %v1952, %v1954
    %v1956 = vrot.slane %v957, 1
    %v1957 = vrot.slane %v958, 1
    %v1958 = vsel %vm1410, %v1956, %v1957
    %v1959 = vrot.slane %v959, 1
    %v1960 = vsel %vm1410, %v1957, %v1959
    %v1961 = vrot.slane %v960, 1
    %v1962 = vrot.slane %v961, 1
    %v1963 = vsel %vm1410, %v1961, %v1962
    %v1964 = vrot.slane %v962, 1
    %v1965 = vsel %vm1410, %v1962, %v1964
    %v1966 = vrot.slane %v963, 1
    %v1967 = vrot.slane %v964, 1
    %v1968 = vsel %vm1410, %v1966, %v1967
    %v1969 = vrot.slane %v965, 1
    %v1970 = vsel %vm1410, %v1967, %v1969
    %v1971 = vrot.slane %v972, 1
    %v1972 = vrot.slane %v973, 1
    %v1973 = vsel %vm1410, %v1971, %v1972
    %v1974 = vrot.slane %v974, 1
    %v1975 = vsel %vm1410, %v1972, %v1974
    %v1976 = vrot.slane %v975, 1
    %v1977 = vrot.slane %v976, 1
    %v1978 = vsel %vm1410, %v1976, %v1977
    %v1979 = vrot.slane %v977, 1
    %v1980 = vsel %vm1410, %v1977, %v1979
    %v1981 = vrot.slane %v978, 1
    %v1982 = vrot.slane %v979, 1
    %v1983 = vsel %vm1410, %v1981, %v1982
    %v1984 = vrot.slane %v980, 1
    %v1985 = vsel %vm1410, %v1982, %v1984
    %v1986 = vrot.slane %v981, 1
    %v1987 = vrot.slane %v982, 1
    %v1988 = vsel %vm1410, %v1986, %v1987
    %v1989 = vrot.slane %v983, 1
    %v1990 = vsel %vm1410, %v1987, %v1989
    %v1991 = vrot.slane %v984, 1
    %v1992 = vrot.slane %v985, 1
    %v1993 = vsel %vm1410, %v1991, %v1992
    %v1994 = vrot.slane %v986, 1
    %v1995 = vsel %vm1410, %v1992, %v1994
    %v1996 = vrot.slane %v987, 1
    %v1997 = vrot.slane %v988, 1
    %v1998 = vsel %vm1410, %v1996, %v1997
    %v1999 = vrot.slane %v989, 1
    %v2000 = vsel %vm1410, %v1997, %v1999
    %v2001 = vrot.slane %v990, 1
    %v2002 = vrot.slane %v991, 1
    %v2003 = vsel %vm1410, %v2001, %v2002
    %v2004 = vrot.slane %v992, 1
    %v2005 = vsel %vm1410, %v2002, %v2004
    %v2006 = vrot.slane %v993, 1
    %v2007 = vrot.slane %v994, 1
    %v2008 = vsel %vm1410, %v2006, %v2007
    %v2009 = vrot.slane %v995, 1
    %v2010 = vsel %vm1410, %v2007, %v2009
    %v2011 = vrot.slane %v996, 1
    %v2012 = vrot.slane %v997, 1
    %v2013 = vsel %vm1410, %v2011, %v2012
    %v2014 = vrot.slane %v998, 1
    %v2015 = vsel %vm1410, %v2012, %v2014
    %v2016 = vrot.slane %v999, 1
    %v2017 = vrot.slane %v1000, 1
    %v2018 = vsel %vm1410, %v2016, %v2017
    %v2019 = vrot.slane %v1001, 1
    %v2020 = vsel %vm1410, %v2017, %v2019
    %v2021 = vrot.slane %v1002, 1
    %v2022 = vrot.slane %v1003, 1
    %v2023 = vsel %vm1410, %v2021, %v2022
    %v2024 = vrot.slane %v1004, 1
    %v2025 = vsel %vm1410, %v2022, %v2024
    %v2026 = vrot.slane %v1005, 1
    %v2027 = vrot.slane %v1006, 1
    %v2028 = vsel %vm1410, %v2026, %v2027
    %v2029 = vrot.slane %v1007, 1
    %v2030 = vsel %vm1410, %v2027, %v2029
    %v2031 = vrot.slane %v1008, 1
    %v2032 = vrot.slane %v1009, 1
    %v2033 = vsel %vm1410, %v2031, %v2032
    %v2034 = vrot.slane %v1010, 1
    %v2035 = vsel %vm1410, %v2032, %v2034
    %v2036 = vrot.slane %v1011, 1
    %v2037 = vrot.slane %v1012, 1
    %v2038 = vsel %vm1410, %v2036, %v2037
    %v2039 = vrot.slane %v1013, 1
    %v2040 = vsel %vm1410, %v2037, %v2039
    %v2041 = vrot.slane %v1014, 1
    %v2042 = vrot.slane %v1015, 1
    %v2043 = vsel %vm1410, %v2041, %v2042
    %v2044 = vrot.slane %v1016, 1
    %v2045 = vsel %vm1410, %v2042, %v2044
    %v2046 = vrot.slane %v1017, 1
    %v2047 = vrot.slane %v1018, 1
    %v2048 = vsel %vm1410, %v2046, %v2047
    %v2049 = vrot.slane %v1019, 1
    %v2050 = vsel %vm1410, %v2047, %v2049
    %2051 = vrot.lane.b32.xlu0 %v1413, 4
    %v2052 = vpop.permute.xlu0 %2051
    %2053 = vrot.lane.b32.xlu0 %v1415, 4
    %v2054 = vpop.permute.xlu0 %2053
    %2055 = vrot.lane.b32.xlu0 %v1418, 4
    %v2056 = vpop.permute.xlu0 %2055
    %2057 = vrot.lane.b32.xlu0 %v1420, 4
    %v2058 = vpop.permute.xlu0 %2057
    %2059 = vrot.lane.b32.xlu0 %v1423, 4
    %v2060 = vpop.permute.xlu0 %2059
    %2061 = vrot.lane.b32.xlu0 %v1425, 4
    %v2062 = vpop.permute.xlu0 %2061
    %2063 = vrot.lane.b32.xlu0 %v1428, 4
    %v2064 = vpop.permute.xlu0 %2063
    %2065 = vrot.lane.b32.xlu0 %v1430, 4
    %v2066 = vpop.permute.xlu0 %2065
    %2067 = vrot.lane.b32.xlu0 %v1433, 4
    %v2068 = vpop.permute.xlu0 %2067
    %2069 = vrot.lane.b32.xlu0 %v1435, 4
    %v2070 = vpop.permute.xlu0 %2069
    %2071 = vrot.lane.b32.xlu0 %v1438, 4
    %v2072 = vpop.permute.xlu0 %2071
    %2073 = vrot.lane.b32.xlu0 %v1440, 4
    %v2074 = vpop.permute.xlu0 %2073
    %2075 = vrot.lane.b32.xlu0 %v1443, 4
    %v2076 = vpop.permute.xlu0 %2075
    %2077 = vrot.lane.b32.xlu0 %v1445, 4
    %v2078 = vpop.permute.xlu0 %2077
    %2079 = vrot.lane.b32.xlu0 %v1448, 4
    %v2080 = vpop.permute.xlu0 %2079
    %2081 = vrot.lane.b32.xlu0 %v1450, 4
    %v2082 = vpop.permute.xlu0 %2081
    %2083 = vrot.lane.b32.xlu0 %v1453, 4
    %v2084 = vpop.permute.xlu0 %2083
    %2085 = vrot.lane.b32.xlu0 %v1455, 4
    %v2086 = vpop.permute.xlu0 %2085
    %2087 = vrot.lane.b32.xlu0 %v1458, 4
    %v2088 = vpop.permute.xlu0 %2087
    %2089 = vrot.lane.b32.xlu0 %v1460, 4
    %v2090 = vpop.permute.xlu0 %2089
    %2091 = vrot.lane.b32.xlu0 %v1463, 4
    %v2092 = vpop.permute.xlu0 %2091
    %2093 = vrot.lane.b32.xlu0 %v1465, 4
    %v2094 = vpop.permute.xlu0 %2093
    %2095 = vrot.lane.b32.xlu0 %v1468, 4
    %v2096 = vpop.permute.xlu0 %2095
    %2097 = vrot.lane.b32.xlu0 %v1470, 4
    %v2098 = vpop.permute.xlu0 %2097
    %2099 = vrot.lane.b32.xlu0 %v1473, 4
    %v2100 = vpop.permute.xlu0 %2099
    %2101 = vrot.lane.b32.xlu0 %v1475, 4
    %v2102 = vpop.permute.xlu0 %2101
    %2103 = vrot.lane.b32.xlu0 %v1478, 4
    %v2104 = vpop.permute.xlu0 %2103
    %2105 = vrot.lane.b32.xlu0 %v1480, 4
    %v2106 = vpop.permute.xlu0 %2105
    %2107 = vrot.lane.b32.xlu0 %v1483, 4
    %v2108 = vpop.permute.xlu0 %2107
    %2109 = vrot.lane.b32.xlu0 %v1485, 4
    %v2110 = vpop.permute.xlu0 %2109
    %2111 = vrot.lane.b32.xlu0 %v1488, 4
    %v2112 = vpop.permute.xlu0 %2111
    %2113 = vrot.lane.b32.xlu0 %v1490, 4
    %v2114 = vpop.permute.xlu0 %2113
    %2115 = vrot.lane.b32.xlu0 %v1493, 4
    %v2116 = vpop.permute.xlu0 %2115
    %2117 = vrot.lane.b32.xlu0 %v1495, 4
    %v2118 = vpop.permute.xlu0 %2117
    %2119 = vrot.lane.b32.xlu0 %v1498, 4
    %v2120 = vpop.permute.xlu0 %2119
    %2121 = vrot.lane.b32.xlu0 %v1500, 4
    %v2122 = vpop.permute.xlu0 %2121
    %2123 = vrot.lane.b32.xlu0 %v1503, 4
    %v2124 = vpop.permute.xlu0 %2123
    %2125 = vrot.lane.b32.xlu0 %v1505, 4
    %v2126 = vpop.permute.xlu0 %2125
    %2127 = vrot.lane.b32.xlu0 %v1508, 4
    %v2128 = vpop.permute.xlu0 %2127
    %2129 = vrot.lane.b32.xlu0 %v1510, 4
    %v2130 = vpop.permute.xlu0 %2129
    %2131 = vrot.lane.b32.xlu0 %v1513, 4
    %v2132 = vpop.permute.xlu0 %2131
    %2133 = vrot.lane.b32.xlu0 %v1515, 4
    %v2134 = vpop.permute.xlu0 %2133
    %2135 = vrot.lane.b32.xlu0 %v1518, 4
    %v2136 = vpop.permute.xlu0 %2135
    %2137 = vrot.lane.b32.xlu0 %v1520, 4
    %v2138 = vpop.permute.xlu0 %2137
    %2139 = vrot.lane.b32.xlu0 %v1523, 4
    %v2140 = vpop.permute.xlu0 %2139
    %2141 = vrot.lane.b32.xlu0 %v1525, 4
    %v2142 = vpop.permute.xlu0 %2141
    %2143 = vrot.lane.b32.xlu0 %v1528, 4
    %v2144 = vpop.permute.xlu0 %2143
    %2145 = vrot.lane.b32.xlu0 %v1530, 4
    %v2146 = vpop.permute.xlu0 %2145
    %2147 = vrot.lane.b32.xlu0 %v1533, 4
    %v2148 = vpop.permute.xlu0 %2147
    %2149 = vrot.lane.b32.xlu0 %v1535, 4
    %v2150 = vpop.permute.xlu0 %2149
    %2151 = vrot.lane.b32.xlu0 %v1538, 4
    %v2152 = vpop.permute.xlu0 %2151
    %2153 = vrot.lane.b32.xlu0 %v1540, 4
    %v2154 = vpop.permute.xlu0 %2153
    %2155 = vrot.lane.b32.xlu0 %v1543, 4
    %v2156 = vpop.permute.xlu0 %2155
    %2157 = vrot.lane.b32.xlu0 %v1545, 4
    %v2158 = vpop.permute.xlu0 %2157
    %2159 = vrot.lane.b32.xlu0 %v1548, 4
    %v2160 = vpop.permute.xlu0 %2159
    %2161 = vrot.lane.b32.xlu0 %v1550, 4
    %v2162 = vpop.permute.xlu0 %2161
    %2163 = vrot.lane.b32.xlu0 %v1553, 4
    %v2164 = vpop.permute.xlu0 %2163
    %2165 = vrot.lane.b32.xlu0 %v1555, 4
    %v2166 = vpop.permute.xlu0 %2165
    %2167 = vrot.lane.b32.xlu0 %v1558, 4
    %v2168 = vpop.permute.xlu0 %2167
    %2169 = vrot.lane.b32.xlu0 %v1560, 4
    %v2170 = vpop.permute.xlu0 %2169
    %2171 = vrot.lane.b32.xlu0 %v1563, 4
    %v2172 = vpop.permute.xlu0 %2171
    %2173 = vrot.lane.b32.xlu0 %v1565, 4
    %v2174 = vpop.permute.xlu0 %2173
    %2175 = vrot.lane.b32.xlu0 %v1568, 4
    %v2176 = vpop.permute.xlu0 %2175
    %2177 = vrot.lane.b32.xlu0 %v1570, 4
    %v2178 = vpop.permute.xlu0 %2177
    %2179 = vrot.lane.b32.xlu0 %v1573, 4
    %v2180 = vpop.permute.xlu0 %2179
    %2181 = vrot.lane.b32.xlu0 %v1575, 4
    %v2182 = vpop.permute.xlu0 %2181
    %2183 = vrot.lane.b32.xlu0 %v1578, 4
    %v2184 = vpop.permute.xlu0 %2183
    %2185 = vrot.lane.b32.xlu0 %v1580, 4
    %v2186 = vpop.permute.xlu0 %2185
    %2187 = vrot.lane.b32.xlu0 %v1583, 4
    %v2188 = vpop.permute.xlu0 %2187
    %2189 = vrot.lane.b32.xlu0 %v1585, 4
    %v2190 = vpop.permute.xlu0 %2189
    %2191 = vrot.lane.b32.xlu0 %v1588, 4
    %v2192 = vpop.permute.xlu0 %2191
    %2193 = vrot.lane.b32.xlu0 %v1590, 4
    %v2194 = vpop.permute.xlu0 %2193
    %2195 = vrot.lane.b32.xlu0 %v1593, 4
    %v2196 = vpop.permute.xlu0 %2195
    %2197 = vrot.lane.b32.xlu0 %v1595, 4
    %v2198 = vpop.permute.xlu0 %2197
    %2199 = vrot.lane.b32.xlu0 %v1598, 4
    %v2200 = vpop.permute.xlu0 %2199
    %2201 = vrot.lane.b32.xlu0 %v1600, 4
    %v2202 = vpop.permute.xlu0 %2201
    %2203 = vrot.lane.b32.xlu0 %v1603, 4
    %v2204 = vpop.permute.xlu0 %2203
    %2205 = vrot.lane.b32.xlu0 %v1605, 4
    %v2206 = vpop.permute.xlu0 %2205
    %2207 = vrot.lane.b32.xlu0 %v1608, 4
    %v2208 = vpop.permute.xlu0 %2207
    %2209 = vrot.lane.b32.xlu0 %v1610, 4
    %v2210 = vpop.permute.xlu0 %2209
    %2211 = vrot.lane.b32.xlu0 %v1613, 4
    %v2212 = vpop.permute.xlu0 %2211
    %2213 = vrot.lane.b32.xlu0 %v1615, 4
    %v2214 = vpop.permute.xlu0 %2213
    %2215 = vrot.lane.b32.xlu0 %v1618, 4
    %v2216 = vpop.permute.xlu0 %2215
    %2217 = vrot.lane.b32.xlu0 %v1620, 4
    %v2218 = vpop.permute.xlu0 %2217
    %2219 = vrot.lane.b32.xlu0 %v1623, 4
    %v2220 = vpop.permute.xlu0 %2219
    %2221 = vrot.lane.b32.xlu0 %v1625, 4
    %v2222 = vpop.permute.xlu0 %2221
    %2223 = vrot.lane.b32.xlu0 %v1628, 4
    %v2224 = vpop.permute.xlu0 %2223
    %2225 = vrot.lane.b32.xlu0 %v1630, 4
    %v2226 = vpop.permute.xlu0 %2225
    %2227 = vrot.lane.b32.xlu0 %v1633, 4
    %v2228 = vpop.permute.xlu0 %2227
    %2229 = vrot.lane.b32.xlu0 %v1635, 4
    %v2230 = vpop.permute.xlu0 %2229
    %2231 = vrot.lane.b32.xlu0 %v1638, 4
    %v2232 = vpop.permute.xlu0 %2231
    %2233 = vrot.lane.b32.xlu0 %v1640, 4
    %v2234 = vpop.permute.xlu0 %2233
    %2235 = vrot.lane.b32.xlu0 %v1643, 4
    %v2236 = vpop.permute.xlu0 %2235
    %2237 = vrot.lane.b32.xlu0 %v1645, 4
    %v2238 = vpop.permute.xlu0 %2237
    %2239 = vrot.lane.b32.xlu0 %v1648, 4
    %v2240 = vpop.permute.xlu0 %2239
    %2241 = vrot.lane.b32.xlu0 %v1650, 4
    %v2242 = vpop.permute.xlu0 %2241
    %2243 = vrot.lane.b32.xlu0 %v1653, 4
    %v2244 = vpop.permute.xlu0 %2243
    %2245 = vrot.lane.b32.xlu0 %v1655, 4
    %v2246 = vpop.permute.xlu0 %2245
    %2247 = vrot.lane.b32.xlu0 %v1658, 4
    %v2248 = vpop.permute.xlu0 %2247
    %2249 = vrot.lane.b32.xlu0 %v1660, 4
    %v2250 = vpop.permute.xlu0 %2249
    %2251 = vrot.lane.b32.xlu0 %v1663, 4
    %v2252 = vpop.permute.xlu0 %2251
    %2253 = vrot.lane.b32.xlu0 %v1665, 4
    %v2254 = vpop.permute.xlu0 %2253
    %2255 = vrot.lane.b32.xlu0 %v1668, 4
    %v2256 = vpop.permute.xlu0 %2255
    %2257 = vrot.lane.b32.xlu0 %v1670, 4
    %v2258 = vpop.permute.xlu0 %2257
    %2259 = vrot.lane.b32.xlu0 %v1673, 4
    %v2260 = vpop.permute.xlu0 %2259
    %2261 = vrot.lane.b32.xlu0 %v1675, 4
    %v2262 = vpop.permute.xlu0 %2261
    %2263 = vrot.lane.b32.xlu0 %v1678, 4
    %v2264 = vpop.permute.xlu0 %2263
    %2265 = vrot.lane.b32.xlu0 %v1680, 4
    %v2266 = vpop.permute.xlu0 %2265
    %2267 = vrot.lane.b32.xlu0 %v1683, 4
    %v2268 = vpop.permute.xlu0 %2267
    %2269 = vrot.lane.b32.xlu0 %v1685, 4
    %v2270 = vpop.permute.xlu0 %2269
    %2271 = vrot.lane.b32.xlu0 %v1688, 4
    %v2272 = vpop.permute.xlu0 %2271
    %2273 = vrot.lane.b32.xlu0 %v1690, 4
    %v2274 = vpop.permute.xlu0 %2273
    %2275 = vrot.lane.b32.xlu0 %v1693, 4
    %v2276 = vpop.permute.xlu0 %2275
    %2277 = vrot.lane.b32.xlu0 %v1695, 4
    %v2278 = vpop.permute.xlu0 %2277
    %2279 = vrot.lane.b32.xlu0 %v1698, 4
    %v2280 = vpop.permute.xlu0 %2279
    %2281 = vrot.lane.b32.xlu0 %v1700, 4
    %v2282 = vpop.permute.xlu0 %2281
    %2283 = vrot.lane.b32.xlu0 %v1703, 4
    %v2284 = vpop.permute.xlu0 %2283
    %2285 = vrot.lane.b32.xlu0 %v1705, 4
    %v2286 = vpop.permute.xlu0 %2285
    %2287 = vrot.lane.b32.xlu0 %v1708, 4
    %v2288 = vpop.permute.xlu0 %2287
    %2289 = vrot.lane.b32.xlu0 %v1710, 4
    %v2290 = vpop.permute.xlu0 %2289
    %2291 = vrot.lane.b32.xlu0 %v1713, 4
    %v2292 = vpop.permute.xlu0 %2291
    %2293 = vrot.lane.b32.xlu0 %v1715, 4
    %v2294 = vpop.permute.xlu0 %2293
    %2295 = vrot.lane.b32.xlu0 %v1718, 4
    %v2296 = vpop.permute.xlu0 %2295
    %2297 = vrot.lane.b32.xlu0 %v1720, 4
    %v2298 = vpop.permute.xlu0 %2297
    %2299 = vrot.lane.b32.xlu0 %v1723, 4
    %v2300 = vpop.permute.xlu0 %2299
    %2301 = vrot.lane.b32.xlu0 %v1725, 4
    %v2302 = vpop.permute.xlu0 %2301
    %2303 = vrot.lane.b32.xlu0 %v1728, 4
    %v2304 = vpop.permute.xlu0 %2303
    %2305 = vrot.lane.b32.xlu0 %v1730, 4
    %v2306 = vpop.permute.xlu0 %2305
    %2307 = vrot.lane.b32.xlu0 %v1733, 4
    %v2308 = vpop.permute.xlu0 %2307
    %2309 = vrot.lane.b32.xlu0 %v1735, 4
    %v2310 = vpop.permute.xlu0 %2309
    %2311 = vrot.lane.b32.xlu0 %v1738, 4
    %v2312 = vpop.permute.xlu0 %2311
    %2313 = vrot.lane.b32.xlu0 %v1740, 4
    %v2314 = vpop.permute.xlu0 %2313
    %2315 = vrot.lane.b32.xlu0 %v1743, 4
    %v2316 = vpop.permute.xlu0 %2315
    %2317 = vrot.lane.b32.xlu0 %v1745, 4
    %v2318 = vpop.permute.xlu0 %2317
    %2319 = vrot.lane.b32.xlu0 %v1748, 4
    %v2320 = vpop.permute.xlu0 %2319
    %2321 = vrot.lane.b32.xlu0 %v1750, 4
    %v2322 = vpop.permute.xlu0 %2321
    %2323 = vrot.lane.b32.xlu0 %v1753, 4
    %v2324 = vpop.permute.xlu0 %2323
    %2325 = vrot.lane.b32.xlu0 %v1755, 4
    %v2326 = vpop.permute.xlu0 %2325
    %2327 = vrot.lane.b32.xlu0 %v1758, 4
    %v2328 = vpop.permute.xlu0 %2327
    %2329 = vrot.lane.b32.xlu0 %v1760, 4
    %v2330 = vpop.permute.xlu0 %2329
    %2331 = vrot.lane.b32.xlu0 %v1763, 4
    %v2332 = vpop.permute.xlu0 %2331
    %2333 = vrot.lane.b32.xlu0 %v1765, 4
    %v2334 = vpop.permute.xlu0 %2333
    %2335 = vrot.lane.b32.xlu0 %v1768, 4
    %v2336 = vpop.permute.xlu0 %2335
    %2337 = vrot.lane.b32.xlu0 %v1770, 4
    %v2338 = vpop.permute.xlu0 %2337
    %2339 = vrot.lane.b32.xlu0 %v1773, 4
    %v2340 = vpop.permute.xlu0 %2339
    %2341 = vrot.lane.b32.xlu0 %v1775, 4
    %v2342 = vpop.permute.xlu0 %2341
    %2343 = vrot.lane.b32.xlu0 %v1778, 4
    %v2344 = vpop.permute.xlu0 %2343
    %2345 = vrot.lane.b32.xlu0 %v1780, 4
    %v2346 = vpop.permute.xlu0 %2345
    %2347 = vrot.lane.b32.xlu0 %v1783, 4
    %v2348 = vpop.permute.xlu0 %2347
    %2349 = vrot.lane.b32.xlu0 %v1785, 4
    %v2350 = vpop.permute.xlu0 %2349
    %2351 = vrot.lane.b32.xlu0 %v1788, 4
    %v2352 = vpop.permute.xlu0 %2351
    %2353 = vrot.lane.b32.xlu0 %v1790, 4
    %v2354 = vpop.permute.xlu0 %2353
    %2355 = vrot.lane.b32.xlu0 %v1793, 4
    %v2356 = vpop.permute.xlu0 %2355
    %2357 = vrot.lane.b32.xlu0 %v1795, 4
    %v2358 = vpop.permute.xlu0 %2357
    %2359 = vrot.lane.b32.xlu0 %v1798, 4
    %v2360 = vpop.permute.xlu0 %2359
    %2361 = vrot.lane.b32.xlu0 %v1800, 4
    %v2362 = vpop.permute.xlu0 %2361
    %2363 = vrot.lane.b32.xlu0 %v1803, 4
    %v2364 = vpop.permute.xlu0 %2363
    %2365 = vrot.lane.b32.xlu0 %v1805, 4
    %v2366 = vpop.permute.xlu0 %2365
    %2367 = vrot.lane.b32.xlu0 %v1808, 4
    %v2368 = vpop.permute.xlu0 %2367
    %2369 = vrot.lane.b32.xlu0 %v1810, 4
    %v2370 = vpop.permute.xlu0 %2369
    %2371 = vrot.lane.b32.xlu0 %v1813, 4
    %v2372 = vpop.permute.xlu0 %2371
    %2373 = vrot.lane.b32.xlu0 %v1815, 4
    %v2374 = vpop.permute.xlu0 %2373
    %2375 = vrot.lane.b32.xlu0 %v1818, 4
    %v2376 = vpop.permute.xlu0 %2375
    %2377 = vrot.lane.b32.xlu0 %v1820, 4
    %v2378 = vpop.permute.xlu0 %2377
    %2379 = vrot.lane.b32.xlu0 %v1823, 4
    %v2380 = vpop.permute.xlu0 %2379
    %2381 = vrot.lane.b32.xlu0 %v1825, 4
    %v2382 = vpop.permute.xlu0 %2381
    %2383 = vrot.lane.b32.xlu0 %v1828, 4
    %v2384 = vpop.permute.xlu0 %2383
    %2385 = vrot.lane.b32.xlu0 %v1830, 4
    %v2386 = vpop.permute.xlu0 %2385
    %2387 = vrot.lane.b32.xlu0 %v1833, 4
    %v2388 = vpop.permute.xlu0 %2387
    %2389 = vrot.lane.b32.xlu0 %v1835, 4
    %v2390 = vpop.permute.xlu0 %2389
    %2391 = vrot.lane.b32.xlu0 %v1838, 4
    %v2392 = vpop.permute.xlu0 %2391
    %2393 = vrot.lane.b32.xlu0 %v1840, 4
    %v2394 = vpop.permute.xlu0 %2393
    %2395 = vrot.lane.b32.xlu0 %v1843, 4
    %v2396 = vpop.permute.xlu0 %2395
    %2397 = vrot.lane.b32.xlu0 %v1845, 4
    %v2398 = vpop.permute.xlu0 %2397
    %2399 = vrot.lane.b32.xlu0 %v1848, 4
    %v2400 = vpop.permute.xlu0 %2399
    %2401 = vrot.lane.b32.xlu0 %v1850, 4
    %v2402 = vpop.permute.xlu0 %2401
    %2403 = vrot.lane.b32.xlu0 %v1853, 4
    %v2404 = vpop.permute.xlu0 %2403
    %2405 = vrot.lane.b32.xlu0 %v1855, 4
    %v2406 = vpop.permute.xlu0 %2405
    %2407 = vrot.lane.b32.xlu0 %v1858, 4
    %v2408 = vpop.permute.xlu0 %2407
    %2409 = vrot.lane.b32.xlu0 %v1860, 4
    %v2410 = vpop.permute.xlu0 %2409
    %2411 = vrot.lane.b32.xlu0 %v1863, 4
    %v2412 = vpop.permute.xlu0 %2411
    %2413 = vrot.lane.b32.xlu0 %v1865, 4
    %v2414 = vpop.permute.xlu0 %2413
    %2415 = vrot.lane.b32.xlu0 %v1868, 4
    %v2416 = vpop.permute.xlu0 %2415
    %2417 = vrot.lane.b32.xlu0 %v1870, 4
    %v2418 = vpop.permute.xlu0 %2417
    %2419 = vrot.lane.b32.xlu0 %v1873, 4
    %v2420 = vpop.permute.xlu0 %2419
    %2421 = vrot.lane.b32.xlu0 %v1875, 4
    %v2422 = vpop.permute.xlu0 %2421
    %2423 = vrot.lane.b32.xlu0 %v1878, 4
    %v2424 = vpop.permute.xlu0 %2423
    %2425 = vrot.lane.b32.xlu0 %v1880, 4
    %v2426 = vpop.permute.xlu0 %2425
    %2427 = vrot.lane.b32.xlu0 %v1883, 4
    %v2428 = vpop.permute.xlu0 %2427
    %2429 = vrot.lane.b32.xlu0 %v1885, 4
    %v2430 = vpop.permute.xlu0 %2429
    %2431 = vrot.lane.b32.xlu0 %v1888, 4
    %v2432 = vpop.permute.xlu0 %2431
    %2433 = vrot.lane.b32.xlu0 %v1890, 4
    %v2434 = vpop.permute.xlu0 %2433
    %2435 = vrot.lane.b32.xlu0 %v1893, 4
    %v2436 = vpop.permute.xlu0 %2435
    %2437 = vrot.lane.b32.xlu0 %v1895, 4
    %v2438 = vpop.permute.xlu0 %2437
    %2439 = vrot.lane.b32.xlu0 %v1898, 4
    %v2440 = vpop.permute.xlu0 %2439
    %2441 = vrot.lane.b32.xlu0 %v1900, 4
    %v2442 = vpop.permute.xlu0 %2441
    %2443 = vrot.lane.b32.xlu0 %v1903, 4
    %v2444 = vpop.permute.xlu0 %2443
    %2445 = vrot.lane.b32.xlu0 %v1905, 4
    %v2446 = vpop.permute.xlu0 %2445
    %2447 = vrot.lane.b32.xlu0 %v1908, 4
    %v2448 = vpop.permute.xlu0 %2447
    %2449 = vrot.lane.b32.xlu0 %v1910, 4
    %v2450 = vpop.permute.xlu0 %2449
    %2451 = vrot.lane.b32.xlu0 %v1913, 4
    %v2452 = vpop.permute.xlu0 %2451
    %2453 = vrot.lane.b32.xlu0 %v1915, 4
    %v2454 = vpop.permute.xlu0 %2453
    %2455 = vrot.lane.b32.xlu0 %v1918, 4
    %v2456 = vpop.permute.xlu0 %2455
    %2457 = vrot.lane.b32.xlu0 %v1920, 4
    %v2458 = vpop.permute.xlu0 %2457
    %2459 = vrot.lane.b32.xlu0 %v1923, 4
    %v2460 = vpop.permute.xlu0 %2459
    %2461 = vrot.lane.b32.xlu0 %v1925, 4
    %v2462 = vpop.permute.xlu0 %2461
    %2463 = vrot.lane.b32.xlu0 %v1928, 4
    %v2464 = vpop.permute.xlu0 %2463
    %2465 = vrot.lane.b32.xlu0 %v1930, 4
    %v2466 = vpop.permute.xlu0 %2465
    %2467 = vrot.lane.b32.xlu0 %v1933, 4
    %v2468 = vpop.permute.xlu0 %2467
    %2469 = vrot.lane.b32.xlu0 %v1935, 4
    %v2470 = vpop.permute.xlu0 %2469
    %2471 = vrot.lane.b32.xlu0 %v1938, 4
    %v2472 = vpop.permute.xlu0 %2471
    %2473 = vrot.lane.b32.xlu0 %v1940, 4
    %v2474 = vpop.permute.xlu0 %2473
    %2475 = vrot.lane.b32.xlu0 %v1943, 4
    %v2476 = vpop.permute.xlu0 %2475
    %2477 = vrot.lane.b32.xlu0 %v1945, 4
    %v2478 = vpop.permute.xlu0 %2477
    %2479 = vrot.lane.b32.xlu0 %v1948, 4
    %v2480 = vpop.permute.xlu0 %2479
    %2481 = vrot.lane.b32.xlu0 %v1950, 4
    %v2482 = vpop.permute.xlu0 %2481
    %2483 = vrot.lane.b32.xlu0 %v1953, 4
    %v2484 = vpop.permute.xlu0 %2483
    %2485 = vrot.lane.b32.xlu0 %v1955, 4
    %v2486 = vpop.permute.xlu0 %2485
    %2487 = vrot.lane.b32.xlu0 %v1958, 4
    %v2488 = vpop.permute.xlu0 %2487
    %2489 = vrot.lane.b32.xlu0 %v1960, 4
    %v2490 = vpop.permute.xlu0 %2489
    %2491 = vrot.lane.b32.xlu0 %v1963, 4
    %v2492 = vpop.permute.xlu0 %2491
    %2493 = vrot.lane.b32.xlu0 %v1965, 4
    %v2494 = vpop.permute.xlu0 %2493
    %2495 = vrot.lane.b32.xlu0 %v1968, 4
    %v2496 = vpop.permute.xlu0 %2495
    %2497 = vrot.lane.b32.xlu0 %v1970, 4
    %v2498 = vpop.permute.xlu0 %2497
    %2499 = vrot.lane.b32.xlu0 %v1973, 4
    %v2500 = vpop.permute.xlu0 %2499
    %2501 = vrot.lane.b32.xlu0 %v1975, 4
    %v2502 = vpop.permute.xlu0 %2501
    %2503 = vrot.lane.b32.xlu0 %v1978, 4
    %v2504 = vpop.permute.xlu0 %2503
    %2505 = vrot.lane.b32.xlu0 %v1980, 4
    %v2506 = vpop.permute.xlu0 %2505
    %2507 = vrot.lane.b32.xlu0 %v1983, 4
    %v2508 = vpop.permute.xlu0 %2507
    %2509 = vrot.lane.b32.xlu0 %v1985, 4
    %v2510 = vpop.permute.xlu0 %2509
    %2511 = vrot.lane.b32.xlu0 %v1988, 4
    %v2512 = vpop.permute.xlu0 %2511
    %2513 = vrot.lane.b32.xlu0 %v1990, 4
    %v2514 = vpop.permute.xlu0 %2513
    %2515 = vrot.lane.b32.xlu0 %v1993, 4
    %v2516 = vpop.permute.xlu0 %2515
    %2517 = vrot.lane.b32.xlu0 %v1995, 4
    %v2518 = vpop.permute.xlu0 %2517
    %2519 = vrot.lane.b32.xlu0 %v1998, 4
    %v2520 = vpop.permute.xlu0 %2519
    %2521 = vrot.lane.b32.xlu0 %v2000, 4
    %v2522 = vpop.permute.xlu0 %2521
    %2523 = vrot.lane.b32.xlu0 %v2003, 4
    %v2524 = vpop.permute.xlu0 %2523
    %2525 = vrot.lane.b32.xlu0 %v2005, 4
    %v2526 = vpop.permute.xlu0 %2525
    %2527 = vrot.lane.b32.xlu0 %v2008, 4
    %v2528 = vpop.permute.xlu0 %2527
    %2529 = vrot.lane.b32.xlu0 %v2010, 4
    %v2530 = vpop.permute.xlu0 %2529
    %2531 = vrot.lane.b32.xlu0 %v2013, 4
    %v2532 = vpop.permute.xlu0 %2531
    %2533 = vrot.lane.b32.xlu0 %v2015, 4
    %v2534 = vpop.permute.xlu0 %2533
    %2535 = vrot.lane.b32.xlu0 %v2018, 4
    %v2536 = vpop.permute.xlu0 %2535
    %2537 = vrot.lane.b32.xlu0 %v2020, 4
    %v2538 = vpop.permute.xlu0 %2537
    %2539 = vrot.lane.b32.xlu0 %v2023, 4
    %v2540 = vpop.permute.xlu0 %2539
    %2541 = vrot.lane.b32.xlu0 %v2025, 4
    %v2542 = vpop.permute.xlu0 %2541
    %2543 = vrot.lane.b32.xlu0 %v2028, 4
    %v2544 = vpop.permute.xlu0 %2543
    %2545 = vrot.lane.b32.xlu0 %v2030, 4
    %v2546 = vpop.permute.xlu0 %2545
    %2547 = vrot.lane.b32.xlu0 %v2033, 4
    %v2548 = vpop.permute.xlu0 %2547
    %2549 = vrot.lane.b32.xlu0 %v2035, 4
    %v2550 = vpop.permute.xlu0 %2549
    %2551 = vrot.lane.b32.xlu0 %v2038, 4
    %v2552 = vpop.permute.xlu0 %2551
    %2553 = vrot.lane.b32.xlu0 %v2040, 4
    %v2554 = vpop.permute.xlu0 %2553
    %2555 = vrot.lane.b32.xlu0 %v2043, 4
    %v2556 = vpop.permute.xlu0 %2555
    %2557 = vrot.lane.b32.xlu0 %v2045, 4
    %v2558 = vpop.permute.xlu0 %2557
    %2559 = vrot.lane.b32.xlu0 %v2048, 4
    %v2560 = vpop.permute.xlu0 %2559
    %2561 = vrot.lane.b32.xlu0 %v2050, 4
    %v2562 = vpop.permute.xlu0 %2561
    %vm2819 = vcmask 1045504
    %v2820 = vrot.slane %v594, 2
    %v2821 = vrot.slane %v595, 2
    %v2822 = vsel %vm2819, %v2820, %v2821
    %v2823 = vrot.slane %v596, 2
    %v2824 = vsel %vm2819, %v2821, %v2823
    %v2825 = vrot.slane %v597, 2
    %v2826 = vrot.slane %v598, 2
    %v2827 = vsel %vm2819, %v2825, %v2826
    %v2828 = vrot.slane %v599, 2
    %v2829 = vsel %vm2819, %v2826, %v2828
    %v2830 = vrot.slane %v600, 2
    %v2831 = vrot.slane %v601, 2
    %v2832 = vsel %vm2819, %v2830, %v2831
    %v2833 = vrot.slane %v602, 2
    %v2834 = vsel %vm2819, %v2831, %v2833
    %v2835 = vrot.slane %v603, 2
    %v2836 = vrot.slane %v604, 2
    %v2837 = vsel %vm2819, %v2835, %v2836
    %v2838 = vrot.slane %v605, 2
    %v2839 = vsel %vm2819, %v2836, %v2838
    %v2840 = vrot.slane %v606, 2
    %v2841 = vrot.slane %v607, 2
    %v2842 = vsel %vm2819, %v2840, %v2841
    %v2843 = vrot.slane %v608, 2
    %v2844 = vsel %vm2819, %v2841, %v2843
    %v2845 = vrot.slane %v609, 2
    %v2846 = vrot.slane %v610, 2
    %v2847 = vsel %vm2819, %v2845, %v2846
    %v2848 = vrot.slane %v611, 2
    %v2849 = vsel %vm2819, %v2846, %v2848
    %v2850 = vrot.slane %v612, 2
    %v2851 = vrot.slane %v613, 2
    %v2852 = vsel %vm2819, %v2850, %v2851
    %v2853 = vrot.slane %v614, 2
    %v2854 = vsel %vm2819, %v2851, %v2853
    %v2855 = vrot.slane %v615, 2
    %v2856 = vrot.slane %v616, 2
    %v2857 = vsel %vm2819, %v2855, %v2856
    %v2858 = vrot.slane %v617, 2
    %v2859 = vsel %vm2819, %v2856, %v2858
    %v2860 = vrot.slane %v618, 2
    %v2861 = vrot.slane %v619, 2
    %v2862 = vsel %vm2819, %v2860, %v2861
    %v2863 = vrot.slane %v620, 2
    %v2864 = vsel %vm2819, %v2861, %v2863
    %v2865 = vrot.slane %v621, 2
    %v2866 = vrot.slane %v622, 2
    %v2867 = vsel %vm2819, %v2865, %v2866
    %v2868 = vrot.slane %v623, 2
    %v2869 = vsel %vm2819, %v2866, %v2868
    %v2870 = vrot.slane %v624, 2
    %v2871 = vrot.slane %v625, 2
    %v2872 = vsel %vm2819, %v2870, %v2871
    %v2873 = vrot.slane %v626, 2
    %v2874 = vsel %vm2819, %v2871, %v2873
    %v2875 = vrot.slane %v627, 2
    %v2876 = vrot.slane %v628, 2
    %v2877 = vsel %vm2819, %v2875, %v2876
    %v2878 = vrot.slane %v629, 2
    %v2879 = vsel %vm2819, %v2876, %v2878
    %v2880 = vrot.slane %v630, 2
    %v2881 = vrot.slane %v631, 2
    %v2882 = vsel %vm2819, %v2880, %v2881
    %v2883 = vrot.slane %v632, 2
    %v2884 = vsel %vm2819, %v2881, %v2883
    %v2885 = vrot.slane %v633, 2
    %v2886 = vrot.slane %v634, 2
    %v2887 = vsel %vm2819, %v2885, %v2886
    %v2888 = vrot.slane %v635, 2
    %v2889 = vsel %vm2819, %v2886, %v2888
    %v2890 = vrot.slane %v636, 2
    %v2891 = vrot.slane %v637, 2
    %v2892 = vsel %vm2819, %v2890, %v2891
    %v2893 = vrot.slane %v638, 2
    %v2894 = vsel %vm2819, %v2891, %v2893
    %v2895 = vrot.slane %v639, 2
    %v2896 = vrot.slane %v640, 2
    %v2897 = vsel %vm2819, %v2895, %v2896
    %v2898 = vrot.slane %v641, 2
    %v2899 = vsel %vm2819, %v2896, %v2898
    %v2900 = vrot.slane %v648, 2
    %v2901 = vrot.slane %v649, 2
    %v2902 = vsel %vm2819, %v2900, %v2901
    %v2903 = vrot.slane %v650, 2
    %v2904 = vsel %vm2819, %v2901, %v2903
    %v2905 = vrot.slane %v651, 2
    %v2906 = vrot.slane %v652, 2
    %v2907 = vsel %vm2819, %v2905, %v2906
    %v2908 = vrot.slane %v653, 2
    %v2909 = vsel %vm2819, %v2906, %v2908
    %v2910 = vrot.slane %v654, 2
    %v2911 = vrot.slane %v655, 2
    %v2912 = vsel %vm2819, %v2910, %v2911
    %v2913 = vrot.slane %v656, 2
    %v2914 = vsel %vm2819, %v2911, %v2913
    %v2915 = vrot.slane %v657, 2
    %v2916 = vrot.slane %v658, 2
    %v2917 = vsel %vm2819, %v2915, %v2916
    %v2918 = vrot.slane %v659, 2
    %v2919 = vsel %vm2819, %v2916, %v2918
    %v2920 = vrot.slane %v660, 2
    %v2921 = vrot.slane %v661, 2
    %v2922 = vsel %vm2819, %v2920, %v2921
    %v2923 = vrot.slane %v662, 2
    %v2924 = vsel %vm2819, %v2921, %v2923
    %v2925 = vrot.slane %v663, 2
    %v2926 = vrot.slane %v664, 2
    %v2927 = vsel %vm2819, %v2925, %v2926
    %v2928 = vrot.slane %v665, 2
    %v2929 = vsel %vm2819, %v2926, %v2928
    %v2930 = vrot.slane %v666, 2
    %v2931 = vrot.slane %v667, 2
    %v2932 = vsel %vm2819, %v2930, %v2931
    %v2933 = vrot.slane %v668, 2
    %v2934 = vsel %vm2819, %v2931, %v2933
    %v2935 = vrot.slane %v669, 2
    %v2936 = vrot.slane %v670, 2
    %v2937 = vsel %vm2819, %v2935, %v2936
    %v2938 = vrot.slane %v671, 2
    %v2939 = vsel %vm2819, %v2936, %v2938
    %v2940 = vrot.slane %v672, 2
    %v2941 = vrot.slane %v673, 2
    %v2942 = vsel %vm2819, %v2940, %v2941
    %v2943 = vrot.slane %v674, 2
    %v2944 = vsel %vm2819, %v2941, %v2943
    %v2945 = vrot.slane %v675, 2
    %v2946 = vrot.slane %v676, 2
    %v2947 = vsel %vm2819, %v2945, %v2946
    %v2948 = vrot.slane %v677, 2
    %v2949 = vsel %vm2819, %v2946, %v2948
    %v2950 = vrot.slane %v678, 2
    %v2951 = vrot.slane %v679, 2
    %v2952 = vsel %vm2819, %v2950, %v2951
    %v2953 = vrot.slane %v680, 2
    %v2954 = vsel %vm2819, %v2951, %v2953
    %v2955 = vrot.slane %v681, 2
    %v2956 = vrot.slane %v682, 2
    %v2957 = vsel %vm2819, %v2955, %v2956
    %v2958 = vrot.slane %v683, 2
    %v2959 = vsel %vm2819, %v2956, %v2958
    %v2960 = vrot.slane %v684, 2
    %v2961 = vrot.slane %v685, 2
    %v2962 = vsel %vm2819, %v2960, %v2961
    %v2963 = vrot.slane %v686, 2
    %v2964 = vsel %vm2819, %v2961, %v2963
    %v2965 = vrot.slane %v687, 2
    %v2966 = vrot.slane %v688, 2
    %v2967 = vsel %vm2819, %v2965, %v2966
    %v2968 = vrot.slane %v689, 2
    %v2969 = vsel %vm2819, %v2966, %v2968
    %v2970 = vrot.slane %v690, 2
    %v2971 = vrot.slane %v691, 2
    %v2972 = vsel %vm2819, %v2970, %v2971
    %v2973 = vrot.slane %v692, 2
    %v2974 = vsel %vm2819, %v2971, %v2973
    %v2975 = vrot.slane %v693, 2
    %v2976 = vrot.slane %v694, 2
    %v2977 = vsel %vm2819, %v2975, %v2976
    %v2978 = vrot.slane %v695, 2
    %v2979 = vsel %vm2819, %v2976, %v2978
    %v2980 = vrot.slane %v702, 2
    %v2981 = vrot.slane %v703, 2
    %v2982 = vsel %vm2819, %v2980, %v2981
    %v2983 = vrot.slane %v704, 2
    %v2984 = vsel %vm2819, %v2981, %v2983
    %v2985 = vrot.slane %v705, 2
    %v2986 = vrot.slane %v706, 2
    %v2987 = vsel %vm2819, %v2985, %v2986
    %v2988 = vrot.slane %v707, 2
    %v2989 = vsel %vm2819, %v2986, %v2988
    %v2990 = vrot.slane %v708, 2
    %v2991 = vrot.slane %v709, 2
    %v2992 = vsel %vm2819, %v2990, %v2991
    %v2993 = vrot.slane %v710, 2
    %v2994 = vsel %vm2819, %v2991, %v2993
    %v2995 = vrot.slane %v711, 2
    %v2996 = vrot.slane %v712, 2
    %v2997 = vsel %vm2819, %v2995, %v2996
    %v2998 = vrot.slane %v713, 2
    %v2999 = vsel %vm2819, %v2996, %v2998
    %v3000 = vrot.slane %v714, 2
    %v3001 = vrot.slane %v715, 2
    %v3002 = vsel %vm2819, %v3000, %v3001
    %v3003 = vrot.slane %v716, 2
    %v3004 = vsel %vm2819, %v3001, %v3003
    %v3005 = vrot.slane %v717, 2
    %v3006 = vrot.slane %v718, 2
    %v3007 = vsel %vm2819, %v3005, %v3006
    %v3008 = vrot.slane %v719, 2
    %v3009 = vsel %vm2819, %v3006, %v3008
    %v3010 = vrot.slane %v720, 2
    %v3011 = vrot.slane %v721, 2
    %v3012 = vsel %vm2819, %v3010, %v3011
    %v3013 = vrot.slane %v722, 2
    %v3014 = vsel %vm2819, %v3011, %v3013
    %v3015 = vrot.slane %v723, 2
    %v3016 = vrot.slane %v724, 2
    %v3017 = vsel %vm2819, %v3015, %v3016
    %v3018 = vrot.slane %v725, 2
    %v3019 = vsel %vm2819, %v3016, %v3018
    %v3020 = vrot.slane %v726, 2
    %v3021 = vrot.slane %v727, 2
    %v3022 = vsel %vm2819, %v3020, %v3021
    %v3023 = vrot.slane %v728, 2
    %v3024 = vsel %vm2819, %v3021, %v3023
    %v3025 = vrot.slane %v729, 2
    %v3026 = vrot.slane %v730, 2
    %v3027 = vsel %vm2819, %v3025, %v3026
    %v3028 = vrot.slane %v731, 2
    %v3029 = vsel %vm2819, %v3026, %v3028
    %v3030 = vrot.slane %v732, 2
    %v3031 = vrot.slane %v733, 2
    %v3032 = vsel %vm2819, %v3030, %v3031
    %v3033 = vrot.slane %v734, 2
    %v3034 = vsel %vm2819, %v3031, %v3033
    %v3035 = vrot.slane %v735, 2
    %v3036 = vrot.slane %v736, 2
    %v3037 = vsel %vm2819, %v3035, %v3036
    %v3038 = vrot.slane %v737, 2
    %v3039 = vsel %vm2819, %v3036, %v3038
    %v3040 = vrot.slane %v738, 2
    %v3041 = vrot.slane %v739, 2
    %v3042 = vsel %vm2819, %v3040, %v3041
    %v3043 = vrot.slane %v740, 2
    %v3044 = vsel %vm2819, %v3041, %v3043
    %v3045 = vrot.slane %v741, 2
    %v3046 = vrot.slane %v742, 2
    %v3047 = vsel %vm2819, %v3045, %v3046
    %v3048 = vrot.slane %v743, 2
    %v3049 = vsel %vm2819, %v3046, %v3048
    %v3050 = vrot.slane %v744, 2
    %v3051 = vrot.slane %v745, 2
    %v3052 = vsel %vm2819, %v3050, %v3051
    %v3053 = vrot.slane %v746, 2
    %v3054 = vsel %vm2819, %v3051, %v3053
    %v3055 = vrot.slane %v747, 2
    %v3056 = vrot.slane %v748, 2
    %v3057 = vsel %vm2819, %v3055, %v3056
    %v3058 = vrot.slane %v749, 2
    %v3059 = vsel %vm2819, %v3056, %v3058
    %v3060 = vrot.slane %v756, 2
    %v3061 = vrot.slane %v757, 2
    %v3062 = vsel %vm2819, %v3060, %v3061
    %v3063 = vrot.slane %v758, 2
    %v3064 = vsel %vm2819, %v3061, %v3063
    %v3065 = vrot.slane %v759, 2
    %v3066 = vrot.slane %v760, 2
    %v3067 = vsel %vm2819, %v3065, %v3066
    %v3068 = vrot.slane %v761, 2
    %v3069 = vsel %vm2819, %v3066, %v3068
    %v3070 = vrot.slane %v762, 2
    %v3071 = vrot.slane %v763, 2
    %v3072 = vsel %vm2819, %v3070, %v3071
    %v3073 = vrot.slane %v764, 2
    %v3074 = vsel %vm2819, %v3071, %v3073
    %v3075 = vrot.slane %v765, 2
    %v3076 = vrot.slane %v766, 2
    %v3077 = vsel %vm2819, %v3075, %v3076
    %v3078 = vrot.slane %v767, 2
    %v3079 = vsel %vm2819, %v3076, %v3078
    %v3080 = vrot.slane %v768, 2
    %v3081 = vrot.slane %v769, 2
    %v3082 = vsel %vm2819, %v3080, %v3081
    %v3083 = vrot.slane %v770, 2
    %v3084 = vsel %vm2819, %v3081, %v3083
    %v3085 = vrot.slane %v771, 2
    %v3086 = vrot.slane %v772, 2
    %v3087 = vsel %vm2819, %v3085, %v3086
    %v3088 = vrot.slane %v773, 2
    %v3089 = vsel %vm2819, %v3086, %v3088
    %v3090 = vrot.slane %v774, 2
    %v3091 = vrot.slane %v775, 2
    %v3092 = vsel %vm2819, %v3090, %v3091
    %v3093 = vrot.slane %v776, 2
    %v3094 = vsel %vm2819, %v3091, %v3093
    %v3095 = vrot.slane %v777, 2
    %v3096 = vrot.slane %v778, 2
    %v3097 = vsel %vm2819, %v3095, %v3096
    %v3098 = vrot.slane %v779, 2
    %v3099 = vsel %vm2819, %v3096, %v3098
    %v3100 = vrot.slane %v780, 2
    %v3101 = vrot.slane %v781, 2
    %v3102 = vsel %vm2819, %v3100, %v3101
    %v3103 = vrot.slane %v782, 2
    %v3104 = vsel %vm2819, %v3101, %v3103
    %v3105 = vrot.slane %v783, 2
    %v3106 = vrot.slane %v784, 2
    %v3107 = vsel %vm2819, %v3105, %v3106
    %v3108 = vrot.slane %v785, 2
    %v3109 = vsel %vm2819, %v3106, %v3108
    %v3110 = vrot.slane %v786, 2
    %v3111 = vrot.slane %v787, 2
    %v3112 = vsel %vm2819, %v3110, %v3111
    %v3113 = vrot.slane %v788, 2
    %v3114 = vsel %vm2819, %v3111, %v3113
    %v3115 = vrot.slane %v789, 2
    %v3116 = vrot.slane %v790, 2
    %v3117 = vsel %vm2819, %v3115, %v3116
    %v3118 = vrot.slane %v791, 2
    %v3119 = vsel %vm2819, %v3116, %v3118
    %v3120 = vrot.slane %v792, 2
    %v3121 = vrot.slane %v793, 2
    %v3122 = vsel %vm2819, %v3120, %v3121
    %v3123 = vrot.slane %v794, 2
    %v3124 = vsel %vm2819, %v3121, %v3123
    %v3125 = vrot.slane %v795, 2
    %v3126 = vrot.slane %v796, 2
    %v3127 = vsel %vm2819, %v3125, %v3126
    %v3128 = vrot.slane %v797, 2
    %v3129 = vsel %vm2819, %v3126, %v3128
    %v3130 = vrot.slane %v798, 2
    %v3131 = vrot.slane %v799, 2
    %v3132 = vsel %vm2819, %v3130, %v3131
    %v3133 = vrot.slane %v800, 2
    %v3134 = vsel %vm2819, %v3131, %v3133
    %v3135 = vrot.slane %v801, 2
    %v3136 = vrot.slane %v802, 2
    %v3137 = vsel %vm2819, %v3135, %v3136
    %v3138 = vrot.slane %v803, 2
    %v3139 = vsel %vm2819, %v3136, %v3138
    %v3140 = vrot.slane %v810, 2
    %v3141 = vrot.slane %v811, 2
    %v3142 = vsel %vm2819, %v3140, %v3141
    %v3143 = vrot.slane %v812, 2
    %v3144 = vsel %vm2819, %v3141, %v3143
    %v3145 = vrot.slane %v813, 2
    %v3146 = vrot.slane %v814, 2
    %v3147 = vsel %vm2819, %v3145, %v3146
    %v3148 = vrot.slane %v815, 2
    %v3149 = vsel %vm2819, %v3146, %v3148
    %v3150 = vrot.slane %v816, 2
    %v3151 = vrot.slane %v817, 2
    %v3152 = vsel %vm2819, %v3150, %v3151
    %v3153 = vrot.slane %v818, 2
    %v3154 = vsel %vm2819, %v3151, %v3153
    %v3155 = vrot.slane %v819, 2
    %v3156 = vrot.slane %v820, 2
    %v3157 = vsel %vm2819, %v3155, %v3156
    %v3158 = vrot.slane %v821, 2
    %v3159 = vsel %vm2819, %v3156, %v3158
    %v3160 = vrot.slane %v822, 2
    %v3161 = vrot.slane %v823, 2
    %v3162 = vsel %vm2819, %v3160, %v3161
    %v3163 = vrot.slane %v824, 2
    %v3164 = vsel %vm2819, %v3161, %v3163
    %v3165 = vrot.slane %v825, 2
    %v3166 = vrot.slane %v826, 2
    %v3167 = vsel %vm2819, %v3165, %v3166
    %v3168 = vrot.slane %v827, 2
    %v3169 = vsel %vm2819, %v3166, %v3168
    %v3170 = vrot.slane %v828, 2
    %v3171 = vrot.slane %v829, 2
    %v3172 = vsel %vm2819, %v3170, %v3171
    %v3173 = vrot.slane %v830, 2
    %v3174 = vsel %vm2819, %v3171, %v3173
    %v3175 = vrot.slane %v831, 2
    %v3176 = vrot.slane %v832, 2
    %v3177 = vsel %vm2819, %v3175, %v3176
    %v3178 = vrot.slane %v833, 2
    %v3179 = vsel %vm2819, %v3176, %v3178
    %v3180 = vrot.slane %v834, 2
    %v3181 = vrot.slane %v835, 2
    %v3182 = vsel %vm2819, %v3180, %v3181
    %v3183 = vrot.slane %v836, 2
    %v3184 = vsel %vm2819, %v3181, %v3183
    %v3185 = vrot.slane %v837, 2
    %v3186 = vrot.slane %v838, 2
    %v3187 = vsel %vm2819, %v3185, %v3186
    %v3188 = vrot.slane %v839, 2
    %v3189 = vsel %vm2819, %v3186, %v3188
    %v3190 = vrot.slane %v840, 2
    %v3191 = vrot.slane %v841, 2
    %v3192 = vsel %vm2819, %v3190, %v3191
    %v3193 = vrot.slane %v842, 2
    %v3194 = vsel %vm2819, %v3191, %v3193
    %v3195 = vrot.slane %v843, 2
    %v3196 = vrot.slane %v844, 2
    %v3197 = vsel %vm2819, %v3195, %v3196
    %v3198 = vrot.slane %v845, 2
    %v3199 = vsel %vm2819, %v3196, %v3198
    %v3200 = vrot.slane %v846, 2
    %v3201 = vrot.slane %v847, 2
    %v3202 = vsel %vm2819, %v3200, %v3201
    %v3203 = vrot.slane %v848, 2
    %v3204 = vsel %vm2819, %v3201, %v3203
    %v3205 = vrot.slane %v849, 2
    %v3206 = vrot.slane %v850, 2
    %v3207 = vsel %vm2819, %v3205, %v3206
    %v3208 = vrot.slane %v851, 2
    %v3209 = vsel %vm2819, %v3206, %v3208
    %v3210 = vrot.slane %v852, 2
    %v3211 = vrot.slane %v853, 2
    %v3212 = vsel %vm2819, %v3210, %v3211
    %v3213 = vrot.slane %v854, 2
    %v3214 = vsel %vm2819, %v3211, %v3213
    %v3215 = vrot.slane %v855, 2
    %v3216 = vrot.slane %v856, 2
    %v3217 = vsel %vm2819, %v3215, %v3216
    %v3218 = vrot.slane %v857, 2
    %v3219 = vsel %vm2819, %v3216, %v3218
    %v3220 = vrot.slane %v864, 2
    %v3221 = vrot.slane %v865, 2
    %v3222 = vsel %vm2819, %v3220, %v3221
    %v3223 = vrot.slane %v866, 2
    %v3224 = vsel %vm2819, %v3221, %v3223
    %v3225 = vrot.slane %v867, 2
    %v3226 = vrot.slane %v868, 2
    %v3227 = vsel %vm2819, %v3225, %v3226
    %v3228 = vrot.slane %v869, 2
    %v3229 = vsel %vm2819, %v3226, %v3228
    %v3230 = vrot.slane %v870, 2
    %v3231 = vrot.slane %v871, 2
    %v3232 = vsel %vm2819, %v3230, %v3231
    %v3233 = vrot.slane %v872, 2
    %v3234 = vsel %vm2819, %v3231, %v3233
    %v3235 = vrot.slane %v873, 2
    %v3236 = vrot.slane %v874, 2
    %v3237 = vsel %vm2819, %v3235, %v3236
    %v3238 = vrot.slane %v875, 2
    %v3239 = vsel %vm2819, %v3236, %v3238
    %v3240 = vrot.slane %v876, 2
    %v3241 = vrot.slane %v877, 2
    %v3242 = vsel %vm2819, %v3240, %v3241
    %v3243 = vrot.slane %v878, 2
    %v3244 = vsel %vm2819, %v3241, %v3243
    %v3245 = vrot.slane %v879, 2
    %v3246 = vrot.slane %v880, 2
    %v3247 = vsel %vm2819, %v3245, %v3246
    %v3248 = vrot.slane %v881, 2
    %v3249 = vsel %vm2819, %v3246, %v3248
    %v3250 = vrot.slane %v882, 2
    %v3251 = vrot.slane %v883, 2
    %v3252 = vsel %vm2819, %v3250, %v3251
    %v3253 = vrot.slane %v884, 2
    %v3254 = vsel %vm2819, %v3251, %v3253
    %v3255 = vrot.slane %v885, 2
    %v3256 = vrot.slane %v886, 2
    %v3257 = vsel %vm2819, %v3255, %v3256
    %v3258 = vrot.slane %v887, 2
    %v3259 = vsel %vm2819, %v3256, %v3258
    %v3260 = vrot.slane %v888, 2
    %v3261 = vrot.slane %v889, 2
    %v3262 = vsel %vm2819, %v3260, %v3261
    %v3263 = vrot.slane %v890, 2
    %v3264 = vsel %vm2819, %v3261, %v3263
    %v3265 = vrot.slane %v891, 2
    %v3266 = vrot.slane %v892, 2
    %v3267 = vsel %vm2819, %v3265, %v3266
    %v3268 = vrot.slane %v893, 2
    %v3269 = vsel %vm2819, %v3266, %v3268
    %v3270 = vrot.slane %v894, 2
    %v3271 = vrot.slane %v895, 2
    %v3272 = vsel %vm2819, %v3270, %v3271
    %v3273 = vrot.slane %v896, 2
    %v3274 = vsel %vm2819, %v3271, %v3273
    %v3275 = vrot.slane %v897, 2
    %v3276 = vrot.slane %v898, 2
    %v3277 = vsel %vm2819, %v3275, %v3276
    %v3278 = vrot.slane %v899, 2
    %v3279 = vsel %vm2819, %v3276, %v3278
    %v3280 = vrot.slane %v900, 2
    %v3281 = vrot.slane %v901, 2
    %v3282 = vsel %vm2819, %v3280, %v3281
    %v3283 = vrot.slane %v902, 2
    %v3284 = vsel %vm2819, %v3281, %v3283
    %v3285 = vrot.slane %v903, 2
    %v3286 = vrot.slane %v904, 2
    %v3287 = vsel %vm2819, %v3285, %v3286
    %v3288 = vrot.slane %v905, 2
    %v3289 = vsel %vm2819, %v3286, %v3288
    %v3290 = vrot.slane %v906, 2
    %v3291 = vrot.slane %v907, 2
    %v3292 = vsel %vm2819, %v3290, %v3291
    %v3293 = vrot.slane %v908, 2
    %v3294 = vsel %vm2819, %v3291, %v3293
    %v3295 = vrot.slane %v909, 2
    %v3296 = vrot.slane %v910, 2
    %v3297 = vsel %vm2819, %v3295, %v3296
    %v3298 = vrot.slane %v911, 2
    %v3299 = vsel %vm2819, %v3296, %v3298
    %v3300 = vrot.slane %v918, 2
    %v3301 = vrot.slane %v919, 2
    %v3302 = vsel %vm2819, %v3300, %v3301
    %v3303 = vrot.slane %v920, 2
    %v3304 = vsel %vm2819, %v3301, %v3303
    %v3305 = vrot.slane %v921, 2
    %v3306 = vrot.slane %v922, 2
    %v3307 = vsel %vm2819, %v3305, %v3306
    %v3308 = vrot.slane %v923, 2
    %v3309 = vsel %vm2819, %v3306, %v3308
    %v3310 = vrot.slane %v924, 2
    %v3311 = vrot.slane %v925, 2
    %v3312 = vsel %vm2819, %v3310, %v3311
    %v3313 = vrot.slane %v926, 2
    %v3314 = vsel %vm2819, %v3311, %v3313
    %v3315 = vrot.slane %v927, 2
    %v3316 = vrot.slane %v928, 2
    %v3317 = vsel %vm2819, %v3315, %v3316
    %v3318 = vrot.slane %v929, 2
    %v3319 = vsel %vm2819, %v3316, %v3318
    %v3320 = vrot.slane %v930, 2
    %v3321 = vrot.slane %v931, 2
    %v3322 = vsel %vm2819, %v3320, %v3321
    %v3323 = vrot.slane %v932, 2
    %v3324 = vsel %vm2819, %v3321, %v3323
    %v3325 = vrot.slane %v933, 2
    %v3326 = vrot.slane %v934, 2
    %v3327 = vsel %vm2819, %v3325, %v3326
    %v3328 = vrot.slane %v935, 2
    %v3329 = vsel %vm2819, %v3326, %v3328
    %v3330 = vrot.slane %v936, 2
    %v3331 = vrot.slane %v937, 2
    %v3332 = vsel %vm2819, %v3330, %v3331
    %v3333 = vrot.slane %v938, 2
    %v3334 = vsel %vm2819, %v3331, %v3333
    %v3335 = vrot.slane %v939, 2
    %v3336 = vrot.slane %v940, 2
    %v3337 = vsel %vm2819, %v3335, %v3336
    %v3338 = vrot.slane %v941, 2
    %v3339 = vsel %vm2819, %v3336, %v3338
    %v3340 = vrot.slane %v942, 2
    %v3341 = vrot.slane %v943, 2
    %v3342 = vsel %vm2819, %v3340, %v3341
    %v3343 = vrot.slane %v944, 2
    %v3344 = vsel %vm2819, %v3341, %v3343
    %v3345 = vrot.slane %v945, 2
    %v3346 = vrot.slane %v946, 2
    %v3347 = vsel %vm2819, %v3345, %v3346
    %v3348 = vrot.slane %v947, 2
    %v3349 = vsel %vm2819, %v3346, %v3348
    %v3350 = vrot.slane %v948, 2
    %v3351 = vrot.slane %v949, 2
    %v3352 = vsel %vm2819, %v3350, %v3351
    %v3353 = vrot.slane %v950, 2
    %v3354 = vsel %vm2819, %v3351, %v3353
    %v3355 = vrot.slane %v951, 2
    %v3356 = vrot.slane %v952, 2
    %v3357 = vsel %vm2819, %v3355, %v3356
    %v3358 = vrot.slane %v953, 2
    %v3359 = vsel %vm2819, %v3356, %v3358
    %v3360 = vrot.slane %v954, 2
    %v3361 = vrot.slane %v955, 2
    %v3362 = vsel %vm2819, %v3360, %v3361
    %v3363 = vrot.slane %v956, 2
    %v3364 = vsel %vm2819, %v3361, %v3363
    %v3365 = vrot.slane %v957, 2
    %v3366 = vrot.slane %v958, 2
    %v3367 = vsel %vm2819, %v3365, %v3366
    %v3368 = vrot.slane %v959, 2
    %v3369 = vsel %vm2819, %v3366, %v3368
    %v3370 = vrot.slane %v960, 2
    %v3371 = vrot.slane %v961, 2
    %v3372 = vsel %vm2819, %v3370, %v3371
    %v3373 = vrot.slane %v962, 2
    %v3374 = vsel %vm2819, %v3371, %v3373
    %v3375 = vrot.slane %v963, 2
    %v3376 = vrot.slane %v964, 2
    %v3377 = vsel %vm2819, %v3375, %v3376
    %v3378 = vrot.slane %v965, 2
    %v3379 = vsel %vm2819, %v3376, %v3378
    %v3380 = vrot.slane %v972, 2
    %v3381 = vrot.slane %v973, 2
    %v3382 = vsel %vm2819, %v3380, %v3381
    %v3383 = vrot.slane %v974, 2
    %v3384 = vsel %vm2819, %v3381, %v3383
    %v3385 = vrot.slane %v975, 2
    %v3386 = vrot.slane %v976, 2
    %v3387 = vsel %vm2819, %v3385, %v3386
    %v3388 = vrot.slane %v977, 2
    %v3389 = vsel %vm2819, %v3386, %v3388
    %v3390 = vrot.slane %v978, 2
    %v3391 = vrot.slane %v979, 2
    %v3392 = vsel %vm2819, %v3390, %v3391
    %v3393 = vrot.slane %v980, 2
    %v3394 = vsel %vm2819, %v3391, %v3393
    %v3395 = vrot.slane %v981, 2
    %v3396 = vrot.slane %v982, 2
    %v3397 = vsel %vm2819, %v3395, %v3396
    %v3398 = vrot.slane %v983, 2
    %v3399 = vsel %vm2819, %v3396, %v3398
    %v3400 = vrot.slane %v984, 2
    %v3401 = vrot.slane %v985, 2
    %v3402 = vsel %vm2819, %v3400, %v3401
    %v3403 = vrot.slane %v986, 2
    %v3404 = vsel %vm2819, %v3401, %v3403
    %v3405 = vrot.slane %v987, 2
    %v3406 = vrot.slane %v988, 2
    %v3407 = vsel %vm2819, %v3405, %v3406
    %v3408 = vrot.slane %v989, 2
    %v3409 = vsel %vm2819, %v3406, %v3408
    %v3410 = vrot.slane %v990, 2
    %v3411 = vrot.slane %v991, 2
    %v3412 = vsel %vm2819, %v3410, %v3411
    %v3413 = vrot.slane %v992, 2
    %v3414 = vsel %vm2819, %v3411, %v3413
    %v3415 = vrot.slane %v993, 2
    %v3416 = vrot.slane %v994, 2
    %v3417 = vsel %vm2819, %v3415, %v3416
    %v3418 = vrot.slane %v995, 2
    %v3419 = vsel %vm2819, %v3416, %v3418
    %v3420 = vrot.slane %v996, 2
    %v3421 = vrot.slane %v997, 2
    %v3422 = vsel %vm2819, %v3420, %v3421
    %v3423 = vrot.slane %v998, 2
    %v3424 = vsel %vm2819, %v3421, %v3423
    %v3425 = vrot.slane %v999, 2
    %v3426 = vrot.slane %v1000, 2
    %v3427 = vsel %vm2819, %v3425, %v3426
    %v3428 = vrot.slane %v1001, 2
    %v3429 = vsel %vm2819, %v3426, %v3428
    %v3430 = vrot.slane %v1002, 2
    %v3431 = vrot.slane %v1003, 2
    %v3432 = vsel %vm2819, %v3430, %v3431
    %v3433 = vrot.slane %v1004, 2
    %v3434 = vsel %vm2819, %v3431, %v3433
    %v3435 = vrot.slane %v1005, 2
    %v3436 = vrot.slane %v1006, 2
    %v3437 = vsel %vm2819, %v3435, %v3436
    %v3438 = vrot.slane %v1007, 2
    %v3439 = vsel %vm2819, %v3436, %v3438
    %v3440 = vrot.slane %v1008, 2
    %v3441 = vrot.slane %v1009, 2
    %v3442 = vsel %vm2819, %v3440, %v3441
    %v3443 = vrot.slane %v1010, 2
    %v3444 = vsel %vm2819, %v3441, %v3443
    %v3445 = vrot.slane %v1011, 2
    %v3446 = vrot.slane %v1012, 2
    %v3447 = vsel %vm2819, %v3445, %v3446
    %v3448 = vrot.slane %v1013, 2
    %v3449 = vsel %vm2819, %v3446, %v3448
    %v3450 = vrot.slane %v1014, 2
    %v3451 = vrot.slane %v1015, 2
    %v3452 = vsel %vm2819, %v3450, %v3451
    %v3453 = vrot.slane %v1016, 2
    %v3454 = vsel %vm2819, %v3451, %v3453
    %v3455 = vrot.slane %v1017, 2
    %v3456 = vrot.slane %v1018, 2
    %v3457 = vsel %vm2819, %v3455, %v3456
    %v3458 = vrot.slane %v1019, 2
    %v3459 = vsel %vm2819, %v3456, %v3458
    %3460 = vrot.lane.b32.xlu0 %v2822, 8
    %v3461 = vpop.permute.xlu0 %3460
    %3462 = vrot.lane.b32.xlu0 %v2824, 8
    %v3463 = vpop.permute.xlu0 %3462
    %3464 = vrot.lane.b32.xlu0 %v2827, 8
    %v3465 = vpop.permute.xlu0 %3464
    %3466 = vrot.lane.b32.xlu0 %v2829, 8
    %v3467 = vpop.permute.xlu0 %3466
    %3468 = vrot.lane.b32.xlu0 %v2832, 8
    %v3469 = vpop.permute.xlu0 %3468
    %3470 = vrot.lane.b32.xlu0 %v2834, 8
    %v3471 = vpop.permute.xlu0 %3470
    %3472 = vrot.lane.b32.xlu0 %v2837, 8
    %v3473 = vpop.permute.xlu0 %3472
    %3474 = vrot.lane.b32.xlu0 %v2839, 8
    %v3475 = vpop.permute.xlu0 %3474
    %3476 = vrot.lane.b32.xlu0 %v2842, 8
    %v3477 = vpop.permute.xlu0 %3476
    %3478 = vrot.lane.b32.xlu0 %v2844, 8
    %v3479 = vpop.permute.xlu0 %3478
    %3480 = vrot.lane.b32.xlu0 %v2847, 8
    %v3481 = vpop.permute.xlu0 %3480
    %3482 = vrot.lane.b32.xlu0 %v2849, 8
    %v3483 = vpop.permute.xlu0 %3482
    %3484 = vrot.lane.b32.xlu0 %v2852, 8
    %v3485 = vpop.permute.xlu0 %3484
    %3486 = vrot.lane.b32.xlu0 %v2854, 8
    %v3487 = vpop.permute.xlu0 %3486
    %3488 = vrot.lane.b32.xlu0 %v2857, 8
    %v3489 = vpop.permute.xlu0 %3488
    %3490 = vrot.lane.b32.xlu0 %v2859, 8
    %v3491 = vpop.permute.xlu0 %3490
    %3492 = vrot.lane.b32.xlu0 %v2862, 8
    %v3493 = vpop.permute.xlu0 %3492
    %3494 = vrot.lane.b32.xlu0 %v2864, 8
    %v3495 = vpop.permute.xlu0 %3494
    %3496 = vrot.lane.b32.xlu0 %v2867, 8
    %v3497 = vpop.permute.xlu0 %3496
    %3498 = vrot.lane.b32.xlu0 %v2869, 8
    %v3499 = vpop.permute.xlu0 %3498
    %3500 = vrot.lane.b32.xlu0 %v2872, 8
    %v3501 = vpop.permute.xlu0 %3500
    %3502 = vrot.lane.b32.xlu0 %v2874, 8
    %v3503 = vpop.permute.xlu0 %3502
    %3504 = vrot.lane.b32.xlu0 %v2877, 8
    %v3505 = vpop.permute.xlu0 %3504
    %3506 = vrot.lane.b32.xlu0 %v2879, 8
    %v3507 = vpop.permute.xlu0 %3506
    %3508 = vrot.lane.b32.xlu0 %v2882, 8
    %v3509 = vpop.permute.xlu0 %3508
    %3510 = vrot.lane.b32.xlu0 %v2884, 8
    %v3511 = vpop.permute.xlu0 %3510
    %3512 = vrot.lane.b32.xlu0 %v2887, 8
    %v3513 = vpop.permute.xlu0 %3512
    %3514 = vrot.lane.b32.xlu0 %v2889, 8
    %v3515 = vpop.permute.xlu0 %3514
    %3516 = vrot.lane.b32.xlu0 %v2892, 8
    %v3517 = vpop.permute.xlu0 %3516
    %3518 = vrot.lane.b32.xlu0 %v2894, 8
    %v3519 = vpop.permute.xlu0 %3518
    %3520 = vrot.lane.b32.xlu0 %v2897, 8
    %v3521 = vpop.permute.xlu0 %3520
    %3522 = vrot.lane.b32.xlu0 %v2899, 8
    %v3523 = vpop.permute.xlu0 %3522
    %3524 = vrot.lane.b32.xlu0 %v2902, 8
    %v3525 = vpop.permute.xlu0 %3524
    %3526 = vrot.lane.b32.xlu0 %v2904, 8
    %v3527 = vpop.permute.xlu0 %3526
    %3528 = vrot.lane.b32.xlu0 %v2907, 8
    %v3529 = vpop.permute.xlu0 %3528
    %3530 = vrot.lane.b32.xlu0 %v2909, 8
    %v3531 = vpop.permute.xlu0 %3530
    %3532 = vrot.lane.b32.xlu0 %v2912, 8
    %v3533 = vpop.permute.xlu0 %3532
    %3534 = vrot.lane.b32.xlu0 %v2914, 8
    %v3535 = vpop.permute.xlu0 %3534
    %3536 = vrot.lane.b32.xlu0 %v2917, 8
    %v3537 = vpop.permute.xlu0 %3536
    %3538 = vrot.lane.b32.xlu0 %v2919, 8
    %v3539 = vpop.permute.xlu0 %3538
    %3540 = vrot.lane.b32.xlu0 %v2922, 8
    %v3541 = vpop.permute.xlu0 %3540
    %3542 = vrot.lane.b32.xlu0 %v2924, 8
    %v3543 = vpop.permute.xlu0 %3542
    %3544 = vrot.lane.b32.xlu0 %v2927, 8
    %v3545 = vpop.permute.xlu0 %3544
    %3546 = vrot.lane.b32.xlu0 %v2929, 8
    %v3547 = vpop.permute.xlu0 %3546
    %3548 = vrot.lane.b32.xlu0 %v2932, 8
    %v3549 = vpop.permute.xlu0 %3548
    %3550 = vrot.lane.b32.xlu0 %v2934, 8
    %v3551 = vpop.permute.xlu0 %3550
    %3552 = vrot.lane.b32.xlu0 %v2937, 8
    %v3553 = vpop.permute.xlu0 %3552
    %3554 = vrot.lane.b32.xlu0 %v2939, 8
    %v3555 = vpop.permute.xlu0 %3554
    %3556 = vrot.lane.b32.xlu0 %v2942, 8
    %v3557 = vpop.permute.xlu0 %3556
    %3558 = vrot.lane.b32.xlu0 %v2944, 8
    %v3559 = vpop.permute.xlu0 %3558
    %3560 = vrot.lane.b32.xlu0 %v2947, 8
    %v3561 = vpop.permute.xlu0 %3560
    %3562 = vrot.lane.b32.xlu0 %v2949, 8
    %v3563 = vpop.permute.xlu0 %3562
    %3564 = vrot.lane.b32.xlu0 %v2952, 8
    %v3565 = vpop.permute.xlu0 %3564
    %3566 = vrot.lane.b32.xlu0 %v2954, 8
    %v3567 = vpop.permute.xlu0 %3566
    %3568 = vrot.lane.b32.xlu0 %v2957, 8
    %v3569 = vpop.permute.xlu0 %3568
    %3570 = vrot.lane.b32.xlu0 %v2959, 8
    %v3571 = vpop.permute.xlu0 %3570
    %3572 = vrot.lane.b32.xlu0 %v2962, 8
    %v3573 = vpop.permute.xlu0 %3572
    %3574 = vrot.lane.b32.xlu0 %v2964, 8
    %v3575 = vpop.permute.xlu0 %3574
    %3576 = vrot.lane.b32.xlu0 %v2967, 8
    %v3577 = vpop.permute.xlu0 %3576
    %3578 = vrot.lane.b32.xlu0 %v2969, 8
    %v3579 = vpop.permute.xlu0 %3578
    %3580 = vrot.lane.b32.xlu0 %v2972, 8
    %v3581 = vpop.permute.xlu0 %3580
    %3582 = vrot.lane.b32.xlu0 %v2974, 8
    %v3583 = vpop.permute.xlu0 %3582
    %3584 = vrot.lane.b32.xlu0 %v2977, 8
    %v3585 = vpop.permute.xlu0 %3584
    %3586 = vrot.lane.b32.xlu0 %v2979, 8
    %v3587 = vpop.permute.xlu0 %3586
    %3588 = vrot.lane.b32.xlu0 %v2982, 8
    %v3589 = vpop.permute.xlu0 %3588
    %3590 = vrot.lane.b32.xlu0 %v2984, 8
    %v3591 = vpop.permute.xlu0 %3590
    %3592 = vrot.lane.b32.xlu0 %v2987, 8
    %v3593 = vpop.permute.xlu0 %3592
    %3594 = vrot.lane.b32.xlu0 %v2989, 8
    %v3595 = vpop.permute.xlu0 %3594
    %3596 = vrot.lane.b32.xlu0 %v2992, 8
    %v3597 = vpop.permute.xlu0 %3596
    %3598 = vrot.lane.b32.xlu0 %v2994, 8
    %v3599 = vpop.permute.xlu0 %3598
    %3600 = vrot.lane.b32.xlu0 %v2997, 8
    %v3601 = vpop.permute.xlu0 %3600
    %3602 = vrot.lane.b32.xlu0 %v2999, 8
    %v3603 = vpop.permute.xlu0 %3602
    %3604 = vrot.lane.b32.xlu0 %v3002, 8
    %v3605 = vpop.permute.xlu0 %3604
    %3606 = vrot.lane.b32.xlu0 %v3004, 8
    %v3607 = vpop.permute.xlu0 %3606
    %3608 = vrot.lane.b32.xlu0 %v3007, 8
    %v3609 = vpop.permute.xlu0 %3608
    %3610 = vrot.lane.b32.xlu0 %v3009, 8
    %v3611 = vpop.permute.xlu0 %3610
    %3612 = vrot.lane.b32.xlu0 %v3012, 8
    %v3613 = vpop.permute.xlu0 %3612
    %3614 = vrot.lane.b32.xlu0 %v3014, 8
    %v3615 = vpop.permute.xlu0 %3614
    %3616 = vrot.lane.b32.xlu0 %v3017, 8
    %v3617 = vpop.permute.xlu0 %3616
    %3618 = vrot.lane.b32.xlu0 %v3019, 8
    %v3619 = vpop.permute.xlu0 %3618
    %3620 = vrot.lane.b32.xlu0 %v3022, 8
    %v3621 = vpop.permute.xlu0 %3620
    %3622 = vrot.lane.b32.xlu0 %v3024, 8
    %v3623 = vpop.permute.xlu0 %3622
    %3624 = vrot.lane.b32.xlu0 %v3027, 8
    %v3625 = vpop.permute.xlu0 %3624
    %3626 = vrot.lane.b32.xlu0 %v3029, 8
    %v3627 = vpop.permute.xlu0 %3626
    %3628 = vrot.lane.b32.xlu0 %v3032, 8
    %v3629 = vpop.permute.xlu0 %3628
    %3630 = vrot.lane.b32.xlu0 %v3034, 8
    %v3631 = vpop.permute.xlu0 %3630
    %3632 = vrot.lane.b32.xlu0 %v3037, 8
    %v3633 = vpop.permute.xlu0 %3632
    %3634 = vrot.lane.b32.xlu0 %v3039, 8
    %v3635 = vpop.permute.xlu0 %3634
    %3636 = vrot.lane.b32.xlu0 %v3042, 8
    %v3637 = vpop.permute.xlu0 %3636
    %3638 = vrot.lane.b32.xlu0 %v3044, 8
    %v3639 = vpop.permute.xlu0 %3638
    %3640 = vrot.lane.b32.xlu0 %v3047, 8
    %v3641 = vpop.permute.xlu0 %3640
    %3642 = vrot.lane.b32.xlu0 %v3049, 8
    %v3643 = vpop.permute.xlu0 %3642
    %3644 = vrot.lane.b32.xlu0 %v3052, 8
    %v3645 = vpop.permute.xlu0 %3644
    %3646 = vrot.lane.b32.xlu0 %v3054, 8
    %v3647 = vpop.permute.xlu0 %3646
    %3648 = vrot.lane.b32.xlu0 %v3057, 8
    %v3649 = vpop.permute.xlu0 %3648
    %3650 = vrot.lane.b32.xlu0 %v3059, 8
    %v3651 = vpop.permute.xlu0 %3650
    %3652 = vrot.lane.b32.xlu0 %v3062, 8
    %v3653 = vpop.permute.xlu0 %3652
    %3654 = vrot.lane.b32.xlu0 %v3064, 8
    %v3655 = vpop.permute.xlu0 %3654
    %3656 = vrot.lane.b32.xlu0 %v3067, 8
    %v3657 = vpop.permute.xlu0 %3656
    %3658 = vrot.lane.b32.xlu0 %v3069, 8
    %v3659 = vpop.permute.xlu0 %3658
    %3660 = vrot.lane.b32.xlu0 %v3072, 8
    %v3661 = vpop.permute.xlu0 %3660
    %3662 = vrot.lane.b32.xlu0 %v3074, 8
    %v3663 = vpop.permute.xlu0 %3662
    %3664 = vrot.lane.b32.xlu0 %v3077, 8
    %v3665 = vpop.permute.xlu0 %3664
    %3666 = vrot.lane.b32.xlu0 %v3079, 8
    %v3667 = vpop.permute.xlu0 %3666
    %3668 = vrot.lane.b32.xlu0 %v3082, 8
    %v3669 = vpop.permute.xlu0 %3668
    %3670 = vrot.lane.b32.xlu0 %v3084, 8
    %v3671 = vpop.permute.xlu0 %3670
    %3672 = vrot.lane.b32.xlu0 %v3087, 8
    %v3673 = vpop.permute.xlu0 %3672
    %3674 = vrot.lane.b32.xlu0 %v3089, 8
    %v3675 = vpop.permute.xlu0 %3674
    %3676 = vrot.lane.b32.xlu0 %v3092, 8
    %v3677 = vpop.permute.xlu0 %3676
    %3678 = vrot.lane.b32.xlu0 %v3094, 8
    %v3679 = vpop.permute.xlu0 %3678
    %3680 = vrot.lane.b32.xlu0 %v3097, 8
    %v3681 = vpop.permute.xlu0 %3680
    %3682 = vrot.lane.b32.xlu0 %v3099, 8
    %v3683 = vpop.permute.xlu0 %3682
    %3684 = vrot.lane.b32.xlu0 %v3102, 8
    %v3685 = vpop.permute.xlu0 %3684
    %3686 = vrot.lane.b32.xlu0 %v3104, 8
    %v3687 = vpop.permute.xlu0 %3686
    %3688 = vrot.lane.b32.xlu0 %v3107, 8
    %v3689 = vpop.permute.xlu0 %3688
    %3690 = vrot.lane.b32.xlu0 %v3109, 8
    %v3691 = vpop.permute.xlu0 %3690
    %3692 = vrot.lane.b32.xlu0 %v3112, 8
    %v3693 = vpop.permute.xlu0 %3692
    %3694 = vrot.lane.b32.xlu0 %v3114, 8
    %v3695 = vpop.permute.xlu0 %3694
    %3696 = vrot.lane.b32.xlu0 %v3117, 8
    %v3697 = vpop.permute.xlu0 %3696
    %3698 = vrot.lane.b32.xlu0 %v3119, 8
    %v3699 = vpop.permute.xlu0 %3698
    %3700 = vrot.lane.b32.xlu0 %v3122, 8
    %v3701 = vpop.permute.xlu0 %3700
    %3702 = vrot.lane.b32.xlu0 %v3124, 8
    %v3703 = vpop.permute.xlu0 %3702
    %3704 = vrot.lane.b32.xlu0 %v3127, 8
    %v3705 = vpop.permute.xlu0 %3704
    %3706 = vrot.lane.b32.xlu0 %v3129, 8
    %v3707 = vpop.permute.xlu0 %3706
    %3708 = vrot.lane.b32.xlu0 %v3132, 8
    %v3709 = vpop.permute.xlu0 %3708
    %3710 = vrot.lane.b32.xlu0 %v3134, 8
    %v3711 = vpop.permute.xlu0 %3710
    %3712 = vrot.lane.b32.xlu0 %v3137, 8
    %v3713 = vpop.permute.xlu0 %3712
    %3714 = vrot.lane.b32.xlu0 %v3139, 8
    %v3715 = vpop.permute.xlu0 %3714
    %3716 = vrot.lane.b32.xlu0 %v3142, 8
    %v3717 = vpop.permute.xlu0 %3716
    %3718 = vrot.lane.b32.xlu0 %v3144, 8
    %v3719 = vpop.permute.xlu0 %3718
    %3720 = vrot.lane.b32.xlu0 %v3147, 8
    %v3721 = vpop.permute.xlu0 %3720
    %3722 = vrot.lane.b32.xlu0 %v3149, 8
    %v3723 = vpop.permute.xlu0 %3722
    %3724 = vrot.lane.b32.xlu0 %v3152, 8
    %v3725 = vpop.permute.xlu0 %3724
    %3726 = vrot.lane.b32.xlu0 %v3154, 8
    %v3727 = vpop.permute.xlu0 %3726
    %3728 = vrot.lane.b32.xlu0 %v3157, 8
    %v3729 = vpop.permute.xlu0 %3728
    %3730 = vrot.lane.b32.xlu0 %v3159, 8
    %v3731 = vpop.permute.xlu0 %3730
    %3732 = vrot.lane.b32.xlu0 %v3162, 8
    %v3733 = vpop.permute.xlu0 %3732
    %3734 = vrot.lane.b32.xlu0 %v3164, 8
    %v3735 = vpop.permute.xlu0 %3734
    %3736 = vrot.lane.b32.xlu0 %v3167, 8
    %v3737 = vpop.permute.xlu0 %3736
    %3738 = vrot.lane.b32.xlu0 %v3169, 8
    %v3739 = vpop.permute.xlu0 %3738
    %3740 = vrot.lane.b32.xlu0 %v3172, 8
    %v3741 = vpop.permute.xlu0 %3740
    %3742 = vrot.lane.b32.xlu0 %v3174, 8
    %v3743 = vpop.permute.xlu0 %3742
    %3744 = vrot.lane.b32.xlu0 %v3177, 8
    %v3745 = vpop.permute.xlu0 %3744
    %3746 = vrot.lane.b32.xlu0 %v3179, 8
    %v3747 = vpop.permute.xlu0 %3746
    %3748 = vrot.lane.b32.xlu0 %v3182, 8
    %v3749 = vpop.permute.xlu0 %3748
    %3750 = vrot.lane.b32.xlu0 %v3184, 8
    %v3751 = vpop.permute.xlu0 %3750
    %3752 = vrot.lane.b32.xlu0 %v3187, 8
    %v3753 = vpop.permute.xlu0 %3752
    %3754 = vrot.lane.b32.xlu0 %v3189, 8
    %v3755 = vpop.permute.xlu0 %3754
    %3756 = vrot.lane.b32.xlu0 %v3192, 8
    %v3757 = vpop.permute.xlu0 %3756
    %3758 = vrot.lane.b32.xlu0 %v3194, 8
    %v3759 = vpop.permute.xlu0 %3758
    %3760 = vrot.lane.b32.xlu0 %v3197, 8
    %v3761 = vpop.permute.xlu0 %3760
    %3762 = vrot.lane.b32.xlu0 %v3199, 8
    %v3763 = vpop.permute.xlu0 %3762
    %3764 = vrot.lane.b32.xlu0 %v3202, 8
    %v3765 = vpop.permute.xlu0 %3764
    %3766 = vrot.lane.b32.xlu0 %v3204, 8
    %v3767 = vpop.permute.xlu0 %3766
    %3768 = vrot.lane.b32.xlu0 %v3207, 8
    %v3769 = vpop.permute.xlu0 %3768
    %3770 = vrot.lane.b32.xlu0 %v3209, 8
    %v3771 = vpop.permute.xlu0 %3770
    %3772 = vrot.lane.b32.xlu0 %v3212, 8
    %v3773 = vpop.permute.xlu0 %3772
    %3774 = vrot.lane.b32.xlu0 %v3214, 8
    %v3775 = vpop.permute.xlu0 %3774
    %3776 = vrot.lane.b32.xlu0 %v3217, 8
    %v3777 = vpop.permute.xlu0 %3776
    %3778 = vrot.lane.b32.xlu0 %v3219, 8
    %v3779 = vpop.permute.xlu0 %3778
    %3780 = vrot.lane.b32.xlu0 %v3222, 8
    %v3781 = vpop.permute.xlu0 %3780
    %3782 = vrot.lane.b32.xlu0 %v3224, 8
    %v3783 = vpop.permute.xlu0 %3782
    %3784 = vrot.lane.b32.xlu0 %v3227, 8
    %v3785 = vpop.permute.xlu0 %3784
    %3786 = vrot.lane.b32.xlu0 %v3229, 8
    %v3787 = vpop.permute.xlu0 %3786
    %3788 = vrot.lane.b32.xlu0 %v3232, 8
    %v3789 = vpop.permute.xlu0 %3788
    %3790 = vrot.lane.b32.xlu0 %v3234, 8
    %v3791 = vpop.permute.xlu0 %3790
    %3792 = vrot.lane.b32.xlu0 %v3237, 8
    %v3793 = vpop.permute.xlu0 %3792
    %3794 = vrot.lane.b32.xlu0 %v3239, 8
    %v3795 = vpop.permute.xlu0 %3794
    %3796 = vrot.lane.b32.xlu0 %v3242, 8
    %v3797 = vpop.permute.xlu0 %3796
    %3798 = vrot.lane.b32.xlu0 %v3244, 8
    %v3799 = vpop.permute.xlu0 %3798
    %3800 = vrot.lane.b32.xlu0 %v3247, 8
    %v3801 = vpop.permute.xlu0 %3800
    %3802 = vrot.lane.b32.xlu0 %v3249, 8
    %v3803 = vpop.permute.xlu0 %3802
    %3804 = vrot.lane.b32.xlu0 %v3252, 8
    %v3805 = vpop.permute.xlu0 %3804
    %3806 = vrot.lane.b32.xlu0 %v3254, 8
    %v3807 = vpop.permute.xlu0 %3806
    %3808 = vrot.lane.b32.xlu0 %v3257, 8
    %v3809 = vpop.permute.xlu0 %3808
    %3810 = vrot.lane.b32.xlu0 %v3259, 8
    %v3811 = vpop.permute.xlu0 %3810
    %3812 = vrot.lane.b32.xlu0 %v3262, 8
    %v3813 = vpop.permute.xlu0 %3812
    %3814 = vrot.lane.b32.xlu0 %v3264, 8
    %v3815 = vpop.permute.xlu0 %3814
    %3816 = vrot.lane.b32.xlu0 %v3267, 8
    %v3817 = vpop.permute.xlu0 %3816
    %3818 = vrot.lane.b32.xlu0 %v3269, 8
    %v3819 = vpop.permute.xlu0 %3818
    %3820 = vrot.lane.b32.xlu0 %v3272, 8
    %v3821 = vpop.permute.xlu0 %3820
    %3822 = vrot.lane.b32.xlu0 %v3274, 8
    %v3823 = vpop.permute.xlu0 %3822
    %3824 = vrot.lane.b32.xlu0 %v3277, 8
    %v3825 = vpop.permute.xlu0 %3824
    %3826 = vrot.lane.b32.xlu0 %v3279, 8
    %v3827 = vpop.permute.xlu0 %3826
    %3828 = vrot.lane.b32.xlu0 %v3282, 8
    %v3829 = vpop.permute.xlu0 %3828
    %3830 = vrot.lane.b32.xlu0 %v3284, 8
    %v3831 = vpop.permute.xlu0 %3830
    %3832 = vrot.lane.b32.xlu0 %v3287, 8
    %v3833 = vpop.permute.xlu0 %3832
    %3834 = vrot.lane.b32.xlu0 %v3289, 8
    %v3835 = vpop.permute.xlu0 %3834
    %3836 = vrot.lane.b32.xlu0 %v3292, 8
    %v3837 = vpop.permute.xlu0 %3836
    %3838 = vrot.lane.b32.xlu0 %v3294, 8
    %v3839 = vpop.permute.xlu0 %3838
    %3840 = vrot.lane.b32.xlu0 %v3297, 8
    %v3841 = vpop.permute.xlu0 %3840
    %3842 = vrot.lane.b32.xlu0 %v3299, 8
    %v3843 = vpop.permute.xlu0 %3842
    %3844 = vrot.lane.b32.xlu0 %v3302, 8
    %v3845 = vpop.permute.xlu0 %3844
    %3846 = vrot.lane.b32.xlu0 %v3304, 8
    %v3847 = vpop.permute.xlu0 %3846
    %3848 = vrot.lane.b32.xlu0 %v3307, 8
    %v3849 = vpop.permute.xlu0 %3848
    %3850 = vrot.lane.b32.xlu0 %v3309, 8
    %v3851 = vpop.permute.xlu0 %3850
    %3852 = vrot.lane.b32.xlu0 %v3312, 8
    %v3853 = vpop.permute.xlu0 %3852
    %3854 = vrot.lane.b32.xlu0 %v3314, 8
    %v3855 = vpop.permute.xlu0 %3854
    %3856 = vrot.lane.b32.xlu0 %v3317, 8
    %v3857 = vpop.permute.xlu0 %3856
    %3858 = vrot.lane.b32.xlu0 %v3319, 8
    %v3859 = vpop.permute.xlu0 %3858
    %3860 = vrot.lane.b32.xlu0 %v3322, 8
    %v3861 = vpop.permute.xlu0 %3860
    %3862 = vrot.lane.b32.xlu0 %v3324, 8
    %v3863 = vpop.permute.xlu0 %3862
    %3864 = vrot.lane.b32.xlu0 %v3327, 8
    %v3865 = vpop.permute.xlu0 %3864
    %3866 = vrot.lane.b32.xlu0 %v3329, 8
    %v3867 = vpop.permute.xlu0 %3866
    %3868 = vrot.lane.b32.xlu0 %v3332, 8
    %v3869 = vpop.permute.xlu0 %3868
    %3870 = vrot.lane.b32.xlu0 %v3334, 8
    %v3871 = vpop.permute.xlu0 %3870
    %3872 = vrot.lane.b32.xlu0 %v3337, 8
    %v3873 = vpop.permute.xlu0 %3872
    %3874 = vrot.lane.b32.xlu0 %v3339, 8
    %v3875 = vpop.permute.xlu0 %3874
    %3876 = vrot.lane.b32.xlu0 %v3342, 8
    %v3877 = vpop.permute.xlu0 %3876
    %3878 = vrot.lane.b32.xlu0 %v3344, 8
    %v3879 = vpop.permute.xlu0 %3878
    %3880 = vrot.lane.b32.xlu0 %v3347, 8
    %v3881 = vpop.permute.xlu0 %3880
    %3882 = vrot.lane.b32.xlu0 %v3349, 8
    %v3883 = vpop.permute.xlu0 %3882
    %3884 = vrot.lane.b32.xlu0 %v3352, 8
    %v3885 = vpop.permute.xlu0 %3884
    %3886 = vrot.lane.b32.xlu0 %v3354, 8
    %v3887 = vpop.permute.xlu0 %3886
    %3888 = vrot.lane.b32.xlu0 %v3357, 8
    %v3889 = vpop.permute.xlu0 %3888
    %3890 = vrot.lane.b32.xlu0 %v3359, 8
    %v3891 = vpop.permute.xlu0 %3890
    %3892 = vrot.lane.b32.xlu0 %v3362, 8
    %v3893 = vpop.permute.xlu0 %3892
    %3894 = vrot.lane.b32.xlu0 %v3364, 8
    %v3895 = vpop.permute.xlu0 %3894
    %3896 = vrot.lane.b32.xlu0 %v3367, 8
    %v3897 = vpop.permute.xlu0 %3896
    %3898 = vrot.lane.b32.xlu0 %v3369, 8
    %v3899 = vpop.permute.xlu0 %3898
    %3900 = vrot.lane.b32.xlu0 %v3372, 8
    %v3901 = vpop.permute.xlu0 %3900
    %3902 = vrot.lane.b32.xlu0 %v3374, 8
    %v3903 = vpop.permute.xlu0 %3902
    %3904 = vrot.lane.b32.xlu0 %v3377, 8
    %v3905 = vpop.permute.xlu0 %3904
    %3906 = vrot.lane.b32.xlu0 %v3379, 8
    %v3907 = vpop.permute.xlu0 %3906
    %3908 = vrot.lane.b32.xlu0 %v3382, 8
    %v3909 = vpop.permute.xlu0 %3908
    %3910 = vrot.lane.b32.xlu0 %v3384, 8
    %v3911 = vpop.permute.xlu0 %3910
    %3912 = vrot.lane.b32.xlu0 %v3387, 8
    %v3913 = vpop.permute.xlu0 %3912
    %3914 = vrot.lane.b32.xlu0 %v3389, 8
    %v3915 = vpop.permute.xlu0 %3914
    %3916 = vrot.lane.b32.xlu0 %v3392, 8
    %v3917 = vpop.permute.xlu0 %3916
    %3918 = vrot.lane.b32.xlu0 %v3394, 8
    %v3919 = vpop.permute.xlu0 %3918
    %3920 = vrot.lane.b32.xlu0 %v3397, 8
    %v3921 = vpop.permute.xlu0 %3920
    %3922 = vrot.lane.b32.xlu0 %v3399, 8
    %v3923 = vpop.permute.xlu0 %3922
    %3924 = vrot.lane.b32.xlu0 %v3402, 8
    %v3925 = vpop.permute.xlu0 %3924
    %3926 = vrot.lane.b32.xlu0 %v3404, 8
    %v3927 = vpop.permute.xlu0 %3926
    %3928 = vrot.lane.b32.xlu0 %v3407, 8
    %v3929 = vpop.permute.xlu0 %3928
    %3930 = vrot.lane.b32.xlu0 %v3409, 8
    %v3931 = vpop.permute.xlu0 %3930
    %3932 = vrot.lane.b32.xlu0 %v3412, 8
    %v3933 = vpop.permute.xlu0 %3932
    %3934 = vrot.lane.b32.xlu0 %v3414, 8
    %v3935 = vpop.permute.xlu0 %3934
    %3936 = vrot.lane.b32.xlu0 %v3417, 8
    %v3937 = vpop.permute.xlu0 %3936
    %3938 = vrot.lane.b32.xlu0 %v3419, 8
    %v3939 = vpop.permute.xlu0 %3938
    %3940 = vrot.lane.b32.xlu0 %v3422, 8
    %v3941 = vpop.permute.xlu0 %3940
    %3942 = vrot.lane.b32.xlu0 %v3424, 8
    %v3943 = vpop.permute.xlu0 %3942
    %3944 = vrot.lane.b32.xlu0 %v3427, 8
    %v3945 = vpop.permute.xlu0 %3944
    %3946 = vrot.lane.b32.xlu0 %v3429, 8
    %v3947 = vpop.permute.xlu0 %3946
    %3948 = vrot.lane.b32.xlu0 %v3432, 8
    %v3949 = vpop.permute.xlu0 %3948
    %3950 = vrot.lane.b32.xlu0 %v3434, 8
    %v3951 = vpop.permute.xlu0 %3950
    %3952 = vrot.lane.b32.xlu0 %v3437, 8
    %v3953 = vpop.permute.xlu0 %3952
    %3954 = vrot.lane.b32.xlu0 %v3439, 8
    %v3955 = vpop.permute.xlu0 %3954
    %3956 = vrot.lane.b32.xlu0 %v3442, 8
    %v3957 = vpop.permute.xlu0 %3956
    %3958 = vrot.lane.b32.xlu0 %v3444, 8
    %v3959 = vpop.permute.xlu0 %3958
    %3960 = vrot.lane.b32.xlu0 %v3447, 8
    %v3961 = vpop.permute.xlu0 %3960
    %3962 = vrot.lane.b32.xlu0 %v3449, 8
    %v3963 = vpop.permute.xlu0 %3962
    %3964 = vrot.lane.b32.xlu0 %v3452, 8
    %v3965 = vpop.permute.xlu0 %3964
    %3966 = vrot.lane.b32.xlu0 %v3454, 8
    %v3967 = vpop.permute.xlu0 %3966
    %3968 = vrot.lane.b32.xlu0 %v3457, 8
    %v3969 = vpop.permute.xlu0 %3968
    %3970 = vrot.lane.b32.xlu0 %v3459, 8
    %v3971 = vpop.permute.xlu0 %3970
    %4244 = vrot.lane.b32.xlu0 %v597, 12
    %v4245 = vpop.permute.xlu0 %4244
    %4246 = vrot.lane.b32.xlu0 %v598, 12
    %v4247 = vpop.permute.xlu0 %4246
    %4248 = vrot.lane.b32.xlu0 %v600, 12
    %v4249 = vpop.permute.xlu0 %4248
    %4250 = vrot.lane.b32.xlu0 %v601, 12
    %v4251 = vpop.permute.xlu0 %4250
    %4252 = vrot.lane.b32.xlu0 %v603, 12
    %v4253 = vpop.permute.xlu0 %4252
    %4254 = vrot.lane.b32.xlu0 %v604, 12
    %v4255 = vpop.permute.xlu0 %4254
    %4256 = vrot.lane.b32.xlu0 %v606, 12
    %v4257 = vpop.permute.xlu0 %4256
    %4258 = vrot.lane.b32.xlu0 %v607, 12
    %v4259 = vpop.permute.xlu0 %4258
    %4260 = vrot.lane.b32.xlu0 %v609, 12
    %v4261 = vpop.permute.xlu0 %4260
    %4262 = vrot.lane.b32.xlu0 %v610, 12
    %v4263 = vpop.permute.xlu0 %4262
    %4264 = vrot.lane.b32.xlu0 %v612, 12
    %v4265 = vpop.permute.xlu0 %4264
    %4266 = vrot.lane.b32.xlu0 %v613, 12
    %v4267 = vpop.permute.xlu0 %4266
    %4268 = vrot.lane.b32.xlu0 %v615, 12
    %v4269 = vpop.permute.xlu0 %4268
    %4270 = vrot.lane.b32.xlu0 %v616, 12
    %v4271 = vpop.permute.xlu0 %4270
    %4272 = vrot.lane.b32.xlu0 %v618, 12
    %v4273 = vpop.permute.xlu0 %4272
    %4274 = vrot.lane.b32.xlu0 %v619, 12
    %v4275 = vpop.permute.xlu0 %4274
    %4276 = vrot.lane.b32.xlu0 %v621, 12
    %v4277 = vpop.permute.xlu0 %4276
    %4278 = vrot.lane.b32.xlu0 %v622, 12
    %v4279 = vpop.permute.xlu0 %4278
    %4280 = vrot.lane.b32.xlu0 %v624, 12
    %v4281 = vpop.permute.xlu0 %4280
    %4282 = vrot.lane.b32.xlu0 %v625, 12
    %v4283 = vpop.permute.xlu0 %4282
    %4284 = vrot.lane.b32.xlu0 %v627, 12
    %v4285 = vpop.permute.xlu0 %4284
    %4286 = vrot.lane.b32.xlu0 %v628, 12
    %v4287 = vpop.permute.xlu0 %4286
    %4288 = vrot.lane.b32.xlu0 %v630, 12
    %v4289 = vpop.permute.xlu0 %4288
    %4290 = vrot.lane.b32.xlu0 %v631, 12
    %v4291 = vpop.permute.xlu0 %4290
    %4292 = vrot.lane.b32.xlu0 %v633, 12
    %v4293 = vpop.permute.xlu0 %4292
    %4294 = vrot.lane.b32.xlu0 %v634, 12
    %v4295 = vpop.permute.xlu0 %4294
    %4296 = vrot.lane.b32.xlu0 %v636, 12
    %v4297 = vpop.permute.xlu0 %4296
    %4298 = vrot.lane.b32.xlu0 %v637, 12
    %v4299 = vpop.permute.xlu0 %4298
    %4300 = vrot.lane.b32.xlu0 %v639, 12
    %v4301 = vpop.permute.xlu0 %4300
    %4302 = vrot.lane.b32.xlu0 %v640, 12
    %v4303 = vpop.permute.xlu0 %4302
    %4304 = vrot.lane.b32.xlu0 %v642, 12
    %v4305 = vpop.permute.xlu0 %4304
    %4306 = vrot.lane.b32.xlu0 %v643, 12
    %v4307 = vpop.permute.xlu0 %4306
    %4308 = vrot.lane.b32.xlu0 %v651, 12
    %v4309 = vpop.permute.xlu0 %4308
    %4310 = vrot.lane.b32.xlu0 %v652, 12
    %v4311 = vpop.permute.xlu0 %4310
    %4312 = vrot.lane.b32.xlu0 %v654, 12
    %v4313 = vpop.permute.xlu0 %4312
    %4314 = vrot.lane.b32.xlu0 %v655, 12
    %v4315 = vpop.permute.xlu0 %4314
    %4316 = vrot.lane.b32.xlu0 %v657, 12
    %v4317 = vpop.permute.xlu0 %4316
    %4318 = vrot.lane.b32.xlu0 %v658, 12
    %v4319 = vpop.permute.xlu0 %4318
    %4320 = vrot.lane.b32.xlu0 %v660, 12
    %v4321 = vpop.permute.xlu0 %4320
    %4322 = vrot.lane.b32.xlu0 %v661, 12
    %v4323 = vpop.permute.xlu0 %4322
    %4324 = vrot.lane.b32.xlu0 %v663, 12
    %v4325 = vpop.permute.xlu0 %4324
    %4326 = vrot.lane.b32.xlu0 %v664, 12
    %v4327 = vpop.permute.xlu0 %4326
    %4328 = vrot.lane.b32.xlu0 %v666, 12
    %v4329 = vpop.permute.xlu0 %4328
    %4330 = vrot.lane.b32.xlu0 %v667, 12
    %v4331 = vpop.permute.xlu0 %4330
    %4332 = vrot.lane.b32.xlu0 %v669, 12
    %v4333 = vpop.permute.xlu0 %4332
    %4334 = vrot.lane.b32.xlu0 %v670, 12
    %v4335 = vpop.permute.xlu0 %4334
    %4336 = vrot.lane.b32.xlu0 %v672, 12
    %v4337 = vpop.permute.xlu0 %4336
    %4338 = vrot.lane.b32.xlu0 %v673, 12
    %v4339 = vpop.permute.xlu0 %4338
    %4340 = vrot.lane.b32.xlu0 %v675, 12
    %v4341 = vpop.permute.xlu0 %4340
    %4342 = vrot.lane.b32.xlu0 %v676, 12
    %v4343 = vpop.permute.xlu0 %4342
    %4344 = vrot.lane.b32.xlu0 %v678, 12
    %v4345 = vpop.permute.xlu0 %4344
    %4346 = vrot.lane.b32.xlu0 %v679, 12
    %v4347 = vpop.permute.xlu0 %4346
    %4348 = vrot.lane.b32.xlu0 %v681, 12
    %v4349 = vpop.permute.xlu0 %4348
    %4350 = vrot.lane.b32.xlu0 %v682, 12
    %v4351 = vpop.permute.xlu0 %4350
    %4352 = vrot.lane.b32.xlu0 %v684, 12
    %v4353 = vpop.permute.xlu0 %4352
    %4354 = vrot.lane.b32.xlu0 %v685, 12
    %v4355 = vpop.permute.xlu0 %4354
    %4356 = vrot.lane.b32.xlu0 %v687, 12
    %v4357 = vpop.permute.xlu0 %4356
    %4358 = vrot.lane.b32.xlu0 %v688, 12
    %v4359 = vpop.permute.xlu0 %4358
    %4360 = vrot.lane.b32.xlu0 %v690, 12
    %v4361 = vpop.permute.xlu0 %4360
    %4362 = vrot.lane.b32.xlu0 %v691, 12
    %v4363 = vpop.permute.xlu0 %4362
    %4364 = vrot.lane.b32.xlu0 %v693, 12
    %v4365 = vpop.permute.xlu0 %4364
    %4366 = vrot.lane.b32.xlu0 %v694, 12
    %v4367 = vpop.permute.xlu0 %4366
    %4368 = vrot.lane.b32.xlu0 %v696, 12
    %v4369 = vpop.permute.xlu0 %4368
    %4370 = vrot.lane.b32.xlu0 %v697, 12
    %v4371 = vpop.permute.xlu0 %4370
    %4372 = vrot.lane.b32.xlu0 %v705, 12
    %v4373 = vpop.permute.xlu0 %4372
    %4374 = vrot.lane.b32.xlu0 %v706, 12
    %v4375 = vpop.permute.xlu0 %4374
    %4376 = vrot.lane.b32.xlu0 %v708, 12
    %v4377 = vpop.permute.xlu0 %4376
    %4378 = vrot.lane.b32.xlu0 %v709, 12
    %v4379 = vpop.permute.xlu0 %4378
    %4380 = vrot.lane.b32.xlu0 %v711, 12
    %v4381 = vpop.permute.xlu0 %4380
    %4382 = vrot.lane.b32.xlu0 %v712, 12
    %v4383 = vpop.permute.xlu0 %4382
    %4384 = vrot.lane.b32.xlu0 %v714, 12
    %v4385 = vpop.permute.xlu0 %4384
    %4386 = vrot.lane.b32.xlu0 %v715, 12
    %v4387 = vpop.permute.xlu0 %4386
    %4388 = vrot.lane.b32.xlu0 %v717, 12
    %v4389 = vpop.permute.xlu0 %4388
    %4390 = vrot.lane.b32.xlu0 %v718, 12
    %v4391 = vpop.permute.xlu0 %4390
    %4392 = vrot.lane.b32.xlu0 %v720, 12
    %v4393 = vpop.permute.xlu0 %4392
    %4394 = vrot.lane.b32.xlu0 %v721, 12
    %v4395 = vpop.permute.xlu0 %4394
    %4396 = vrot.lane.b32.xlu0 %v723, 12
    %v4397 = vpop.permute.xlu0 %4396
    %4398 = vrot.lane.b32.xlu0 %v724, 12
    %v4399 = vpop.permute.xlu0 %4398
    %4400 = vrot.lane.b32.xlu0 %v726, 12
    %v4401 = vpop.permute.xlu0 %4400
    %4402 = vrot.lane.b32.xlu0 %v727, 12
    %v4403 = vpop.permute.xlu0 %4402
    %4404 = vrot.lane.b32.xlu0 %v729, 12
    %v4405 = vpop.permute.xlu0 %4404
    %4406 = vrot.lane.b32.xlu0 %v730, 12
    %v4407 = vpop.permute.xlu0 %4406
    %4408 = vrot.lane.b32.xlu0 %v732, 12
    %v4409 = vpop.permute.xlu0 %4408
    %4410 = vrot.lane.b32.xlu0 %v733, 12
    %v4411 = vpop.permute.xlu0 %4410
    %4412 = vrot.lane.b32.xlu0 %v735, 12
    %v4413 = vpop.permute.xlu0 %4412
    %4414 = vrot.lane.b32.xlu0 %v736, 12
    %v4415 = vpop.permute.xlu0 %4414
    %4416 = vrot.lane.b32.xlu0 %v738, 12
    %v4417 = vpop.permute.xlu0 %4416
    %4418 = vrot.lane.b32.xlu0 %v739, 12
    %v4419 = vpop.permute.xlu0 %4418
    %4420 = vrot.lane.b32.xlu0 %v741, 12
    %v4421 = vpop.permute.xlu0 %4420
    %4422 = vrot.lane.b32.xlu0 %v742, 12
    %v4423 = vpop.permute.xlu0 %4422
    %4424 = vrot.lane.b32.xlu0 %v744, 12
    %v4425 = vpop.permute.xlu0 %4424
    %4426 = vrot.lane.b32.xlu0 %v745, 12
    %v4427 = vpop.permute.xlu0 %4426
    %4428 = vrot.lane.b32.xlu0 %v747, 12
    %v4429 = vpop.permute.xlu0 %4428
    %4430 = vrot.lane.b32.xlu0 %v748, 12
    %v4431 = vpop.permute.xlu0 %4430
    %4432 = vrot.lane.b32.xlu0 %v750, 12
    %v4433 = vpop.permute.xlu0 %4432
    %4434 = vrot.lane.b32.xlu0 %v751, 12
    %v4435 = vpop.permute.xlu0 %4434
    %4436 = vrot.lane.b32.xlu0 %v759, 12
    %v4437 = vpop.permute.xlu0 %4436
    %4438 = vrot.lane.b32.xlu0 %v760, 12
    %v4439 = vpop.permute.xlu0 %4438
    %4440 = vrot.lane.b32.xlu0 %v762, 12
    %v4441 = vpop.permute.xlu0 %4440
    %4442 = vrot.lane.b32.xlu0 %v763, 12
    %v4443 = vpop.permute.xlu0 %4442
    %4444 = vrot.lane.b32.xlu0 %v765, 12
    %v4445 = vpop.permute.xlu0 %4444
    %4446 = vrot.lane.b32.xlu0 %v766, 12
    %v4447 = vpop.permute.xlu0 %4446
    %4448 = vrot.lane.b32.xlu0 %v768, 12
    %v4449 = vpop.permute.xlu0 %4448
    %4450 = vrot.lane.b32.xlu0 %v769, 12
    %v4451 = vpop.permute.xlu0 %4450
    %4452 = vrot.lane.b32.xlu0 %v771, 12
    %v4453 = vpop.permute.xlu0 %4452
    %4454 = vrot.lane.b32.xlu0 %v772, 12
    %v4455 = vpop.permute.xlu0 %4454
    %4456 = vrot.lane.b32.xlu0 %v774, 12
    %v4457 = vpop.permute.xlu0 %4456
    %4458 = vrot.lane.b32.xlu0 %v775, 12
    %v4459 = vpop.permute.xlu0 %4458
    %4460 = vrot.lane.b32.xlu0 %v777, 12
    %v4461 = vpop.permute.xlu0 %4460
    %4462 = vrot.lane.b32.xlu0 %v778, 12
    %v4463 = vpop.permute.xlu0 %4462
    %4464 = vrot.lane.b32.xlu0 %v780, 12
    %v4465 = vpop.permute.xlu0 %4464
    %4466 = vrot.lane.b32.xlu0 %v781, 12
    %v4467 = vpop.permute.xlu0 %4466
    %4468 = vrot.lane.b32.xlu0 %v783, 12
    %v4469 = vpop.permute.xlu0 %4468
    %4470 = vrot.lane.b32.xlu0 %v784, 12
    %v4471 = vpop.permute.xlu0 %4470
    %4472 = vrot.lane.b32.xlu0 %v786, 12
    %v4473 = vpop.permute.xlu0 %4472
    %4474 = vrot.lane.b32.xlu0 %v787, 12
    %v4475 = vpop.permute.xlu0 %4474
    %4476 = vrot.lane.b32.xlu0 %v789, 12
    %v4477 = vpop.permute.xlu0 %4476
    %4478 = vrot.lane.b32.xlu0 %v790, 12
    %v4479 = vpop.permute.xlu0 %4478
    %4480 = vrot.lane.b32.xlu0 %v792, 12
    %v4481 = vpop.permute.xlu0 %4480
    %4482 = vrot.lane.b32.xlu0 %v793, 12
    %v4483 = vpop.permute.xlu0 %4482
    %4484 = vrot.lane.b32.xlu0 %v795, 12
    %v4485 = vpop.permute.xlu0 %4484
    %4486 = vrot.lane.b32.xlu0 %v796, 12
    %v4487 = vpop.permute.xlu0 %4486
    %4488 = vrot.lane.b32.xlu0 %v798, 12
    %v4489 = vpop.permute.xlu0 %4488
    %4490 = vrot.lane.b32.xlu0 %v799, 12
    %v4491 = vpop.permute.xlu0 %4490
    %4492 = vrot.lane.b32.xlu0 %v801, 12
    %v4493 = vpop.permute.xlu0 %4492
    %4494 = vrot.lane.b32.xlu0 %v802, 12
    %v4495 = vpop.permute.xlu0 %4494
    %4496 = vrot.lane.b32.xlu0 %v804, 12
    %v4497 = vpop.permute.xlu0 %4496
    %4498 = vrot.lane.b32.xlu0 %v805, 12
    %v4499 = vpop.permute.xlu0 %4498
    %4500 = vrot.lane.b32.xlu0 %v813, 12
    %v4501 = vpop.permute.xlu0 %4500
    %4502 = vrot.lane.b32.xlu0 %v814, 12
    %v4503 = vpop.permute.xlu0 %4502
    %4504 = vrot.lane.b32.xlu0 %v816, 12
    %v4505 = vpop.permute.xlu0 %4504
    %4506 = vrot.lane.b32.xlu0 %v817, 12
    %v4507 = vpop.permute.xlu0 %4506
    %4508 = vrot.lane.b32.xlu0 %v819, 12
    %v4509 = vpop.permute.xlu0 %4508
    %4510 = vrot.lane.b32.xlu0 %v820, 12
    %v4511 = vpop.permute.xlu0 %4510
    %4512 = vrot.lane.b32.xlu0 %v822, 12
    %v4513 = vpop.permute.xlu0 %4512
    %4514 = vrot.lane.b32.xlu0 %v823, 12
    %v4515 = vpop.permute.xlu0 %4514
    %4516 = vrot.lane.b32.xlu0 %v825, 12
    %v4517 = vpop.permute.xlu0 %4516
    %4518 = vrot.lane.b32.xlu0 %v826, 12
    %v4519 = vpop.permute.xlu0 %4518
    %4520 = vrot.lane.b32.xlu0 %v828, 12
    %v4521 = vpop.permute.xlu0 %4520
    %4522 = vrot.lane.b32.xlu0 %v829, 12
    %v4523 = vpop.permute.xlu0 %4522
    %4524 = vrot.lane.b32.xlu0 %v831, 12
    %v4525 = vpop.permute.xlu0 %4524
    %4526 = vrot.lane.b32.xlu0 %v832, 12
    %v4527 = vpop.permute.xlu0 %4526
    %4528 = vrot.lane.b32.xlu0 %v834, 12
    %v4529 = vpop.permute.xlu0 %4528
    %4530 = vrot.lane.b32.xlu0 %v835, 12
    %v4531 = vpop.permute.xlu0 %4530
    %4532 = vrot.lane.b32.xlu0 %v837, 12
    %v4533 = vpop.permute.xlu0 %4532
    %4534 = vrot.lane.b32.xlu0 %v838, 12
    %v4535 = vpop.permute.xlu0 %4534
    %4536 = vrot.lane.b32.xlu0 %v840, 12
    %v4537 = vpop.permute.xlu0 %4536
    %4538 = vrot.lane.b32.xlu0 %v841, 12
    %v4539 = vpop.permute.xlu0 %4538
    %4540 = vrot.lane.b32.xlu0 %v843, 12
    %v4541 = vpop.permute.xlu0 %4540
    %4542 = vrot.lane.b32.xlu0 %v844, 12
    %v4543 = vpop.permute.xlu0 %4542
    %4544 = vrot.lane.b32.xlu0 %v846, 12
    %v4545 = vpop.permute.xlu0 %4544
    %4546 = vrot.lane.b32.xlu0 %v847, 12
    %v4547 = vpop.permute.xlu0 %4546
    %4548 = vrot.lane.b32.xlu0 %v849, 12
    %v4549 = vpop.permute.xlu0 %4548
    %4550 = vrot.lane.b32.xlu0 %v850, 12
    %v4551 = vpop.permute.xlu0 %4550
    %4552 = vrot.lane.b32.xlu0 %v852, 12
    %v4553 = vpop.permute.xlu0 %4552
    %4554 = vrot.lane.b32.xlu0 %v853, 12
    %v4555 = vpop.permute.xlu0 %4554
    %4556 = vrot.lane.b32.xlu0 %v855, 12
    %v4557 = vpop.permute.xlu0 %4556
    %4558 = vrot.lane.b32.xlu0 %v856, 12
    %v4559 = vpop.permute.xlu0 %4558
    %4560 = vrot.lane.b32.xlu0 %v858, 12
    %v4561 = vpop.permute.xlu0 %4560
    %4562 = vrot.lane.b32.xlu0 %v859, 12
    %v4563 = vpop.permute.xlu0 %4562
    %4564 = vrot.lane.b32.xlu0 %v867, 12
    %v4565 = vpop.permute.xlu0 %4564
    %4566 = vrot.lane.b32.xlu0 %v868, 12
    %v4567 = vpop.permute.xlu0 %4566
    %4568 = vrot.lane.b32.xlu0 %v870, 12
    %v4569 = vpop.permute.xlu0 %4568
    %4570 = vrot.lane.b32.xlu0 %v871, 12
    %v4571 = vpop.permute.xlu0 %4570
    %4572 = vrot.lane.b32.xlu0 %v873, 12
    %v4573 = vpop.permute.xlu0 %4572
    %4574 = vrot.lane.b32.xlu0 %v874, 12
    %v4575 = vpop.permute.xlu0 %4574
    %4576 = vrot.lane.b32.xlu0 %v876, 12
    %v4577 = vpop.permute.xlu0 %4576
    %4578 = vrot.lane.b32.xlu0 %v877, 12
    %v4579 = vpop.permute.xlu0 %4578
    %4580 = vrot.lane.b32.xlu0 %v879, 12
    %v4581 = vpop.permute.xlu0 %4580
    %4582 = vrot.lane.b32.xlu0 %v880, 12
    %v4583 = vpop.permute.xlu0 %4582
    %4584 = vrot.lane.b32.xlu0 %v882, 12
    %v4585 = vpop.permute.xlu0 %4584
    %4586 = vrot.lane.b32.xlu0 %v883, 12
    %v4587 = vpop.permute.xlu0 %4586
    %4588 = vrot.lane.b32.xlu0 %v885, 12
    %v4589 = vpop.permute.xlu0 %4588
    %4590 = vrot.lane.b32.xlu0 %v886, 12
    %v4591 = vpop.permute.xlu0 %4590
    %4592 = vrot.lane.b32.xlu0 %v888, 12
    %v4593 = vpop.permute.xlu0 %4592
    %4594 = vrot.lane.b32.xlu0 %v889, 12
    %v4595 = vpop.permute.xlu0 %4594
    %4596 = vrot.lane.b32.xlu0 %v891, 12
    %v4597 = vpop.permute.xlu0 %4596
    %4598 = vrot.lane.b32.xlu0 %v892, 12
    %v4599 = vpop.permute.xlu0 %4598
    %4600 = vrot.lane.b32.xlu0 %v894, 12
    %v4601 = vpop.permute.xlu0 %4600
    %4602 = vrot.lane.b32.xlu0 %v895, 12
    %v4603 = vpop.permute.xlu0 %4602
    %4604 = vrot.lane.b32.xlu0 %v897, 12
    %v4605 = vpop.permute.xlu0 %4604
    %4606 = vrot.lane.b32.xlu0 %v898, 12
    %v4607 = vpop.permute.xlu0 %4606
    %4608 = vrot.lane.b32.xlu0 %v900, 12
    %v4609 = vpop.permute.xlu0 %4608
    %4610 = vrot.lane.b32.xlu0 %v901, 12
    %v4611 = vpop.permute.xlu0 %4610
    %4612 = vrot.lane.b32.xlu0 %v903, 12
    %v4613 = vpop.permute.xlu0 %4612
    %4614 = vrot.lane.b32.xlu0 %v904, 12
    %v4615 = vpop.permute.xlu0 %4614
    %4616 = vrot.lane.b32.xlu0 %v906, 12
    %v4617 = vpop.permute.xlu0 %4616
    %4618 = vrot.lane.b32.xlu0 %v907, 12
    %v4619 = vpop.permute.xlu0 %4618
    %4620 = vrot.lane.b32.xlu0 %v909, 12
    %v4621 = vpop.permute.xlu0 %4620
    %4622 = vrot.lane.b32.xlu0 %v910, 12
    %v4623 = vpop.permute.xlu0 %4622
    %4624 = vrot.lane.b32.xlu0 %v912, 12
    %v4625 = vpop.permute.xlu0 %4624
    %4626 = vrot.lane.b32.xlu0 %v913, 12
    %v4627 = vpop.permute.xlu0 %4626
    %4628 = vrot.lane.b32.xlu0 %v921, 12
    %v4629 = vpop.permute.xlu0 %4628
    %4630 = vrot.lane.b32.xlu0 %v922, 12
    %v4631 = vpop.permute.xlu0 %4630
    %4632 = vrot.lane.b32.xlu0 %v924, 12
    %v4633 = vpop.permute.xlu0 %4632
    %4634 = vrot.lane.b32.xlu0 %v925, 12
    %v4635 = vpop.permute.xlu0 %4634
    %4636 = vrot.lane.b32.xlu0 %v927, 12
    %v4637 = vpop.permute.xlu0 %4636
    %4638 = vrot.lane.b32.xlu0 %v928, 12
    %v4639 = vpop.permute.xlu0 %4638
    %4640 = vrot.lane.b32.xlu0 %v930, 12
    %v4641 = vpop.permute.xlu0 %4640
    %4642 = vrot.lane.b32.xlu0 %v931, 12
    %v4643 = vpop.permute.xlu0 %4642
    %4644 = vrot.lane.b32.xlu0 %v933, 12
    %v4645 = vpop.permute.xlu0 %4644
    %4646 = vrot.lane.b32.xlu0 %v934, 12
    %v4647 = vpop.permute.xlu0 %4646
    %4648 = vrot.lane.b32.xlu0 %v936, 12
    %v4649 = vpop.permute.xlu0 %4648
    %4650 = vrot.lane.b32.xlu0 %v937, 12
    %v4651 = vpop.permute.xlu0 %4650
    %4652 = vrot.lane.b32.xlu0 %v939, 12
    %v4653 = vpop.permute.xlu0 %4652
    %4654 = vrot.lane.b32.xlu0 %v940, 12
    %v4655 = vpop.permute.xlu0 %4654
    %4656 = vrot.lane.b32.xlu0 %v942, 12
    %v4657 = vpop.permute.xlu0 %4656
    %4658 = vrot.lane.b32.xlu0 %v943, 12
    %v4659 = vpop.permute.xlu0 %4658
    %4660 = vrot.lane.b32.xlu0 %v945, 12
    %v4661 = vpop.permute.xlu0 %4660
    %4662 = vrot.lane.b32.xlu0 %v946, 12
    %v4663 = vpop.permute.xlu0 %4662
    %4664 = vrot.lane.b32.xlu0 %v948, 12
    %v4665 = vpop.permute.xlu0 %4664
    %4666 = vrot.lane.b32.xlu0 %v949, 12
    %v4667 = vpop.permute.xlu0 %4666
    %4668 = vrot.lane.b32.xlu0 %v951, 12
    %v4669 = vpop.permute.xlu0 %4668
    %4670 = vrot.lane.b32.xlu0 %v952, 12
    %v4671 = vpop.permute.xlu0 %4670
    %4672 = vrot.lane.b32.xlu0 %v954, 12
    %v4673 = vpop.permute.xlu0 %4672
    %4674 = vrot.lane.b32.xlu0 %v955, 12
    %v4675 = vpop.permute.xlu0 %4674
    %4676 = vrot.lane.b32.xlu0 %v957, 12
    %v4677 = vpop.permute.xlu0 %4676
    %4678 = vrot.lane.b32.xlu0 %v958, 12
    %v4679 = vpop.permute.xlu0 %4678
    %4680 = vrot.lane.b32.xlu0 %v960, 12
    %v4681 = vpop.permute.xlu0 %4680
    %4682 = vrot.lane.b32.xlu0 %v961, 12
    %v4683 = vpop.permute.xlu0 %4682
    %4684 = vrot.lane.b32.xlu0 %v963, 12
    %v4685 = vpop.permute.xlu0 %4684
    %4686 = vrot.lane.b32.xlu0 %v964, 12
    %v4687 = vpop.permute.xlu0 %4686
    %4688 = vrot.lane.b32.xlu0 %v966, 12
    %v4689 = vpop.permute.xlu0 %4688
    %4690 = vrot.lane.b32.xlu0 %v967, 12
    %v4691 = vpop.permute.xlu0 %4690
    %4692 = vrot.lane.b32.xlu0 %v975, 12
    %v4693 = vpop.permute.xlu0 %4692
    %4694 = vrot.lane.b32.xlu0 %v976, 12
    %v4695 = vpop.permute.xlu0 %4694
    %4696 = vrot.lane.b32.xlu0 %v978, 12
    %v4697 = vpop.permute.xlu0 %4696
    %4698 = vrot.lane.b32.xlu0 %v979, 12
    %v4699 = vpop.permute.xlu0 %4698
    %4700 = vrot.lane.b32.xlu0 %v981, 12
    %v4701 = vpop.permute.xlu0 %4700
    %4702 = vrot.lane.b32.xlu0 %v982, 12
    %v4703 = vpop.permute.xlu0 %4702
    %4704 = vrot.lane.b32.xlu0 %v984, 12
    %v4705 = vpop.permute.xlu0 %4704
    %4706 = vrot.lane.b32.xlu0 %v985, 12
    %v4707 = vpop.permute.xlu0 %4706
    %4708 = vrot.lane.b32.xlu0 %v987, 12
    %v4709 = vpop.permute.xlu0 %4708
    %4710 = vrot.lane.b32.xlu0 %v988, 12
    %v4711 = vpop.permute.xlu0 %4710
    %4712 = vrot.lane.b32.xlu0 %v990, 12
    %v4713 = vpop.permute.xlu0 %4712
    %4714 = vrot.lane.b32.xlu0 %v991, 12
    %v4715 = vpop.permute.xlu0 %4714
    %4716 = vrot.lane.b32.xlu0 %v993, 12
    %v4717 = vpop.permute.xlu0 %4716
    %4718 = vrot.lane.b32.xlu0 %v994, 12
    %v4719 = vpop.permute.xlu0 %4718
    %4720 = vrot.lane.b32.xlu0 %v996, 12
    %v4721 = vpop.permute.xlu0 %4720
    %4722 = vrot.lane.b32.xlu0 %v997, 12
    %v4723 = vpop.permute.xlu0 %4722
    %4724 = vrot.lane.b32.xlu0 %v999, 12
    %v4725 = vpop.permute.xlu0 %4724
    %4726 = vrot.lane.b32.xlu0 %v1000, 12
    %v4727 = vpop.permute.xlu0 %4726
    %4728 = vrot.lane.b32.xlu0 %v1002, 12
    %v4729 = vpop.permute.xlu0 %4728
    %4730 = vrot.lane.b32.xlu0 %v1003, 12
    %v4731 = vpop.permute.xlu0 %4730
    %4732 = vrot.lane.b32.xlu0 %v1005, 12
    %v4733 = vpop.permute.xlu0 %4732
    %4734 = vrot.lane.b32.xlu0 %v1006, 12
    %v4735 = vpop.permute.xlu0 %4734
    %4736 = vrot.lane.b32.xlu0 %v1008, 12
    %v4737 = vpop.permute.xlu0 %4736
    %4738 = vrot.lane.b32.xlu0 %v1009, 12
    %v4739 = vpop.permute.xlu0 %4738
    %4740 = vrot.lane.b32.xlu0 %v1011, 12
    %v4741 = vpop.permute.xlu0 %4740
    %4742 = vrot.lane.b32.xlu0 %v1012, 12
    %v4743 = vpop.permute.xlu0 %4742
    %4744 = vrot.lane.b32.xlu0 %v1014, 12
    %v4745 = vpop.permute.xlu0 %4744
    %4746 = vrot.lane.b32.xlu0 %v1015, 12
    %v4747 = vpop.permute.xlu0 %4746
    %4748 = vrot.lane.b32.xlu0 %v1017, 12
    %v4749 = vpop.permute.xlu0 %4748
    %4750 = vrot.lane.b32.xlu0 %v1018, 12
    %v4751 = vpop.permute.xlu0 %4750
    %4752 = vrot.lane.b32.xlu0 %v1020, 12
    %v4753 = vpop.permute.xlu0 %4752
    %4754 = vrot.lane.b32.xlu0 %v1021, 12
    %v4755 = vpop.permute.xlu0 %4754
    %v5020 = vrot.slane %v642, 1
    %v5021 = vrot.slane %v643, 1
    %v5022 = vsel %vm1410, %v5020, %v5021
    %v5023 = vrot.slane %v644, 1
    %v5024 = vsel %vm1410, %v5021, %v5023
    %v5025 = vrot.slane %v696, 1
    %v5026 = vrot.slane %v697, 1
    %v5027 = vsel %vm1410, %v5025, %v5026
    %v5028 = vrot.slane %v698, 1
    %v5029 = vsel %vm1410, %v5026, %v5028
    %v5030 = vrot.slane %v750, 1
    %v5031 = vrot.slane %v751, 1
    %v5032 = vsel %vm1410, %v5030, %v5031
    %v5033 = vrot.slane %v752, 1
    %v5034 = vsel %vm1410, %v5031, %v5033
    %v5035 = vrot.slane %v804, 1
    %v5036 = vrot.slane %v805, 1
    %v5037 = vsel %vm1410, %v5035, %v5036
    %v5038 = vrot.slane %v806, 1
    %v5039 = vsel %vm1410, %v5036, %v5038
    %v5040 = vrot.slane %v858, 1
    %v5041 = vrot.slane %v859, 1
    %v5042 = vsel %vm1410, %v5040, %v5041
    %v5043 = vrot.slane %v860, 1
    %v5044 = vsel %vm1410, %v5041, %v5043
    %v5045 = vrot.slane %v912, 1
    %v5046 = vrot.slane %v913, 1
    %v5047 = vsel %vm1410, %v5045, %v5046
    %v5048 = vrot.slane %v914, 1
    %v5049 = vsel %vm1410, %v5046, %v5048
    %v5050 = vrot.slane %v966, 1
    %v5051 = vrot.slane %v967, 1
    %v5052 = vsel %vm1410, %v5050, %v5051
    %v5053 = vrot.slane %v968, 1
    %v5054 = vsel %vm1410, %v5051, %v5053
    %v5055 = vrot.slane %v1020, 1
    %v5056 = vrot.slane %v1021, 1
    %v5057 = vsel %vm1410, %v5055, %v5056
    %v5058 = vrot.slane %v1022, 1
    %v5059 = vsel %vm1410, %v5056, %v5058
    %5060 = vrot.lane.b32.xlu0 %v1418, 16
    %v5061 = vpop.permute.xlu0 %5060
    %5062 = vrot.lane.b32.xlu0 %v1420, 16
    %v5063 = vpop.permute.xlu0 %5062
    %5064 = vrot.lane.b32.xlu0 %v1423, 16
    %v5065 = vpop.permute.xlu0 %5064
    %5066 = vrot.lane.b32.xlu0 %v1425, 16
    %v5067 = vpop.permute.xlu0 %5066
    %5068 = vrot.lane.b32.xlu0 %v1428, 16
    %v5069 = vpop.permute.xlu0 %5068
    %5070 = vrot.lane.b32.xlu0 %v1430, 16
    %v5071 = vpop.permute.xlu0 %5070
    %5072 = vrot.lane.b32.xlu0 %v1433, 16
    %v5073 = vpop.permute.xlu0 %5072
    %5074 = vrot.lane.b32.xlu0 %v1435, 16
    %v5075 = vpop.permute.xlu0 %5074
    %5076 = vrot.lane.b32.xlu0 %v1438, 16
    %v5077 = vpop.permute.xlu0 %5076
    %5078 = vrot.lane.b32.xlu0 %v1440, 16
    %v5079 = vpop.permute.xlu0 %5078
    %5080 = vrot.lane.b32.xlu0 %v1443, 16
    %v5081 = vpop.permute.xlu0 %5080
    %5082 = vrot.lane.b32.xlu0 %v1445, 16
    %v5083 = vpop.permute.xlu0 %5082
    %5084 = vrot.lane.b32.xlu0 %v1448, 16
    %v5085 = vpop.permute.xlu0 %5084
    %5086 = vrot.lane.b32.xlu0 %v1450, 16
    %v5087 = vpop.permute.xlu0 %5086
    %5088 = vrot.lane.b32.xlu0 %v1453, 16
    %v5089 = vpop.permute.xlu0 %5088
    %5090 = vrot.lane.b32.xlu0 %v1455, 16
    %v5091 = vpop.permute.xlu0 %5090
    %5092 = vrot.lane.b32.xlu0 %v1458, 16
    %v5093 = vpop.permute.xlu0 %5092
    %5094 = vrot.lane.b32.xlu0 %v1460, 16
    %v5095 = vpop.permute.xlu0 %5094
    %5096 = vrot.lane.b32.xlu0 %v1463, 16
    %v5097 = vpop.permute.xlu0 %5096
    %5098 = vrot.lane.b32.xlu0 %v1465, 16
    %v5099 = vpop.permute.xlu0 %5098
    %5100 = vrot.lane.b32.xlu0 %v1468, 16
    %v5101 = vpop.permute.xlu0 %5100
    %5102 = vrot.lane.b32.xlu0 %v1470, 16
    %v5103 = vpop.permute.xlu0 %5102
    %5104 = vrot.lane.b32.xlu0 %v1473, 16
    %v5105 = vpop.permute.xlu0 %5104
    %5106 = vrot.lane.b32.xlu0 %v1475, 16
    %v5107 = vpop.permute.xlu0 %5106
    %5108 = vrot.lane.b32.xlu0 %v1478, 16
    %v5109 = vpop.permute.xlu0 %5108
    %5110 = vrot.lane.b32.xlu0 %v1480, 16
    %v5111 = vpop.permute.xlu0 %5110
    %5112 = vrot.lane.b32.xlu0 %v1483, 16
    %v5113 = vpop.permute.xlu0 %5112
    %5114 = vrot.lane.b32.xlu0 %v1485, 16
    %v5115 = vpop.permute.xlu0 %5114
    %5116 = vrot.lane.b32.xlu0 %v1488, 16
    %v5117 = vpop.permute.xlu0 %5116
    %5118 = vrot.lane.b32.xlu0 %v1490, 16
    %v5119 = vpop.permute.xlu0 %5118
    %5120 = vrot.lane.b32.xlu0 %v5022, 16
    %v5121 = vpop.permute.xlu0 %5120
    %5122 = vrot.lane.b32.xlu0 %v5024, 16
    %v5123 = vpop.permute.xlu0 %5122
    %5124 = vrot.lane.b32.xlu0 %v1498, 16
    %v5125 = vpop.permute.xlu0 %5124
    %5126 = vrot.lane.b32.xlu0 %v1500, 16
    %v5127 = vpop.permute.xlu0 %5126
    %5128 = vrot.lane.b32.xlu0 %v1503, 16
    %v5129 = vpop.permute.xlu0 %5128
    %5130 = vrot.lane.b32.xlu0 %v1505, 16
    %v5131 = vpop.permute.xlu0 %5130
    %5132 = vrot.lane.b32.xlu0 %v1508, 16
    %v5133 = vpop.permute.xlu0 %5132
    %5134 = vrot.lane.b32.xlu0 %v1510, 16
    %v5135 = vpop.permute.xlu0 %5134
    %5136 = vrot.lane.b32.xlu0 %v1513, 16
    %v5137 = vpop.permute.xlu0 %5136
    %5138 = vrot.lane.b32.xlu0 %v1515, 16
    %v5139 = vpop.permute.xlu0 %5138
    %5140 = vrot.lane.b32.xlu0 %v1518, 16
    %v5141 = vpop.permute.xlu0 %5140
    %5142 = vrot.lane.b32.xlu0 %v1520, 16
    %v5143 = vpop.permute.xlu0 %5142
    %5144 = vrot.lane.b32.xlu0 %v1523, 16
    %v5145 = vpop.permute.xlu0 %5144
    %5146 = vrot.lane.b32.xlu0 %v1525, 16
    %v5147 = vpop.permute.xlu0 %5146
    %5148 = vrot.lane.b32.xlu0 %v1528, 16
    %v5149 = vpop.permute.xlu0 %5148
    %5150 = vrot.lane.b32.xlu0 %v1530, 16
    %v5151 = vpop.permute.xlu0 %5150
    %5152 = vrot.lane.b32.xlu0 %v1533, 16
    %v5153 = vpop.permute.xlu0 %5152
    %5154 = vrot.lane.b32.xlu0 %v1535, 16
    %v5155 = vpop.permute.xlu0 %5154
    %5156 = vrot.lane.b32.xlu0 %v1538, 16
    %v5157 = vpop.permute.xlu0 %5156
    %5158 = vrot.lane.b32.xlu0 %v1540, 16
    %v5159 = vpop.permute.xlu0 %5158
    %5160 = vrot.lane.b32.xlu0 %v1543, 16
    %v5161 = vpop.permute.xlu0 %5160
    %5162 = vrot.lane.b32.xlu0 %v1545, 16
    %v5163 = vpop.permute.xlu0 %5162
    %5164 = vrot.lane.b32.xlu0 %v1548, 16
    %v5165 = vpop.permute.xlu0 %5164
    %5166 = vrot.lane.b32.xlu0 %v1550, 16
    %v5167 = vpop.permute.xlu0 %5166
    %5168 = vrot.lane.b32.xlu0 %v1553, 16
    %v5169 = vpop.permute.xlu0 %5168
    %5170 = vrot.lane.b32.xlu0 %v1555, 16
    %v5171 = vpop.permute.xlu0 %5170
    %5172 = vrot.lane.b32.xlu0 %v1558, 16
    %v5173 = vpop.permute.xlu0 %5172
    %5174 = vrot.lane.b32.xlu0 %v1560, 16
    %v5175 = vpop.permute.xlu0 %5174
    %5176 = vrot.lane.b32.xlu0 %v1563, 16
    %v5177 = vpop.permute.xlu0 %5176
    %5178 = vrot.lane.b32.xlu0 %v1565, 16
    %v5179 = vpop.permute.xlu0 %5178
    %5180 = vrot.lane.b32.xlu0 %v1568, 16
    %v5181 = vpop.permute.xlu0 %5180
    %5182 = vrot.lane.b32.xlu0 %v1570, 16
    %v5183 = vpop.permute.xlu0 %5182
    %5184 = vrot.lane.b32.xlu0 %v5027, 16
    %v5185 = vpop.permute.xlu0 %5184
    %5186 = vrot.lane.b32.xlu0 %v5029, 16
    %v5187 = vpop.permute.xlu0 %5186
    %5188 = vrot.lane.b32.xlu0 %v1578, 16
    %v5189 = vpop.permute.xlu0 %5188
    %5190 = vrot.lane.b32.xlu0 %v1580, 16
    %v5191 = vpop.permute.xlu0 %5190
    %5192 = vrot.lane.b32.xlu0 %v1583, 16
    %v5193 = vpop.permute.xlu0 %5192
    %5194 = vrot.lane.b32.xlu0 %v1585, 16
    %v5195 = vpop.permute.xlu0 %5194
    %5196 = vrot.lane.b32.xlu0 %v1588, 16
    %v5197 = vpop.permute.xlu0 %5196
    %5198 = vrot.lane.b32.xlu0 %v1590, 16
    %v5199 = vpop.permute.xlu0 %5198
    %5200 = vrot.lane.b32.xlu0 %v1593, 16
    %v5201 = vpop.permute.xlu0 %5200
    %5202 = vrot.lane.b32.xlu0 %v1595, 16
    %v5203 = vpop.permute.xlu0 %5202
    %5204 = vrot.lane.b32.xlu0 %v1598, 16
    %v5205 = vpop.permute.xlu0 %5204
    %5206 = vrot.lane.b32.xlu0 %v1600, 16
    %v5207 = vpop.permute.xlu0 %5206
    %5208 = vrot.lane.b32.xlu0 %v1603, 16
    %v5209 = vpop.permute.xlu0 %5208
    %5210 = vrot.lane.b32.xlu0 %v1605, 16
    %v5211 = vpop.permute.xlu0 %5210
    %5212 = vrot.lane.b32.xlu0 %v1608, 16
    %v5213 = vpop.permute.xlu0 %5212
    %5214 = vrot.lane.b32.xlu0 %v1610, 16
    %v5215 = vpop.permute.xlu0 %5214
    %5216 = vrot.lane.b32.xlu0 %v1613, 16
    %v5217 = vpop.permute.xlu0 %5216
    %5218 = vrot.lane.b32.xlu0 %v1615, 16
    %v5219 = vpop.permute.xlu0 %5218
    %5220 = vrot.lane.b32.xlu0 %v1618, 16
    %v5221 = vpop.permute.xlu0 %5220
    %5222 = vrot.lane.b32.xlu0 %v1620, 16
    %v5223 = vpop.permute.xlu0 %5222
    %5224 = vrot.lane.b32.xlu0 %v1623, 16
    %v5225 = vpop.permute.xlu0 %5224
    %5226 = vrot.lane.b32.xlu0 %v1625, 16
    %v5227 = vpop.permute.xlu0 %5226
    %5228 = vrot.lane.b32.xlu0 %v1628, 16
    %v5229 = vpop.permute.xlu0 %5228
    %5230 = vrot.lane.b32.xlu0 %v1630, 16
    %v5231 = vpop.permute.xlu0 %5230
    %5232 = vrot.lane.b32.xlu0 %v1633, 16
    %v5233 = vpop.permute.xlu0 %5232
    %5234 = vrot.lane.b32.xlu0 %v1635, 16
    %v5235 = vpop.permute.xlu0 %5234
    %5236 = vrot.lane.b32.xlu0 %v1638, 16
    %v5237 = vpop.permute.xlu0 %5236
    %5238 = vrot.lane.b32.xlu0 %v1640, 16
    %v5239 = vpop.permute.xlu0 %5238
    %5240 = vrot.lane.b32.xlu0 %v1643, 16
    %v5241 = vpop.permute.xlu0 %5240
    %5242 = vrot.lane.b32.xlu0 %v1645, 16
    %v5243 = vpop.permute.xlu0 %5242
    %5244 = vrot.lane.b32.xlu0 %v1648, 16
    %v5245 = vpop.permute.xlu0 %5244
    %5246 = vrot.lane.b32.xlu0 %v1650, 16
    %v5247 = vpop.permute.xlu0 %5246
    %5248 = vrot.lane.b32.xlu0 %v5032, 16
    %v5249 = vpop.permute.xlu0 %5248
    %5250 = vrot.lane.b32.xlu0 %v5034, 16
    %v5251 = vpop.permute.xlu0 %5250
    %5252 = vrot.lane.b32.xlu0 %v1658, 16
    %v5253 = vpop.permute.xlu0 %5252
    %5254 = vrot.lane.b32.xlu0 %v1660, 16
    %v5255 = vpop.permute.xlu0 %5254
    %5256 = vrot.lane.b32.xlu0 %v1663, 16
    %v5257 = vpop.permute.xlu0 %5256
    %5258 = vrot.lane.b32.xlu0 %v1665, 16
    %v5259 = vpop.permute.xlu0 %5258
    %5260 = vrot.lane.b32.xlu0 %v1668, 16
    %v5261 = vpop.permute.xlu0 %5260
    %5262 = vrot.lane.b32.xlu0 %v1670, 16
    %v5263 = vpop.permute.xlu0 %5262
    %5264 = vrot.lane.b32.xlu0 %v1673, 16
    %v5265 = vpop.permute.xlu0 %5264
    %5266 = vrot.lane.b32.xlu0 %v1675, 16
    %v5267 = vpop.permute.xlu0 %5266
    %5268 = vrot.lane.b32.xlu0 %v1678, 16
    %v5269 = vpop.permute.xlu0 %5268
    %5270 = vrot.lane.b32.xlu0 %v1680, 16
    %v5271 = vpop.permute.xlu0 %5270
    %5272 = vrot.lane.b32.xlu0 %v1683, 16
    %v5273 = vpop.permute.xlu0 %5272
    %5274 = vrot.lane.b32.xlu0 %v1685, 16
    %v5275 = vpop.permute.xlu0 %5274
    %5276 = vrot.lane.b32.xlu0 %v1688, 16
    %v5277 = vpop.permute.xlu0 %5276
    %5278 = vrot.lane.b32.xlu0 %v1690, 16
    %v5279 = vpop.permute.xlu0 %5278
    %5280 = vrot.lane.b32.xlu0 %v1693, 16
    %v5281 = vpop.permute.xlu0 %5280
    %5282 = vrot.lane.b32.xlu0 %v1695, 16
    %v5283 = vpop.permute.xlu0 %5282
    %5284 = vrot.lane.b32.xlu0 %v1698, 16
    %v5285 = vpop.permute.xlu0 %5284
    %5286 = vrot.lane.b32.xlu0 %v1700, 16
    %v5287 = vpop.permute.xlu0 %5286
    %5288 = vrot.lane.b32.xlu0 %v1703, 16
    %v5289 = vpop.permute.xlu0 %5288
    %5290 = vrot.lane.b32.xlu0 %v1705, 16
    %v5291 = vpop.permute.xlu0 %5290
    %5292 = vrot.lane.b32.xlu0 %v1708, 16
    %v5293 = vpop.permute.xlu0 %5292
    %5294 = vrot.lane.b32.xlu0 %v1710, 16
    %v5295 = vpop.permute.xlu0 %5294
    %5296 = vrot.lane.b32.xlu0 %v1713, 16
    %v5297 = vpop.permute.xlu0 %5296
    %5298 = vrot.lane.b32.xlu0 %v1715, 16
    %v5299 = vpop.permute.xlu0 %5298
    %5300 = vrot.lane.b32.xlu0 %v1718, 16
    %v5301 = vpop.permute.xlu0 %5300
    %5302 = vrot.lane.b32.xlu0 %v1720, 16
    %v5303 = vpop.permute.xlu0 %5302
    %5304 = vrot.lane.b32.xlu0 %v1723, 16
    %v5305 = vpop.permute.xlu0 %5304
    %5306 = vrot.lane.b32.xlu0 %v1725, 16
    %v5307 = vpop.permute.xlu0 %5306
    %5308 = vrot.lane.b32.xlu0 %v1728, 16
    %v5309 = vpop.permute.xlu0 %5308
    %5310 = vrot.lane.b32.xlu0 %v1730, 16
    %v5311 = vpop.permute.xlu0 %5310
    %5312 = vrot.lane.b32.xlu0 %v5037, 16
    %v5313 = vpop.permute.xlu0 %5312
    %5314 = vrot.lane.b32.xlu0 %v5039, 16
    %v5315 = vpop.permute.xlu0 %5314
    %5316 = vrot.lane.b32.xlu0 %v1738, 16
    %v5317 = vpop.permute.xlu0 %5316
    %5318 = vrot.lane.b32.xlu0 %v1740, 16
    %v5319 = vpop.permute.xlu0 %5318
    %5320 = vrot.lane.b32.xlu0 %v1743, 16
    %v5321 = vpop.permute.xlu0 %5320
    %5322 = vrot.lane.b32.xlu0 %v1745, 16
    %v5323 = vpop.permute.xlu0 %5322
    %5324 = vrot.lane.b32.xlu0 %v1748, 16
    %v5325 = vpop.permute.xlu0 %5324
    %5326 = vrot.lane.b32.xlu0 %v1750, 16
    %v5327 = vpop.permute.xlu0 %5326
    %5328 = vrot.lane.b32.xlu0 %v1753, 16
    %v5329 = vpop.permute.xlu0 %5328
    %5330 = vrot.lane.b32.xlu0 %v1755, 16
    %v5331 = vpop.permute.xlu0 %5330
    %5332 = vrot.lane.b32.xlu0 %v1758, 16
    %v5333 = vpop.permute.xlu0 %5332
    %5334 = vrot.lane.b32.xlu0 %v1760, 16
    %v5335 = vpop.permute.xlu0 %5334
    %5336 = vrot.lane.b32.xlu0 %v1763, 16
    %v5337 = vpop.permute.xlu0 %5336
    %5338 = vrot.lane.b32.xlu0 %v1765, 16
    %v5339 = vpop.permute.xlu0 %5338
    %5340 = vrot.lane.b32.xlu0 %v1768, 16
    %v5341 = vpop.permute.xlu0 %5340
    %5342 = vrot.lane.b32.xlu0 %v1770, 16
    %v5343 = vpop.permute.xlu0 %5342
    %5344 = vrot.lane.b32.xlu0 %v1773, 16
    %v5345 = vpop.permute.xlu0 %5344
    %5346 = vrot.lane.b32.xlu0 %v1775, 16
    %v5347 = vpop.permute.xlu0 %5346
    %5348 = vrot.lane.b32.xlu0 %v1778, 16
    %v5349 = vpop.permute.xlu0 %5348
    %5350 = vrot.lane.b32.xlu0 %v1780, 16
    %v5351 = vpop.permute.xlu0 %5350
    %5352 = vrot.lane.b32.xlu0 %v1783, 16
    %v5353 = vpop.permute.xlu0 %5352
    %5354 = vrot.lane.b32.xlu0 %v1785, 16
    %v5355 = vpop.permute.xlu0 %5354
    %5356 = vrot.lane.b32.xlu0 %v1788, 16
    %v5357 = vpop.permute.xlu0 %5356
    %5358 = vrot.lane.b32.xlu0 %v1790, 16
    %v5359 = vpop.permute.xlu0 %5358
    %5360 = vrot.lane.b32.xlu0 %v1793, 16
    %v5361 = vpop.permute.xlu0 %5360
    %5362 = vrot.lane.b32.xlu0 %v1795, 16
    %v5363 = vpop.permute.xlu0 %5362
    %5364 = vrot.lane.b32.xlu0 %v1798, 16
    %v5365 = vpop.permute.xlu0 %5364
    %5366 = vrot.lane.b32.xlu0 %v1800, 16
    %v5367 = vpop.permute.xlu0 %5366
    %5368 = vrot.lane.b32.xlu0 %v1803, 16
    %v5369 = vpop.permute.xlu0 %5368
    %5370 = vrot.lane.b32.xlu0 %v1805, 16
    %v5371 = vpop.permute.xlu0 %5370
    %5372 = vrot.lane.b32.xlu0 %v1808, 16
    %v5373 = vpop.permute.xlu0 %5372
    %5374 = vrot.lane.b32.xlu0 %v1810, 16
    %v5375 = vpop.permute.xlu0 %5374
    %5376 = vrot.lane.b32.xlu0 %v5042, 16
    %v5377 = vpop.permute.xlu0 %5376
    %5378 = vrot.lane.b32.xlu0 %v5044, 16
    %v5379 = vpop.permute.xlu0 %5378
    %5380 = vrot.lane.b32.xlu0 %v1818, 16
    %v5381 = vpop.permute.xlu0 %5380
    %5382 = vrot.lane.b32.xlu0 %v1820, 16
    %v5383 = vpop.permute.xlu0 %5382
    %5384 = vrot.lane.b32.xlu0 %v1823, 16
    %v5385 = vpop.permute.xlu0 %5384
    %5386 = vrot.lane.b32.xlu0 %v1825, 16
    %v5387 = vpop.permute.xlu0 %5386
    %5388 = vrot.lane.b32.xlu0 %v1828, 16
    %v5389 = vpop.permute.xlu0 %5388
    %5390 = vrot.lane.b32.xlu0 %v1830, 16
    %v5391 = vpop.permute.xlu0 %5390
    %5392 = vrot.lane.b32.xlu0 %v1833, 16
    %v5393 = vpop.permute.xlu0 %5392
    %5394 = vrot.lane.b32.xlu0 %v1835, 16
    %v5395 = vpop.permute.xlu0 %5394
    %5396 = vrot.lane.b32.xlu0 %v1838, 16
    %v5397 = vpop.permute.xlu0 %5396
    %5398 = vrot.lane.b32.xlu0 %v1840, 16
    %v5399 = vpop.permute.xlu0 %5398
    %5400 = vrot.lane.b32.xlu0 %v1843, 16
    %v5401 = vpop.permute.xlu0 %5400
    %5402 = vrot.lane.b32.xlu0 %v1845, 16
    %v5403 = vpop.permute.xlu0 %5402
    %5404 = vrot.lane.b32.xlu0 %v1848, 16
    %v5405 = vpop.permute.xlu0 %5404
    %5406 = vrot.lane.b32.xlu0 %v1850, 16
    %v5407 = vpop.permute.xlu0 %5406
    %5408 = vrot.lane.b32.xlu0 %v1853, 16
    %v5409 = vpop.permute.xlu0 %5408
    %5410 = vrot.lane.b32.xlu0 %v1855, 16
    %v5411 = vpop.permute.xlu0 %5410
    %5412 = vrot.lane.b32.xlu0 %v1858, 16
    %v5413 = vpop.permute.xlu0 %5412
    %5414 = vrot.lane.b32.xlu0 %v1860, 16
    %v5415 = vpop.permute.xlu0 %5414
    %5416 = vrot.lane.b32.xlu0 %v1863, 16
    %v5417 = vpop.permute.xlu0 %5416
    %5418 = vrot.lane.b32.xlu0 %v1865, 16
    %v5419 = vpop.permute.xlu0 %5418
    %5420 = vrot.lane.b32.xlu0 %v1868, 16
    %v5421 = vpop.permute.xlu0 %5420
    %5422 = vrot.lane.b32.xlu0 %v1870, 16
    %v5423 = vpop.permute.xlu0 %5422
    %5424 = vrot.lane.b32.xlu0 %v1873, 16
    %v5425 = vpop.permute.xlu0 %5424
    %5426 = vrot.lane.b32.xlu0 %v1875, 16
    %v5427 = vpop.permute.xlu0 %5426
    %5428 = vrot.lane.b32.xlu0 %v1878, 16
    %v5429 = vpop.permute.xlu0 %5428
    %5430 = vrot.lane.b32.xlu0 %v1880, 16
    %v5431 = vpop.permute.xlu0 %5430
    %5432 = vrot.lane.b32.xlu0 %v1883, 16
    %v5433 = vpop.permute.xlu0 %5432
    %5434 = vrot.lane.b32.xlu0 %v1885, 16
    %v5435 = vpop.permute.xlu0 %5434
    %5436 = vrot.lane.b32.xlu0 %v1888, 16
    %v5437 = vpop.permute.xlu0 %5436
    %5438 = vrot.lane.b32.xlu0 %v1890, 16
    %v5439 = vpop.permute.xlu0 %5438
    %5440 = vrot.lane.b32.xlu0 %v5047, 16
    %v5441 = vpop.permute.xlu0 %5440
    %5442 = vrot.lane.b32.xlu0 %v5049, 16
    %v5443 = vpop.permute.xlu0 %5442
    %5444 = vrot.lane.b32.xlu0 %v1898, 16
    %v5445 = vpop.permute.xlu0 %5444
    %5446 = vrot.lane.b32.xlu0 %v1900, 16
    %v5447 = vpop.permute.xlu0 %5446
    %5448 = vrot.lane.b32.xlu0 %v1903, 16
    %v5449 = vpop.permute.xlu0 %5448
    %5450 = vrot.lane.b32.xlu0 %v1905, 16
    %v5451 = vpop.permute.xlu0 %5450
    %5452 = vrot.lane.b32.xlu0 %v1908, 16
    %v5453 = vpop.permute.xlu0 %5452
    %5454 = vrot.lane.b32.xlu0 %v1910, 16
    %v5455 = vpop.permute.xlu0 %5454
    %5456 = vrot.lane.b32.xlu0 %v1913, 16
    %v5457 = vpop.permute.xlu0 %5456
    %5458 = vrot.lane.b32.xlu0 %v1915, 16
    %v5459 = vpop.permute.xlu0 %5458
    %5460 = vrot.lane.b32.xlu0 %v1918, 16
    %v5461 = vpop.permute.xlu0 %5460
    %5462 = vrot.lane.b32.xlu0 %v1920, 16
    %v5463 = vpop.permute.xlu0 %5462
    %5464 = vrot.lane.b32.xlu0 %v1923, 16
    %v5465 = vpop.permute.xlu0 %5464
    %5466 = vrot.lane.b32.xlu0 %v1925, 16
    %v5467 = vpop.permute.xlu0 %5466
    %5468 = vrot.lane.b32.xlu0 %v1928, 16
    %v5469 = vpop.permute.xlu0 %5468
    %5470 = vrot.lane.b32.xlu0 %v1930, 16
    %v5471 = vpop.permute.xlu0 %5470
    %5472 = vrot.lane.b32.xlu0 %v1933, 16
    %v5473 = vpop.permute.xlu0 %5472
    %5474 = vrot.lane.b32.xlu0 %v1935, 16
    %v5475 = vpop.permute.xlu0 %5474
    %5476 = vrot.lane.b32.xlu0 %v1938, 16
    %v5477 = vpop.permute.xlu0 %5476
    %5478 = vrot.lane.b32.xlu0 %v1940, 16
    %v5479 = vpop.permute.xlu0 %5478
    %5480 = vrot.lane.b32.xlu0 %v1943, 16
    %v5481 = vpop.permute.xlu0 %5480
    %5482 = vrot.lane.b32.xlu0 %v1945, 16
    %v5483 = vpop.permute.xlu0 %5482
    %5484 = vrot.lane.b32.xlu0 %v1948, 16
    %v5485 = vpop.permute.xlu0 %5484
    %5486 = vrot.lane.b32.xlu0 %v1950, 16
    %v5487 = vpop.permute.xlu0 %5486
    %5488 = vrot.lane.b32.xlu0 %v1953, 16
    %v5489 = vpop.permute.xlu0 %5488
    %5490 = vrot.lane.b32.xlu0 %v1955, 16
    %v5491 = vpop.permute.xlu0 %5490
    %5492 = vrot.lane.b32.xlu0 %v1958, 16
    %v5493 = vpop.permute.xlu0 %5492
    %5494 = vrot.lane.b32.xlu0 %v1960, 16
    %v5495 = vpop.permute.xlu0 %5494
    %5496 = vrot.lane.b32.xlu0 %v1963, 16
    %v5497 = vpop.permute.xlu0 %5496
    %5498 = vrot.lane.b32.xlu0 %v1965, 16
    %v5499 = vpop.permute.xlu0 %5498
    %5500 = vrot.lane.b32.xlu0 %v1968, 16
    %v5501 = vpop.permute.xlu0 %5500
    %5502 = vrot.lane.b32.xlu0 %v1970, 16
    %v5503 = vpop.permute.xlu0 %5502
    %5504 = vrot.lane.b32.xlu0 %v5052, 16
    %v5505 = vpop.permute.xlu0 %5504
    %5506 = vrot.lane.b32.xlu0 %v5054, 16
    %v5507 = vpop.permute.xlu0 %5506
    %5508 = vrot.lane.b32.xlu0 %v1978, 16
    %v5509 = vpop.permute.xlu0 %5508
    %5510 = vrot.lane.b32.xlu0 %v1980, 16
    %v5511 = vpop.permute.xlu0 %5510
    %5512 = vrot.lane.b32.xlu0 %v1983, 16
    %v5513 = vpop.permute.xlu0 %5512
    %5514 = vrot.lane.b32.xlu0 %v1985, 16
    %v5515 = vpop.permute.xlu0 %5514
    %5516 = vrot.lane.b32.xlu0 %v1988, 16
    %v5517 = vpop.permute.xlu0 %5516
    %5518 = vrot.lane.b32.xlu0 %v1990, 16
    %v5519 = vpop.permute.xlu0 %5518
    %5520 = vrot.lane.b32.xlu0 %v1993, 16
    %v5521 = vpop.permute.xlu0 %5520
    %5522 = vrot.lane.b32.xlu0 %v1995, 16
    %v5523 = vpop.permute.xlu0 %5522
    %5524 = vrot.lane.b32.xlu0 %v1998, 16
    %v5525 = vpop.permute.xlu0 %5524
    %5526 = vrot.lane.b32.xlu0 %v2000, 16
    %v5527 = vpop.permute.xlu0 %5526
    %5528 = vrot.lane.b32.xlu0 %v2003, 16
    %v5529 = vpop.permute.xlu0 %5528
    %5530 = vrot.lane.b32.xlu0 %v2005, 16
    %v5531 = vpop.permute.xlu0 %5530
    %5532 = vrot.lane.b32.xlu0 %v2008, 16
    %v5533 = vpop.permute.xlu0 %5532
    %5534 = vrot.lane.b32.xlu0 %v2010, 16
    %v5535 = vpop.permute.xlu0 %5534
    %5536 = vrot.lane.b32.xlu0 %v2013, 16
    %v5537 = vpop.permute.xlu0 %5536
    %5538 = vrot.lane.b32.xlu0 %v2015, 16
    %v5539 = vpop.permute.xlu0 %5538
    %5540 = vrot.lane.b32.xlu0 %v2018, 16
    %v5541 = vpop.permute.xlu0 %5540
    %5542 = vrot.lane.b32.xlu0 %v2020, 16
    %v5543 = vpop.permute.xlu0 %5542
    %5544 = vrot.lane.b32.xlu0 %v2023, 16
    %v5545 = vpop.permute.xlu0 %5544
    %5546 = vrot.lane.b32.xlu0 %v2025, 16
    %v5547 = vpop.permute.xlu0 %5546
    %5548 = vrot.lane.b32.xlu0 %v2028, 16
    %v5549 = vpop.permute.xlu0 %5548
    %5550 = vrot.lane.b32.xlu0 %v2030, 16
    %v5551 = vpop.permute.xlu0 %5550
    %5552 = vrot.lane.b32.xlu0 %v2033, 16
    %v5553 = vpop.permute.xlu0 %5552
    %5554 = vrot.lane.b32.xlu0 %v2035, 16
    %v5555 = vpop.permute.xlu0 %5554
    %5556 = vrot.lane.b32.xlu0 %v2038, 16
    %v5557 = vpop.permute.xlu0 %5556
    %5558 = vrot.lane.b32.xlu0 %v2040, 16
    %v5559 = vpop.permute.xlu0 %5558
    %5560 = vrot.lane.b32.xlu0 %v2043, 16
    %v5561 = vpop.permute.xlu0 %5560
    %5562 = vrot.lane.b32.xlu0 %v2045, 16
    %v5563 = vpop.permute.xlu0 %5562
    %5564 = vrot.lane.b32.xlu0 %v2048, 16
    %v5565 = vpop.permute.xlu0 %5564
    %5566 = vrot.lane.b32.xlu0 %v2050, 16
    %v5567 = vpop.permute.xlu0 %5566
    %5568 = vrot.lane.b32.xlu0 %v5057, 16
    %v5569 = vpop.permute.xlu0 %5568
    %5570 = vrot.lane.b32.xlu0 %v5059, 16
    %v5571 = vpop.permute.xlu0 %5570
    %v5828 = vrot.slane %v642, 2
    %v5829 = vrot.slane %v643, 2
    %v5830 = vsel %vm2819, %v5828, %v5829
    %v5831 = vrot.slane %v644, 2
    %v5832 = vsel %vm2819, %v5829, %v5831
    %v5833 = vrot.slane %v696, 2
    %v5834 = vrot.slane %v697, 2
    %v5835 = vsel %vm2819, %v5833, %v5834
    %v5836 = vrot.slane %v698, 2
    %v5837 = vsel %vm2819, %v5834, %v5836
    %v5838 = vrot.slane %v750, 2
    %v5839 = vrot.slane %v751, 2
    %v5840 = vsel %vm2819, %v5838, %v5839
    %v5841 = vrot.slane %v752, 2
    %v5842 = vsel %vm2819, %v5839, %v5841
    %v5843 = vrot.slane %v804, 2
    %v5844 = vrot.slane %v805, 2
    %v5845 = vsel %vm2819, %v5843, %v5844
    %v5846 = vrot.slane %v806, 2
    %v5847 = vsel %vm2819, %v5844, %v5846
    %v5848 = vrot.slane %v858, 2
    %v5849 = vrot.slane %v859, 2
    %v5850 = vsel %vm2819, %v5848, %v5849
    %v5851 = vrot.slane %v860, 2
    %v5852 = vsel %vm2819, %v5849, %v5851
    %v5853 = vrot.slane %v912, 2
    %v5854 = vrot.slane %v913, 2
    %v5855 = vsel %vm2819, %v5853, %v5854
    %v5856 = vrot.slane %v914, 2
    %v5857 = vsel %vm2819, %v5854, %v5856
    %v5858 = vrot.slane %v966, 2
    %v5859 = vrot.slane %v967, 2
    %v5860 = vsel %vm2819, %v5858, %v5859
    %v5861 = vrot.slane %v968, 2
    %v5862 = vsel %vm2819, %v5859, %v5861
    %v5863 = vrot.slane %v1020, 2
    %v5864 = vrot.slane %v1021, 2
    %v5865 = vsel %vm2819, %v5863, %v5864
    %v5866 = vrot.slane %v1022, 2
    %v5867 = vsel %vm2819, %v5864, %v5866
    %5868 = vrot.lane.b32.xlu0 %v2827, 20
    %v5869 = vpop.permute.xlu0 %5868
    %5870 = vrot.lane.b32.xlu0 %v2829, 20
    %v5871 = vpop.permute.xlu0 %5870
    %5872 = vrot.lane.b32.xlu0 %v2832, 20
    %v5873 = vpop.permute.xlu0 %5872
    %5874 = vrot.lane.b32.xlu0 %v2834, 20
    %v5875 = vpop.permute.xlu0 %5874
    %5876 = vrot.lane.b32.xlu0 %v2837, 20
    %v5877 = vpop.permute.xlu0 %5876
    %5878 = vrot.lane.b32.xlu0 %v2839, 20
    %v5879 = vpop.permute.xlu0 %5878
    %5880 = vrot.lane.b32.xlu0 %v2842, 20
    %v5881 = vpop.permute.xlu0 %5880
    %5882 = vrot.lane.b32.xlu0 %v2844, 20
    %v5883 = vpop.permute.xlu0 %5882
    %5884 = vrot.lane.b32.xlu0 %v2847, 20
    %v5885 = vpop.permute.xlu0 %5884
    %5886 = vrot.lane.b32.xlu0 %v2849, 20
    %v5887 = vpop.permute.xlu0 %5886
    %5888 = vrot.lane.b32.xlu0 %v2852, 20
    %v5889 = vpop.permute.xlu0 %5888
    %5890 = vrot.lane.b32.xlu0 %v2854, 20
    %v5891 = vpop.permute.xlu0 %5890
    %5892 = vrot.lane.b32.xlu0 %v2857, 20
    %v5893 = vpop.permute.xlu0 %5892
    %5894 = vrot.lane.b32.xlu0 %v2859, 20
    %v5895 = vpop.permute.xlu0 %5894
    %5896 = vrot.lane.b32.xlu0 %v2862, 20
    %v5897 = vpop.permute.xlu0 %5896
    %5898 = vrot.lane.b32.xlu0 %v2864, 20
    %v5899 = vpop.permute.xlu0 %5898
    %5900 = vrot.lane.b32.xlu0 %v2867, 20
    %v5901 = vpop.permute.xlu0 %5900
    %5902 = vrot.lane.b32.xlu0 %v2869, 20
    %v5903 = vpop.permute.xlu0 %5902
    %5904 = vrot.lane.b32.xlu0 %v2872, 20
    %v5905 = vpop.permute.xlu0 %5904
    %5906 = vrot.lane.b32.xlu0 %v2874, 20
    %v5907 = vpop.permute.xlu0 %5906
    %5908 = vrot.lane.b32.xlu0 %v2877, 20
    %v5909 = vpop.permute.xlu0 %5908
    %5910 = vrot.lane.b32.xlu0 %v2879, 20
    %v5911 = vpop.permute.xlu0 %5910
    %5912 = vrot.lane.b32.xlu0 %v2882, 20
    %v5913 = vpop.permute.xlu0 %5912
    %5914 = vrot.lane.b32.xlu0 %v2884, 20
    %v5915 = vpop.permute.xlu0 %5914
    %5916 = vrot.lane.b32.xlu0 %v2887, 20
    %v5917 = vpop.permute.xlu0 %5916
    %5918 = vrot.lane.b32.xlu0 %v2889, 20
    %v5919 = vpop.permute.xlu0 %5918
    %5920 = vrot.lane.b32.xlu0 %v2892, 20
    %v5921 = vpop.permute.xlu0 %5920
    %5922 = vrot.lane.b32.xlu0 %v2894, 20
    %v5923 = vpop.permute.xlu0 %5922
    %5924 = vrot.lane.b32.xlu0 %v2897, 20
    %v5925 = vpop.permute.xlu0 %5924
    %5926 = vrot.lane.b32.xlu0 %v2899, 20
    %v5927 = vpop.permute.xlu0 %5926
    %5928 = vrot.lane.b32.xlu0 %v5830, 20
    %v5929 = vpop.permute.xlu0 %5928
    %5930 = vrot.lane.b32.xlu0 %v5832, 20
    %v5931 = vpop.permute.xlu0 %5930
    %5932 = vrot.lane.b32.xlu0 %v2907, 20
    %v5933 = vpop.permute.xlu0 %5932
    %5934 = vrot.lane.b32.xlu0 %v2909, 20
    %v5935 = vpop.permute.xlu0 %5934
    %5936 = vrot.lane.b32.xlu0 %v2912, 20
    %v5937 = vpop.permute.xlu0 %5936
    %5938 = vrot.lane.b32.xlu0 %v2914, 20
    %v5939 = vpop.permute.xlu0 %5938
    %5940 = vrot.lane.b32.xlu0 %v2917, 20
    %v5941 = vpop.permute.xlu0 %5940
    %5942 = vrot.lane.b32.xlu0 %v2919, 20
    %v5943 = vpop.permute.xlu0 %5942
    %5944 = vrot.lane.b32.xlu0 %v2922, 20
    %v5945 = vpop.permute.xlu0 %5944
    %5946 = vrot.lane.b32.xlu0 %v2924, 20
    %v5947 = vpop.permute.xlu0 %5946
    %5948 = vrot.lane.b32.xlu0 %v2927, 20
    %v5949 = vpop.permute.xlu0 %5948
    %5950 = vrot.lane.b32.xlu0 %v2929, 20
    %v5951 = vpop.permute.xlu0 %5950
    %5952 = vrot.lane.b32.xlu0 %v2932, 20
    %v5953 = vpop.permute.xlu0 %5952
    %5954 = vrot.lane.b32.xlu0 %v2934, 20
    %v5955 = vpop.permute.xlu0 %5954
    %5956 = vrot.lane.b32.xlu0 %v2937, 20
    %v5957 = vpop.permute.xlu0 %5956
    %5958 = vrot.lane.b32.xlu0 %v2939, 20
    %v5959 = vpop.permute.xlu0 %5958
    %5960 = vrot.lane.b32.xlu0 %v2942, 20
    %v5961 = vpop.permute.xlu0 %5960
    %5962 = vrot.lane.b32.xlu0 %v2944, 20
    %v5963 = vpop.permute.xlu0 %5962
    %5964 = vrot.lane.b32.xlu0 %v2947, 20
    %v5965 = vpop.permute.xlu0 %5964
    %5966 = vrot.lane.b32.xlu0 %v2949, 20
    %v5967 = vpop.permute.xlu0 %5966
    %5968 = vrot.lane.b32.xlu0 %v2952, 20
    %v5969 = vpop.permute.xlu0 %5968
    %5970 = vrot.lane.b32.xlu0 %v2954, 20
    %v5971 = vpop.permute.xlu0 %5970
    %5972 = vrot.lane.b32.xlu0 %v2957, 20
    %v5973 = vpop.permute.xlu0 %5972
    %5974 = vrot.lane.b32.xlu0 %v2959, 20
    %v5975 = vpop.permute.xlu0 %5974
    %5976 = vrot.lane.b32.xlu0 %v2962, 20
    %v5977 = vpop.permute.xlu0 %5976
    %5978 = vrot.lane.b32.xlu0 %v2964, 20
    %v5979 = vpop.permute.xlu0 %5978
    %5980 = vrot.lane.b32.xlu0 %v2967, 20
    %v5981 = vpop.permute.xlu0 %5980
    %5982 = vrot.lane.b32.xlu0 %v2969, 20
    %v5983 = vpop.permute.xlu0 %5982
    %5984 = vrot.lane.b32.xlu0 %v2972, 20
    %v5985 = vpop.permute.xlu0 %5984
    %5986 = vrot.lane.b32.xlu0 %v2974, 20
    %v5987 = vpop.permute.xlu0 %5986
    %5988 = vrot.lane.b32.xlu0 %v2977, 20
    %v5989 = vpop.permute.xlu0 %5988
    %5990 = vrot.lane.b32.xlu0 %v2979, 20
    %v5991 = vpop.permute.xlu0 %5990
    %5992 = vrot.lane.b32.xlu0 %v5835, 20
    %v5993 = vpop.permute.xlu0 %5992
    %5994 = vrot.lane.b32.xlu0 %v5837, 20
    %v5995 = vpop.permute.xlu0 %5994
    %5996 = vrot.lane.b32.xlu0 %v2987, 20
    %v5997 = vpop.permute.xlu0 %5996
    %5998 = vrot.lane.b32.xlu0 %v2989, 20
    %v5999 = vpop.permute.xlu0 %5998
    %6000 = vrot.lane.b32.xlu0 %v2992, 20
    %v6001 = vpop.permute.xlu0 %6000
    %6002 = vrot.lane.b32.xlu0 %v2994, 20
    %v6003 = vpop.permute.xlu0 %6002
    %6004 = vrot.lane.b32.xlu0 %v2997, 20
    %v6005 = vpop.permute.xlu0 %6004
    %6006 = vrot.lane.b32.xlu0 %v2999, 20
    %v6007 = vpop.permute.xlu0 %6006
    %6008 = vrot.lane.b32.xlu0 %v3002, 20
    %v6009 = vpop.permute.xlu0 %6008
    %6010 = vrot.lane.b32.xlu0 %v3004, 20
    %v6011 = vpop.permute.xlu0 %6010
    %6012 = vrot.lane.b32.xlu0 %v3007, 20
    %v6013 = vpop.permute.xlu0 %6012
    %6014 = vrot.lane.b32.xlu0 %v3009, 20
    %v6015 = vpop.permute.xlu0 %6014
    %6016 = vrot.lane.b32.xlu0 %v3012, 20
    %v6017 = vpop.permute.xlu0 %6016
    %6018 = vrot.lane.b32.xlu0 %v3014, 20
    %v6019 = vpop.permute.xlu0 %6018
    %6020 = vrot.lane.b32.xlu0 %v3017, 20
    %v6021 = vpop.permute.xlu0 %6020
    %6022 = vrot.lane.b32.xlu0 %v3019, 20
    %v6023 = vpop.permute.xlu0 %6022
    %6024 = vrot.lane.b32.xlu0 %v3022, 20
    %v6025 = vpop.permute.xlu0 %6024
    %6026 = vrot.lane.b32.xlu0 %v3024, 20
    %v6027 = vpop.permute.xlu0 %6026
    %6028 = vrot.lane.b32.xlu0 %v3027, 20
    %v6029 = vpop.permute.xlu0 %6028
    %6030 = vrot.lane.b32.xlu0 %v3029, 20
    %v6031 = vpop.permute.xlu0 %6030
    %6032 = vrot.lane.b32.xlu0 %v3032, 20
    %v6033 = vpop.permute.xlu0 %6032
    %6034 = vrot.lane.b32.xlu0 %v3034, 20
    %v6035 = vpop.permute.xlu0 %6034
    %6036 = vrot.lane.b32.xlu0 %v3037, 20
    %v6037 = vpop.permute.xlu0 %6036
    %6038 = vrot.lane.b32.xlu0 %v3039, 20
    %v6039 = vpop.permute.xlu0 %6038
    %6040 = vrot.lane.b32.xlu0 %v3042, 20
    %v6041 = vpop.permute.xlu0 %6040
    %6042 = vrot.lane.b32.xlu0 %v3044, 20
    %v6043 = vpop.permute.xlu0 %6042
    %6044 = vrot.lane.b32.xlu0 %v3047, 20
    %v6045 = vpop.permute.xlu0 %6044
    %6046 = vrot.lane.b32.xlu0 %v3049, 20
    %v6047 = vpop.permute.xlu0 %6046
    %6048 = vrot.lane.b32.xlu0 %v3052, 20
    %v6049 = vpop.permute.xlu0 %6048
    %6050 = vrot.lane.b32.xlu0 %v3054, 20
    %v6051 = vpop.permute.xlu0 %6050
    %6052 = vrot.lane.b32.xlu0 %v3057, 20
    %v6053 = vpop.permute.xlu0 %6052
    %6054 = vrot.lane.b32.xlu0 %v3059, 20
    %v6055 = vpop.permute.xlu0 %6054
    %6056 = vrot.lane.b32.xlu0 %v5840, 20
    %v6057 = vpop.permute.xlu0 %6056
    %6058 = vrot.lane.b32.xlu0 %v5842, 20
    %v6059 = vpop.permute.xlu0 %6058
    %6060 = vrot.lane.b32.xlu0 %v3067, 20
    %v6061 = vpop.permute.xlu0 %6060
    %6062 = vrot.lane.b32.xlu0 %v3069, 20
    %v6063 = vpop.permute.xlu0 %6062
    %6064 = vrot.lane.b32.xlu0 %v3072, 20
    %v6065 = vpop.permute.xlu0 %6064
    %6066 = vrot.lane.b32.xlu0 %v3074, 20
    %v6067 = vpop.permute.xlu0 %6066
    %6068 = vrot.lane.b32.xlu0 %v3077, 20
    %v6069 = vpop.permute.xlu0 %6068
    %6070 = vrot.lane.b32.xlu0 %v3079, 20
    %v6071 = vpop.permute.xlu0 %6070
    %6072 = vrot.lane.b32.xlu0 %v3082, 20
    %v6073 = vpop.permute.xlu0 %6072
    %6074 = vrot.lane.b32.xlu0 %v3084, 20
    %v6075 = vpop.permute.xlu0 %6074
    %6076 = vrot.lane.b32.xlu0 %v3087, 20
    %v6077 = vpop.permute.xlu0 %6076
    %6078 = vrot.lane.b32.xlu0 %v3089, 20
    %v6079 = vpop.permute.xlu0 %6078
    %6080 = vrot.lane.b32.xlu0 %v3092, 20
    %v6081 = vpop.permute.xlu0 %6080
    %6082 = vrot.lane.b32.xlu0 %v3094, 20
    %v6083 = vpop.permute.xlu0 %6082
    %6084 = vrot.lane.b32.xlu0 %v3097, 20
    %v6085 = vpop.permute.xlu0 %6084
    %6086 = vrot.lane.b32.xlu0 %v3099, 20
    %v6087 = vpop.permute.xlu0 %6086
    %6088 = vrot.lane.b32.xlu0 %v3102, 20
    %v6089 = vpop.permute.xlu0 %6088
    %6090 = vrot.lane.b32.xlu0 %v3104, 20
    %v6091 = vpop.permute.xlu0 %6090
    %6092 = vrot.lane.b32.xlu0 %v3107, 20
    %v6093 = vpop.permute.xlu0 %6092
    %6094 = vrot.lane.b32.xlu0 %v3109, 20
    %v6095 = vpop.permute.xlu0 %6094
    %6096 = vrot.lane.b32.xlu0 %v3112, 20
    %v6097 = vpop.permute.xlu0 %6096
    %6098 = vrot.lane.b32.xlu0 %v3114, 20
    %v6099 = vpop.permute.xlu0 %6098
    %6100 = vrot.lane.b32.xlu0 %v3117, 20
    %v6101 = vpop.permute.xlu0 %6100
    %6102 = vrot.lane.b32.xlu0 %v3119, 20
    %v6103 = vpop.permute.xlu0 %6102
    %6104 = vrot.lane.b32.xlu0 %v3122, 20
    %v6105 = vpop.permute.xlu0 %6104
    %6106 = vrot.lane.b32.xlu0 %v3124, 20
    %v6107 = vpop.permute.xlu0 %6106
    %6108 = vrot.lane.b32.xlu0 %v3127, 20
    %v6109 = vpop.permute.xlu0 %6108
    %6110 = vrot.lane.b32.xlu0 %v3129, 20
    %v6111 = vpop.permute.xlu0 %6110
    %6112 = vrot.lane.b32.xlu0 %v3132, 20
    %v6113 = vpop.permute.xlu0 %6112
    %6114 = vrot.lane.b32.xlu0 %v3134, 20
    %v6115 = vpop.permute.xlu0 %6114
    %6116 = vrot.lane.b32.xlu0 %v3137, 20
    %v6117 = vpop.permute.xlu0 %6116
    %6118 = vrot.lane.b32.xlu0 %v3139, 20
    %v6119 = vpop.permute.xlu0 %6118
    %6120 = vrot.lane.b32.xlu0 %v5845, 20
    %v6121 = vpop.permute.xlu0 %6120
    %6122 = vrot.lane.b32.xlu0 %v5847, 20
    %v6123 = vpop.permute.xlu0 %6122
    %6124 = vrot.lane.b32.xlu0 %v3147, 20
    %v6125 = vpop.permute.xlu0 %6124
    %6126 = vrot.lane.b32.xlu0 %v3149, 20
    %v6127 = vpop.permute.xlu0 %6126
    %6128 = vrot.lane.b32.xlu0 %v3152, 20
    %v6129 = vpop.permute.xlu0 %6128
    %6130 = vrot.lane.b32.xlu0 %v3154, 20
    %v6131 = vpop.permute.xlu0 %6130
    %6132 = vrot.lane.b32.xlu0 %v3157, 20
    %v6133 = vpop.permute.xlu0 %6132
    %6134 = vrot.lane.b32.xlu0 %v3159, 20
    %v6135 = vpop.permute.xlu0 %6134
    %6136 = vrot.lane.b32.xlu0 %v3162, 20
    %v6137 = vpop.permute.xlu0 %6136
    %6138 = vrot.lane.b32.xlu0 %v3164, 20
    %v6139 = vpop.permute.xlu0 %6138
    %6140 = vrot.lane.b32.xlu0 %v3167, 20
    %v6141 = vpop.permute.xlu0 %6140
    %6142 = vrot.lane.b32.xlu0 %v3169, 20
    %v6143 = vpop.permute.xlu0 %6142
    %6144 = vrot.lane.b32.xlu0 %v3172, 20
    %v6145 = vpop.permute.xlu0 %6144
    %6146 = vrot.lane.b32.xlu0 %v3174, 20
    %v6147 = vpop.permute.xlu0 %6146
    %6148 = vrot.lane.b32.xlu0 %v3177, 20
    %v6149 = vpop.permute.xlu0 %6148
    %6150 = vrot.lane.b32.xlu0 %v3179, 20
    %v6151 = vpop.permute.xlu0 %6150
    %6152 = vrot.lane.b32.xlu0 %v3182, 20
    %v6153 = vpop.permute.xlu0 %6152
    %6154 = vrot.lane.b32.xlu0 %v3184, 20
    %v6155 = vpop.permute.xlu0 %6154
    %6156 = vrot.lane.b32.xlu0 %v3187, 20
    %v6157 = vpop.permute.xlu0 %6156
    %6158 = vrot.lane.b32.xlu0 %v3189, 20
    %v6159 = vpop.permute.xlu0 %6158
    %6160 = vrot.lane.b32.xlu0 %v3192, 20
    %v6161 = vpop.permute.xlu0 %6160
    %6162 = vrot.lane.b32.xlu0 %v3194, 20
    %v6163 = vpop.permute.xlu0 %6162
    %6164 = vrot.lane.b32.xlu0 %v3197, 20
    %v6165 = vpop.permute.xlu0 %6164
    %6166 = vrot.lane.b32.xlu0 %v3199, 20
    %v6167 = vpop.permute.xlu0 %6166
    %6168 = vrot.lane.b32.xlu0 %v3202, 20
    %v6169 = vpop.permute.xlu0 %6168
    %6170 = vrot.lane.b32.xlu0 %v3204, 20
    %v6171 = vpop.permute.xlu0 %6170
    %6172 = vrot.lane.b32.xlu0 %v3207, 20
    %v6173 = vpop.permute.xlu0 %6172
    %6174 = vrot.lane.b32.xlu0 %v3209, 20
    %v6175 = vpop.permute.xlu0 %6174
    %6176 = vrot.lane.b32.xlu0 %v3212, 20
    %v6177 = vpop.permute.xlu0 %6176
    %6178 = vrot.lane.b32.xlu0 %v3214, 20
    %v6179 = vpop.permute.xlu0 %6178
    %6180 = vrot.lane.b32.xlu0 %v3217, 20
    %v6181 = vpop.permute.xlu0 %6180
    %6182 = vrot.lane.b32.xlu0 %v3219, 20
    %v6183 = vpop.permute.xlu0 %6182
    %6184 = vrot.lane.b32.xlu0 %v5850, 20
    %v6185 = vpop.permute.xlu0 %6184
    %6186 = vrot.lane.b32.xlu0 %v5852, 20
    %v6187 = vpop.permute.xlu0 %6186
    %6188 = vrot.lane.b32.xlu0 %v3227, 20
    %v6189 = vpop.permute.xlu0 %6188
    %6190 = vrot.lane.b32.xlu0 %v3229, 20
    %v6191 = vpop.permute.xlu0 %6190
    %6192 = vrot.lane.b32.xlu0 %v3232, 20
    %v6193 = vpop.permute.xlu0 %6192
    %6194 = vrot.lane.b32.xlu0 %v3234, 20
    %v6195 = vpop.permute.xlu0 %6194
    %6196 = vrot.lane.b32.xlu0 %v3237, 20
    %v6197 = vpop.permute.xlu0 %6196
    %6198 = vrot.lane.b32.xlu0 %v3239, 20
    %v6199 = vpop.permute.xlu0 %6198
    %6200 = vrot.lane.b32.xlu0 %v3242, 20
    %v6201 = vpop.permute.xlu0 %6200
    %6202 = vrot.lane.b32.xlu0 %v3244, 20
    %v6203 = vpop.permute.xlu0 %6202
    %6204 = vrot.lane.b32.xlu0 %v3247, 20
    %v6205 = vpop.permute.xlu0 %6204
    %6206 = vrot.lane.b32.xlu0 %v3249, 20
    %v6207 = vpop.permute.xlu0 %6206
    %6208 = vrot.lane.b32.xlu0 %v3252, 20
    %v6209 = vpop.permute.xlu0 %6208
    %6210 = vrot.lane.b32.xlu0 %v3254, 20
    %v6211 = vpop.permute.xlu0 %6210
    %6212 = vrot.lane.b32.xlu0 %v3257, 20
    %v6213 = vpop.permute.xlu0 %6212
    %6214 = vrot.lane.b32.xlu0 %v3259, 20
    %v6215 = vpop.permute.xlu0 %6214
    %6216 = vrot.lane.b32.xlu0 %v3262, 20
    %v6217 = vpop.permute.xlu0 %6216
    %6218 = vrot.lane.b32.xlu0 %v3264, 20
    %v6219 = vpop.permute.xlu0 %6218
    %6220 = vrot.lane.b32.xlu0 %v3267, 20
    %v6221 = vpop.permute.xlu0 %6220
    %6222 = vrot.lane.b32.xlu0 %v3269, 20
    %v6223 = vpop.permute.xlu0 %6222
    %6224 = vrot.lane.b32.xlu0 %v3272, 20
    %v6225 = vpop.permute.xlu0 %6224
    %6226 = vrot.lane.b32.xlu0 %v3274, 20
    %v6227 = vpop.permute.xlu0 %6226
    %6228 = vrot.lane.b32.xlu0 %v3277, 20
    %v6229 = vpop.permute.xlu0 %6228
    %6230 = vrot.lane.b32.xlu0 %v3279, 20
    %v6231 = vpop.permute.xlu0 %6230
    %6232 = vrot.lane.b32.xlu0 %v3282, 20
    %v6233 = vpop.permute.xlu0 %6232
    %6234 = vrot.lane.b32.xlu0 %v3284, 20
    %v6235 = vpop.permute.xlu0 %6234
    %6236 = vrot.lane.b32.xlu0 %v3287, 20
    %v6237 = vpop.permute.xlu0 %6236
    %6238 = vrot.lane.b32.xlu0 %v3289, 20
    %v6239 = vpop.permute.xlu0 %6238
    %6240 = vrot.lane.b32.xlu0 %v3292, 20
    %v6241 = vpop.permute.xlu0 %6240
    %6242 = vrot.lane.b32.xlu0 %v3294, 20
    %v6243 = vpop.permute.xlu0 %6242
    %6244 = vrot.lane.b32.xlu0 %v3297, 20
    %v6245 = vpop.permute.xlu0 %6244
    %6246 = vrot.lane.b32.xlu0 %v3299, 20
    %v6247 = vpop.permute.xlu0 %6246
    %6248 = vrot.lane.b32.xlu0 %v5855, 20
    %v6249 = vpop.permute.xlu0 %6248
    %6250 = vrot.lane.b32.xlu0 %v5857, 20
    %v6251 = vpop.permute.xlu0 %6250
    %6252 = vrot.lane.b32.xlu0 %v3307, 20
    %v6253 = vpop.permute.xlu0 %6252
    %6254 = vrot.lane.b32.xlu0 %v3309, 20
    %v6255 = vpop.permute.xlu0 %6254
    %6256 = vrot.lane.b32.xlu0 %v3312, 20
    %v6257 = vpop.permute.xlu0 %6256
    %6258 = vrot.lane.b32.xlu0 %v3314, 20
    %v6259 = vpop.permute.xlu0 %6258
    %6260 = vrot.lane.b32.xlu0 %v3317, 20
    %v6261 = vpop.permute.xlu0 %6260
    %6262 = vrot.lane.b32.xlu0 %v3319, 20
    %v6263 = vpop.permute.xlu0 %6262
    %6264 = vrot.lane.b32.xlu0 %v3322, 20
    %v6265 = vpop.permute.xlu0 %6264
    %6266 = vrot.lane.b32.xlu0 %v3324, 20
    %v6267 = vpop.permute.xlu0 %6266
    %6268 = vrot.lane.b32.xlu0 %v3327, 20
    %v6269 = vpop.permute.xlu0 %6268
    %6270 = vrot.lane.b32.xlu0 %v3329, 20
    %v6271 = vpop.permute.xlu0 %6270
    %6272 = vrot.lane.b32.xlu0 %v3332, 20
    %v6273 = vpop.permute.xlu0 %6272
    %6274 = vrot.lane.b32.xlu0 %v3334, 20
    %v6275 = vpop.permute.xlu0 %6274
    %6276 = vrot.lane.b32.xlu0 %v3337, 20
    %v6277 = vpop.permute.xlu0 %6276
    %6278 = vrot.lane.b32.xlu0 %v3339, 20
    %v6279 = vpop.permute.xlu0 %6278
    %6280 = vrot.lane.b32.xlu0 %v3342, 20
    %v6281 = vpop.permute.xlu0 %6280
    %6282 = vrot.lane.b32.xlu0 %v3344, 20
    %v6283 = vpop.permute.xlu0 %6282
    %6284 = vrot.lane.b32.xlu0 %v3347, 20
    %v6285 = vpop.permute.xlu0 %6284
    %6286 = vrot.lane.b32.xlu0 %v3349, 20
    %v6287 = vpop.permute.xlu0 %6286
    %6288 = vrot.lane.b32.xlu0 %v3352, 20
    %v6289 = vpop.permute.xlu0 %6288
    %6290 = vrot.lane.b32.xlu0 %v3354, 20
    %v6291 = vpop.permute.xlu0 %6290
    %6292 = vrot.lane.b32.xlu0 %v3357, 20
    %v6293 = vpop.permute.xlu0 %6292
    %6294 = vrot.lane.b32.xlu0 %v3359, 20
    %v6295 = vpop.permute.xlu0 %6294
    %6296 = vrot.lane.b32.xlu0 %v3362, 20
    %v6297 = vpop.permute.xlu0 %6296
    %6298 = vrot.lane.b32.xlu0 %v3364, 20
    %v6299 = vpop.permute.xlu0 %6298
    %6300 = vrot.lane.b32.xlu0 %v3367, 20
    %v6301 = vpop.permute.xlu0 %6300
    %6302 = vrot.lane.b32.xlu0 %v3369, 20
    %v6303 = vpop.permute.xlu0 %6302
    %6304 = vrot.lane.b32.xlu0 %v3372, 20
    %v6305 = vpop.permute.xlu0 %6304
    %6306 = vrot.lane.b32.xlu0 %v3374, 20
    %v6307 = vpop.permute.xlu0 %6306
    %6308 = vrot.lane.b32.xlu0 %v3377, 20
    %v6309 = vpop.permute.xlu0 %6308
    %6310 = vrot.lane.b32.xlu0 %v3379, 20
    %v6311 = vpop.permute.xlu0 %6310
    %6312 = vrot.lane.b32.xlu0 %v5860, 20
    %v6313 = vpop.permute.xlu0 %6312
    %6314 = vrot.lane.b32.xlu0 %v5862, 20
    %v6315 = vpop.permute.xlu0 %6314
    %6316 = vrot.lane.b32.xlu0 %v3387, 20
    %v6317 = vpop.permute.xlu0 %6316
    %6318 = vrot.lane.b32.xlu0 %v3389, 20
    %v6319 = vpop.permute.xlu0 %6318
    %6320 = vrot.lane.b32.xlu0 %v3392, 20
    %v6321 = vpop.permute.xlu0 %6320
    %6322 = vrot.lane.b32.xlu0 %v3394, 20
    %v6323 = vpop.permute.xlu0 %6322
    %6324 = vrot.lane.b32.xlu0 %v3397, 20
    %v6325 = vpop.permute.xlu0 %6324
    %6326 = vrot.lane.b32.xlu0 %v3399, 20
    %v6327 = vpop.permute.xlu0 %6326
    %6328 = vrot.lane.b32.xlu0 %v3402, 20
    %v6329 = vpop.permute.xlu0 %6328
    %6330 = vrot.lane.b32.xlu0 %v3404, 20
    %v6331 = vpop.permute.xlu0 %6330
    %6332 = vrot.lane.b32.xlu0 %v3407, 20
    %v6333 = vpop.permute.xlu0 %6332
    %6334 = vrot.lane.b32.xlu0 %v3409, 20
    %v6335 = vpop.permute.xlu0 %6334
    %6336 = vrot.lane.b32.xlu0 %v3412, 20
    %v6337 = vpop.permute.xlu0 %6336
    %6338 = vrot.lane.b32.xlu0 %v3414, 20
    %v6339 = vpop.permute.xlu0 %6338
    %6340 = vrot.lane.b32.xlu0 %v3417, 20
    %v6341 = vpop.permute.xlu0 %6340
    %6342 = vrot.lane.b32.xlu0 %v3419, 20
    %v6343 = vpop.permute.xlu0 %6342
    %6344 = vrot.lane.b32.xlu0 %v3422, 20
    %v6345 = vpop.permute.xlu0 %6344
    %6346 = vrot.lane.b32.xlu0 %v3424, 20
    %v6347 = vpop.permute.xlu0 %6346
    %6348 = vrot.lane.b32.xlu0 %v3427, 20
    %v6349 = vpop.permute.xlu0 %6348
    %6350 = vrot.lane.b32.xlu0 %v3429, 20
    %v6351 = vpop.permute.xlu0 %6350
    %6352 = vrot.lane.b32.xlu0 %v3432, 20
    %v6353 = vpop.permute.xlu0 %6352
    %6354 = vrot.lane.b32.xlu0 %v3434, 20
    %v6355 = vpop.permute.xlu0 %6354
    %6356 = vrot.lane.b32.xlu0 %v3437, 20
    %v6357 = vpop.permute.xlu0 %6356
    %6358 = vrot.lane.b32.xlu0 %v3439, 20
    %v6359 = vpop.permute.xlu0 %6358
    %6360 = vrot.lane.b32.xlu0 %v3442, 20
    %v6361 = vpop.permute.xlu0 %6360
    %6362 = vrot.lane.b32.xlu0 %v3444, 20
    %v6363 = vpop.permute.xlu0 %6362
    %6364 = vrot.lane.b32.xlu0 %v3447, 20
    %v6365 = vpop.permute.xlu0 %6364
    %6366 = vrot.lane.b32.xlu0 %v3449, 20
    %v6367 = vpop.permute.xlu0 %6366
    %6368 = vrot.lane.b32.xlu0 %v3452, 20
    %v6369 = vpop.permute.xlu0 %6368
    %6370 = vrot.lane.b32.xlu0 %v3454, 20
    %v6371 = vpop.permute.xlu0 %6370
    %6372 = vrot.lane.b32.xlu0 %v3457, 20
    %v6373 = vpop.permute.xlu0 %6372
    %6374 = vrot.lane.b32.xlu0 %v3459, 20
    %v6375 = vpop.permute.xlu0 %6374
    %6376 = vrot.lane.b32.xlu0 %v5865, 20
    %v6377 = vpop.permute.xlu0 %6376
    %6378 = vrot.lane.b32.xlu0 %v5867, 20
    %v6379 = vpop.permute.xlu0 %6378
    %6652 = vrot.lane.b32.xlu0 %v600, 24
    %v6653 = vpop.permute.xlu0 %6652
    %6654 = vrot.lane.b32.xlu0 %v601, 24
    %v6655 = vpop.permute.xlu0 %6654
    %6656 = vrot.lane.b32.xlu0 %v603, 24
    %v6657 = vpop.permute.xlu0 %6656
    %6658 = vrot.lane.b32.xlu0 %v604, 24
    %v6659 = vpop.permute.xlu0 %6658
    %6660 = vrot.lane.b32.xlu0 %v606, 24
    %v6661 = vpop.permute.xlu0 %6660
    %6662 = vrot.lane.b32.xlu0 %v607, 24
    %v6663 = vpop.permute.xlu0 %6662
    %6664 = vrot.lane.b32.xlu0 %v609, 24
    %v6665 = vpop.permute.xlu0 %6664
    %6666 = vrot.lane.b32.xlu0 %v610, 24
    %v6667 = vpop.permute.xlu0 %6666
    %6668 = vrot.lane.b32.xlu0 %v612, 24
    %v6669 = vpop.permute.xlu0 %6668
    %6670 = vrot.lane.b32.xlu0 %v613, 24
    %v6671 = vpop.permute.xlu0 %6670
    %6672 = vrot.lane.b32.xlu0 %v615, 24
    %v6673 = vpop.permute.xlu0 %6672
    %6674 = vrot.lane.b32.xlu0 %v616, 24
    %v6675 = vpop.permute.xlu0 %6674
    %6676 = vrot.lane.b32.xlu0 %v618, 24
    %v6677 = vpop.permute.xlu0 %6676
    %6678 = vrot.lane.b32.xlu0 %v619, 24
    %v6679 = vpop.permute.xlu0 %6678
    %6680 = vrot.lane.b32.xlu0 %v621, 24
    %v6681 = vpop.permute.xlu0 %6680
    %6682 = vrot.lane.b32.xlu0 %v622, 24
    %v6683 = vpop.permute.xlu0 %6682
    %6684 = vrot.lane.b32.xlu0 %v624, 24
    %v6685 = vpop.permute.xlu0 %6684
    %6686 = vrot.lane.b32.xlu0 %v625, 24
    %v6687 = vpop.permute.xlu0 %6686
    %6688 = vrot.lane.b32.xlu0 %v627, 24
    %v6689 = vpop.permute.xlu0 %6688
    %6690 = vrot.lane.b32.xlu0 %v628, 24
    %v6691 = vpop.permute.xlu0 %6690
    %6692 = vrot.lane.b32.xlu0 %v630, 24
    %v6693 = vpop.permute.xlu0 %6692
    %6694 = vrot.lane.b32.xlu0 %v631, 24
    %v6695 = vpop.permute.xlu0 %6694
    %6696 = vrot.lane.b32.xlu0 %v633, 24
    %v6697 = vpop.permute.xlu0 %6696
    %6698 = vrot.lane.b32.xlu0 %v634, 24
    %v6699 = vpop.permute.xlu0 %6698
    %6700 = vrot.lane.b32.xlu0 %v636, 24
    %v6701 = vpop.permute.xlu0 %6700
    %6702 = vrot.lane.b32.xlu0 %v637, 24
    %v6703 = vpop.permute.xlu0 %6702
    %6704 = vrot.lane.b32.xlu0 %v639, 24
    %v6705 = vpop.permute.xlu0 %6704
    %6706 = vrot.lane.b32.xlu0 %v640, 24
    %v6707 = vpop.permute.xlu0 %6706
    %6708 = vrot.lane.b32.xlu0 %v642, 24
    %v6709 = vpop.permute.xlu0 %6708
    %6710 = vrot.lane.b32.xlu0 %v643, 24
    %v6711 = vpop.permute.xlu0 %6710
    %6712 = vrot.lane.b32.xlu0 %v645, 24
    %v6713 = vpop.permute.xlu0 %6712
    %6714 = vrot.lane.b32.xlu0 %v646, 24
    %v6715 = vpop.permute.xlu0 %6714
    %6716 = vrot.lane.b32.xlu0 %v654, 24
    %v6717 = vpop.permute.xlu0 %6716
    %6718 = vrot.lane.b32.xlu0 %v655, 24
    %v6719 = vpop.permute.xlu0 %6718
    %6720 = vrot.lane.b32.xlu0 %v657, 24
    %v6721 = vpop.permute.xlu0 %6720
    %6722 = vrot.lane.b32.xlu0 %v658, 24
    %v6723 = vpop.permute.xlu0 %6722
    %6724 = vrot.lane.b32.xlu0 %v660, 24
    %v6725 = vpop.permute.xlu0 %6724
    %6726 = vrot.lane.b32.xlu0 %v661, 24
    %v6727 = vpop.permute.xlu0 %6726
    %6728 = vrot.lane.b32.xlu0 %v663, 24
    %v6729 = vpop.permute.xlu0 %6728
    %6730 = vrot.lane.b32.xlu0 %v664, 24
    %v6731 = vpop.permute.xlu0 %6730
    %6732 = vrot.lane.b32.xlu0 %v666, 24
    %v6733 = vpop.permute.xlu0 %6732
    %6734 = vrot.lane.b32.xlu0 %v667, 24
    %v6735 = vpop.permute.xlu0 %6734
    %6736 = vrot.lane.b32.xlu0 %v669, 24
    %v6737 = vpop.permute.xlu0 %6736
    %6738 = vrot.lane.b32.xlu0 %v670, 24
    %v6739 = vpop.permute.xlu0 %6738
    %6740 = vrot.lane.b32.xlu0 %v672, 24
    %v6741 = vpop.permute.xlu0 %6740
    %6742 = vrot.lane.b32.xlu0 %v673, 24
    %v6743 = vpop.permute.xlu0 %6742
    %6744 = vrot.lane.b32.xlu0 %v675, 24
    %v6745 = vpop.permute.xlu0 %6744
    %6746 = vrot.lane.b32.xlu0 %v676, 24
    %v6747 = vpop.permute.xlu0 %6746
    %6748 = vrot.lane.b32.xlu0 %v678, 24
    %v6749 = vpop.permute.xlu0 %6748
    %6750 = vrot.lane.b32.xlu0 %v679, 24
    %v6751 = vpop.permute.xlu0 %6750
    %6752 = vrot.lane.b32.xlu0 %v681, 24
    %v6753 = vpop.permute.xlu0 %6752
    %6754 = vrot.lane.b32.xlu0 %v682, 24
    %v6755 = vpop.permute.xlu0 %6754
    %6756 = vrot.lane.b32.xlu0 %v684, 24
    %v6757 = vpop.permute.xlu0 %6756
    %6758 = vrot.lane.b32.xlu0 %v685, 24
    %v6759 = vpop.permute.xlu0 %6758
    %6760 = vrot.lane.b32.xlu0 %v687, 24
    %v6761 = vpop.permute.xlu0 %6760
    %6762 = vrot.lane.b32.xlu0 %v688, 24
    %v6763 = vpop.permute.xlu0 %6762
    %6764 = vrot.lane.b32.xlu0 %v690, 24
    %v6765 = vpop.permute.xlu0 %6764
    %6766 = vrot.lane.b32.xlu0 %v691, 24
    %v6767 = vpop.permute.xlu0 %6766
    %6768 = vrot.lane.b32.xlu0 %v693, 24
    %v6769 = vpop.permute.xlu0 %6768
    %6770 = vrot.lane.b32.xlu0 %v694, 24
    %v6771 = vpop.permute.xlu0 %6770
    %6772 = vrot.lane.b32.xlu0 %v696, 24
    %v6773 = vpop.permute.xlu0 %6772
    %6774 = vrot.lane.b32.xlu0 %v697, 24
    %v6775 = vpop.permute.xlu0 %6774
    %6776 = vrot.lane.b32.xlu0 %v699, 24
    %v6777 = vpop.permute.xlu0 %6776
    %6778 = vrot.lane.b32.xlu0 %v700, 24
    %v6779 = vpop.permute.xlu0 %6778
    %6780 = vrot.lane.b32.xlu0 %v708, 24
    %v6781 = vpop.permute.xlu0 %6780
    %6782 = vrot.lane.b32.xlu0 %v709, 24
    %v6783 = vpop.permute.xlu0 %6782
    %6784 = vrot.lane.b32.xlu0 %v711, 24
    %v6785 = vpop.permute.xlu0 %6784
    %6786 = vrot.lane.b32.xlu0 %v712, 24
    %v6787 = vpop.permute.xlu0 %6786
    %6788 = vrot.lane.b32.xlu0 %v714, 24
    %v6789 = vpop.permute.xlu0 %6788
    %6790 = vrot.lane.b32.xlu0 %v715, 24
    %v6791 = vpop.permute.xlu0 %6790
    %6792 = vrot.lane.b32.xlu0 %v717, 24
    %v6793 = vpop.permute.xlu0 %6792
    %6794 = vrot.lane.b32.xlu0 %v718, 24
    %v6795 = vpop.permute.xlu0 %6794
    %6796 = vrot.lane.b32.xlu0 %v720, 24
    %v6797 = vpop.permute.xlu0 %6796
    %6798 = vrot.lane.b32.xlu0 %v721, 24
    %v6799 = vpop.permute.xlu0 %6798
    %6800 = vrot.lane.b32.xlu0 %v723, 24
    %v6801 = vpop.permute.xlu0 %6800
    %6802 = vrot.lane.b32.xlu0 %v724, 24
    %v6803 = vpop.permute.xlu0 %6802
    %6804 = vrot.lane.b32.xlu0 %v726, 24
    %v6805 = vpop.permute.xlu0 %6804
    %6806 = vrot.lane.b32.xlu0 %v727, 24
    %v6807 = vpop.permute.xlu0 %6806
    %6808 = vrot.lane.b32.xlu0 %v729, 24
    %v6809 = vpop.permute.xlu0 %6808
    %6810 = vrot.lane.b32.xlu0 %v730, 24
    %v6811 = vpop.permute.xlu0 %6810
    %6812 = vrot.lane.b32.xlu0 %v732, 24
    %v6813 = vpop.permute.xlu0 %6812
    %6814 = vrot.lane.b32.xlu0 %v733, 24
    %v6815 = vpop.permute.xlu0 %6814
    %6816 = vrot.lane.b32.xlu0 %v735, 24
    %v6817 = vpop.permute.xlu0 %6816
    %6818 = vrot.lane.b32.xlu0 %v736, 24
    %v6819 = vpop.permute.xlu0 %6818
    %6820 = vrot.lane.b32.xlu0 %v738, 24
    %v6821 = vpop.permute.xlu0 %6820
    %6822 = vrot.lane.b32.xlu0 %v739, 24
    %v6823 = vpop.permute.xlu0 %6822
    %6824 = vrot.lane.b32.xlu0 %v741, 24
    %v6825 = vpop.permute.xlu0 %6824
    %6826 = vrot.lane.b32.xlu0 %v742, 24
    %v6827 = vpop.permute.xlu0 %6826
    %6828 = vrot.lane.b32.xlu0 %v744, 24
    %v6829 = vpop.permute.xlu0 %6828
    %6830 = vrot.lane.b32.xlu0 %v745, 24
    %v6831 = vpop.permute.xlu0 %6830
    %6832 = vrot.lane.b32.xlu0 %v747, 24
    %v6833 = vpop.permute.xlu0 %6832
    %6834 = vrot.lane.b32.xlu0 %v748, 24
    %v6835 = vpop.permute.xlu0 %6834
    %6836 = vrot.lane.b32.xlu0 %v750, 24
    %v6837 = vpop.permute.xlu0 %6836
    %6838 = vrot.lane.b32.xlu0 %v751, 24
    %v6839 = vpop.permute.xlu0 %6838
    %6840 = vrot.lane.b32.xlu0 %v753, 24
    %v6841 = vpop.permute.xlu0 %6840
    %6842 = vrot.lane.b32.xlu0 %v754, 24
    %v6843 = vpop.permute.xlu0 %6842
    %6844 = vrot.lane.b32.xlu0 %v762, 24
    %v6845 = vpop.permute.xlu0 %6844
    %6846 = vrot.lane.b32.xlu0 %v763, 24
    %v6847 = vpop.permute.xlu0 %6846
    %6848 = vrot.lane.b32.xlu0 %v765, 24
    %v6849 = vpop.permute.xlu0 %6848
    %6850 = vrot.lane.b32.xlu0 %v766, 24
    %v6851 = vpop.permute.xlu0 %6850
    %6852 = vrot.lane.b32.xlu0 %v768, 24
    %v6853 = vpop.permute.xlu0 %6852
    %6854 = vrot.lane.b32.xlu0 %v769, 24
    %v6855 = vpop.permute.xlu0 %6854
    %6856 = vrot.lane.b32.xlu0 %v771, 24
    %v6857 = vpop.permute.xlu0 %6856
    %6858 = vrot.lane.b32.xlu0 %v772, 24
    %v6859 = vpop.permute.xlu0 %6858
    %6860 = vrot.lane.b32.xlu0 %v774, 24
    %v6861 = vpop.permute.xlu0 %6860
    %6862 = vrot.lane.b32.xlu0 %v775, 24
    %v6863 = vpop.permute.xlu0 %6862
    %6864 = vrot.lane.b32.xlu0 %v777, 24
    %v6865 = vpop.permute.xlu0 %6864
    %6866 = vrot.lane.b32.xlu0 %v778, 24
    %v6867 = vpop.permute.xlu0 %6866
    %6868 = vrot.lane.b32.xlu0 %v780, 24
    %v6869 = vpop.permute.xlu0 %6868
    %6870 = vrot.lane.b32.xlu0 %v781, 24
    %v6871 = vpop.permute.xlu0 %6870
    %6872 = vrot.lane.b32.xlu0 %v783, 24
    %v6873 = vpop.permute.xlu0 %6872
    %6874 = vrot.lane.b32.xlu0 %v784, 24
    %v6875 = vpop.permute.xlu0 %6874
    %6876 = vrot.lane.b32.xlu0 %v786, 24
    %v6877 = vpop.permute.xlu0 %6876
    %6878 = vrot.lane.b32.xlu0 %v787, 24
    %v6879 = vpop.permute.xlu0 %6878
    %6880 = vrot.lane.b32.xlu0 %v789, 24
    %v6881 = vpop.permute.xlu0 %6880
    %6882 = vrot.lane.b32.xlu0 %v790, 24
    %v6883 = vpop.permute.xlu0 %6882
    %6884 = vrot.lane.b32.xlu0 %v792, 24
    %v6885 = vpop.permute.xlu0 %6884
    %6886 = vrot.lane.b32.xlu0 %v793, 24
    %v6887 = vpop.permute.xlu0 %6886
    %6888 = vrot.lane.b32.xlu0 %v795, 24
    %v6889 = vpop.permute.xlu0 %6888
    %6890 = vrot.lane.b32.xlu0 %v796, 24
    %v6891 = vpop.permute.xlu0 %6890
    %6892 = vrot.lane.b32.xlu0 %v798, 24
    %v6893 = vpop.permute.xlu0 %6892
    %6894 = vrot.lane.b32.xlu0 %v799, 24
    %v6895 = vpop.permute.xlu0 %6894
    %6896 = vrot.lane.b32.xlu0 %v801, 24
    %v6897 = vpop.permute.xlu0 %6896
    %6898 = vrot.lane.b32.xlu0 %v802, 24
    %v6899 = vpop.permute.xlu0 %6898
    %6900 = vrot.lane.b32.xlu0 %v804, 24
    %v6901 = vpop.permute.xlu0 %6900
    %6902 = vrot.lane.b32.xlu0 %v805, 24
    %v6903 = vpop.permute.xlu0 %6902
    %6904 = vrot.lane.b32.xlu0 %v807, 24
    %v6905 = vpop.permute.xlu0 %6904
    %6906 = vrot.lane.b32.xlu0 %v808, 24
    %v6907 = vpop.permute.xlu0 %6906
    %6908 = vrot.lane.b32.xlu0 %v816, 24
    %v6909 = vpop.permute.xlu0 %6908
    %6910 = vrot.lane.b32.xlu0 %v817, 24
    %v6911 = vpop.permute.xlu0 %6910
    %6912 = vrot.lane.b32.xlu0 %v819, 24
    %v6913 = vpop.permute.xlu0 %6912
    %6914 = vrot.lane.b32.xlu0 %v820, 24
    %v6915 = vpop.permute.xlu0 %6914
    %6916 = vrot.lane.b32.xlu0 %v822, 24
    %v6917 = vpop.permute.xlu0 %6916
    %6918 = vrot.lane.b32.xlu0 %v823, 24
    %v6919 = vpop.permute.xlu0 %6918
    %6920 = vrot.lane.b32.xlu0 %v825, 24
    %v6921 = vpop.permute.xlu0 %6920
    %6922 = vrot.lane.b32.xlu0 %v826, 24
    %v6923 = vpop.permute.xlu0 %6922
    %6924 = vrot.lane.b32.xlu0 %v828, 24
    %v6925 = vpop.permute.xlu0 %6924
    %6926 = vrot.lane.b32.xlu0 %v829, 24
    %v6927 = vpop.permute.xlu0 %6926
    %6928 = vrot.lane.b32.xlu0 %v831, 24
    %v6929 = vpop.permute.xlu0 %6928
    %6930 = vrot.lane.b32.xlu0 %v832, 24
    %v6931 = vpop.permute.xlu0 %6930
    %6932 = vrot.lane.b32.xlu0 %v834, 24
    %v6933 = vpop.permute.xlu0 %6932
    %6934 = vrot.lane.b32.xlu0 %v835, 24
    %v6935 = vpop.permute.xlu0 %6934
    %6936 = vrot.lane.b32.xlu0 %v837, 24
    %v6937 = vpop.permute.xlu0 %6936
    %6938 = vrot.lane.b32.xlu0 %v838, 24
    %v6939 = vpop.permute.xlu0 %6938
    %6940 = vrot.lane.b32.xlu0 %v840, 24
    %v6941 = vpop.permute.xlu0 %6940
    %6942 = vrot.lane.b32.xlu0 %v841, 24
    %v6943 = vpop.permute.xlu0 %6942
    %6944 = vrot.lane.b32.xlu0 %v843, 24
    %v6945 = vpop.permute.xlu0 %6944
    %6946 = vrot.lane.b32.xlu0 %v844, 24
    %v6947 = vpop.permute.xlu0 %6946
    %6948 = vrot.lane.b32.xlu0 %v846, 24
    %v6949 = vpop.permute.xlu0 %6948
    %6950 = vrot.lane.b32.xlu0 %v847, 24
    %v6951 = vpop.permute.xlu0 %6950
    %6952 = vrot.lane.b32.xlu0 %v849, 24
    %v6953 = vpop.permute.xlu0 %6952
    %6954 = vrot.lane.b32.xlu0 %v850, 24
    %v6955 = vpop.permute.xlu0 %6954
    %6956 = vrot.lane.b32.xlu0 %v852, 24
    %v6957 = vpop.permute.xlu0 %6956
    %6958 = vrot.lane.b32.xlu0 %v853, 24
    %v6959 = vpop.permute.xlu0 %6958
    %6960 = vrot.lane.b32.xlu0 %v855, 24
    %v6961 = vpop.permute.xlu0 %6960
    %6962 = vrot.lane.b32.xlu0 %v856, 24
    %v6963 = vpop.permute.xlu0 %6962
    %6964 = vrot.lane.b32.xlu0 %v858, 24
    %v6965 = vpop.permute.xlu0 %6964
    %6966 = vrot.lane.b32.xlu0 %v859, 24
    %v6967 = vpop.permute.xlu0 %6966
    %6968 = vrot.lane.b32.xlu0 %v861, 24
    %v6969 = vpop.permute.xlu0 %6968
    %6970 = vrot.lane.b32.xlu0 %v862, 24
    %v6971 = vpop.permute.xlu0 %6970
    %6972 = vrot.lane.b32.xlu0 %v870, 24
    %v6973 = vpop.permute.xlu0 %6972
    %6974 = vrot.lane.b32.xlu0 %v871, 24
    %v6975 = vpop.permute.xlu0 %6974
    %6976 = vrot.lane.b32.xlu0 %v873, 24
    %v6977 = vpop.permute.xlu0 %6976
    %6978 = vrot.lane.b32.xlu0 %v874, 24
    %v6979 = vpop.permute.xlu0 %6978
    %6980 = vrot.lane.b32.xlu0 %v876, 24
    %v6981 = vpop.permute.xlu0 %6980
    %6982 = vrot.lane.b32.xlu0 %v877, 24
    %v6983 = vpop.permute.xlu0 %6982
    %6984 = vrot.lane.b32.xlu0 %v879, 24
    %v6985 = vpop.permute.xlu0 %6984
    %6986 = vrot.lane.b32.xlu0 %v880, 24
    %v6987 = vpop.permute.xlu0 %6986
    %6988 = vrot.lane.b32.xlu0 %v882, 24
    %v6989 = vpop.permute.xlu0 %6988
    %6990 = vrot.lane.b32.xlu0 %v883, 24
    %v6991 = vpop.permute.xlu0 %6990
    %6992 = vrot.lane.b32.xlu0 %v885, 24
    %v6993 = vpop.permute.xlu0 %6992
    %6994 = vrot.lane.b32.xlu0 %v886, 24
    %v6995 = vpop.permute.xlu0 %6994
    %6996 = vrot.lane.b32.xlu0 %v888, 24
    %v6997 = vpop.permute.xlu0 %6996
    %6998 = vrot.lane.b32.xlu0 %v889, 24
    %v6999 = vpop.permute.xlu0 %6998
    %7000 = vrot.lane.b32.xlu0 %v891, 24
    %v7001 = vpop.permute.xlu0 %7000
    %7002 = vrot.lane.b32.xlu0 %v892, 24
    %v7003 = vpop.permute.xlu0 %7002
    %7004 = vrot.lane.b32.xlu0 %v894, 24
    %v7005 = vpop.permute.xlu0 %7004
    %7006 = vrot.lane.b32.xlu0 %v895, 24
    %v7007 = vpop.permute.xlu0 %7006
    %7008 = vrot.lane.b32.xlu0 %v897, 24
    %v7009 = vpop.permute.xlu0 %7008
    %7010 = vrot.lane.b32.xlu0 %v898, 24
    %v7011 = vpop.permute.xlu0 %7010
    %7012 = vrot.lane.b32.xlu0 %v900, 24
    %v7013 = vpop.permute.xlu0 %7012
    %7014 = vrot.lane.b32.xlu0 %v901, 24
    %v7015 = vpop.permute.xlu0 %7014
    %7016 = vrot.lane.b32.xlu0 %v903, 24
    %v7017 = vpop.permute.xlu0 %7016
    %7018 = vrot.lane.b32.xlu0 %v904, 24
    %v7019 = vpop.permute.xlu0 %7018
    %7020 = vrot.lane.b32.xlu0 %v906, 24
    %v7021 = vpop.permute.xlu0 %7020
    %7022 = vrot.lane.b32.xlu0 %v907, 24
    %v7023 = vpop.permute.xlu0 %7022
    %7024 = vrot.lane.b32.xlu0 %v909, 24
    %v7025 = vpop.permute.xlu0 %7024
    %7026 = vrot.lane.b32.xlu0 %v910, 24
    %v7027 = vpop.permute.xlu0 %7026
    %7028 = vrot.lane.b32.xlu0 %v912, 24
    %v7029 = vpop.permute.xlu0 %7028
    %7030 = vrot.lane.b32.xlu0 %v913, 24
    %v7031 = vpop.permute.xlu0 %7030
    %7032 = vrot.lane.b32.xlu0 %v915, 24
    %v7033 = vpop.permute.xlu0 %7032
    %7034 = vrot.lane.b32.xlu0 %v916, 24
    %v7035 = vpop.permute.xlu0 %7034
    %7036 = vrot.lane.b32.xlu0 %v924, 24
    %v7037 = vpop.permute.xlu0 %7036
    %7038 = vrot.lane.b32.xlu0 %v925, 24
    %v7039 = vpop.permute.xlu0 %7038
    %7040 = vrot.lane.b32.xlu0 %v927, 24
    %v7041 = vpop.permute.xlu0 %7040
    %7042 = vrot.lane.b32.xlu0 %v928, 24
    %v7043 = vpop.permute.xlu0 %7042
    %7044 = vrot.lane.b32.xlu0 %v930, 24
    %v7045 = vpop.permute.xlu0 %7044
    %7046 = vrot.lane.b32.xlu0 %v931, 24
    %v7047 = vpop.permute.xlu0 %7046
    %7048 = vrot.lane.b32.xlu0 %v933, 24
    %v7049 = vpop.permute.xlu0 %7048
    %7050 = vrot.lane.b32.xlu0 %v934, 24
    %v7051 = vpop.permute.xlu0 %7050
    %7052 = vrot.lane.b32.xlu0 %v936, 24
    %v7053 = vpop.permute.xlu0 %7052
    %7054 = vrot.lane.b32.xlu0 %v937, 24
    %v7055 = vpop.permute.xlu0 %7054
    %7056 = vrot.lane.b32.xlu0 %v939, 24
    %v7057 = vpop.permute.xlu0 %7056
    %7058 = vrot.lane.b32.xlu0 %v940, 24
    %v7059 = vpop.permute.xlu0 %7058
    %7060 = vrot.lane.b32.xlu0 %v942, 24
    %v7061 = vpop.permute.xlu0 %7060
    %7062 = vrot.lane.b32.xlu0 %v943, 24
    %v7063 = vpop.permute.xlu0 %7062
    %7064 = vrot.lane.b32.xlu0 %v945, 24
    %v7065 = vpop.permute.xlu0 %7064
    %7066 = vrot.lane.b32.xlu0 %v946, 24
    %v7067 = vpop.permute.xlu0 %7066
    %7068 = vrot.lane.b32.xlu0 %v948, 24
    %v7069 = vpop.permute.xlu0 %7068
    %7070 = vrot.lane.b32.xlu0 %v949, 24
    %v7071 = vpop.permute.xlu0 %7070
    %7072 = vrot.lane.b32.xlu0 %v951, 24
    %v7073 = vpop.permute.xlu0 %7072
    %7074 = vrot.lane.b32.xlu0 %v952, 24
    %v7075 = vpop.permute.xlu0 %7074
    %7076 = vrot.lane.b32.xlu0 %v954, 24
    %v7077 = vpop.permute.xlu0 %7076
    %7078 = vrot.lane.b32.xlu0 %v955, 24
    %v7079 = vpop.permute.xlu0 %7078
    %7080 = vrot.lane.b32.xlu0 %v957, 24
    %v7081 = vpop.permute.xlu0 %7080
    %7082 = vrot.lane.b32.xlu0 %v958, 24
    %v7083 = vpop.permute.xlu0 %7082
    %7084 = vrot.lane.b32.xlu0 %v960, 24
    %v7085 = vpop.permute.xlu0 %7084
    %7086 = vrot.lane.b32.xlu0 %v961, 24
    %v7087 = vpop.permute.xlu0 %7086
    %7088 = vrot.lane.b32.xlu0 %v963, 24
    %v7089 = vpop.permute.xlu0 %7088
    %7090 = vrot.lane.b32.xlu0 %v964, 24
    %v7091 = vpop.permute.xlu0 %7090
    %7092 = vrot.lane.b32.xlu0 %v966, 24
    %v7093 = vpop.permute.xlu0 %7092
    %7094 = vrot.lane.b32.xlu0 %v967, 24
    %v7095 = vpop.permute.xlu0 %7094
    %7096 = vrot.lane.b32.xlu0 %v969, 24
    %v7097 = vpop.permute.xlu0 %7096
    %7098 = vrot.lane.b32.xlu0 %v970, 24
    %v7099 = vpop.permute.xlu0 %7098
    %7100 = vrot.lane.b32.xlu0 %v978, 24
    %v7101 = vpop.permute.xlu0 %7100
    %7102 = vrot.lane.b32.xlu0 %v979, 24
    %v7103 = vpop.permute.xlu0 %7102
    %7104 = vrot.lane.b32.xlu0 %v981, 24
    %v7105 = vpop.permute.xlu0 %7104
    %7106 = vrot.lane.b32.xlu0 %v982, 24
    %v7107 = vpop.permute.xlu0 %7106
    %7108 = vrot.lane.b32.xlu0 %v984, 24
    %v7109 = vpop.permute.xlu0 %7108
    %7110 = vrot.lane.b32.xlu0 %v985, 24
    %v7111 = vpop.permute.xlu0 %7110
    %7112 = vrot.lane.b32.xlu0 %v987, 24
    %v7113 = vpop.permute.xlu0 %7112
    %7114 = vrot.lane.b32.xlu0 %v988, 24
    %v7115 = vpop.permute.xlu0 %7114
    %7116 = vrot.lane.b32.xlu0 %v990, 24
    %v7117 = vpop.permute.xlu0 %7116
    %7118 = vrot.lane.b32.xlu0 %v991, 24
    %v7119 = vpop.permute.xlu0 %7118
    %7120 = vrot.lane.b32.xlu0 %v993, 24
    %v7121 = vpop.permute.xlu0 %7120
    %7122 = vrot.lane.b32.xlu0 %v994, 24
    %v7123 = vpop.permute.xlu0 %7122
    %7124 = vrot.lane.b32.xlu0 %v996, 24
    %v7125 = vpop.permute.xlu0 %7124
    %7126 = vrot.lane.b32.xlu0 %v997, 24
    %v7127 = vpop.permute.xlu0 %7126
    %7128 = vrot.lane.b32.xlu0 %v999, 24
    %v7129 = vpop.permute.xlu0 %7128
    %7130 = vrot.lane.b32.xlu0 %v1000, 24
    %v7131 = vpop.permute.xlu0 %7130
    %7132 = vrot.lane.b32.xlu0 %v1002, 24
    %v7133 = vpop.permute.xlu0 %7132
    %7134 = vrot.lane.b32.xlu0 %v1003, 24
    %v7135 = vpop.permute.xlu0 %7134
    %7136 = vrot.lane.b32.xlu0 %v1005, 24
    %v7137 = vpop.permute.xlu0 %7136
    %7138 = vrot.lane.b32.xlu0 %v1006, 24
    %v7139 = vpop.permute.xlu0 %7138
    %7140 = vrot.lane.b32.xlu0 %v1008, 24
    %v7141 = vpop.permute.xlu0 %7140
    %7142 = vrot.lane.b32.xlu0 %v1009, 24
    %v7143 = vpop.permute.xlu0 %7142
    %7144 = vrot.lane.b32.xlu0 %v1011, 24
    %v7145 = vpop.permute.xlu0 %7144
    %7146 = vrot.lane.b32.xlu0 %v1012, 24
    %v7147 = vpop.permute.xlu0 %7146
    %7148 = vrot.lane.b32.xlu0 %v1014, 24
    %v7149 = vpop.permute.xlu0 %7148
    %7150 = vrot.lane.b32.xlu0 %v1015, 24
    %v7151 = vpop.permute.xlu0 %7150
    %7152 = vrot.lane.b32.xlu0 %v1017, 24
    %v7153 = vpop.permute.xlu0 %7152
    %7154 = vrot.lane.b32.xlu0 %v1018, 24
    %v7155 = vpop.permute.xlu0 %7154
    %7156 = vrot.lane.b32.xlu0 %v1020, 24
    %v7157 = vpop.permute.xlu0 %7156
    %7158 = vrot.lane.b32.xlu0 %v1021, 24
    %v7159 = vpop.permute.xlu0 %7158
    %7160 = vrot.lane.b32.xlu0 %v1023, 24
    %v7161 = vpop.permute.xlu0 %7160
    %7162 = vrot.lane.b32.xlu0 %v1024, 24
    %v7163 = vpop.permute.xlu0 %7162
    %v7428 = vrot.slane %v645, 1
    %v7429 = vrot.slane %v646, 1
    %v7430 = vsel %vm1410, %v7428, %v7429
    %v7431 = vrot.slane %v647, 1
    %v7432 = vsel %vm1410, %v7429, %v7431
    %v7433 = vrot.slane %v699, 1
    %v7434 = vrot.slane %v700, 1
    %v7435 = vsel %vm1410, %v7433, %v7434
    %v7436 = vrot.slane %v701, 1
    %v7437 = vsel %vm1410, %v7434, %v7436
    %v7438 = vrot.slane %v753, 1
    %v7439 = vrot.slane %v754, 1
    %v7440 = vsel %vm1410, %v7438, %v7439
    %v7441 = vrot.slane %v755, 1
    %v7442 = vsel %vm1410, %v7439, %v7441
    %v7443 = vrot.slane %v807, 1
    %v7444 = vrot.slane %v808, 1
    %v7445 = vsel %vm1410, %v7443, %v7444
    %v7446 = vrot.slane %v809, 1
    %v7447 = vsel %vm1410, %v7444, %v7446
    %v7448 = vrot.slane %v861, 1
    %v7449 = vrot.slane %v862, 1
    %v7450 = vsel %vm1410, %v7448, %v7449
    %v7451 = vrot.slane %v863, 1
    %v7452 = vsel %vm1410, %v7449, %v7451
    %v7453 = vrot.slane %v915, 1
    %v7454 = vrot.slane %v916, 1
    %v7455 = vsel %vm1410, %v7453, %v7454
    %v7456 = vrot.slane %v917, 1
    %v7457 = vsel %vm1410, %v7454, %v7456
    %v7458 = vrot.slane %v969, 1
    %v7459 = vrot.slane %v970, 1
    %v7460 = vsel %vm1410, %v7458, %v7459
    %v7461 = vrot.slane %v971, 1
    %v7462 = vsel %vm1410, %v7459, %v7461
    %v7463 = vrot.slane %v1023, 1
    %v7464 = vrot.slane %v1024, 1
    %v7465 = vsel %vm1410, %v7463, %v7464
    %v7466 = vrot.slane %v1025, 1
    %v7467 = vsel %vm1410, %v7464, %v7466
    %7468 = vrot.lane.b32.xlu0 %v1423, 28
    %v7469 = vpop.permute.xlu0 %7468
    %7470 = vrot.lane.b32.xlu0 %v1425, 28
    %v7471 = vpop.permute.xlu0 %7470
    %7472 = vrot.lane.b32.xlu0 %v1428, 28
    %v7473 = vpop.permute.xlu0 %7472
    %7474 = vrot.lane.b32.xlu0 %v1430, 28
    %v7475 = vpop.permute.xlu0 %7474
    %7476 = vrot.lane.b32.xlu0 %v1433, 28
    %v7477 = vpop.permute.xlu0 %7476
    %7478 = vrot.lane.b32.xlu0 %v1435, 28
    %v7479 = vpop.permute.xlu0 %7478
    %7480 = vrot.lane.b32.xlu0 %v1438, 28
    %v7481 = vpop.permute.xlu0 %7480
    %7482 = vrot.lane.b32.xlu0 %v1440, 28
    %v7483 = vpop.permute.xlu0 %7482
    %7484 = vrot.lane.b32.xlu0 %v1443, 28
    %v7485 = vpop.permute.xlu0 %7484
    %7486 = vrot.lane.b32.xlu0 %v1445, 28
    %v7487 = vpop.permute.xlu0 %7486
    %7488 = vrot.lane.b32.xlu0 %v1448, 28
    %v7489 = vpop.permute.xlu0 %7488
    %7490 = vrot.lane.b32.xlu0 %v1450, 28
    %v7491 = vpop.permute.xlu0 %7490
    %7492 = vrot.lane.b32.xlu0 %v1453, 28
    %v7493 = vpop.permute.xlu0 %7492
    %7494 = vrot.lane.b32.xlu0 %v1455, 28
    %v7495 = vpop.permute.xlu0 %7494
    %7496 = vrot.lane.b32.xlu0 %v1458, 28
    %v7497 = vpop.permute.xlu0 %7496
    %7498 = vrot.lane.b32.xlu0 %v1460, 28
    %v7499 = vpop.permute.xlu0 %7498
    %7500 = vrot.lane.b32.xlu0 %v1463, 28
    %v7501 = vpop.permute.xlu0 %7500
    %7502 = vrot.lane.b32.xlu0 %v1465, 28
    %v7503 = vpop.permute.xlu0 %7502
    %7504 = vrot.lane.b32.xlu0 %v1468, 28
    %v7505 = vpop.permute.xlu0 %7504
    %7506 = vrot.lane.b32.xlu0 %v1470, 28
    %v7507 = vpop.permute.xlu0 %7506
    %7508 = vrot.lane.b32.xlu0 %v1473, 28
    %v7509 = vpop.permute.xlu0 %7508
    %7510 = vrot.lane.b32.xlu0 %v1475, 28
    %v7511 = vpop.permute.xlu0 %7510
    %7512 = vrot.lane.b32.xlu0 %v1478, 28
    %v7513 = vpop.permute.xlu0 %7512
    %7514 = vrot.lane.b32.xlu0 %v1480, 28
    %v7515 = vpop.permute.xlu0 %7514
    %7516 = vrot.lane.b32.xlu0 %v1483, 28
    %v7517 = vpop.permute.xlu0 %7516
    %7518 = vrot.lane.b32.xlu0 %v1485, 28
    %v7519 = vpop.permute.xlu0 %7518
    %7520 = vrot.lane.b32.xlu0 %v1488, 28
    %v7521 = vpop.permute.xlu0 %7520
    %7522 = vrot.lane.b32.xlu0 %v1490, 28
    %v7523 = vpop.permute.xlu0 %7522
    %7524 = vrot.lane.b32.xlu0 %v5022, 28
    %v7525 = vpop.permute.xlu0 %7524
    %7526 = vrot.lane.b32.xlu0 %v5024, 28
    %v7527 = vpop.permute.xlu0 %7526
    %7528 = vrot.lane.b32.xlu0 %v7430, 28
    %v7529 = vpop.permute.xlu0 %7528
    %7530 = vrot.lane.b32.xlu0 %v7432, 28
    %v7531 = vpop.permute.xlu0 %7530
    %7532 = vrot.lane.b32.xlu0 %v1503, 28
    %v7533 = vpop.permute.xlu0 %7532
    %7534 = vrot.lane.b32.xlu0 %v1505, 28
    %v7535 = vpop.permute.xlu0 %7534
    %7536 = vrot.lane.b32.xlu0 %v1508, 28
    %v7537 = vpop.permute.xlu0 %7536
    %7538 = vrot.lane.b32.xlu0 %v1510, 28
    %v7539 = vpop.permute.xlu0 %7538
    %7540 = vrot.lane.b32.xlu0 %v1513, 28
    %v7541 = vpop.permute.xlu0 %7540
    %7542 = vrot.lane.b32.xlu0 %v1515, 28
    %v7543 = vpop.permute.xlu0 %7542
    %7544 = vrot.lane.b32.xlu0 %v1518, 28
    %v7545 = vpop.permute.xlu0 %7544
    %7546 = vrot.lane.b32.xlu0 %v1520, 28
    %v7547 = vpop.permute.xlu0 %7546
    %7548 = vrot.lane.b32.xlu0 %v1523, 28
    %v7549 = vpop.permute.xlu0 %7548
    %7550 = vrot.lane.b32.xlu0 %v1525, 28
    %v7551 = vpop.permute.xlu0 %7550
    %7552 = vrot.lane.b32.xlu0 %v1528, 28
    %v7553 = vpop.permute.xlu0 %7552
    %7554 = vrot.lane.b32.xlu0 %v1530, 28
    %v7555 = vpop.permute.xlu0 %7554
    %7556 = vrot.lane.b32.xlu0 %v1533, 28
    %v7557 = vpop.permute.xlu0 %7556
    %7558 = vrot.lane.b32.xlu0 %v1535, 28
    %v7559 = vpop.permute.xlu0 %7558
    %7560 = vrot.lane.b32.xlu0 %v1538, 28
    %v7561 = vpop.permute.xlu0 %7560
    %7562 = vrot.lane.b32.xlu0 %v1540, 28
    %v7563 = vpop.permute.xlu0 %7562
    %7564 = vrot.lane.b32.xlu0 %v1543, 28
    %v7565 = vpop.permute.xlu0 %7564
    %7566 = vrot.lane.b32.xlu0 %v1545, 28
    %v7567 = vpop.permute.xlu0 %7566
    %7568 = vrot.lane.b32.xlu0 %v1548, 28
    %v7569 = vpop.permute.xlu0 %7568
    %7570 = vrot.lane.b32.xlu0 %v1550, 28
    %v7571 = vpop.permute.xlu0 %7570
    %7572 = vrot.lane.b32.xlu0 %v1553, 28
    %v7573 = vpop.permute.xlu0 %7572
    %7574 = vrot.lane.b32.xlu0 %v1555, 28
    %v7575 = vpop.permute.xlu0 %7574
    %7576 = vrot.lane.b32.xlu0 %v1558, 28
    %v7577 = vpop.permute.xlu0 %7576
    %7578 = vrot.lane.b32.xlu0 %v1560, 28
    %v7579 = vpop.permute.xlu0 %7578
    %7580 = vrot.lane.b32.xlu0 %v1563, 28
    %v7581 = vpop.permute.xlu0 %7580
    %7582 = vrot.lane.b32.xlu0 %v1565, 28
    %v7583 = vpop.permute.xlu0 %7582
    %7584 = vrot.lane.b32.xlu0 %v1568, 28
    %v7585 = vpop.permute.xlu0 %7584
    %7586 = vrot.lane.b32.xlu0 %v1570, 28
    %v7587 = vpop.permute.xlu0 %7586
    %7588 = vrot.lane.b32.xlu0 %v5027, 28
    %v7589 = vpop.permute.xlu0 %7588
    %7590 = vrot.lane.b32.xlu0 %v5029, 28
    %v7591 = vpop.permute.xlu0 %7590
    %7592 = vrot.lane.b32.xlu0 %v7435, 28
    %v7593 = vpop.permute.xlu0 %7592
    %7594 = vrot.lane.b32.xlu0 %v7437, 28
    %v7595 = vpop.permute.xlu0 %7594
    %7596 = vrot.lane.b32.xlu0 %v1583, 28
    %v7597 = vpop.permute.xlu0 %7596
    %7598 = vrot.lane.b32.xlu0 %v1585, 28
    %v7599 = vpop.permute.xlu0 %7598
    %7600 = vrot.lane.b32.xlu0 %v1588, 28
    %v7601 = vpop.permute.xlu0 %7600
    %7602 = vrot.lane.b32.xlu0 %v1590, 28
    %v7603 = vpop.permute.xlu0 %7602
    %7604 = vrot.lane.b32.xlu0 %v1593, 28
    %v7605 = vpop.permute.xlu0 %7604
    %7606 = vrot.lane.b32.xlu0 %v1595, 28
    %v7607 = vpop.permute.xlu0 %7606
    %7608 = vrot.lane.b32.xlu0 %v1598, 28
    %v7609 = vpop.permute.xlu0 %7608
    %7610 = vrot.lane.b32.xlu0 %v1600, 28
    %v7611 = vpop.permute.xlu0 %7610
    %7612 = vrot.lane.b32.xlu0 %v1603, 28
    %v7613 = vpop.permute.xlu0 %7612
    %7614 = vrot.lane.b32.xlu0 %v1605, 28
    %v7615 = vpop.permute.xlu0 %7614
    %7616 = vrot.lane.b32.xlu0 %v1608, 28
    %v7617 = vpop.permute.xlu0 %7616
    %7618 = vrot.lane.b32.xlu0 %v1610, 28
    %v7619 = vpop.permute.xlu0 %7618
    %7620 = vrot.lane.b32.xlu0 %v1613, 28
    %v7621 = vpop.permute.xlu0 %7620
    %7622 = vrot.lane.b32.xlu0 %v1615, 28
    %v7623 = vpop.permute.xlu0 %7622
    %7624 = vrot.lane.b32.xlu0 %v1618, 28
    %v7625 = vpop.permute.xlu0 %7624
    %7626 = vrot.lane.b32.xlu0 %v1620, 28
    %v7627 = vpop.permute.xlu0 %7626
    %7628 = vrot.lane.b32.xlu0 %v1623, 28
    %v7629 = vpop.permute.xlu0 %7628
    %7630 = vrot.lane.b32.xlu0 %v1625, 28
    %v7631 = vpop.permute.xlu0 %7630
    %7632 = vrot.lane.b32.xlu0 %v1628, 28
    %v7633 = vpop.permute.xlu0 %7632
    %7634 = vrot.lane.b32.xlu0 %v1630, 28
    %v7635 = vpop.permute.xlu0 %7634
    %7636 = vrot.lane.b32.xlu0 %v1633, 28
    %v7637 = vpop.permute.xlu0 %7636
    %7638 = vrot.lane.b32.xlu0 %v1635, 28
    %v7639 = vpop.permute.xlu0 %7638
    %7640 = vrot.lane.b32.xlu0 %v1638, 28
    %v7641 = vpop.permute.xlu0 %7640
    %7642 = vrot.lane.b32.xlu0 %v1640, 28
    %v7643 = vpop.permute.xlu0 %7642
    %7644 = vrot.lane.b32.xlu0 %v1643, 28
    %v7645 = vpop.permute.xlu0 %7644
    %7646 = vrot.lane.b32.xlu0 %v1645, 28
    %v7647 = vpop.permute.xlu0 %7646
    %7648 = vrot.lane.b32.xlu0 %v1648, 28
    %v7649 = vpop.permute.xlu0 %7648
    %7650 = vrot.lane.b32.xlu0 %v1650, 28
    %v7651 = vpop.permute.xlu0 %7650
    %7652 = vrot.lane.b32.xlu0 %v5032, 28
    %v7653 = vpop.permute.xlu0 %7652
    %7654 = vrot.lane.b32.xlu0 %v5034, 28
    %v7655 = vpop.permute.xlu0 %7654
    %7656 = vrot.lane.b32.xlu0 %v7440, 28
    %v7657 = vpop.permute.xlu0 %7656
    %7658 = vrot.lane.b32.xlu0 %v7442, 28
    %v7659 = vpop.permute.xlu0 %7658
    %7660 = vrot.lane.b32.xlu0 %v1663, 28
    %v7661 = vpop.permute.xlu0 %7660
    %7662 = vrot.lane.b32.xlu0 %v1665, 28
    %v7663 = vpop.permute.xlu0 %7662
    %7664 = vrot.lane.b32.xlu0 %v1668, 28
    %v7665 = vpop.permute.xlu0 %7664
    %7666 = vrot.lane.b32.xlu0 %v1670, 28
    %v7667 = vpop.permute.xlu0 %7666
    %7668 = vrot.lane.b32.xlu0 %v1673, 28
    %v7669 = vpop.permute.xlu0 %7668
    %7670 = vrot.lane.b32.xlu0 %v1675, 28
    %v7671 = vpop.permute.xlu0 %7670
    %7672 = vrot.lane.b32.xlu0 %v1678, 28
    %v7673 = vpop.permute.xlu0 %7672
    %7674 = vrot.lane.b32.xlu0 %v1680, 28
    %v7675 = vpop.permute.xlu0 %7674
    %7676 = vrot.lane.b32.xlu0 %v1683, 28
    %v7677 = vpop.permute.xlu0 %7676
    %7678 = vrot.lane.b32.xlu0 %v1685, 28
    %v7679 = vpop.permute.xlu0 %7678
    %7680 = vrot.lane.b32.xlu0 %v1688, 28
    %v7681 = vpop.permute.xlu0 %7680
    %7682 = vrot.lane.b32.xlu0 %v1690, 28
    %v7683 = vpop.permute.xlu0 %7682
    %7684 = vrot.lane.b32.xlu0 %v1693, 28
    %v7685 = vpop.permute.xlu0 %7684
    %7686 = vrot.lane.b32.xlu0 %v1695, 28
    %v7687 = vpop.permute.xlu0 %7686
    %7688 = vrot.lane.b32.xlu0 %v1698, 28
    %v7689 = vpop.permute.xlu0 %7688
    %7690 = vrot.lane.b32.xlu0 %v1700, 28
    %v7691 = vpop.permute.xlu0 %7690
    %7692 = vrot.lane.b32.xlu0 %v1703, 28
    %v7693 = vpop.permute.xlu0 %7692
    %7694 = vrot.lane.b32.xlu0 %v1705, 28
    %v7695 = vpop.permute.xlu0 %7694
    %7696 = vrot.lane.b32.xlu0 %v1708, 28
    %v7697 = vpop.permute.xlu0 %7696
    %7698 = vrot.lane.b32.xlu0 %v1710, 28
    %v7699 = vpop.permute.xlu0 %7698
    %7700 = vrot.lane.b32.xlu0 %v1713, 28
    %v7701 = vpop.permute.xlu0 %7700
    %7702 = vrot.lane.b32.xlu0 %v1715, 28
    %v7703 = vpop.permute.xlu0 %7702
    %7704 = vrot.lane.b32.xlu0 %v1718, 28
    %v7705 = vpop.permute.xlu0 %7704
    %7706 = vrot.lane.b32.xlu0 %v1720, 28
    %v7707 = vpop.permute.xlu0 %7706
    %7708 = vrot.lane.b32.xlu0 %v1723, 28
    %v7709 = vpop.permute.xlu0 %7708
    %7710 = vrot.lane.b32.xlu0 %v1725, 28
    %v7711 = vpop.permute.xlu0 %7710
    %7712 = vrot.lane.b32.xlu0 %v1728, 28
    %v7713 = vpop.permute.xlu0 %7712
    %7714 = vrot.lane.b32.xlu0 %v1730, 28
    %v7715 = vpop.permute.xlu0 %7714
    %7716 = vrot.lane.b32.xlu0 %v5037, 28
    %v7717 = vpop.permute.xlu0 %7716
    %7718 = vrot.lane.b32.xlu0 %v5039, 28
    %v7719 = vpop.permute.xlu0 %7718
    %7720 = vrot.lane.b32.xlu0 %v7445, 28
    %v7721 = vpop.permute.xlu0 %7720
    %7722 = vrot.lane.b32.xlu0 %v7447, 28
    %v7723 = vpop.permute.xlu0 %7722
    %7724 = vrot.lane.b32.xlu0 %v1743, 28
    %v7725 = vpop.permute.xlu0 %7724
    %7726 = vrot.lane.b32.xlu0 %v1745, 28
    %v7727 = vpop.permute.xlu0 %7726
    %7728 = vrot.lane.b32.xlu0 %v1748, 28
    %v7729 = vpop.permute.xlu0 %7728
    %7730 = vrot.lane.b32.xlu0 %v1750, 28
    %v7731 = vpop.permute.xlu0 %7730
    %7732 = vrot.lane.b32.xlu0 %v1753, 28
    %v7733 = vpop.permute.xlu0 %7732
    %7734 = vrot.lane.b32.xlu0 %v1755, 28
    %v7735 = vpop.permute.xlu0 %7734
    %7736 = vrot.lane.b32.xlu0 %v1758, 28
    %v7737 = vpop.permute.xlu0 %7736
    %7738 = vrot.lane.b32.xlu0 %v1760, 28
    %v7739 = vpop.permute.xlu0 %7738
    %7740 = vrot.lane.b32.xlu0 %v1763, 28
    %v7741 = vpop.permute.xlu0 %7740
    %7742 = vrot.lane.b32.xlu0 %v1765, 28
    %v7743 = vpop.permute.xlu0 %7742
    %7744 = vrot.lane.b32.xlu0 %v1768, 28
    %v7745 = vpop.permute.xlu0 %7744
    %7746 = vrot.lane.b32.xlu0 %v1770, 28
    %v7747 = vpop.permute.xlu0 %7746
    %7748 = vrot.lane.b32.xlu0 %v1773, 28
    %v7749 = vpop.permute.xlu0 %7748
    %7750 = vrot.lane.b32.xlu0 %v1775, 28
    %v7751 = vpop.permute.xlu0 %7750
    %7752 = vrot.lane.b32.xlu0 %v1778, 28
    %v7753 = vpop.permute.xlu0 %7752
    %7754 = vrot.lane.b32.xlu0 %v1780, 28
    %v7755 = vpop.permute.xlu0 %7754
    %7756 = vrot.lane.b32.xlu0 %v1783, 28
    %v7757 = vpop.permute.xlu0 %7756
    %7758 = vrot.lane.b32.xlu0 %v1785, 28
    %v7759 = vpop.permute.xlu0 %7758
    %7760 = vrot.lane.b32.xlu0 %v1788, 28
    %v7761 = vpop.permute.xlu0 %7760
    %7762 = vrot.lane.b32.xlu0 %v1790, 28
    %v7763 = vpop.permute.xlu0 %7762
    %7764 = vrot.lane.b32.xlu0 %v1793, 28
    %v7765 = vpop.permute.xlu0 %7764
    %7766 = vrot.lane.b32.xlu0 %v1795, 28
    %v7767 = vpop.permute.xlu0 %7766
    %7768 = vrot.lane.b32.xlu0 %v1798, 28
    %v7769 = vpop.permute.xlu0 %7768
    %7770 = vrot.lane.b32.xlu0 %v1800, 28
    %v7771 = vpop.permute.xlu0 %7770
    %7772 = vrot.lane.b32.xlu0 %v1803, 28
    %v7773 = vpop.permute.xlu0 %7772
    %7774 = vrot.lane.b32.xlu0 %v1805, 28
    %v7775 = vpop.permute.xlu0 %7774
    %7776 = vrot.lane.b32.xlu0 %v1808, 28
    %v7777 = vpop.permute.xlu0 %7776
    %7778 = vrot.lane.b32.xlu0 %v1810, 28
    %v7779 = vpop.permute.xlu0 %7778
    %7780 = vrot.lane.b32.xlu0 %v5042, 28
    %v7781 = vpop.permute.xlu0 %7780
    %7782 = vrot.lane.b32.xlu0 %v5044, 28
    %v7783 = vpop.permute.xlu0 %7782
    %7784 = vrot.lane.b32.xlu0 %v7450, 28
    %v7785 = vpop.permute.xlu0 %7784
    %7786 = vrot.lane.b32.xlu0 %v7452, 28
    %v7787 = vpop.permute.xlu0 %7786
    %7788 = vrot.lane.b32.xlu0 %v1823, 28
    %v7789 = vpop.permute.xlu0 %7788
    %7790 = vrot.lane.b32.xlu0 %v1825, 28
    %v7791 = vpop.permute.xlu0 %7790
    %7792 = vrot.lane.b32.xlu0 %v1828, 28
    %v7793 = vpop.permute.xlu0 %7792
    %7794 = vrot.lane.b32.xlu0 %v1830, 28
    %v7795 = vpop.permute.xlu0 %7794
    %7796 = vrot.lane.b32.xlu0 %v1833, 28
    %v7797 = vpop.permute.xlu0 %7796
    %7798 = vrot.lane.b32.xlu0 %v1835, 28
    %v7799 = vpop.permute.xlu0 %7798
    %7800 = vrot.lane.b32.xlu0 %v1838, 28
    %v7801 = vpop.permute.xlu0 %7800
    %7802 = vrot.lane.b32.xlu0 %v1840, 28
    %v7803 = vpop.permute.xlu0 %7802
    %7804 = vrot.lane.b32.xlu0 %v1843, 28
    %v7805 = vpop.permute.xlu0 %7804
    %7806 = vrot.lane.b32.xlu0 %v1845, 28
    %v7807 = vpop.permute.xlu0 %7806
    %7808 = vrot.lane.b32.xlu0 %v1848, 28
    %v7809 = vpop.permute.xlu0 %7808
    %7810 = vrot.lane.b32.xlu0 %v1850, 28
    %v7811 = vpop.permute.xlu0 %7810
    %7812 = vrot.lane.b32.xlu0 %v1853, 28
    %v7813 = vpop.permute.xlu0 %7812
    %7814 = vrot.lane.b32.xlu0 %v1855, 28
    %v7815 = vpop.permute.xlu0 %7814
    %7816 = vrot.lane.b32.xlu0 %v1858, 28
    %v7817 = vpop.permute.xlu0 %7816
    %7818 = vrot.lane.b32.xlu0 %v1860, 28
    %v7819 = vpop.permute.xlu0 %7818
    %7820 = vrot.lane.b32.xlu0 %v1863, 28
    %v7821 = vpop.permute.xlu0 %7820
    %7822 = vrot.lane.b32.xlu0 %v1865, 28
    %v7823 = vpop.permute.xlu0 %7822
    %7824 = vrot.lane.b32.xlu0 %v1868, 28
    %v7825 = vpop.permute.xlu0 %7824
    %7826 = vrot.lane.b32.xlu0 %v1870, 28
    %v7827 = vpop.permute.xlu0 %7826
    %7828 = vrot.lane.b32.xlu0 %v1873, 28
    %v7829 = vpop.permute.xlu0 %7828
    %7830 = vrot.lane.b32.xlu0 %v1875, 28
    %v7831 = vpop.permute.xlu0 %7830
    %7832 = vrot.lane.b32.xlu0 %v1878, 28
    %v7833 = vpop.permute.xlu0 %7832
    %7834 = vrot.lane.b32.xlu0 %v1880, 28
    %v7835 = vpop.permute.xlu0 %7834
    %7836 = vrot.lane.b32.xlu0 %v1883, 28
    %v7837 = vpop.permute.xlu0 %7836
    %7838 = vrot.lane.b32.xlu0 %v1885, 28
    %v7839 = vpop.permute.xlu0 %7838
    %7840 = vrot.lane.b32.xlu0 %v1888, 28
    %v7841 = vpop.permute.xlu0 %7840
    %7842 = vrot.lane.b32.xlu0 %v1890, 28
    %v7843 = vpop.permute.xlu0 %7842
    %7844 = vrot.lane.b32.xlu0 %v5047, 28
    %v7845 = vpop.permute.xlu0 %7844
    %7846 = vrot.lane.b32.xlu0 %v5049, 28
    %v7847 = vpop.permute.xlu0 %7846
    %7848 = vrot.lane.b32.xlu0 %v7455, 28
    %v7849 = vpop.permute.xlu0 %7848
    %7850 = vrot.lane.b32.xlu0 %v7457, 28
    %v7851 = vpop.permute.xlu0 %7850
    %7852 = vrot.lane.b32.xlu0 %v1903, 28
    %v7853 = vpop.permute.xlu0 %7852
    %7854 = vrot.lane.b32.xlu0 %v1905, 28
    %v7855 = vpop.permute.xlu0 %7854
    %7856 = vrot.lane.b32.xlu0 %v1908, 28
    %v7857 = vpop.permute.xlu0 %7856
    %7858 = vrot.lane.b32.xlu0 %v1910, 28
    %v7859 = vpop.permute.xlu0 %7858
    %7860 = vrot.lane.b32.xlu0 %v1913, 28
    %v7861 = vpop.permute.xlu0 %7860
    %7862 = vrot.lane.b32.xlu0 %v1915, 28
    %v7863 = vpop.permute.xlu0 %7862
    %7864 = vrot.lane.b32.xlu0 %v1918, 28
    %v7865 = vpop.permute.xlu0 %7864
    %7866 = vrot.lane.b32.xlu0 %v1920, 28
    %v7867 = vpop.permute.xlu0 %7866
    %7868 = vrot.lane.b32.xlu0 %v1923, 28
    %v7869 = vpop.permute.xlu0 %7868
    %7870 = vrot.lane.b32.xlu0 %v1925, 28
    %v7871 = vpop.permute.xlu0 %7870
    %7872 = vrot.lane.b32.xlu0 %v1928, 28
    %v7873 = vpop.permute.xlu0 %7872
    %7874 = vrot.lane.b32.xlu0 %v1930, 28
    %v7875 = vpop.permute.xlu0 %7874
    %7876 = vrot.lane.b32.xlu0 %v1933, 28
    %v7877 = vpop.permute.xlu0 %7876
    %7878 = vrot.lane.b32.xlu0 %v1935, 28
    %v7879 = vpop.permute.xlu0 %7878
    %7880 = vrot.lane.b32.xlu0 %v1938, 28
    %v7881 = vpop.permute.xlu0 %7880
    %7882 = vrot.lane.b32.xlu0 %v1940, 28
    %v7883 = vpop.permute.xlu0 %7882
    %7884 = vrot.lane.b32.xlu0 %v1943, 28
    %v7885 = vpop.permute.xlu0 %7884
    %7886 = vrot.lane.b32.xlu0 %v1945, 28
    %v7887 = vpop.permute.xlu0 %7886
    %7888 = vrot.lane.b32.xlu0 %v1948, 28
    %v7889 = vpop.permute.xlu0 %7888
    %7890 = vrot.lane.b32.xlu0 %v1950, 28
    %v7891 = vpop.permute.xlu0 %7890
    %7892 = vrot.lane.b32.xlu0 %v1953, 28
    %v7893 = vpop.permute.xlu0 %7892
    %7894 = vrot.lane.b32.xlu0 %v1955, 28
    %v7895 = vpop.permute.xlu0 %7894
    %7896 = vrot.lane.b32.xlu0 %v1958, 28
    %v7897 = vpop.permute.xlu0 %7896
    %7898 = vrot.lane.b32.xlu0 %v1960, 28
    %v7899 = vpop.permute.xlu0 %7898
    %7900 = vrot.lane.b32.xlu0 %v1963, 28
    %v7901 = vpop.permute.xlu0 %7900
    %7902 = vrot.lane.b32.xlu0 %v1965, 28
    %v7903 = vpop.permute.xlu0 %7902
    %7904 = vrot.lane.b32.xlu0 %v1968, 28
    %v7905 = vpop.permute.xlu0 %7904
    %7906 = vrot.lane.b32.xlu0 %v1970, 28
    %v7907 = vpop.permute.xlu0 %7906
    %7908 = vrot.lane.b32.xlu0 %v5052, 28
    %v7909 = vpop.permute.xlu0 %7908
    %7910 = vrot.lane.b32.xlu0 %v5054, 28
    %v7911 = vpop.permute.xlu0 %7910
    %7912 = vrot.lane.b32.xlu0 %v7460, 28
    %v7913 = vpop.permute.xlu0 %7912
    %7914 = vrot.lane.b32.xlu0 %v7462, 28
    %v7915 = vpop.permute.xlu0 %7914
    %7916 = vrot.lane.b32.xlu0 %v1983, 28
    %v7917 = vpop.permute.xlu0 %7916
    %7918 = vrot.lane.b32.xlu0 %v1985, 28
    %v7919 = vpop.permute.xlu0 %7918
    %7920 = vrot.lane.b32.xlu0 %v1988, 28
    %v7921 = vpop.permute.xlu0 %7920
    %7922 = vrot.lane.b32.xlu0 %v1990, 28
    %v7923 = vpop.permute.xlu0 %7922
    %7924 = vrot.lane.b32.xlu0 %v1993, 28
    %v7925 = vpop.permute.xlu0 %7924
    %7926 = vrot.lane.b32.xlu0 %v1995, 28
    %v7927 = vpop.permute.xlu0 %7926
    %7928 = vrot.lane.b32.xlu0 %v1998, 28
    %v7929 = vpop.permute.xlu0 %7928
    %7930 = vrot.lane.b32.xlu0 %v2000, 28
    %v7931 = vpop.permute.xlu0 %7930
    %7932 = vrot.lane.b32.xlu0 %v2003, 28
    %v7933 = vpop.permute.xlu0 %7932
    %7934 = vrot.lane.b32.xlu0 %v2005, 28
    %v7935 = vpop.permute.xlu0 %7934
    %7936 = vrot.lane.b32.xlu0 %v2008, 28
    %v7937 = vpop.permute.xlu0 %7936
    %7938 = vrot.lane.b32.xlu0 %v2010, 28
    %v7939 = vpop.permute.xlu0 %7938
    %7940 = vrot.lane.b32.xlu0 %v2013, 28
    %v7941 = vpop.permute.xlu0 %7940
    %7942 = vrot.lane.b32.xlu0 %v2015, 28
    %v7943 = vpop.permute.xlu0 %7942
    %7944 = vrot.lane.b32.xlu0 %v2018, 28
    %v7945 = vpop.permute.xlu0 %7944
    %7946 = vrot.lane.b32.xlu0 %v2020, 28
    %v7947 = vpop.permute.xlu0 %7946
    %7948 = vrot.lane.b32.xlu0 %v2023, 28
    %v7949 = vpop.permute.xlu0 %7948
    %7950 = vrot.lane.b32.xlu0 %v2025, 28
    %v7951 = vpop.permute.xlu0 %7950
    %7952 = vrot.lane.b32.xlu0 %v2028, 28
    %v7953 = vpop.permute.xlu0 %7952
    %7954 = vrot.lane.b32.xlu0 %v2030, 28
    %v7955 = vpop.permute.xlu0 %7954
    %7956 = vrot.lane.b32.xlu0 %v2033, 28
    %v7957 = vpop.permute.xlu0 %7956
    %7958 = vrot.lane.b32.xlu0 %v2035, 28
    %v7959 = vpop.permute.xlu0 %7958
    %7960 = vrot.lane.b32.xlu0 %v2038, 28
    %v7961 = vpop.permute.xlu0 %7960
    %7962 = vrot.lane.b32.xlu0 %v2040, 28
    %v7963 = vpop.permute.xlu0 %7962
    %7964 = vrot.lane.b32.xlu0 %v2043, 28
    %v7965 = vpop.permute.xlu0 %7964
    %7966 = vrot.lane.b32.xlu0 %v2045, 28
    %v7967 = vpop.permute.xlu0 %7966
    %7968 = vrot.lane.b32.xlu0 %v2048, 28
    %v7969 = vpop.permute.xlu0 %7968
    %7970 = vrot.lane.b32.xlu0 %v2050, 28
    %v7971 = vpop.permute.xlu0 %7970
    %7972 = vrot.lane.b32.xlu0 %v5057, 28
    %v7973 = vpop.permute.xlu0 %7972
    %7974 = vrot.lane.b32.xlu0 %v5059, 28
    %v7975 = vpop.permute.xlu0 %7974
    %7976 = vrot.lane.b32.xlu0 %v7465, 28
    %v7977 = vpop.permute.xlu0 %7976
    %7978 = vrot.lane.b32.xlu0 %v7467, 28
    %v7979 = vpop.permute.xlu0 %7978
    %v8236 = vrot.slane %v645, 2
    %v8237 = vrot.slane %v646, 2
    %v8238 = vsel %vm2819, %v8236, %v8237
    %v8239 = vrot.slane %v647, 2
    %v8240 = vsel %vm2819, %v8237, %v8239
    %v8241 = vrot.slane %v699, 2
    %v8242 = vrot.slane %v700, 2
    %v8243 = vsel %vm2819, %v8241, %v8242
    %v8244 = vrot.slane %v701, 2
    %v8245 = vsel %vm2819, %v8242, %v8244
    %v8246 = vrot.slane %v753, 2
    %v8247 = vrot.slane %v754, 2
    %v8248 = vsel %vm2819, %v8246, %v8247
    %v8249 = vrot.slane %v755, 2
    %v8250 = vsel %vm2819, %v8247, %v8249
    %v8251 = vrot.slane %v807, 2
    %v8252 = vrot.slane %v808, 2
    %v8253 = vsel %vm2819, %v8251, %v8252
    %v8254 = vrot.slane %v809, 2
    %v8255 = vsel %vm2819, %v8252, %v8254
    %v8256 = vrot.slane %v861, 2
    %v8257 = vrot.slane %v862, 2
    %v8258 = vsel %vm2819, %v8256, %v8257
    %v8259 = vrot.slane %v863, 2
    %v8260 = vsel %vm2819, %v8257, %v8259
    %v8261 = vrot.slane %v915, 2
    %v8262 = vrot.slane %v916, 2
    %v8263 = vsel %vm2819, %v8261, %v8262
    %v8264 = vrot.slane %v917, 2
    %v8265 = vsel %vm2819, %v8262, %v8264
    %v8266 = vrot.slane %v969, 2
    %v8267 = vrot.slane %v970, 2
    %v8268 = vsel %vm2819, %v8266, %v8267
    %v8269 = vrot.slane %v971, 2
    %v8270 = vsel %vm2819, %v8267, %v8269
    %v8271 = vrot.slane %v1023, 2
    %v8272 = vrot.slane %v1024, 2
    %v8273 = vsel %vm2819, %v8271, %v8272
    %v8274 = vrot.slane %v1025, 2
    %v8275 = vsel %vm2819, %v8272, %v8274
    %8276 = vrot.lane.b32.xlu0 %v2832, 32
    %v8277 = vpop.permute.xlu0 %8276
    %8278 = vrot.lane.b32.xlu0 %v2834, 32
    %v8279 = vpop.permute.xlu0 %8278
    %8280 = vrot.lane.b32.xlu0 %v2837, 32
    %v8281 = vpop.permute.xlu0 %8280
    %8282 = vrot.lane.b32.xlu0 %v2839, 32
    %v8283 = vpop.permute.xlu0 %8282
    %8284 = vrot.lane.b32.xlu0 %v2842, 32
    %v8285 = vpop.permute.xlu0 %8284
    %8286 = vrot.lane.b32.xlu0 %v2844, 32
    %v8287 = vpop.permute.xlu0 %8286
    %8288 = vrot.lane.b32.xlu0 %v2847, 32
    %v8289 = vpop.permute.xlu0 %8288
    %8290 = vrot.lane.b32.xlu0 %v2849, 32
    %v8291 = vpop.permute.xlu0 %8290
    %8292 = vrot.lane.b32.xlu0 %v2852, 32
    %v8293 = vpop.permute.xlu0 %8292
    %8294 = vrot.lane.b32.xlu0 %v2854, 32
    %v8295 = vpop.permute.xlu0 %8294
    %8296 = vrot.lane.b32.xlu0 %v2857, 32
    %v8297 = vpop.permute.xlu0 %8296
    %8298 = vrot.lane.b32.xlu0 %v2859, 32
    %v8299 = vpop.permute.xlu0 %8298
    %8300 = vrot.lane.b32.xlu0 %v2862, 32
    %v8301 = vpop.permute.xlu0 %8300
    %8302 = vrot.lane.b32.xlu0 %v2864, 32
    %v8303 = vpop.permute.xlu0 %8302
    %8304 = vrot.lane.b32.xlu0 %v2867, 32
    %v8305 = vpop.permute.xlu0 %8304
    %8306 = vrot.lane.b32.xlu0 %v2869, 32
    %v8307 = vpop.permute.xlu0 %8306
    %8308 = vrot.lane.b32.xlu0 %v2872, 32
    %v8309 = vpop.permute.xlu0 %8308
    %8310 = vrot.lane.b32.xlu0 %v2874, 32
    %v8311 = vpop.permute.xlu0 %8310
    %8312 = vrot.lane.b32.xlu0 %v2877, 32
    %v8313 = vpop.permute.xlu0 %8312
    %8314 = vrot.lane.b32.xlu0 %v2879, 32
    %v8315 = vpop.permute.xlu0 %8314
    %8316 = vrot.lane.b32.xlu0 %v2882, 32
    %v8317 = vpop.permute.xlu0 %8316
    %8318 = vrot.lane.b32.xlu0 %v2884, 32
    %v8319 = vpop.permute.xlu0 %8318
    %8320 = vrot.lane.b32.xlu0 %v2887, 32
    %v8321 = vpop.permute.xlu0 %8320
    %8322 = vrot.lane.b32.xlu0 %v2889, 32
    %v8323 = vpop.permute.xlu0 %8322
    %8324 = vrot.lane.b32.xlu0 %v2892, 32
    %v8325 = vpop.permute.xlu0 %8324
    %8326 = vrot.lane.b32.xlu0 %v2894, 32
    %v8327 = vpop.permute.xlu0 %8326
    %8328 = vrot.lane.b32.xlu0 %v2897, 32
    %v8329 = vpop.permute.xlu0 %8328
    %8330 = vrot.lane.b32.xlu0 %v2899, 32
    %v8331 = vpop.permute.xlu0 %8330
    %8332 = vrot.lane.b32.xlu0 %v5830, 32
    %v8333 = vpop.permute.xlu0 %8332
    %8334 = vrot.lane.b32.xlu0 %v5832, 32
    %v8335 = vpop.permute.xlu0 %8334
    %8336 = vrot.lane.b32.xlu0 %v8238, 32
    %v8337 = vpop.permute.xlu0 %8336
    %8338 = vrot.lane.b32.xlu0 %v8240, 32
    %v8339 = vpop.permute.xlu0 %8338
    %8340 = vrot.lane.b32.xlu0 %v2912, 32
    %v8341 = vpop.permute.xlu0 %8340
    %8342 = vrot.lane.b32.xlu0 %v2914, 32
    %v8343 = vpop.permute.xlu0 %8342
    %8344 = vrot.lane.b32.xlu0 %v2917, 32
    %v8345 = vpop.permute.xlu0 %8344
    %8346 = vrot.lane.b32.xlu0 %v2919, 32
    %v8347 = vpop.permute.xlu0 %8346
    %8348 = vrot.lane.b32.xlu0 %v2922, 32
    %v8349 = vpop.permute.xlu0 %8348
    %8350 = vrot.lane.b32.xlu0 %v2924, 32
    %v8351 = vpop.permute.xlu0 %8350
    %8352 = vrot.lane.b32.xlu0 %v2927, 32
    %v8353 = vpop.permute.xlu0 %8352
    %8354 = vrot.lane.b32.xlu0 %v2929, 32
    %v8355 = vpop.permute.xlu0 %8354
    %8356 = vrot.lane.b32.xlu0 %v2932, 32
    %v8357 = vpop.permute.xlu0 %8356
    %8358 = vrot.lane.b32.xlu0 %v2934, 32
    %v8359 = vpop.permute.xlu0 %8358
    %8360 = vrot.lane.b32.xlu0 %v2937, 32
    %v8361 = vpop.permute.xlu0 %8360
    %8362 = vrot.lane.b32.xlu0 %v2939, 32
    %v8363 = vpop.permute.xlu0 %8362
    %8364 = vrot.lane.b32.xlu0 %v2942, 32
    %v8365 = vpop.permute.xlu0 %8364
    %8366 = vrot.lane.b32.xlu0 %v2944, 32
    %v8367 = vpop.permute.xlu0 %8366
    %8368 = vrot.lane.b32.xlu0 %v2947, 32
    %v8369 = vpop.permute.xlu0 %8368
    %8370 = vrot.lane.b32.xlu0 %v2949, 32
    %v8371 = vpop.permute.xlu0 %8370
    %8372 = vrot.lane.b32.xlu0 %v2952, 32
    %v8373 = vpop.permute.xlu0 %8372
    %8374 = vrot.lane.b32.xlu0 %v2954, 32
    %v8375 = vpop.permute.xlu0 %8374
    %8376 = vrot.lane.b32.xlu0 %v2957, 32
    %v8377 = vpop.permute.xlu0 %8376
    %8378 = vrot.lane.b32.xlu0 %v2959, 32
    %v8379 = vpop.permute.xlu0 %8378
    %8380 = vrot.lane.b32.xlu0 %v2962, 32
    %v8381 = vpop.permute.xlu0 %8380
    %8382 = vrot.lane.b32.xlu0 %v2964, 32
    %v8383 = vpop.permute.xlu0 %8382
    %8384 = vrot.lane.b32.xlu0 %v2967, 32
    %v8385 = vpop.permute.xlu0 %8384
    %8386 = vrot.lane.b32.xlu0 %v2969, 32
    %v8387 = vpop.permute.xlu0 %8386
    %8388 = vrot.lane.b32.xlu0 %v2972, 32
    %v8389 = vpop.permute.xlu0 %8388
    %8390 = vrot.lane.b32.xlu0 %v2974, 32
    %v8391 = vpop.permute.xlu0 %8390
    %8392 = vrot.lane.b32.xlu0 %v2977, 32
    %v8393 = vpop.permute.xlu0 %8392
    %8394 = vrot.lane.b32.xlu0 %v2979, 32
    %v8395 = vpop.permute.xlu0 %8394
    %8396 = vrot.lane.b32.xlu0 %v5835, 32
    %v8397 = vpop.permute.xlu0 %8396
    %8398 = vrot.lane.b32.xlu0 %v5837, 32
    %v8399 = vpop.permute.xlu0 %8398
    %8400 = vrot.lane.b32.xlu0 %v8243, 32
    %v8401 = vpop.permute.xlu0 %8400
    %8402 = vrot.lane.b32.xlu0 %v8245, 32
    %v8403 = vpop.permute.xlu0 %8402
    %8404 = vrot.lane.b32.xlu0 %v2992, 32
    %v8405 = vpop.permute.xlu0 %8404
    %8406 = vrot.lane.b32.xlu0 %v2994, 32
    %v8407 = vpop.permute.xlu0 %8406
    %8408 = vrot.lane.b32.xlu0 %v2997, 32
    %v8409 = vpop.permute.xlu0 %8408
    %8410 = vrot.lane.b32.xlu0 %v2999, 32
    %v8411 = vpop.permute.xlu0 %8410
    %8412 = vrot.lane.b32.xlu0 %v3002, 32
    %v8413 = vpop.permute.xlu0 %8412
    %8414 = vrot.lane.b32.xlu0 %v3004, 32
    %v8415 = vpop.permute.xlu0 %8414
    %8416 = vrot.lane.b32.xlu0 %v3007, 32
    %v8417 = vpop.permute.xlu0 %8416
    %8418 = vrot.lane.b32.xlu0 %v3009, 32
    %v8419 = vpop.permute.xlu0 %8418
    %8420 = vrot.lane.b32.xlu0 %v3012, 32
    %v8421 = vpop.permute.xlu0 %8420
    %8422 = vrot.lane.b32.xlu0 %v3014, 32
    %v8423 = vpop.permute.xlu0 %8422
    %8424 = vrot.lane.b32.xlu0 %v3017, 32
    %v8425 = vpop.permute.xlu0 %8424
    %8426 = vrot.lane.b32.xlu0 %v3019, 32
    %v8427 = vpop.permute.xlu0 %8426
    %8428 = vrot.lane.b32.xlu0 %v3022, 32
    %v8429 = vpop.permute.xlu0 %8428
    %8430 = vrot.lane.b32.xlu0 %v3024, 32
    %v8431 = vpop.permute.xlu0 %8430
    %8432 = vrot.lane.b32.xlu0 %v3027, 32
    %v8433 = vpop.permute.xlu0 %8432
    %8434 = vrot.lane.b32.xlu0 %v3029, 32
    %v8435 = vpop.permute.xlu0 %8434
    %8436 = vrot.lane.b32.xlu0 %v3032, 32
    %v8437 = vpop.permute.xlu0 %8436
    %8438 = vrot.lane.b32.xlu0 %v3034, 32
    %v8439 = vpop.permute.xlu0 %8438
    %8440 = vrot.lane.b32.xlu0 %v3037, 32
    %v8441 = vpop.permute.xlu0 %8440
    %8442 = vrot.lane.b32.xlu0 %v3039, 32
    %v8443 = vpop.permute.xlu0 %8442
    %8444 = vrot.lane.b32.xlu0 %v3042, 32
    %v8445 = vpop.permute.xlu0 %8444
    %8446 = vrot.lane.b32.xlu0 %v3044, 32
    %v8447 = vpop.permute.xlu0 %8446
    %8448 = vrot.lane.b32.xlu0 %v3047, 32
    %v8449 = vpop.permute.xlu0 %8448
    %8450 = vrot.lane.b32.xlu0 %v3049, 32
    %v8451 = vpop.permute.xlu0 %8450
    %8452 = vrot.lane.b32.xlu0 %v3052, 32
    %v8453 = vpop.permute.xlu0 %8452
    %8454 = vrot.lane.b32.xlu0 %v3054, 32
    %v8455 = vpop.permute.xlu0 %8454
    %8456 = vrot.lane.b32.xlu0 %v3057, 32
    %v8457 = vpop.permute.xlu0 %8456
    %8458 = vrot.lane.b32.xlu0 %v3059, 32
    %v8459 = vpop.permute.xlu0 %8458
    %8460 = vrot.lane.b32.xlu0 %v5840, 32
    %v8461 = vpop.permute.xlu0 %8460
    %8462 = vrot.lane.b32.xlu0 %v5842, 32
    %v8463 = vpop.permute.xlu0 %8462
    %8464 = vrot.lane.b32.xlu0 %v8248, 32
    %v8465 = vpop.permute.xlu0 %8464
    %8466 = vrot.lane.b32.xlu0 %v8250, 32
    %v8467 = vpop.permute.xlu0 %8466
    %8468 = vrot.lane.b32.xlu0 %v3072, 32
    %v8469 = vpop.permute.xlu0 %8468
    %8470 = vrot.lane.b32.xlu0 %v3074, 32
    %v8471 = vpop.permute.xlu0 %8470
    %8472 = vrot.lane.b32.xlu0 %v3077, 32
    %v8473 = vpop.permute.xlu0 %8472
    %8474 = vrot.lane.b32.xlu0 %v3079, 32
    %v8475 = vpop.permute.xlu0 %8474
    %8476 = vrot.lane.b32.xlu0 %v3082, 32
    %v8477 = vpop.permute.xlu0 %8476
    %8478 = vrot.lane.b32.xlu0 %v3084, 32
    %v8479 = vpop.permute.xlu0 %8478
    %8480 = vrot.lane.b32.xlu0 %v3087, 32
    %v8481 = vpop.permute.xlu0 %8480
    %8482 = vrot.lane.b32.xlu0 %v3089, 32
    %v8483 = vpop.permute.xlu0 %8482
    %8484 = vrot.lane.b32.xlu0 %v3092, 32
    %v8485 = vpop.permute.xlu0 %8484
    %8486 = vrot.lane.b32.xlu0 %v3094, 32
    %v8487 = vpop.permute.xlu0 %8486
    %8488 = vrot.lane.b32.xlu0 %v3097, 32
    %v8489 = vpop.permute.xlu0 %8488
    %8490 = vrot.lane.b32.xlu0 %v3099, 32
    %v8491 = vpop.permute.xlu0 %8490
    %8492 = vrot.lane.b32.xlu0 %v3102, 32
    %v8493 = vpop.permute.xlu0 %8492
    %8494 = vrot.lane.b32.xlu0 %v3104, 32
    %v8495 = vpop.permute.xlu0 %8494
    %8496 = vrot.lane.b32.xlu0 %v3107, 32
    %v8497 = vpop.permute.xlu0 %8496
    %8498 = vrot.lane.b32.xlu0 %v3109, 32
    %v8499 = vpop.permute.xlu0 %8498
    %8500 = vrot.lane.b32.xlu0 %v3112, 32
    %v8501 = vpop.permute.xlu0 %8500
    %8502 = vrot.lane.b32.xlu0 %v3114, 32
    %v8503 = vpop.permute.xlu0 %8502
    %8504 = vrot.lane.b32.xlu0 %v3117, 32
    %v8505 = vpop.permute.xlu0 %8504
    %8506 = vrot.lane.b32.xlu0 %v3119, 32
    %v8507 = vpop.permute.xlu0 %8506
    %8508 = vrot.lane.b32.xlu0 %v3122, 32
    %v8509 = vpop.permute.xlu0 %8508
    %8510 = vrot.lane.b32.xlu0 %v3124, 32
    %v8511 = vpop.permute.xlu0 %8510
    %8512 = vrot.lane.b32.xlu0 %v3127, 32
    %v8513 = vpop.permute.xlu0 %8512
    %8514 = vrot.lane.b32.xlu0 %v3129, 32
    %v8515 = vpop.permute.xlu0 %8514
    %8516 = vrot.lane.b32.xlu0 %v3132, 32
    %v8517 = vpop.permute.xlu0 %8516
    %8518 = vrot.lane.b32.xlu0 %v3134, 32
    %v8519 = vpop.permute.xlu0 %8518
    %8520 = vrot.lane.b32.xlu0 %v3137, 32
    %v8521 = vpop.permute.xlu0 %8520
    %8522 = vrot.lane.b32.xlu0 %v3139, 32
    %v8523 = vpop.permute.xlu0 %8522
    %8524 = vrot.lane.b32.xlu0 %v5845, 32
    %v8525 = vpop.permute.xlu0 %8524
    %8526 = vrot.lane.b32.xlu0 %v5847, 32
    %v8527 = vpop.permute.xlu0 %8526
    %8528 = vrot.lane.b32.xlu0 %v8253, 32
    %v8529 = vpop.permute.xlu0 %8528
    %8530 = vrot.lane.b32.xlu0 %v8255, 32
    %v8531 = vpop.permute.xlu0 %8530
    %8532 = vrot.lane.b32.xlu0 %v3152, 32
    %v8533 = vpop.permute.xlu0 %8532
    %8534 = vrot.lane.b32.xlu0 %v3154, 32
    %v8535 = vpop.permute.xlu0 %8534
    %8536 = vrot.lane.b32.xlu0 %v3157, 32
    %v8537 = vpop.permute.xlu0 %8536
    %8538 = vrot.lane.b32.xlu0 %v3159, 32
    %v8539 = vpop.permute.xlu0 %8538
    %8540 = vrot.lane.b32.xlu0 %v3162, 32
    %v8541 = vpop.permute.xlu0 %8540
    %8542 = vrot.lane.b32.xlu0 %v3164, 32
    %v8543 = vpop.permute.xlu0 %8542
    %8544 = vrot.lane.b32.xlu0 %v3167, 32
    %v8545 = vpop.permute.xlu0 %8544
    %8546 = vrot.lane.b32.xlu0 %v3169, 32
    %v8547 = vpop.permute.xlu0 %8546
    %8548 = vrot.lane.b32.xlu0 %v3172, 32
    %v8549 = vpop.permute.xlu0 %8548
    %8550 = vrot.lane.b32.xlu0 %v3174, 32
    %v8551 = vpop.permute.xlu0 %8550
    %8552 = vrot.lane.b32.xlu0 %v3177, 32
    %v8553 = vpop.permute.xlu0 %8552
    %8554 = vrot.lane.b32.xlu0 %v3179, 32
    %v8555 = vpop.permute.xlu0 %8554
    %8556 = vrot.lane.b32.xlu0 %v3182, 32
    %v8557 = vpop.permute.xlu0 %8556
    %8558 = vrot.lane.b32.xlu0 %v3184, 32
    %v8559 = vpop.permute.xlu0 %8558
    %8560 = vrot.lane.b32.xlu0 %v3187, 32
    %v8561 = vpop.permute.xlu0 %8560
    %8562 = vrot.lane.b32.xlu0 %v3189, 32
    %v8563 = vpop.permute.xlu0 %8562
    %8564 = vrot.lane.b32.xlu0 %v3192, 32
    %v8565 = vpop.permute.xlu0 %8564
    %8566 = vrot.lane.b32.xlu0 %v3194, 32
    %v8567 = vpop.permute.xlu0 %8566
    %8568 = vrot.lane.b32.xlu0 %v3197, 32
    %v8569 = vpop.permute.xlu0 %8568
    %8570 = vrot.lane.b32.xlu0 %v3199, 32
    %v8571 = vpop.permute.xlu0 %8570
    %8572 = vrot.lane.b32.xlu0 %v3202, 32
    %v8573 = vpop.permute.xlu0 %8572
    %8574 = vrot.lane.b32.xlu0 %v3204, 32
    %v8575 = vpop.permute.xlu0 %8574
    %8576 = vrot.lane.b32.xlu0 %v3207, 32
    %v8577 = vpop.permute.xlu0 %8576
    %8578 = vrot.lane.b32.xlu0 %v3209, 32
    %v8579 = vpop.permute.xlu0 %8578
    %8580 = vrot.lane.b32.xlu0 %v3212, 32
    %v8581 = vpop.permute.xlu0 %8580
    %8582 = vrot.lane.b32.xlu0 %v3214, 32
    %v8583 = vpop.permute.xlu0 %8582
    %8584 = vrot.lane.b32.xlu0 %v3217, 32
    %v8585 = vpop.permute.xlu0 %8584
    %8586 = vrot.lane.b32.xlu0 %v3219, 32
    %v8587 = vpop.permute.xlu0 %8586
    %8588 = vrot.lane.b32.xlu0 %v5850, 32
    %v8589 = vpop.permute.xlu0 %8588
    %8590 = vrot.lane.b32.xlu0 %v5852, 32
    %v8591 = vpop.permute.xlu0 %8590
    %8592 = vrot.lane.b32.xlu0 %v8258, 32
    %v8593 = vpop.permute.xlu0 %8592
    %8594 = vrot.lane.b32.xlu0 %v8260, 32
    %v8595 = vpop.permute.xlu0 %8594
    %8596 = vrot.lane.b32.xlu0 %v3232, 32
    %v8597 = vpop.permute.xlu0 %8596
    %8598 = vrot.lane.b32.xlu0 %v3234, 32
    %v8599 = vpop.permute.xlu0 %8598
    %8600 = vrot.lane.b32.xlu0 %v3237, 32
    %v8601 = vpop.permute.xlu0 %8600
    %8602 = vrot.lane.b32.xlu0 %v3239, 32
    %v8603 = vpop.permute.xlu0 %8602
    %8604 = vrot.lane.b32.xlu0 %v3242, 32
    %v8605 = vpop.permute.xlu0 %8604
    %8606 = vrot.lane.b32.xlu0 %v3244, 32
    %v8607 = vpop.permute.xlu0 %8606
    %8608 = vrot.lane.b32.xlu0 %v3247, 32
    %v8609 = vpop.permute.xlu0 %8608
    %8610 = vrot.lane.b32.xlu0 %v3249, 32
    %v8611 = vpop.permute.xlu0 %8610
    %8612 = vrot.lane.b32.xlu0 %v3252, 32
    %v8613 = vpop.permute.xlu0 %8612
    %8614 = vrot.lane.b32.xlu0 %v3254, 32
    %v8615 = vpop.permute.xlu0 %8614
    %8616 = vrot.lane.b32.xlu0 %v3257, 32
    %v8617 = vpop.permute.xlu0 %8616
    %8618 = vrot.lane.b32.xlu0 %v3259, 32
    %v8619 = vpop.permute.xlu0 %8618
    %8620 = vrot.lane.b32.xlu0 %v3262, 32
    %v8621 = vpop.permute.xlu0 %8620
    %8622 = vrot.lane.b32.xlu0 %v3264, 32
    %v8623 = vpop.permute.xlu0 %8622
    %8624 = vrot.lane.b32.xlu0 %v3267, 32
    %v8625 = vpop.permute.xlu0 %8624
    %8626 = vrot.lane.b32.xlu0 %v3269, 32
    %v8627 = vpop.permute.xlu0 %8626
    %8628 = vrot.lane.b32.xlu0 %v3272, 32
    %v8629 = vpop.permute.xlu0 %8628
    %8630 = vrot.lane.b32.xlu0 %v3274, 32
    %v8631 = vpop.permute.xlu0 %8630
    %8632 = vrot.lane.b32.xlu0 %v3277, 32
    %v8633 = vpop.permute.xlu0 %8632
    %8634 = vrot.lane.b32.xlu0 %v3279, 32
    %v8635 = vpop.permute.xlu0 %8634
    %8636 = vrot.lane.b32.xlu0 %v3282, 32
    %v8637 = vpop.permute.xlu0 %8636
    %8638 = vrot.lane.b32.xlu0 %v3284, 32
    %v8639 = vpop.permute.xlu0 %8638
    %8640 = vrot.lane.b32.xlu0 %v3287, 32
    %v8641 = vpop.permute.xlu0 %8640
    %8642 = vrot.lane.b32.xlu0 %v3289, 32
    %v8643 = vpop.permute.xlu0 %8642
    %8644 = vrot.lane.b32.xlu0 %v3292, 32
    %v8645 = vpop.permute.xlu0 %8644
    %8646 = vrot.lane.b32.xlu0 %v3294, 32
    %v8647 = vpop.permute.xlu0 %8646
    %8648 = vrot.lane.b32.xlu0 %v3297, 32
    %v8649 = vpop.permute.xlu0 %8648
    %8650 = vrot.lane.b32.xlu0 %v3299, 32
    %v8651 = vpop.permute.xlu0 %8650
    %8652 = vrot.lane.b32.xlu0 %v5855, 32
    %v8653 = vpop.permute.xlu0 %8652
    %8654 = vrot.lane.b32.xlu0 %v5857, 32
    %v8655 = vpop.permute.xlu0 %8654
    %8656 = vrot.lane.b32.xlu0 %v8263, 32
    %v8657 = vpop.permute.xlu0 %8656
    %8658 = vrot.lane.b32.xlu0 %v8265, 32
    %v8659 = vpop.permute.xlu0 %8658
    %8660 = vrot.lane.b32.xlu0 %v3312, 32
    %v8661 = vpop.permute.xlu0 %8660
    %8662 = vrot.lane.b32.xlu0 %v3314, 32
    %v8663 = vpop.permute.xlu0 %8662
    %8664 = vrot.lane.b32.xlu0 %v3317, 32
    %v8665 = vpop.permute.xlu0 %8664
    %8666 = vrot.lane.b32.xlu0 %v3319, 32
    %v8667 = vpop.permute.xlu0 %8666
    %8668 = vrot.lane.b32.xlu0 %v3322, 32
    %v8669 = vpop.permute.xlu0 %8668
    %8670 = vrot.lane.b32.xlu0 %v3324, 32
    %v8671 = vpop.permute.xlu0 %8670
    %8672 = vrot.lane.b32.xlu0 %v3327, 32
    %v8673 = vpop.permute.xlu0 %8672
    %8674 = vrot.lane.b32.xlu0 %v3329, 32
    %v8675 = vpop.permute.xlu0 %8674
    %8676 = vrot.lane.b32.xlu0 %v3332, 32
    %v8677 = vpop.permute.xlu0 %8676
    %8678 = vrot.lane.b32.xlu0 %v3334, 32
    %v8679 = vpop.permute.xlu0 %8678
    %8680 = vrot.lane.b32.xlu0 %v3337, 32
    %v8681 = vpop.permute.xlu0 %8680
    %8682 = vrot.lane.b32.xlu0 %v3339, 32
    %v8683 = vpop.permute.xlu0 %8682
    %8684 = vrot.lane.b32.xlu0 %v3342, 32
    %v8685 = vpop.permute.xlu0 %8684
    %8686 = vrot.lane.b32.xlu0 %v3344, 32
    %v8687 = vpop.permute.xlu0 %8686
    %8688 = vrot.lane.b32.xlu0 %v3347, 32
    %v8689 = vpop.permute.xlu0 %8688
    %8690 = vrot.lane.b32.xlu0 %v3349, 32
    %v8691 = vpop.permute.xlu0 %8690
    %8692 = vrot.lane.b32.xlu0 %v3352, 32
    %v8693 = vpop.permute.xlu0 %8692
    %8694 = vrot.lane.b32.xlu0 %v3354, 32
    %v8695 = vpop.permute.xlu0 %8694
    %8696 = vrot.lane.b32.xlu0 %v3357, 32
    %v8697 = vpop.permute.xlu0 %8696
    %8698 = vrot.lane.b32.xlu0 %v3359, 32
    %v8699 = vpop.permute.xlu0 %8698
    %8700 = vrot.lane.b32.xlu0 %v3362, 32
    %v8701 = vpop.permute.xlu0 %8700
    %8702 = vrot.lane.b32.xlu0 %v3364, 32
    %v8703 = vpop.permute.xlu0 %8702
    %8704 = vrot.lane.b32.xlu0 %v3367, 32
    %v8705 = vpop.permute.xlu0 %8704
    %8706 = vrot.lane.b32.xlu0 %v3369, 32
    %v8707 = vpop.permute.xlu0 %8706
    %8708 = vrot.lane.b32.xlu0 %v3372, 32
    %v8709 = vpop.permute.xlu0 %8708
    %8710 = vrot.lane.b32.xlu0 %v3374, 32
    %v8711 = vpop.permute.xlu0 %8710
    %8712 = vrot.lane.b32.xlu0 %v3377, 32
    %v8713 = vpop.permute.xlu0 %8712
    %8714 = vrot.lane.b32.xlu0 %v3379, 32
    %v8715 = vpop.permute.xlu0 %8714
    %8716 = vrot.lane.b32.xlu0 %v5860, 32
    %v8717 = vpop.permute.xlu0 %8716
    %8718 = vrot.lane.b32.xlu0 %v5862, 32
    %v8719 = vpop.permute.xlu0 %8718
    %8720 = vrot.lane.b32.xlu0 %v8268, 32
    %v8721 = vpop.permute.xlu0 %8720
    %8722 = vrot.lane.b32.xlu0 %v8270, 32
    %v8723 = vpop.permute.xlu0 %8722
    %8724 = vrot.lane.b32.xlu0 %v3392, 32
    %v8725 = vpop.permute.xlu0 %8724
    %8726 = vrot.lane.b32.xlu0 %v3394, 32
    %v8727 = vpop.permute.xlu0 %8726
    %8728 = vrot.lane.b32.xlu0 %v3397, 32
    %v8729 = vpop.permute.xlu0 %8728
    %8730 = vrot.lane.b32.xlu0 %v3399, 32
    %v8731 = vpop.permute.xlu0 %8730
    %8732 = vrot.lane.b32.xlu0 %v3402, 32
    %v8733 = vpop.permute.xlu0 %8732
    %8734 = vrot.lane.b32.xlu0 %v3404, 32
    %v8735 = vpop.permute.xlu0 %8734
    %8736 = vrot.lane.b32.xlu0 %v3407, 32
    %v8737 = vpop.permute.xlu0 %8736
    %8738 = vrot.lane.b32.xlu0 %v3409, 32
    %v8739 = vpop.permute.xlu0 %8738
    %8740 = vrot.lane.b32.xlu0 %v3412, 32
    %v8741 = vpop.permute.xlu0 %8740
    %8742 = vrot.lane.b32.xlu0 %v3414, 32
    %v8743 = vpop.permute.xlu0 %8742
    %8744 = vrot.lane.b32.xlu0 %v3417, 32
    %v8745 = vpop.permute.xlu0 %8744
    %8746 = vrot.lane.b32.xlu0 %v3419, 32
    %v8747 = vpop.permute.xlu0 %8746
    %8748 = vrot.lane.b32.xlu0 %v3422, 32
    %v8749 = vpop.permute.xlu0 %8748
    %8750 = vrot.lane.b32.xlu0 %v3424, 32
    %v8751 = vpop.permute.xlu0 %8750
    %8752 = vrot.lane.b32.xlu0 %v3427, 32
    %v8753 = vpop.permute.xlu0 %8752
    %8754 = vrot.lane.b32.xlu0 %v3429, 32
    %v8755 = vpop.permute.xlu0 %8754
    %8756 = vrot.lane.b32.xlu0 %v3432, 32
    %v8757 = vpop.permute.xlu0 %8756
    %8758 = vrot.lane.b32.xlu0 %v3434, 32
    %v8759 = vpop.permute.xlu0 %8758
    %8760 = vrot.lane.b32.xlu0 %v3437, 32
    %v8761 = vpop.permute.xlu0 %8760
    %8762 = vrot.lane.b32.xlu0 %v3439, 32
    %v8763 = vpop.permute.xlu0 %8762
    %8764 = vrot.lane.b32.xlu0 %v3442, 32
    %v8765 = vpop.permute.xlu0 %8764
    %8766 = vrot.lane.b32.xlu0 %v3444, 32
    %v8767 = vpop.permute.xlu0 %8766
    %8768 = vrot.lane.b32.xlu0 %v3447, 32
    %v8769 = vpop.permute.xlu0 %8768
    %8770 = vrot.lane.b32.xlu0 %v3449, 32
    %v8771 = vpop.permute.xlu0 %8770
    %8772 = vrot.lane.b32.xlu0 %v3452, 32
    %v8773 = vpop.permute.xlu0 %8772
    %8774 = vrot.lane.b32.xlu0 %v3454, 32
    %v8775 = vpop.permute.xlu0 %8774
    %8776 = vrot.lane.b32.xlu0 %v3457, 32
    %v8777 = vpop.permute.xlu0 %8776
    %8778 = vrot.lane.b32.xlu0 %v3459, 32
    %v8779 = vpop.permute.xlu0 %8778
    %8780 = vrot.lane.b32.xlu0 %v5865, 32
    %v8781 = vpop.permute.xlu0 %8780
    %8782 = vrot.lane.b32.xlu0 %v5867, 32
    %v8783 = vpop.permute.xlu0 %8782
    %8784 = vrot.lane.b32.xlu0 %v8273, 32
    %v8785 = vpop.permute.xlu0 %8784
    %8786 = vrot.lane.b32.xlu0 %v8275, 32
    %v8787 = vpop.permute.xlu0 %8786
    %vm9044 = vcmask 31744
    %v9045 = vsel %vm9044, %v594, %v2052
    %v9046 = vsel %vm9044, %v595, %v2054
    %v9047 = vsel %vm9044, %v597, %v2056
    %v9048 = vsel %vm9044, %v598, %v2058
    %v9049 = vsel %vm9044, %v600, %v2060
    %v9050 = vsel %vm9044, %v601, %v2062
    %v9051 = vsel %vm9044, %v603, %v2064
    %v9052 = vsel %vm9044, %v604, %v2066
    %v9053 = vsel %vm9044, %v606, %v2068
    %v9054 = vsel %vm9044, %v607, %v2070
    %v9055 = vsel %vm9044, %v609, %v2072
    %v9056 = vsel %vm9044, %v610, %v2074
    %v9057 = vsel %vm9044, %v612, %v2076
    %v9058 = vsel %vm9044, %v613, %v2078
    %v9059 = vsel %vm9044, %v615, %v2080
    %v9060 = vsel %vm9044, %v616, %v2082
    %v9061 = vsel %vm9044, %v618, %v2084
    %v9062 = vsel %vm9044, %v619, %v2086
    %v9063 = vsel %vm9044, %v621, %v2088
    %v9064 = vsel %vm9044, %v622, %v2090
    %v9065 = vsel %vm9044, %v624, %v2092
    %v9066 = vsel %vm9044, %v625, %v2094
    %v9067 = vsel %vm9044, %v627, %v2096
    %v9068 = vsel %vm9044, %v628, %v2098
    %v9069 = vsel %vm9044, %v630, %v2100
    %v9070 = vsel %vm9044, %v631, %v2102
    %v9071 = vsel %vm9044, %v633, %v2104
    %v9072 = vsel %vm9044, %v634, %v2106
    %v9073 = vsel %vm9044, %v636, %v2108
    %v9074 = vsel %vm9044, %v637, %v2110
    %v9075 = vsel %vm9044, %v639, %v2112
    %v9076 = vsel %vm9044, %v640, %v2114
    %v9077 = vsel %vm9044, %v648, %v2116
    %v9078 = vsel %vm9044, %v649, %v2118
    %v9079 = vsel %vm9044, %v651, %v2120
    %v9080 = vsel %vm9044, %v652, %v2122
    %v9081 = vsel %vm9044, %v654, %v2124
    %v9082 = vsel %vm9044, %v655, %v2126
    %v9083 = vsel %vm9044, %v657, %v2128
    %v9084 = vsel %vm9044, %v658, %v2130
    %v9085 = vsel %vm9044, %v660, %v2132
    %v9086 = vsel %vm9044, %v661, %v2134
    %v9087 = vsel %vm9044, %v663, %v2136
    %v9088 = vsel %vm9044, %v664, %v2138
    %v9089 = vsel %vm9044, %v666, %v2140
    %v9090 = vsel %vm9044, %v667, %v2142
    %v9091 = vsel %vm9044, %v669, %v2144
    %v9092 = vsel %vm9044, %v670, %v2146
    %v9093 = vsel %vm9044, %v672, %v2148
    %v9094 = vsel %vm9044, %v673, %v2150
    %v9095 = vsel %vm9044, %v675, %v2152
    %v9096 = vsel %vm9044, %v676, %v2154
    %v9097 = vsel %vm9044, %v678, %v2156
    %v9098 = vsel %vm9044, %v679, %v2158
    %v9099 = vsel %vm9044, %v681, %v2160
    %v9100 = vsel %vm9044, %v682, %v2162
    %v9101 = vsel %vm9044, %v684, %v2164
    %v9102 = vsel %vm9044, %v685, %v2166
    %v9103 = vsel %vm9044, %v687, %v2168
    %v9104 = vsel %vm9044, %v688, %v2170
    %v9105 = vsel %vm9044, %v690, %v2172
    %v9106 = vsel %vm9044, %v691, %v2174
    %v9107 = vsel %vm9044, %v693, %v2176
    %v9108 = vsel %vm9044, %v694, %v2178
    %v9109 = vsel %vm9044, %v702, %v2180
    %v9110 = vsel %vm9044, %v703, %v2182
    %v9111 = vsel %vm9044, %v705, %v2184
    %v9112 = vsel %vm9044, %v706, %v2186
    %v9113 = vsel %vm9044, %v708, %v2188
    %v9114 = vsel %vm9044, %v709, %v2190
    %v9115 = vsel %vm9044, %v711, %v2192
    %v9116 = vsel %vm9044, %v712, %v2194
    %v9117 = vsel %vm9044, %v714, %v2196
    %v9118 = vsel %vm9044, %v715, %v2198
    %v9119 = vsel %vm9044, %v717, %v2200
    %v9120 = vsel %vm9044, %v718, %v2202
    %v9121 = vsel %vm9044, %v720, %v2204
    %v9122 = vsel %vm9044, %v721, %v2206
    %v9123 = vsel %vm9044, %v723, %v2208
    %v9124 = vsel %vm9044, %v724, %v2210
    %v9125 = vsel %vm9044, %v726, %v2212
    %v9126 = vsel %vm9044, %v727, %v2214
    %v9127 = vsel %vm9044, %v729, %v2216
    %v9128 = vsel %vm9044, %v730, %v2218
    %v9129 = vsel %vm9044, %v732, %v2220
    %v9130 = vsel %vm9044, %v733, %v2222
    %v9131 = vsel %vm9044, %v735, %v2224
    %v9132 = vsel %vm9044, %v736, %v2226
    %v9133 = vsel %vm9044, %v738, %v2228
    %v9134 = vsel %vm9044, %v739, %v2230
    %v9135 = vsel %vm9044, %v741, %v2232
    %v9136 = vsel %vm9044, %v742, %v2234
    %v9137 = vsel %vm9044, %v744, %v2236
    %v9138 = vsel %vm9044, %v745, %v2238
    %v9139 = vsel %vm9044, %v747, %v2240
    %v9140 = vsel %vm9044, %v748, %v2242
    %v9141 = vsel %vm9044, %v756, %v2244
    %v9142 = vsel %vm9044, %v757, %v2246
    %v9143 = vsel %vm9044, %v759, %v2248
    %v9144 = vsel %vm9044, %v760, %v2250
    %v9145 = vsel %vm9044, %v762, %v2252
    %v9146 = vsel %vm9044, %v763, %v2254
    %v9147 = vsel %vm9044, %v765, %v2256
    %v9148 = vsel %vm9044, %v766, %v2258
    %v9149 = vsel %vm9044, %v768, %v2260
    %v9150 = vsel %vm9044, %v769, %v2262
    %v9151 = vsel %vm9044, %v771, %v2264
    %v9152 = vsel %vm9044, %v772, %v2266
    %v9153 = vsel %vm9044, %v774, %v2268
    %v9154 = vsel %vm9044, %v775, %v2270
    %v9155 = vsel %vm9044, %v777, %v2272
    %v9156 = vsel %vm9044, %v778, %v2274
    %v9157 = vsel %vm9044, %v780, %v2276
    %v9158 = vsel %vm9044, %v781, %v2278
    %v9159 = vsel %vm9044, %v783, %v2280
    %v9160 = vsel %vm9044, %v784, %v2282
    %v9161 = vsel %vm9044, %v786, %v2284
    %v9162 = vsel %vm9044, %v787, %v2286
    %v9163 = vsel %vm9044, %v789, %v2288
    %v9164 = vsel %vm9044, %v790, %v2290
    %v9165 = vsel %vm9044, %v792, %v2292
    %v9166 = vsel %vm9044, %v793, %v2294
    %v9167 = vsel %vm9044, %v795, %v2296
    %v9168 = vsel %vm9044, %v796, %v2298
    %v9169 = vsel %vm9044, %v798, %v2300
    %v9170 = vsel %vm9044, %v799, %v2302
    %v9171 = vsel %vm9044, %v801, %v2304
    %v9172 = vsel %vm9044, %v802, %v2306
    %v9173 = vsel %vm9044, %v810, %v2308
    %v9174 = vsel %vm9044, %v811, %v2310
    %v9175 = vsel %vm9044, %v813, %v2312
    %v9176 = vsel %vm9044, %v814, %v2314
    %v9177 = vsel %vm9044, %v816, %v2316
    %v9178 = vsel %vm9044, %v817, %v2318
    %v9179 = vsel %vm9044, %v819, %v2320
    %v9180 = vsel %vm9044, %v820, %v2322
    %v9181 = vsel %vm9044, %v822, %v2324
    %v9182 = vsel %vm9044, %v823, %v2326
    %v9183 = vsel %vm9044, %v825, %v2328
    %v9184 = vsel %vm9044, %v826, %v2330
    %v9185 = vsel %vm9044, %v828, %v2332
    %v9186 = vsel %vm9044, %v829, %v2334
    %v9187 = vsel %vm9044, %v831, %v2336
    %v9188 = vsel %vm9044, %v832, %v2338
    %v9189 = vsel %vm9044, %v834, %v2340
    %v9190 = vsel %vm9044, %v835, %v2342
    %v9191 = vsel %vm9044, %v837, %v2344
    %v9192 = vsel %vm9044, %v838, %v2346
    %v9193 = vsel %vm9044, %v840, %v2348
    %v9194 = vsel %vm9044, %v841, %v2350
    %v9195 = vsel %vm9044, %v843, %v2352
    %v9196 = vsel %vm9044, %v844, %v2354
    %v9197 = vsel %vm9044, %v846, %v2356
    %v9198 = vsel %vm9044, %v847, %v2358
    %v9199 = vsel %vm9044, %v849, %v2360
    %v9200 = vsel %vm9044, %v850, %v2362
    %v9201 = vsel %vm9044, %v852, %v2364
    %v9202 = vsel %vm9044, %v853, %v2366
    %v9203 = vsel %vm9044, %v855, %v2368
    %v9204 = vsel %vm9044, %v856, %v2370
    %v9205 = vsel %vm9044, %v864, %v2372
    %v9206 = vsel %vm9044, %v865, %v2374
    %v9207 = vsel %vm9044, %v867, %v2376
    %v9208 = vsel %vm9044, %v868, %v2378
    %v9209 = vsel %vm9044, %v870, %v2380
    %v9210 = vsel %vm9044, %v871, %v2382
    %v9211 = vsel %vm9044, %v873, %v2384
    %v9212 = vsel %vm9044, %v874, %v2386
    %v9213 = vsel %vm9044, %v876, %v2388
    %v9214 = vsel %vm9044, %v877, %v2390
    %v9215 = vsel %vm9044, %v879, %v2392
    %v9216 = vsel %vm9044, %v880, %v2394
    %v9217 = vsel %vm9044, %v882, %v2396
    %v9218 = vsel %vm9044, %v883, %v2398
    %v9219 = vsel %vm9044, %v885, %v2400
    %v9220 = vsel %vm9044, %v886, %v2402
    %v9221 = vsel %vm9044, %v888, %v2404
    %v9222 = vsel %vm9044, %v889, %v2406
    %v9223 = vsel %vm9044, %v891, %v2408
    %v9224 = vsel %vm9044, %v892, %v2410
    %v9225 = vsel %vm9044, %v894, %v2412
    %v9226 = vsel %vm9044, %v895, %v2414
    %v9227 = vsel %vm9044, %v897, %v2416
    %v9228 = vsel %vm9044, %v898, %v2418
    %v9229 = vsel %vm9044, %v900, %v2420
    %v9230 = vsel %vm9044, %v901, %v2422
    %v9231 = vsel %vm9044, %v903, %v2424
    %v9232 = vsel %vm9044, %v904, %v2426
    %v9233 = vsel %vm9044, %v906, %v2428
    %v9234 = vsel %vm9044, %v907, %v2430
    %v9235 = vsel %vm9044, %v909, %v2432
    %v9236 = vsel %vm9044, %v910, %v2434
    %v9237 = vsel %vm9044, %v918, %v2436
    %v9238 = vsel %vm9044, %v919, %v2438
    %v9239 = vsel %vm9044, %v921, %v2440
    %v9240 = vsel %vm9044, %v922, %v2442
    %v9241 = vsel %vm9044, %v924, %v2444
    %v9242 = vsel %vm9044, %v925, %v2446
    %v9243 = vsel %vm9044, %v927, %v2448
    %v9244 = vsel %vm9044, %v928, %v2450
    %v9245 = vsel %vm9044, %v930, %v2452
    %v9246 = vsel %vm9044, %v931, %v2454
    %v9247 = vsel %vm9044, %v933, %v2456
    %v9248 = vsel %vm9044, %v934, %v2458
    %v9249 = vsel %vm9044, %v936, %v2460
    %v9250 = vsel %vm9044, %v937, %v2462
    %v9251 = vsel %vm9044, %v939, %v2464
    %v9252 = vsel %vm9044, %v940, %v2466
    %v9253 = vsel %vm9044, %v942, %v2468
    %v9254 = vsel %vm9044, %v943, %v2470
    %v9255 = vsel %vm9044, %v945, %v2472
    %v9256 = vsel %vm9044, %v946, %v2474
    %v9257 = vsel %vm9044, %v948, %v2476
    %v9258 = vsel %vm9044, %v949, %v2478
    %v9259 = vsel %vm9044, %v951, %v2480
    %v9260 = vsel %vm9044, %v952, %v2482
    %v9261 = vsel %vm9044, %v954, %v2484
    %v9262 = vsel %vm9044, %v955, %v2486
    %v9263 = vsel %vm9044, %v957, %v2488
    %v9264 = vsel %vm9044, %v958, %v2490
    %v9265 = vsel %vm9044, %v960, %v2492
    %v9266 = vsel %vm9044, %v961, %v2494
    %v9267 = vsel %vm9044, %v963, %v2496
    %v9268 = vsel %vm9044, %v964, %v2498
    %v9269 = vsel %vm9044, %v972, %v2500
    %v9270 = vsel %vm9044, %v973, %v2502
    %v9271 = vsel %vm9044, %v975, %v2504
    %v9272 = vsel %vm9044, %v976, %v2506
    %v9273 = vsel %vm9044, %v978, %v2508
    %v9274 = vsel %vm9044, %v979, %v2510
    %v9275 = vsel %vm9044, %v981, %v2512
    %v9276 = vsel %vm9044, %v982, %v2514
    %v9277 = vsel %vm9044, %v984, %v2516
    %v9278 = vsel %vm9044, %v985, %v2518
    %v9279 = vsel %vm9044, %v987, %v2520
    %v9280 = vsel %vm9044, %v988, %v2522
    %v9281 = vsel %vm9044, %v990, %v2524
    %v9282 = vsel %vm9044, %v991, %v2526
    %v9283 = vsel %vm9044, %v993, %v2528
    %v9284 = vsel %vm9044, %v994, %v2530
    %v9285 = vsel %vm9044, %v996, %v2532
    %v9286 = vsel %vm9044, %v997, %v2534
    %v9287 = vsel %vm9044, %v999, %v2536
    %v9288 = vsel %vm9044, %v1000, %v2538
    %v9289 = vsel %vm9044, %v1002, %v2540
    %v9290 = vsel %vm9044, %v1003, %v2542
    %v9291 = vsel %vm9044, %v1005, %v2544
    %v9292 = vsel %vm9044, %v1006, %v2546
    %v9293 = vsel %vm9044, %v1008, %v2548
    %v9294 = vsel %vm9044, %v1009, %v2550
    %v9295 = vsel %vm9044, %v1011, %v2552
    %v9296 = vsel %vm9044, %v1012, %v2554
    %v9297 = vsel %vm9044, %v1014, %v2556
    %v9298 = vsel %vm9044, %v1015, %v2558
    %v9299 = vsel %vm9044, %v1017, %v2560
    %v9300 = vsel %vm9044, %v1018, %v2562
    %vm9301 = vcmask 64512
    %v9302 = vsel %vm9301, %v9045, %v3461
    %v9303 = vsel %vm9301, %v9046, %v3463
    %v9304 = vsel %vm9301, %v9047, %v3465
    %v9305 = vsel %vm9301, %v9048, %v3467
    %v9306 = vsel %vm9301, %v9049, %v3469
    %v9307 = vsel %vm9301, %v9050, %v3471
    %v9308 = vsel %vm9301, %v9051, %v3473
    %v9309 = vsel %vm9301, %v9052, %v3475
    %v9310 = vsel %vm9301, %v9053, %v3477
    %v9311 = vsel %vm9301, %v9054, %v3479
    %v9312 = vsel %vm9301, %v9055, %v3481
    %v9313 = vsel %vm9301, %v9056, %v3483
    %v9314 = vsel %vm9301, %v9057, %v3485
    %v9315 = vsel %vm9301, %v9058, %v3487
    %v9316 = vsel %vm9301, %v9059, %v3489
    %v9317 = vsel %vm9301, %v9060, %v3491
    %v9318 = vsel %vm9301, %v9061, %v3493
    %v9319 = vsel %vm9301, %v9062, %v3495
    %v9320 = vsel %vm9301, %v9063, %v3497
    %v9321 = vsel %vm9301, %v9064, %v3499
    %v9322 = vsel %vm9301, %v9065, %v3501
    %v9323 = vsel %vm9301, %v9066, %v3503
    %v9324 = vsel %vm9301, %v9067, %v3505
    %v9325 = vsel %vm9301, %v9068, %v3507
    %v9326 = vsel %vm9301, %v9069, %v3509
    %v9327 = vsel %vm9301, %v9070, %v3511
    %v9328 = vsel %vm9301, %v9071, %v3513
    %v9329 = vsel %vm9301, %v9072, %v3515
    %v9330 = vsel %vm9301, %v9073, %v3517
    %v9331 = vsel %vm9301, %v9074, %v3519
    %v9332 = vsel %vm9301, %v9075, %v3521
    %v9333 = vsel %vm9301, %v9076, %v3523
    %v9334 = vsel %vm9301, %v9077, %v3525
    %v9335 = vsel %vm9301, %v9078, %v3527
    %v9336 = vsel %vm9301, %v9079, %v3529
    %v9337 = vsel %vm9301, %v9080, %v3531
    %v9338 = vsel %vm9301, %v9081, %v3533
    %v9339 = vsel %vm9301, %v9082, %v3535
    %v9340 = vsel %vm9301, %v9083, %v3537
    %v9341 = vsel %vm9301, %v9084, %v3539
    %v9342 = vsel %vm9301, %v9085, %v3541
    %v9343 = vsel %vm9301, %v9086, %v3543
    %v9344 = vsel %vm9301, %v9087, %v3545
    %v9345 = vsel %vm9301, %v9088, %v3547
    %v9346 = vsel %vm9301, %v9089, %v3549
    %v9347 = vsel %vm9301, %v9090, %v3551
    %v9348 = vsel %vm9301, %v9091, %v3553
    %v9349 = vsel %vm9301, %v9092, %v3555
    %v9350 = vsel %vm9301, %v9093, %v3557
    %v9351 = vsel %vm9301, %v9094, %v3559
    %v9352 = vsel %vm9301, %v9095, %v3561
    %v9353 = vsel %vm9301, %v9096, %v3563
    %v9354 = vsel %vm9301, %v9097, %v3565
    %v9355 = vsel %vm9301, %v9098, %v3567
    %v9356 = vsel %vm9301, %v9099, %v3569
    %v9357 = vsel %vm9301, %v9100, %v3571
    %v9358 = vsel %vm9301, %v9101, %v3573
    %v9359 = vsel %vm9301, %v9102, %v3575
    %v9360 = vsel %vm9301, %v9103, %v3577
    %v9361 = vsel %vm9301, %v9104, %v3579
    %v9362 = vsel %vm9301, %v9105, %v3581
    %v9363 = vsel %vm9301, %v9106, %v3583
    %v9364 = vsel %vm9301, %v9107, %v3585
    %v9365 = vsel %vm9301, %v9108, %v3587
    %v9366 = vsel %vm9301, %v9109, %v3589
    %v9367 = vsel %vm9301, %v9110, %v3591
    %v9368 = vsel %vm9301, %v9111, %v3593
    %v9369 = vsel %vm9301, %v9112, %v3595
    %v9370 = vsel %vm9301, %v9113, %v3597
    %v9371 = vsel %vm9301, %v9114, %v3599
    %v9372 = vsel %vm9301, %v9115, %v3601
    %v9373 = vsel %vm9301, %v9116, %v3603
    %v9374 = vsel %vm9301, %v9117, %v3605
    %v9375 = vsel %vm9301, %v9118, %v3607
    %v9376 = vsel %vm9301, %v9119, %v3609
    %v9377 = vsel %vm9301, %v9120, %v3611
    %v9378 = vsel %vm9301, %v9121, %v3613
    %v9379 = vsel %vm9301, %v9122, %v3615
    %v9380 = vsel %vm9301, %v9123, %v3617
    %v9381 = vsel %vm9301, %v9124, %v3619
    %v9382 = vsel %vm9301, %v9125, %v3621
    %v9383 = vsel %vm9301, %v9126, %v3623
    %v9384 = vsel %vm9301, %v9127, %v3625
    %v9385 = vsel %vm9301, %v9128, %v3627
    %v9386 = vsel %vm9301, %v9129, %v3629
    %v9387 = vsel %vm9301, %v9130, %v3631
    %v9388 = vsel %vm9301, %v9131, %v3633
    %v9389 = vsel %vm9301, %v9132, %v3635
    %v9390 = vsel %vm9301, %v9133, %v3637
    %v9391 = vsel %vm9301, %v9134, %v3639
    %v9392 = vsel %vm9301, %v9135, %v3641
    %v9393 = vsel %vm9301, %v9136, %v3643
    %v9394 = vsel %vm9301, %v9137, %v3645
    %v9395 = vsel %vm9301, %v9138, %v3647
    %v9396 = vsel %vm9301, %v9139, %v3649
    %v9397 = vsel %vm9301, %v9140, %v3651
    %v9398 = vsel %vm9301, %v9141, %v3653
    %v9399 = vsel %vm9301, %v9142, %v3655
    %v9400 = vsel %vm9301, %v9143, %v3657
    %v9401 = vsel %vm9301, %v9144, %v3659
    %v9402 = vsel %vm9301, %v9145, %v3661
    %v9403 = vsel %vm9301, %v9146, %v3663
    %v9404 = vsel %vm9301, %v9147, %v3665
    %v9405 = vsel %vm9301, %v9148, %v3667
    %v9406 = vsel %vm9301, %v9149, %v3669
    %v9407 = vsel %vm9301, %v9150, %v3671
    %v9408 = vsel %vm9301, %v9151, %v3673
    %v9409 = vsel %vm9301, %v9152, %v3675
    %v9410 = vsel %vm9301, %v9153, %v3677
    %v9411 = vsel %vm9301, %v9154, %v3679
    %v9412 = vsel %vm9301, %v9155, %v3681
    %v9413 = vsel %vm9301, %v9156, %v3683
    %v9414 = vsel %vm9301, %v9157, %v3685
    %v9415 = vsel %vm9301, %v9158, %v3687
    %v9416 = vsel %vm9301, %v9159, %v3689
    %v9417 = vsel %vm9301, %v9160, %v3691
    %v9418 = vsel %vm9301, %v9161, %v3693
    %v9419 = vsel %vm9301, %v9162, %v3695
    %v9420 = vsel %vm9301, %v9163, %v3697
    %v9421 = vsel %vm9301, %v9164, %v3699
    %v9422 = vsel %vm9301, %v9165, %v3701
    %v9423 = vsel %vm9301, %v9166, %v3703
    %v9424 = vsel %vm9301, %v9167, %v3705
    %v9425 = vsel %vm9301, %v9168, %v3707
    %v9426 = vsel %vm9301, %v9169, %v3709
    %v9427 = vsel %vm9301, %v9170, %v3711
    %v9428 = vsel %vm9301, %v9171, %v3713
    %v9429 = vsel %vm9301, %v9172, %v3715
    %v9430 = vsel %vm9301, %v9173, %v3717
    %v9431 = vsel %vm9301, %v9174, %v3719
    %v9432 = vsel %vm9301, %v9175, %v3721
    %v9433 = vsel %vm9301, %v9176, %v3723
    %v9434 = vsel %vm9301, %v9177, %v3725
    %v9435 = vsel %vm9301, %v9178, %v3727
    %v9436 = vsel %vm9301, %v9179, %v3729
    %v9437 = vsel %vm9301, %v9180, %v3731
    %v9438 = vsel %vm9301, %v9181, %v3733
    %v9439 = vsel %vm9301, %v9182, %v3735
    %v9440 = vsel %vm9301, %v9183, %v3737
    %v9441 = vsel %vm9301, %v9184, %v3739
    %v9442 = vsel %vm9301, %v9185, %v3741
    %v9443 = vsel %vm9301, %v9186, %v3743
    %v9444 = vsel %vm9301, %v9187, %v3745
    %v9445 = vsel %vm9301, %v9188, %v3747
    %v9446 = vsel %vm9301, %v9189, %v3749
    %v9447 = vsel %vm9301, %v9190, %v3751
    %v9448 = vsel %vm9301, %v9191, %v3753
    %v9449 = vsel %vm9301, %v9192, %v3755
    %v9450 = vsel %vm9301, %v9193, %v3757
    %v9451 = vsel %vm9301, %v9194, %v3759
    %v9452 = vsel %vm9301, %v9195, %v3761
    %v9453 = vsel %vm9301, %v9196, %v3763
    %v9454 = vsel %vm9301, %v9197, %v3765
    %v9455 = vsel %vm9301, %v9198, %v3767
    %v9456 = vsel %vm9301, %v9199, %v3769
    %v9457 = vsel %vm9301, %v9200, %v3771
    %v9458 = vsel %vm9301, %v9201, %v3773
    %v9459 = vsel %vm9301, %v9202, %v3775
    %v9460 = vsel %vm9301, %v9203, %v3777
    %v9461 = vsel %vm9301, %v9204, %v3779
    %v9462 = vsel %vm9301, %v9205, %v3781
    %v9463 = vsel %vm9301, %v9206, %v3783
    %v9464 = vsel %vm9301, %v9207, %v3785
    %v9465 = vsel %vm9301, %v9208, %v3787
    %v9466 = vsel %vm9301, %v9209, %v3789
    %v9467 = vsel %vm9301, %v9210, %v3791
    %v9468 = vsel %vm9301, %v9211, %v3793
    %v9469 = vsel %vm9301, %v9212, %v3795
    %v9470 = vsel %vm9301, %v9213, %v3797
    %v9471 = vsel %vm9301, %v9214, %v3799
    %v9472 = vsel %vm9301, %v9215, %v3801
    %v9473 = vsel %vm9301, %v9216, %v3803
    %v9474 = vsel %vm9301, %v9217, %v3805
    %v9475 = vsel %vm9301, %v9218, %v3807
    %v9476 = vsel %vm9301, %v9219, %v3809
    %v9477 = vsel %vm9301, %v9220, %v3811
    %v9478 = vsel %vm9301, %v9221, %v3813
    %v9479 = vsel %vm9301, %v9222, %v3815
    %v9480 = vsel %vm9301, %v9223, %v3817
    %v9481 = vsel %vm9301, %v9224, %v3819
    %v9482 = vsel %vm9301, %v9225, %v3821
    %v9483 = vsel %vm9301, %v9226, %v3823
    %v9484 = vsel %vm9301, %v9227, %v3825
    %v9485 = vsel %vm9301, %v9228, %v3827
    %v9486 = vsel %vm9301, %v9229, %v3829
    %v9487 = vsel %vm9301, %v9230, %v3831
    %v9488 = vsel %vm9301, %v9231, %v3833
    %v9489 = vsel %vm9301, %v9232, %v3835
    %v9490 = vsel %vm9301, %v9233, %v3837
    %v9491 = vsel %vm9301, %v9234, %v3839
    %v9492 = vsel %vm9301, %v9235, %v3841
    %v9493 = vsel %vm9301, %v9236, %v3843
    %v9494 = vsel %vm9301, %v9237, %v3845
    %v9495 = vsel %vm9301, %v9238, %v3847
    %v9496 = vsel %vm9301, %v9239, %v3849
    %v9497 = vsel %vm9301, %v9240, %v3851
    %v9498 = vsel %vm9301, %v9241, %v3853
    %v9499 = vsel %vm9301, %v9242, %v3855
    %v9500 = vsel %vm9301, %v9243, %v3857
    %v9501 = vsel %vm9301, %v9244, %v3859
    %v9502 = vsel %vm9301, %v9245, %v3861
    %v9503 = vsel %vm9301, %v9246, %v3863
    %v9504 = vsel %vm9301, %v9247, %v3865
    %v9505 = vsel %vm9301, %v9248, %v3867
    %v9506 = vsel %vm9301, %v9249, %v3869
    %v9507 = vsel %vm9301, %v9250, %v3871
    %v9508 = vsel %vm9301, %v9251, %v3873
    %v9509 = vsel %vm9301, %v9252, %v3875
    %v9510 = vsel %vm9301, %v9253, %v3877
    %v9511 = vsel %vm9301, %v9254, %v3879
    %v9512 = vsel %vm9301, %v9255, %v3881
    %v9513 = vsel %vm9301, %v9256, %v3883
    %v9514 = vsel %vm9301, %v9257, %v3885
    %v9515 = vsel %vm9301, %v9258, %v3887
    %v9516 = vsel %vm9301, %v9259, %v3889
    %v9517 = vsel %vm9301, %v9260, %v3891
    %v9518 = vsel %vm9301, %v9261, %v3893
    %v9519 = vsel %vm9301, %v9262, %v3895
    %v9520 = vsel %vm9301, %v9263, %v3897
    %v9521 = vsel %vm9301, %v9264, %v3899
    %v9522 = vsel %vm9301, %v9265, %v3901
    %v9523 = vsel %vm9301, %v9266, %v3903
    %v9524 = vsel %vm9301, %v9267, %v3905
    %v9525 = vsel %vm9301, %v9268, %v3907
    %v9526 = vsel %vm9301, %v9269, %v3909
    %v9527 = vsel %vm9301, %v9270, %v3911
    %v9528 = vsel %vm9301, %v9271, %v3913
    %v9529 = vsel %vm9301, %v9272, %v3915
    %v9530 = vsel %vm9301, %v9273, %v3917
    %v9531 = vsel %vm9301, %v9274, %v3919
    %v9532 = vsel %vm9301, %v9275, %v3921
    %v9533 = vsel %vm9301, %v9276, %v3923
    %v9534 = vsel %vm9301, %v9277, %v3925
    %v9535 = vsel %vm9301, %v9278, %v3927
    %v9536 = vsel %vm9301, %v9279, %v3929
    %v9537 = vsel %vm9301, %v9280, %v3931
    %v9538 = vsel %vm9301, %v9281, %v3933
    %v9539 = vsel %vm9301, %v9282, %v3935
    %v9540 = vsel %vm9301, %v9283, %v3937
    %v9541 = vsel %vm9301, %v9284, %v3939
    %v9542 = vsel %vm9301, %v9285, %v3941
    %v9543 = vsel %vm9301, %v9286, %v3943
    %v9544 = vsel %vm9301, %v9287, %v3945
    %v9545 = vsel %vm9301, %v9288, %v3947
    %v9546 = vsel %vm9301, %v9289, %v3949
    %v9547 = vsel %vm9301, %v9290, %v3951
    %v9548 = vsel %vm9301, %v9291, %v3953
    %v9549 = vsel %vm9301, %v9292, %v3955
    %v9550 = vsel %vm9301, %v9293, %v3957
    %v9551 = vsel %vm9301, %v9294, %v3959
    %v9552 = vsel %vm9301, %v9295, %v3961
    %v9553 = vsel %vm9301, %v9296, %v3963
    %v9554 = vsel %vm9301, %v9297, %v3965
    %v9555 = vsel %vm9301, %v9298, %v3967
    %v9556 = vsel %vm9301, %v9299, %v3969
    %v9557 = vsel %vm9301, %v9300, %v3971
    %vm9558 = vcmask 97280
    %v9559 = vsel %vm9558, %v9302, %v4245
    %v9560 = vsel %vm9558, %v9303, %v4247
    %v9561 = vsel %vm9558, %v9304, %v4249
    %v9562 = vsel %vm9558, %v9305, %v4251
    %v9563 = vsel %vm9558, %v9306, %v4253
    %v9564 = vsel %vm9558, %v9307, %v4255
    %v9565 = vsel %vm9558, %v9308, %v4257
    %v9566 = vsel %vm9558, %v9309, %v4259
    %v9567 = vsel %vm9558, %v9310, %v4261
    %v9568 = vsel %vm9558, %v9311, %v4263
    %v9569 = vsel %vm9558, %v9312, %v4265
    %v9570 = vsel %vm9558, %v9313, %v4267
    %v9571 = vsel %vm9558, %v9314, %v4269
    %v9572 = vsel %vm9558, %v9315, %v4271
    %v9573 = vsel %vm9558, %v9316, %v4273
    %v9574 = vsel %vm9558, %v9317, %v4275
    %v9575 = vsel %vm9558, %v9318, %v4277
    %v9576 = vsel %vm9558, %v9319, %v4279
    %v9577 = vsel %vm9558, %v9320, %v4281
    %v9578 = vsel %vm9558, %v9321, %v4283
    %v9579 = vsel %vm9558, %v9322, %v4285
    %v9580 = vsel %vm9558, %v9323, %v4287
    %v9581 = vsel %vm9558, %v9324, %v4289
    %v9582 = vsel %vm9558, %v9325, %v4291
    %v9583 = vsel %vm9558, %v9326, %v4293
    %v9584 = vsel %vm9558, %v9327, %v4295
    %v9585 = vsel %vm9558, %v9328, %v4297
    %v9586 = vsel %vm9558, %v9329, %v4299
    %v9587 = vsel %vm9558, %v9330, %v4301
    %v9588 = vsel %vm9558, %v9331, %v4303
    %v9589 = vsel %vm9558, %v9332, %v4305
    %v9590 = vsel %vm9558, %v9333, %v4307
    %v9591 = vsel %vm9558, %v9334, %v4309
    %v9592 = vsel %vm9558, %v9335, %v4311
    %v9593 = vsel %vm9558, %v9336, %v4313
    %v9594 = vsel %vm9558, %v9337, %v4315
    %v9595 = vsel %vm9558, %v9338, %v4317
    %v9596 = vsel %vm9558, %v9339, %v4319
    %v9597 = vsel %vm9558, %v9340, %v4321
    %v9598 = vsel %vm9558, %v9341, %v4323
    %v9599 = vsel %vm9558, %v9342, %v4325
    %v9600 = vsel %vm9558, %v9343, %v4327
    %v9601 = vsel %vm9558, %v9344, %v4329
    %v9602 = vsel %vm9558, %v9345, %v4331
    %v9603 = vsel %vm9558, %v9346, %v4333
    %v9604 = vsel %vm9558, %v9347, %v4335
    %v9605 = vsel %vm9558, %v9348, %v4337
    %v9606 = vsel %vm9558, %v9349, %v4339
    %v9607 = vsel %vm9558, %v9350, %v4341
    %v9608 = vsel %vm9558, %v9351, %v4343
    %v9609 = vsel %vm9558, %v9352, %v4345
    %v9610 = vsel %vm9558, %v9353, %v4347
    %v9611 = vsel %vm9558, %v9354, %v4349
    %v9612 = vsel %vm9558, %v9355, %v4351
    %v9613 = vsel %vm9558, %v9356, %v4353
    %v9614 = vsel %vm9558, %v9357, %v4355
    %v9615 = vsel %vm9558, %v9358, %v4357
    %v9616 = vsel %vm9558, %v9359, %v4359
    %v9617 = vsel %vm9558, %v9360, %v4361
    %v9618 = vsel %vm9558, %v9361, %v4363
    %v9619 = vsel %vm9558, %v9362, %v4365
    %v9620 = vsel %vm9558, %v9363, %v4367
    %v9621 = vsel %vm9558, %v9364, %v4369
    %v9622 = vsel %vm9558, %v9365, %v4371
    %v9623 = vsel %vm9558, %v9366, %v4373
    %v9624 = vsel %vm9558, %v9367, %v4375
    %v9625 = vsel %vm9558, %v9368, %v4377
    %v9626 = vsel %vm9558, %v9369, %v4379
    %v9627 = vsel %vm9558, %v9370, %v4381
    %v9628 = vsel %vm9558, %v9371, %v4383
    %v9629 = vsel %vm9558, %v9372, %v4385
    %v9630 = vsel %vm9558, %v9373, %v4387
    %v9631 = vsel %vm9558, %v9374, %v4389
    %v9632 = vsel %vm9558, %v9375, %v4391
    %v9633 = vsel %vm9558, %v9376, %v4393
    %v9634 = vsel %vm9558, %v9377, %v4395
    %v9635 = vsel %vm9558, %v9378, %v4397
    %v9636 = vsel %vm9558, %v9379, %v4399
    %v9637 = vsel %vm9558, %v9380, %v4401
    %v9638 = vsel %vm9558, %v9381, %v4403
    %v9639 = vsel %vm9558, %v9382, %v4405
    %v9640 = vsel %vm9558, %v9383, %v4407
    %v9641 = vsel %vm9558, %v9384, %v4409
    %v9642 = vsel %vm9558, %v9385, %v4411
    %v9643 = vsel %vm9558, %v9386, %v4413
    %v9644 = vsel %vm9558, %v9387, %v4415
    %v9645 = vsel %vm9558, %v9388, %v4417
    %v9646 = vsel %vm9558, %v9389, %v4419
    %v9647 = vsel %vm9558, %v9390, %v4421
    %v9648 = vsel %vm9558, %v9391, %v4423
    %v9649 = vsel %vm9558, %v9392, %v4425
    %v9650 = vsel %vm9558, %v9393, %v4427
    %v9651 = vsel %vm9558, %v9394, %v4429
    %v9652 = vsel %vm9558, %v9395, %v4431
    %v9653 = vsel %vm9558, %v9396, %v4433
    %v9654 = vsel %vm9558, %v9397, %v4435
    %v9655 = vsel %vm9558, %v9398, %v4437
    %v9656 = vsel %vm9558, %v9399, %v4439
    %v9657 = vsel %vm9558, %v9400, %v4441
    %v9658 = vsel %vm9558, %v9401, %v4443
    %v9659 = vsel %vm9558, %v9402, %v4445
    %v9660 = vsel %vm9558, %v9403, %v4447
    %v9661 = vsel %vm9558, %v9404, %v4449
    %v9662 = vsel %vm9558, %v9405, %v4451
    %v9663 = vsel %vm9558, %v9406, %v4453
    %v9664 = vsel %vm9558, %v9407, %v4455
    %v9665 = vsel %vm9558, %v9408, %v4457
    %v9666 = vsel %vm9558, %v9409, %v4459
    %v9667 = vsel %vm9558, %v9410, %v4461
    %v9668 = vsel %vm9558, %v9411, %v4463
    %v9669 = vsel %vm9558, %v9412, %v4465
    %v9670 = vsel %vm9558, %v9413, %v4467
    %v9671 = vsel %vm9558, %v9414, %v4469
    %v9672 = vsel %vm9558, %v9415, %v4471
    %v9673 = vsel %vm9558, %v9416, %v4473
    %v9674 = vsel %vm9558, %v9417, %v4475
    %v9675 = vsel %vm9558, %v9418, %v4477
    %v9676 = vsel %vm9558, %v9419, %v4479
    %v9677 = vsel %vm9558, %v9420, %v4481
    %v9678 = vsel %vm9558, %v9421, %v4483
    %v9679 = vsel %vm9558, %v9422, %v4485
    %v9680 = vsel %vm9558, %v9423, %v4487
    %v9681 = vsel %vm9558, %v9424, %v4489
    %v9682 = vsel %vm9558, %v9425, %v4491
    %v9683 = vsel %vm9558, %v9426, %v4493
    %v9684 = vsel %vm9558, %v9427, %v4495
    %v9685 = vsel %vm9558, %v9428, %v4497
    %v9686 = vsel %vm9558, %v9429, %v4499
    %v9687 = vsel %vm9558, %v9430, %v4501
    %v9688 = vsel %vm9558, %v9431, %v4503
    %v9689 = vsel %vm9558, %v9432, %v4505
    %v9690 = vsel %vm9558, %v9433, %v4507
    %v9691 = vsel %vm9558, %v9434, %v4509
    %v9692 = vsel %vm9558, %v9435, %v4511
    %v9693 = vsel %vm9558, %v9436, %v4513
    %v9694 = vsel %vm9558, %v9437, %v4515
    %v9695 = vsel %vm9558, %v9438, %v4517
    %v9696 = vsel %vm9558, %v9439, %v4519
    %v9697 = vsel %vm9558, %v9440, %v4521
    %v9698 = vsel %vm9558, %v9441, %v4523
    %v9699 = vsel %vm9558, %v9442, %v4525
    %v9700 = vsel %vm9558, %v9443, %v4527
    %v9701 = vsel %vm9558, %v9444, %v4529
    %v9702 = vsel %vm9558, %v9445, %v4531
    %v9703 = vsel %vm9558, %v9446, %v4533
    %v9704 = vsel %vm9558, %v9447, %v4535
    %v9705 = vsel %vm9558, %v9448, %v4537
    %v9706 = vsel %vm9558, %v9449, %v4539
    %v9707 = vsel %vm9558, %v9450, %v4541
    %v9708 = vsel %vm9558, %v9451, %v4543
    %v9709 = vsel %vm9558, %v9452, %v4545
    %v9710 = vsel %vm9558, %v9453, %v4547
    %v9711 = vsel %vm9558, %v9454, %v4549
    %v9712 = vsel %vm9558, %v9455, %v4551
    %v9713 = vsel %vm9558, %v9456, %v4553
    %v9714 = vsel %vm9558, %v9457, %v4555
    %v9715 = vsel %vm9558, %v9458, %v4557
    %v9716 = vsel %vm9558, %v9459, %v4559
    %v9717 = vsel %vm9558, %v9460, %v4561
    %v9718 = vsel %vm9558, %v9461, %v4563
    %v9719 = vsel %vm9558, %v9462, %v4565
    %v9720 = vsel %vm9558, %v9463, %v4567
    %v9721 = vsel %vm9558, %v9464, %v4569
    %v9722 = vsel %vm9558, %v9465, %v4571
    %v9723 = vsel %vm9558, %v9466, %v4573
    %v9724 = vsel %vm9558, %v9467, %v4575
    %v9725 = vsel %vm9558, %v9468, %v4577
    %v9726 = vsel %vm9558, %v9469, %v4579
    %v9727 = vsel %vm9558, %v9470, %v4581
    %v9728 = vsel %vm9558, %v9471, %v4583
    %v9729 = vsel %vm9558, %v9472, %v4585
    %v9730 = vsel %vm9558, %v9473, %v4587
    %v9731 = vsel %vm9558, %v9474, %v4589
    %v9732 = vsel %vm9558, %v9475, %v4591
    %v9733 = vsel %vm9558, %v9476, %v4593
    %v9734 = vsel %vm9558, %v9477, %v4595
    %v9735 = vsel %vm9558, %v9478, %v4597
    %v9736 = vsel %vm9558, %v9479, %v4599
    %v9737 = vsel %vm9558, %v9480, %v4601
    %v9738 = vsel %vm9558, %v9481, %v4603
    %v9739 = vsel %vm9558, %v9482, %v4605
    %v9740 = vsel %vm9558, %v9483, %v4607
    %v9741 = vsel %vm9558, %v9484, %v4609
    %v9742 = vsel %vm9558, %v9485, %v4611
    %v9743 = vsel %vm9558, %v9486, %v4613
    %v9744 = vsel %vm9558, %v9487, %v4615
    %v9745 = vsel %vm9558, %v9488, %v4617
    %v9746 = vsel %vm9558, %v9489, %v4619
    %v9747 = vsel %vm9558, %v9490, %v4621
    %v9748 = vsel %vm9558, %v9491, %v4623
    %v9749 = vsel %vm9558, %v9492, %v4625
    %v9750 = vsel %vm9558, %v9493, %v4627
    %v9751 = vsel %vm9558, %v9494, %v4629
    %v9752 = vsel %vm9558, %v9495, %v4631
    %v9753 = vsel %vm9558, %v9496, %v4633
    %v9754 = vsel %vm9558, %v9497, %v4635
    %v9755 = vsel %vm9558, %v9498, %v4637
    %v9756 = vsel %vm9558, %v9499, %v4639
    %v9757 = vsel %vm9558, %v9500, %v4641
    %v9758 = vsel %vm9558, %v9501, %v4643
    %v9759 = vsel %vm9558, %v9502, %v4645
    %v9760 = vsel %vm9558, %v9503, %v4647
    %v9761 = vsel %vm9558, %v9504, %v4649
    %v9762 = vsel %vm9558, %v9505, %v4651
    %v9763 = vsel %vm9558, %v9506, %v4653
    %v9764 = vsel %vm9558, %v9507, %v4655
    %v9765 = vsel %vm9558, %v9508, %v4657
    %v9766 = vsel %vm9558, %v9509, %v4659
    %v9767 = vsel %vm9558, %v9510, %v4661
    %v9768 = vsel %vm9558, %v9511, %v4663
    %v9769 = vsel %vm9558, %v9512, %v4665
    %v9770 = vsel %vm9558, %v9513, %v4667
    %v9771 = vsel %vm9558, %v9514, %v4669
    %v9772 = vsel %vm9558, %v9515, %v4671
    %v9773 = vsel %vm9558, %v9516, %v4673
    %v9774 = vsel %vm9558, %v9517, %v4675
    %v9775 = vsel %vm9558, %v9518, %v4677
    %v9776 = vsel %vm9558, %v9519, %v4679
    %v9777 = vsel %vm9558, %v9520, %v4681
    %v9778 = vsel %vm9558, %v9521, %v4683
    %v9779 = vsel %vm9558, %v9522, %v4685
    %v9780 = vsel %vm9558, %v9523, %v4687
    %v9781 = vsel %vm9558, %v9524, %v4689
    %v9782 = vsel %vm9558, %v9525, %v4691
    %v9783 = vsel %vm9558, %v9526, %v4693
    %v9784 = vsel %vm9558, %v9527, %v4695
    %v9785 = vsel %vm9558, %v9528, %v4697
    %v9786 = vsel %vm9558, %v9529, %v4699
    %v9787 = vsel %vm9558, %v9530, %v4701
    %v9788 = vsel %vm9558, %v9531, %v4703
    %v9789 = vsel %vm9558, %v9532, %v4705
    %v9790 = vsel %vm9558, %v9533, %v4707
    %v9791 = vsel %vm9558, %v9534, %v4709
    %v9792 = vsel %vm9558, %v9535, %v4711
    %v9793 = vsel %vm9558, %v9536, %v4713
    %v9794 = vsel %vm9558, %v9537, %v4715
    %v9795 = vsel %vm9558, %v9538, %v4717
    %v9796 = vsel %vm9558, %v9539, %v4719
    %v9797 = vsel %vm9558, %v9540, %v4721
    %v9798 = vsel %vm9558, %v9541, %v4723
    %v9799 = vsel %vm9558, %v9542, %v4725
    %v9800 = vsel %vm9558, %v9543, %v4727
    %v9801 = vsel %vm9558, %v9544, %v4729
    %v9802 = vsel %vm9558, %v9545, %v4731
    %v9803 = vsel %vm9558, %v9546, %v4733
    %v9804 = vsel %vm9558, %v9547, %v4735
    %v9805 = vsel %vm9558, %v9548, %v4737
    %v9806 = vsel %vm9558, %v9549, %v4739
    %v9807 = vsel %vm9558, %v9550, %v4741
    %v9808 = vsel %vm9558, %v9551, %v4743
    %v9809 = vsel %vm9558, %v9552, %v4745
    %v9810 = vsel %vm9558, %v9553, %v4747
    %v9811 = vsel %vm9558, %v9554, %v4749
    %v9812 = vsel %vm9558, %v9555, %v4751
    %v9813 = vsel %vm9558, %v9556, %v4753
    %v9814 = vsel %vm9558, %v9557, %v4755
    %vm9815 = vcmask 130048
    %v9816 = vsel %vm9815, %v9559, %v5061
    %v9817 = vsel %vm9815, %v9560, %v5063
    %v9818 = vsel %vm9815, %v9561, %v5065
    %v9819 = vsel %vm9815, %v9562, %v5067
    %v9820 = vsel %vm9815, %v9563, %v5069
    %v9821 = vsel %vm9815, %v9564, %v5071
    %v9822 = vsel %vm9815, %v9565, %v5073
    %v9823 = vsel %vm9815, %v9566, %v5075
    %v9824 = vsel %vm9815, %v9567, %v5077
    %v9825 = vsel %vm9815, %v9568, %v5079
    %v9826 = vsel %vm9815, %v9569, %v5081
    %v9827 = vsel %vm9815, %v9570, %v5083
    %v9828 = vsel %vm9815, %v9571, %v5085
    %v9829 = vsel %vm9815, %v9572, %v5087
    %v9830 = vsel %vm9815, %v9573, %v5089
    %v9831 = vsel %vm9815, %v9574, %v5091
    %v9832 = vsel %vm9815, %v9575, %v5093
    %v9833 = vsel %vm9815, %v9576, %v5095
    %v9834 = vsel %vm9815, %v9577, %v5097
    %v9835 = vsel %vm9815, %v9578, %v5099
    %v9836 = vsel %vm9815, %v9579, %v5101
    %v9837 = vsel %vm9815, %v9580, %v5103
    %v9838 = vsel %vm9815, %v9581, %v5105
    %v9839 = vsel %vm9815, %v9582, %v5107
    %v9840 = vsel %vm9815, %v9583, %v5109
    %v9841 = vsel %vm9815, %v9584, %v5111
    %v9842 = vsel %vm9815, %v9585, %v5113
    %v9843 = vsel %vm9815, %v9586, %v5115
    %v9844 = vsel %vm9815, %v9587, %v5117
    %v9845 = vsel %vm9815, %v9588, %v5119
    %v9846 = vsel %vm9815, %v9589, %v5121
    %v9847 = vsel %vm9815, %v9590, %v5123
    %v9848 = vsel %vm9815, %v9591, %v5125
    %v9849 = vsel %vm9815, %v9592, %v5127
    %v9850 = vsel %vm9815, %v9593, %v5129
    %v9851 = vsel %vm9815, %v9594, %v5131
    %v9852 = vsel %vm9815, %v9595, %v5133
    %v9853 = vsel %vm9815, %v9596, %v5135
    %v9854 = vsel %vm9815, %v9597, %v5137
    %v9855 = vsel %vm9815, %v9598, %v5139
    %v9856 = vsel %vm9815, %v9599, %v5141
    %v9857 = vsel %vm9815, %v9600, %v5143
    %v9858 = vsel %vm9815, %v9601, %v5145
    %v9859 = vsel %vm9815, %v9602, %v5147
    %v9860 = vsel %vm9815, %v9603, %v5149
    %v9861 = vsel %vm9815, %v9604, %v5151
    %v9862 = vsel %vm9815, %v9605, %v5153
    %v9863 = vsel %vm9815, %v9606, %v5155
    %v9864 = vsel %vm9815, %v9607, %v5157
    %v9865 = vsel %vm9815, %v9608, %v5159
    %v9866 = vsel %vm9815, %v9609, %v5161
    %v9867 = vsel %vm9815, %v9610, %v5163
    %v9868 = vsel %vm9815, %v9611, %v5165
    %v9869 = vsel %vm9815, %v9612, %v5167
    %v9870 = vsel %vm9815, %v9613, %v5169
    %v9871 = vsel %vm9815, %v9614, %v5171
    %v9872 = vsel %vm9815, %v9615, %v5173
    %v9873 = vsel %vm9815, %v9616, %v5175
    %v9874 = vsel %vm9815, %v9617, %v5177
    %v9875 = vsel %vm9815, %v9618, %v5179
    %v9876 = vsel %vm9815, %v9619, %v5181
    %v9877 = vsel %vm9815, %v9620, %v5183
    %v9878 = vsel %vm9815, %v9621, %v5185
    %v9879 = vsel %vm9815, %v9622, %v5187
    %v9880 = vsel %vm9815, %v9623, %v5189
    %v9881 = vsel %vm9815, %v9624, %v5191
    %v9882 = vsel %vm9815, %v9625, %v5193
    %v9883 = vsel %vm9815, %v9626, %v5195
    %v9884 = vsel %vm9815, %v9627, %v5197
    %v9885 = vsel %vm9815, %v9628, %v5199
    %v9886 = vsel %vm9815, %v9629, %v5201
    %v9887 = vsel %vm9815, %v9630, %v5203
    %v9888 = vsel %vm9815, %v9631, %v5205
    %v9889 = vsel %vm9815, %v9632, %v5207
    %v9890 = vsel %vm9815, %v9633, %v5209
    %v9891 = vsel %vm9815, %v9634, %v5211
    %v9892 = vsel %vm9815, %v9635, %v5213
    %v9893 = vsel %vm9815, %v9636, %v5215
    %v9894 = vsel %vm9815, %v9637, %v5217
    %v9895 = vsel %vm9815, %v9638, %v5219
    %v9896 = vsel %vm9815, %v9639, %v5221
    %v9897 = vsel %vm9815, %v9640, %v5223
    %v9898 = vsel %vm9815, %v9641, %v5225
    %v9899 = vsel %vm9815, %v9642, %v5227
    %v9900 = vsel %vm9815, %v9643, %v5229
    %v9901 = vsel %vm9815, %v9644, %v5231
    %v9902 = vsel %vm9815, %v9645, %v5233
    %v9903 = vsel %vm9815, %v9646, %v5235
    %v9904 = vsel %vm9815, %v9647, %v5237
    %v9905 = vsel %vm9815, %v9648, %v5239
    %v9906 = vsel %vm9815, %v9649, %v5241
    %v9907 = vsel %vm9815, %v9650, %v5243
    %v9908 = vsel %vm9815, %v9651, %v5245
    %v9909 = vsel %vm9815, %v9652, %v5247
    %v9910 = vsel %vm9815, %v9653, %v5249
    %v9911 = vsel %vm9815, %v9654, %v5251
    %v9912 = vsel %vm9815, %v9655, %v5253
    %v9913 = vsel %vm9815, %v9656, %v5255
    %v9914 = vsel %vm9815, %v9657, %v5257
    %v9915 = vsel %vm9815, %v9658, %v5259
    %v9916 = vsel %vm9815, %v9659, %v5261
    %v9917 = vsel %vm9815, %v9660, %v5263
    %v9918 = vsel %vm9815, %v9661, %v5265
    %v9919 = vsel %vm9815, %v9662, %v5267
    %v9920 = vsel %vm9815, %v9663, %v5269
    %v9921 = vsel %vm9815, %v9664, %v5271
    %v9922 = vsel %vm9815, %v9665, %v5273
    %v9923 = vsel %vm9815, %v9666, %v5275
    %v9924 = vsel %vm9815, %v9667, %v5277
    %v9925 = vsel %vm9815, %v9668, %v5279
    %v9926 = vsel %vm9815, %v9669, %v5281
    %v9927 = vsel %vm9815, %v9670, %v5283
    %v9928 = vsel %vm9815, %v9671, %v5285
    %v9929 = vsel %vm9815, %v9672, %v5287
    %v9930 = vsel %vm9815, %v9673, %v5289
    %v9931 = vsel %vm9815, %v9674, %v5291
    %v9932 = vsel %vm9815, %v9675, %v5293
    %v9933 = vsel %vm9815, %v9676, %v5295
    %v9934 = vsel %vm9815, %v9677, %v5297
    %v9935 = vsel %vm9815, %v9678, %v5299
    %v9936 = vsel %vm9815, %v9679, %v5301
    %v9937 = vsel %vm9815, %v9680, %v5303
    %v9938 = vsel %vm9815, %v9681, %v5305
    %v9939 = vsel %vm9815, %v9682, %v5307
    %v9940 = vsel %vm9815, %v9683, %v5309
    %v9941 = vsel %vm9815, %v9684, %v5311
    %v9942 = vsel %vm9815, %v9685, %v5313
    %v9943 = vsel %vm9815, %v9686, %v5315
    %v9944 = vsel %vm9815, %v9687, %v5317
    %v9945 = vsel %vm9815, %v9688, %v5319
    %v9946 = vsel %vm9815, %v9689, %v5321
    %v9947 = vsel %vm9815, %v9690, %v5323
    %v9948 = vsel %vm9815, %v9691, %v5325
    %v9949 = vsel %vm9815, %v9692, %v5327
    %v9950 = vsel %vm9815, %v9693, %v5329
    %v9951 = vsel %vm9815, %v9694, %v5331
    %v9952 = vsel %vm9815, %v9695, %v5333
    %v9953 = vsel %vm9815, %v9696, %v5335
    %v9954 = vsel %vm9815, %v9697, %v5337
    %v9955 = vsel %vm9815, %v9698, %v5339
    %v9956 = vsel %vm9815, %v9699, %v5341
    %v9957 = vsel %vm9815, %v9700, %v5343
    %v9958 = vsel %vm9815, %v9701, %v5345
    %v9959 = vsel %vm9815, %v9702, %v5347
    %v9960 = vsel %vm9815, %v9703, %v5349
    %v9961 = vsel %vm9815, %v9704, %v5351
    %v9962 = vsel %vm9815, %v9705, %v5353
    %v9963 = vsel %vm9815, %v9706, %v5355
    %v9964 = vsel %vm9815, %v9707, %v5357
    %v9965 = vsel %vm9815, %v9708, %v5359
    %v9966 = vsel %vm9815, %v9709, %v5361
    %v9967 = vsel %vm9815, %v9710, %v5363
    %v9968 = vsel %vm9815, %v9711, %v5365
    %v9969 = vsel %vm9815, %v9712, %v5367
    %v9970 = vsel %vm9815, %v9713, %v5369
    %v9971 = vsel %vm9815, %v9714, %v5371
    %v9972 = vsel %vm9815, %v9715, %v5373
    %v9973 = vsel %vm9815, %v9716, %v5375
    %v9974 = vsel %vm9815, %v9717, %v5377
    %v9975 = vsel %vm9815, %v9718, %v5379
    %v9976 = vsel %vm9815, %v9719, %v5381
    %v9977 = vsel %vm9815, %v9720, %v5383
    %v9978 = vsel %vm9815, %v9721, %v5385
    %v9979 = vsel %vm9815, %v9722, %v5387
    %v9980 = vsel %vm9815, %v9723, %v5389
    %v9981 = vsel %vm9815, %v9724, %v5391
    %v9982 = vsel %vm9815, %v9725, %v5393
    %v9983 = vsel %vm9815, %v9726, %v5395
    %v9984 = vsel %vm9815, %v9727, %v5397
    %v9985 = vsel %vm9815, %v9728, %v5399
    %v9986 = vsel %vm9815, %v9729, %v5401
    %v9987 = vsel %vm9815, %v9730, %v5403
    %v9988 = vsel %vm9815, %v9731, %v5405
    %v9989 = vsel %vm9815, %v9732, %v5407
    %v9990 = vsel %vm9815, %v9733, %v5409
    %v9991 = vsel %vm9815, %v9734, %v5411
    %v9992 = vsel %vm9815, %v9735, %v5413
    %v9993 = vsel %vm9815, %v9736, %v5415
    %v9994 = vsel %vm9815, %v9737, %v5417
    %v9995 = vsel %vm9815, %v9738, %v5419
    %v9996 = vsel %vm9815, %v9739, %v5421
    %v9997 = vsel %vm9815, %v9740, %v5423
    %v9998 = vsel %vm9815, %v9741, %v5425
    %v9999 = vsel %vm9815, %v9742, %v5427
    %v10000 = vsel %vm9815, %v9743, %v5429
    %v10001 = vsel %vm9815, %v9744, %v5431
    %v10002 = vsel %vm9815, %v9745, %v5433
    %v10003 = vsel %vm9815, %v9746, %v5435
    %v10004 = vsel %vm9815, %v9747, %v5437
    %v10005 = vsel %vm9815, %v9748, %v5439
    %v10006 = vsel %vm9815, %v9749, %v5441
    %v10007 = vsel %vm9815, %v9750, %v5443
    %v10008 = vsel %vm9815, %v9751, %v5445
    %v10009 = vsel %vm9815, %v9752, %v5447
    %v10010 = vsel %vm9815, %v9753, %v5449
    %v10011 = vsel %vm9815, %v9754, %v5451
    %v10012 = vsel %vm9815, %v9755, %v5453
    %v10013 = vsel %vm9815, %v9756, %v5455
    %v10014 = vsel %vm9815, %v9757, %v5457
    %v10015 = vsel %vm9815, %v9758, %v5459
    %v10016 = vsel %vm9815, %v9759, %v5461
    %v10017 = vsel %vm9815, %v9760, %v5463
    %v10018 = vsel %vm9815, %v9761, %v5465
    %v10019 = vsel %vm9815, %v9762, %v5467
    %v10020 = vsel %vm9815, %v9763, %v5469
    %v10021 = vsel %vm9815, %v9764, %v5471
    %v10022 = vsel %vm9815, %v9765, %v5473
    %v10023 = vsel %vm9815, %v9766, %v5475
    %v10024 = vsel %vm9815, %v9767, %v5477
    %v10025 = vsel %vm9815, %v9768, %v5479
    %v10026 = vsel %vm9815, %v9769, %v5481
    %v10027 = vsel %vm9815, %v9770, %v5483
    %v10028 = vsel %vm9815, %v9771, %v5485
    %v10029 = vsel %vm9815, %v9772, %v5487
    %v10030 = vsel %vm9815, %v9773, %v5489
    %v10031 = vsel %vm9815, %v9774, %v5491
    %v10032 = vsel %vm9815, %v9775, %v5493
    %v10033 = vsel %vm9815, %v9776, %v5495
    %v10034 = vsel %vm9815, %v9777, %v5497
    %v10035 = vsel %vm9815, %v9778, %v5499
    %v10036 = vsel %vm9815, %v9779, %v5501
    %v10037 = vsel %vm9815, %v9780, %v5503
    %v10038 = vsel %vm9815, %v9781, %v5505
    %v10039 = vsel %vm9815, %v9782, %v5507
    %v10040 = vsel %vm9815, %v9783, %v5509
    %v10041 = vsel %vm9815, %v9784, %v5511
    %v10042 = vsel %vm9815, %v9785, %v5513
    %v10043 = vsel %vm9815, %v9786, %v5515
    %v10044 = vsel %vm9815, %v9787, %v5517
    %v10045 = vsel %vm9815, %v9788, %v5519
    %v10046 = vsel %vm9815, %v9789, %v5521
    %v10047 = vsel %vm9815, %v9790, %v5523
    %v10048 = vsel %vm9815, %v9791, %v5525
    %v10049 = vsel %vm9815, %v9792, %v5527
    %v10050 = vsel %vm9815, %v9793, %v5529
    %v10051 = vsel %vm9815, %v9794, %v5531
    %v10052 = vsel %vm9815, %v9795, %v5533
    %v10053 = vsel %vm9815, %v9796, %v5535
    %v10054 = vsel %vm9815, %v9797, %v5537
    %v10055 = vsel %vm9815, %v9798, %v5539
    %v10056 = vsel %vm9815, %v9799, %v5541
    %v10057 = vsel %vm9815, %v9800, %v5543
    %v10058 = vsel %vm9815, %v9801, %v5545
    %v10059 = vsel %vm9815, %v9802, %v5547
    %v10060 = vsel %vm9815, %v9803, %v5549
    %v10061 = vsel %vm9815, %v9804, %v5551
    %v10062 = vsel %vm9815, %v9805, %v5553
    %v10063 = vsel %vm9815, %v9806, %v5555
    %v10064 = vsel %vm9815, %v9807, %v5557
    %v10065 = vsel %vm9815, %v9808, %v5559
    %v10066 = vsel %vm9815, %v9809, %v5561
    %v10067 = vsel %vm9815, %v9810, %v5563
    %v10068 = vsel %vm9815, %v9811, %v5565
    %v10069 = vsel %vm9815, %v9812, %v5567
    %v10070 = vsel %vm9815, %v9813, %v5569
    %v10071 = vsel %vm9815, %v9814, %v5571
    %vm10072 = vcmask 162816
    %v10073 = vsel %vm10072, %v9816, %v5869
    %v10074 = vsel %vm10072, %v9817, %v5871
    %v10075 = vsel %vm10072, %v9818, %v5873
    %v10076 = vsel %vm10072, %v9819, %v5875
    %v10077 = vsel %vm10072, %v9820, %v5877
    %v10078 = vsel %vm10072, %v9821, %v5879
    %v10079 = vsel %vm10072, %v9822, %v5881
    %v10080 = vsel %vm10072, %v9823, %v5883
    %v10081 = vsel %vm10072, %v9824, %v5885
    %v10082 = vsel %vm10072, %v9825, %v5887
    %v10083 = vsel %vm10072, %v9826, %v5889
    %v10084 = vsel %vm10072, %v9827, %v5891
    %v10085 = vsel %vm10072, %v9828, %v5893
    %v10086 = vsel %vm10072, %v9829, %v5895
    %v10087 = vsel %vm10072, %v9830, %v5897
    %v10088 = vsel %vm10072, %v9831, %v5899
    %v10089 = vsel %vm10072, %v9832, %v5901
    %v10090 = vsel %vm10072, %v9833, %v5903
    %v10091 = vsel %vm10072, %v9834, %v5905
    %v10092 = vsel %vm10072, %v9835, %v5907
    %v10093 = vsel %vm10072, %v9836, %v5909
    %v10094 = vsel %vm10072, %v9837, %v5911
    %v10095 = vsel %vm10072, %v9838, %v5913
    %v10096 = vsel %vm10072, %v9839, %v5915
    %v10097 = vsel %vm10072, %v9840, %v5917
    %v10098 = vsel %vm10072, %v9841, %v5919
    %v10099 = vsel %vm10072, %v9842, %v5921
    %v10100 = vsel %vm10072, %v9843, %v5923
    %v10101 = vsel %vm10072, %v9844, %v5925
    %v10102 = vsel %vm10072, %v9845, %v5927
    %v10103 = vsel %vm10072, %v9846, %v5929
    %v10104 = vsel %vm10072, %v9847, %v5931
    %v10105 = vsel %vm10072, %v9848, %v5933
    %v10106 = vsel %vm10072, %v9849, %v5935
    %v10107 = vsel %vm10072, %v9850, %v5937
    %v10108 = vsel %vm10072, %v9851, %v5939
    %v10109 = vsel %vm10072, %v9852, %v5941
    %v10110 = vsel %vm10072, %v9853, %v5943
    %v10111 = vsel %vm10072, %v9854, %v5945
    %v10112 = vsel %vm10072, %v9855, %v5947
    %v10113 = vsel %vm10072, %v9856, %v5949
    %v10114 = vsel %vm10072, %v9857, %v5951
    %v10115 = vsel %vm10072, %v9858, %v5953
    %v10116 = vsel %vm10072, %v9859, %v5955
    %v10117 = vsel %vm10072, %v9860, %v5957
    %v10118 = vsel %vm10072, %v9861, %v5959
    %v10119 = vsel %vm10072, %v9862, %v5961
    %v10120 = vsel %vm10072, %v9863, %v5963
    %v10121 = vsel %vm10072, %v9864, %v5965
    %v10122 = vsel %vm10072, %v9865, %v5967
    %v10123 = vsel %vm10072, %v9866, %v5969
    %v10124 = vsel %vm10072, %v9867, %v5971
    %v10125 = vsel %vm10072, %v9868, %v5973
    %v10126 = vsel %vm10072, %v9869, %v5975
    %v10127 = vsel %vm10072, %v9870, %v5977
    %v10128 = vsel %vm10072, %v9871, %v5979
    %v10129 = vsel %vm10072, %v9872, %v5981
    %v10130 = vsel %vm10072, %v9873, %v5983
    %v10131 = vsel %vm10072, %v9874, %v5985
    %v10132 = vsel %vm10072, %v9875, %v5987
    %v10133 = vsel %vm10072, %v9876, %v5989
    %v10134 = vsel %vm10072, %v9877, %v5991
    %v10135 = vsel %vm10072, %v9878, %v5993
    %v10136 = vsel %vm10072, %v9879, %v5995
    %v10137 = vsel %vm10072, %v9880, %v5997
    %v10138 = vsel %vm10072, %v9881, %v5999
    %v10139 = vsel %vm10072, %v9882, %v6001
    %v10140 = vsel %vm10072, %v9883, %v6003
    %v10141 = vsel %vm10072, %v9884, %v6005
    %v10142 = vsel %vm10072, %v9885, %v6007
    %v10143 = vsel %vm10072, %v9886, %v6009
    %v10144 = vsel %vm10072, %v9887, %v6011
    %v10145 = vsel %vm10072, %v9888, %v6013
    %v10146 = vsel %vm10072, %v9889, %v6015
    %v10147 = vsel %vm10072, %v9890, %v6017
    %v10148 = vsel %vm10072, %v9891, %v6019
    %v10149 = vsel %vm10072, %v9892, %v6021
    %v10150 = vsel %vm10072, %v9893, %v6023
    %v10151 = vsel %vm10072, %v9894, %v6025
    %v10152 = vsel %vm10072, %v9895, %v6027
    %v10153 = vsel %vm10072, %v9896, %v6029
    %v10154 = vsel %vm10072, %v9897, %v6031
    %v10155 = vsel %vm10072, %v9898, %v6033
    %v10156 = vsel %vm10072, %v9899, %v6035
    %v10157 = vsel %vm10072, %v9900, %v6037
    %v10158 = vsel %vm10072, %v9901, %v6039
    %v10159 = vsel %vm10072, %v9902, %v6041
    %v10160 = vsel %vm10072, %v9903, %v6043
    %v10161 = vsel %vm10072, %v9904, %v6045
    %v10162 = vsel %vm10072, %v9905, %v6047
    %v10163 = vsel %vm10072, %v9906, %v6049
    %v10164 = vsel %vm10072, %v9907, %v6051
    %v10165 = vsel %vm10072, %v9908, %v6053
    %v10166 = vsel %vm10072, %v9909, %v6055
    %v10167 = vsel %vm10072, %v9910, %v6057
    %v10168 = vsel %vm10072, %v9911, %v6059
    %v10169 = vsel %vm10072, %v9912, %v6061
    %v10170 = vsel %vm10072, %v9913, %v6063
    %v10171 = vsel %vm10072, %v9914, %v6065
    %v10172 = vsel %vm10072, %v9915, %v6067
    %v10173 = vsel %vm10072, %v9916, %v6069
    %v10174 = vsel %vm10072, %v9917, %v6071
    %v10175 = vsel %vm10072, %v9918, %v6073
    %v10176 = vsel %vm10072, %v9919, %v6075
    %v10177 = vsel %vm10072, %v9920, %v6077
    %v10178 = vsel %vm10072, %v9921, %v6079
    %v10179 = vsel %vm10072, %v9922, %v6081
    %v10180 = vsel %vm10072, %v9923, %v6083
    %v10181 = vsel %vm10072, %v9924, %v6085
    %v10182 = vsel %vm10072, %v9925, %v6087
    %v10183 = vsel %vm10072, %v9926, %v6089
    %v10184 = vsel %vm10072, %v9927, %v6091
    %v10185 = vsel %vm10072, %v9928, %v6093
    %v10186 = vsel %vm10072, %v9929, %v6095
    %v10187 = vsel %vm10072, %v9930, %v6097
    %v10188 = vsel %vm10072, %v9931, %v6099
    %v10189 = vsel %vm10072, %v9932, %v6101
    %v10190 = vsel %vm10072, %v9933, %v6103
    %v10191 = vsel %vm10072, %v9934, %v6105
    %v10192 = vsel %vm10072, %v9935, %v6107
    %v10193 = vsel %vm10072, %v9936, %v6109
    %v10194 = vsel %vm10072, %v9937, %v6111
    %v10195 = vsel %vm10072, %v9938, %v6113
    %v10196 = vsel %vm10072, %v9939, %v6115
    %v10197 = vsel %vm10072, %v9940, %v6117
    %v10198 = vsel %vm10072, %v9941, %v6119
    %v10199 = vsel %vm10072, %v9942, %v6121
    %v10200 = vsel %vm10072, %v9943, %v6123
    %v10201 = vsel %vm10072, %v9944, %v6125
    %v10202 = vsel %vm10072, %v9945, %v6127
    %v10203 = vsel %vm10072, %v9946, %v6129
    %v10204 = vsel %vm10072, %v9947, %v6131
    %v10205 = vsel %vm10072, %v9948, %v6133
    %v10206 = vsel %vm10072, %v9949, %v6135
    %v10207 = vsel %vm10072, %v9950, %v6137
    %v10208 = vsel %vm10072, %v9951, %v6139
    %v10209 = vsel %vm10072, %v9952, %v6141
    %v10210 = vsel %vm10072, %v9953, %v6143
    %v10211 = vsel %vm10072, %v9954, %v6145
    %v10212 = vsel %vm10072, %v9955, %v6147
    %v10213 = vsel %vm10072, %v9956, %v6149
    %v10214 = vsel %vm10072, %v9957, %v6151
    %v10215 = vsel %vm10072, %v9958, %v6153
    %v10216 = vsel %vm10072, %v9959, %v6155
    %v10217 = vsel %vm10072, %v9960, %v6157
    %v10218 = vsel %vm10072, %v9961, %v6159
    %v10219 = vsel %vm10072, %v9962, %v6161
    %v10220 = vsel %vm10072, %v9963, %v6163
    %v10221 = vsel %vm10072, %v9964, %v6165
    %v10222 = vsel %vm10072, %v9965, %v6167
    %v10223 = vsel %vm10072, %v9966, %v6169
    %v10224 = vsel %vm10072, %v9967, %v6171
    %v10225 = vsel %vm10072, %v9968, %v6173
    %v10226 = vsel %vm10072, %v9969, %v6175
    %v10227 = vsel %vm10072, %v9970, %v6177
    %v10228 = vsel %vm10072, %v9971, %v6179
    %v10229 = vsel %vm10072, %v9972, %v6181
    %v10230 = vsel %vm10072, %v9973, %v6183
    %v10231 = vsel %vm10072, %v9974, %v6185
    %v10232 = vsel %vm10072, %v9975, %v6187
    %v10233 = vsel %vm10072, %v9976, %v6189
    %v10234 = vsel %vm10072, %v9977, %v6191
    %v10235 = vsel %vm10072, %v9978, %v6193
    %v10236 = vsel %vm10072, %v9979, %v6195
    %v10237 = vsel %vm10072, %v9980, %v6197
    %v10238 = vsel %vm10072, %v9981, %v6199
    %v10239 = vsel %vm10072, %v9982, %v6201
    %v10240 = vsel %vm10072, %v9983, %v6203
    %v10241 = vsel %vm10072, %v9984, %v6205
    %v10242 = vsel %vm10072, %v9985, %v6207
    %v10243 = vsel %vm10072, %v9986, %v6209
    %v10244 = vsel %vm10072, %v9987, %v6211
    %v10245 = vsel %vm10072, %v9988, %v6213
    %v10246 = vsel %vm10072, %v9989, %v6215
    %v10247 = vsel %vm10072, %v9990, %v6217
    %v10248 = vsel %vm10072, %v9991, %v6219
    %v10249 = vsel %vm10072, %v9992, %v6221
    %v10250 = vsel %vm10072, %v9993, %v6223
    %v10251 = vsel %vm10072, %v9994, %v6225
    %v10252 = vsel %vm10072, %v9995, %v6227
    %v10253 = vsel %vm10072, %v9996, %v6229
    %v10254 = vsel %vm10072, %v9997, %v6231
    %v10255 = vsel %vm10072, %v9998, %v6233
    %v10256 = vsel %vm10072, %v9999, %v6235
    %v10257 = vsel %vm10072, %v10000, %v6237
    %v10258 = vsel %vm10072, %v10001, %v6239
    %v10259 = vsel %vm10072, %v10002, %v6241
    %v10260 = vsel %vm10072, %v10003, %v6243
    %v10261 = vsel %vm10072, %v10004, %v6245
    %v10262 = vsel %vm10072, %v10005, %v6247
    %v10263 = vsel %vm10072, %v10006, %v6249
    %v10264 = vsel %vm10072, %v10007, %v6251
    %v10265 = vsel %vm10072, %v10008, %v6253
    %v10266 = vsel %vm10072, %v10009, %v6255
    %v10267 = vsel %vm10072, %v10010, %v6257
    %v10268 = vsel %vm10072, %v10011, %v6259
    %v10269 = vsel %vm10072, %v10012, %v6261
    %v10270 = vsel %vm10072, %v10013, %v6263
    %v10271 = vsel %vm10072, %v10014, %v6265
    %v10272 = vsel %vm10072, %v10015, %v6267
    %v10273 = vsel %vm10072, %v10016, %v6269
    %v10274 = vsel %vm10072, %v10017, %v6271
    %v10275 = vsel %vm10072, %v10018, %v6273
    %v10276 = vsel %vm10072, %v10019, %v6275
    %v10277 = vsel %vm10072, %v10020, %v6277
    %v10278 = vsel %vm10072, %v10021, %v6279
    %v10279 = vsel %vm10072, %v10022, %v6281
    %v10280 = vsel %vm10072, %v10023, %v6283
    %v10281 = vsel %vm10072, %v10024, %v6285
    %v10282 = vsel %vm10072, %v10025, %v6287
    %v10283 = vsel %vm10072, %v10026, %v6289
    %v10284 = vsel %vm10072, %v10027, %v6291
    %v10285 = vsel %vm10072, %v10028, %v6293
    %v10286 = vsel %vm10072, %v10029, %v6295
    %v10287 = vsel %vm10072, %v10030, %v6297
    %v10288 = vsel %vm10072, %v10031, %v6299
    %v10289 = vsel %vm10072, %v10032, %v6301
    %v10290 = vsel %vm10072, %v10033, %v6303
    %v10291 = vsel %vm10072, %v10034, %v6305
    %v10292 = vsel %vm10072, %v10035, %v6307
    %v10293 = vsel %vm10072, %v10036, %v6309
    %v10294 = vsel %vm10072, %v10037, %v6311
    %v10295 = vsel %vm10072, %v10038, %v6313
    %v10296 = vsel %vm10072, %v10039, %v6315
    %v10297 = vsel %vm10072, %v10040, %v6317
    %v10298 = vsel %vm10072, %v10041, %v6319
    %v10299 = vsel %vm10072, %v10042, %v6321
    %v10300 = vsel %vm10072, %v10043, %v6323
    %v10301 = vsel %vm10072, %v10044, %v6325
    %v10302 = vsel %vm10072, %v10045, %v6327
    %v10303 = vsel %vm10072, %v10046, %v6329
    %v10304 = vsel %vm10072, %v10047, %v6331
    %v10305 = vsel %vm10072, %v10048, %v6333
    %v10306 = vsel %vm10072, %v10049, %v6335
    %v10307 = vsel %vm10072, %v10050, %v6337
    %v10308 = vsel %vm10072, %v10051, %v6339
    %v10309 = vsel %vm10072, %v10052, %v6341
    %v10310 = vsel %vm10072, %v10053, %v6343
    %v10311 = vsel %vm10072, %v10054, %v6345
    %v10312 = vsel %vm10072, %v10055, %v6347
    %v10313 = vsel %vm10072, %v10056, %v6349
    %v10314 = vsel %vm10072, %v10057, %v6351
    %v10315 = vsel %vm10072, %v10058, %v6353
    %v10316 = vsel %vm10072, %v10059, %v6355
    %v10317 = vsel %vm10072, %v10060, %v6357
    %v10318 = vsel %vm10072, %v10061, %v6359
    %v10319 = vsel %vm10072, %v10062, %v6361
    %v10320 = vsel %vm10072, %v10063, %v6363
    %v10321 = vsel %vm10072, %v10064, %v6365
    %v10322 = vsel %vm10072, %v10065, %v6367
    %v10323 = vsel %vm10072, %v10066, %v6369
    %v10324 = vsel %vm10072, %v10067, %v6371
    %v10325 = vsel %vm10072, %v10068, %v6373
    %v10326 = vsel %vm10072, %v10069, %v6375
    %v10327 = vsel %vm10072, %v10070, %v6377
    %v10328 = vsel %vm10072, %v10071, %v6379
    %vm10329 = vcmask 195584
    %v10330 = vsel %vm10329, %v10073, %v6653
    %v10331 = vsel %vm10329, %v10074, %v6655
    %v10332 = vsel %vm10329, %v10075, %v6657
    %v10333 = vsel %vm10329, %v10076, %v6659
    %v10334 = vsel %vm10329, %v10077, %v6661
    %v10335 = vsel %vm10329, %v10078, %v6663
    %v10336 = vsel %vm10329, %v10079, %v6665
    %v10337 = vsel %vm10329, %v10080, %v6667
    %v10338 = vsel %vm10329, %v10081, %v6669
    %v10339 = vsel %vm10329, %v10082, %v6671
    %v10340 = vsel %vm10329, %v10083, %v6673
    %v10341 = vsel %vm10329, %v10084, %v6675
    %v10342 = vsel %vm10329, %v10085, %v6677
    %v10343 = vsel %vm10329, %v10086, %v6679
    %v10344 = vsel %vm10329, %v10087, %v6681
    %v10345 = vsel %vm10329, %v10088, %v6683
    %v10346 = vsel %vm10329, %v10089, %v6685
    %v10347 = vsel %vm10329, %v10090, %v6687
    %v10348 = vsel %vm10329, %v10091, %v6689
    %v10349 = vsel %vm10329, %v10092, %v6691
    %v10350 = vsel %vm10329, %v10093, %v6693
    %v10351 = vsel %vm10329, %v10094, %v6695
    %v10352 = vsel %vm10329, %v10095, %v6697
    %v10353 = vsel %vm10329, %v10096, %v6699
    %v10354 = vsel %vm10329, %v10097, %v6701
    %v10355 = vsel %vm10329, %v10098, %v6703
    %v10356 = vsel %vm10329, %v10099, %v6705
    %v10357 = vsel %vm10329, %v10100, %v6707
    %v10358 = vsel %vm10329, %v10101, %v6709
    %v10359 = vsel %vm10329, %v10102, %v6711
    %v10360 = vsel %vm10329, %v10103, %v6713
    %v10361 = vsel %vm10329, %v10104, %v6715
    %v10362 = vsel %vm10329, %v10105, %v6717
    %v10363 = vsel %vm10329, %v10106, %v6719
    %v10364 = vsel %vm10329, %v10107, %v6721
    %v10365 = vsel %vm10329, %v10108, %v6723
    %v10366 = vsel %vm10329, %v10109, %v6725
    %v10367 = vsel %vm10329, %v10110, %v6727
    %v10368 = vsel %vm10329, %v10111, %v6729
    %v10369 = vsel %vm10329, %v10112, %v6731
    %v10370 = vsel %vm10329, %v10113, %v6733
    %v10371 = vsel %vm10329, %v10114, %v6735
    %v10372 = vsel %vm10329, %v10115, %v6737
    %v10373 = vsel %vm10329, %v10116, %v6739
    %v10374 = vsel %vm10329, %v10117, %v6741
    %v10375 = vsel %vm10329, %v10118, %v6743
    %v10376 = vsel %vm10329, %v10119, %v6745
    %v10377 = vsel %vm10329, %v10120, %v6747
    %v10378 = vsel %vm10329, %v10121, %v6749
    %v10379 = vsel %vm10329, %v10122, %v6751
    %v10380 = vsel %vm10329, %v10123, %v6753
    %v10381 = vsel %vm10329, %v10124, %v6755
    %v10382 = vsel %vm10329, %v10125, %v6757
    %v10383 = vsel %vm10329, %v10126, %v6759
    %v10384 = vsel %vm10329, %v10127, %v6761
    %v10385 = vsel %vm10329, %v10128, %v6763
    %v10386 = vsel %vm10329, %v10129, %v6765
    %v10387 = vsel %vm10329, %v10130, %v6767
    %v10388 = vsel %vm10329, %v10131, %v6769
    %v10389 = vsel %vm10329, %v10132, %v6771
    %v10390 = vsel %vm10329, %v10133, %v6773
    %v10391 = vsel %vm10329, %v10134, %v6775
    %v10392 = vsel %vm10329, %v10135, %v6777
    %v10393 = vsel %vm10329, %v10136, %v6779
    %v10394 = vsel %vm10329, %v10137, %v6781
    %v10395 = vsel %vm10329, %v10138, %v6783
    %v10396 = vsel %vm10329, %v10139, %v6785
    %v10397 = vsel %vm10329, %v10140, %v6787
    %v10398 = vsel %vm10329, %v10141, %v6789
    %v10399 = vsel %vm10329, %v10142, %v6791
    %v10400 = vsel %vm10329, %v10143, %v6793
    %v10401 = vsel %vm10329, %v10144, %v6795
    %v10402 = vsel %vm10329, %v10145, %v6797
    %v10403 = vsel %vm10329, %v10146, %v6799
    %v10404 = vsel %vm10329, %v10147, %v6801
    %v10405 = vsel %vm10329, %v10148, %v6803
    %v10406 = vsel %vm10329, %v10149, %v6805
    %v10407 = vsel %vm10329, %v10150, %v6807
    %v10408 = vsel %vm10329, %v10151, %v6809
    %v10409 = vsel %vm10329, %v10152, %v6811
    %v10410 = vsel %vm10329, %v10153, %v6813
    %v10411 = vsel %vm10329, %v10154, %v6815
    %v10412 = vsel %vm10329, %v10155, %v6817
    %v10413 = vsel %vm10329, %v10156, %v6819
    %v10414 = vsel %vm10329, %v10157, %v6821
    %v10415 = vsel %vm10329, %v10158, %v6823
    %v10416 = vsel %vm10329, %v10159, %v6825
    %v10417 = vsel %vm10329, %v10160, %v6827
    %v10418 = vsel %vm10329, %v10161, %v6829
    %v10419 = vsel %vm10329, %v10162, %v6831
    %v10420 = vsel %vm10329, %v10163, %v6833
    %v10421 = vsel %vm10329, %v10164, %v6835
    %v10422 = vsel %vm10329, %v10165, %v6837
    %v10423 = vsel %vm10329, %v10166, %v6839
    %v10424 = vsel %vm10329, %v10167, %v6841
    %v10425 = vsel %vm10329, %v10168, %v6843
    %v10426 = vsel %vm10329, %v10169, %v6845
    %v10427 = vsel %vm10329, %v10170, %v6847
    %v10428 = vsel %vm10329, %v10171, %v6849
    %v10429 = vsel %vm10329, %v10172, %v6851
    %v10430 = vsel %vm10329, %v10173, %v6853
    %v10431 = vsel %vm10329, %v10174, %v6855
    %v10432 = vsel %vm10329, %v10175, %v6857
    %v10433 = vsel %vm10329, %v10176, %v6859
    %v10434 = vsel %vm10329, %v10177, %v6861
    %v10435 = vsel %vm10329, %v10178, %v6863
    %v10436 = vsel %vm10329, %v10179, %v6865
    %v10437 = vsel %vm10329, %v10180, %v6867
    %v10438 = vsel %vm10329, %v10181, %v6869
    %v10439 = vsel %vm10329, %v10182, %v6871
    %v10440 = vsel %vm10329, %v10183, %v6873
    %v10441 = vsel %vm10329, %v10184, %v6875
    %v10442 = vsel %vm10329, %v10185, %v6877
    %v10443 = vsel %vm10329, %v10186, %v6879
    %v10444 = vsel %vm10329, %v10187, %v6881
    %v10445 = vsel %vm10329, %v10188, %v6883
    %v10446 = vsel %vm10329, %v10189, %v6885
    %v10447 = vsel %vm10329, %v10190, %v6887
    %v10448 = vsel %vm10329, %v10191, %v6889
    %v10449 = vsel %vm10329, %v10192, %v6891
    %v10450 = vsel %vm10329, %v10193, %v6893
    %v10451 = vsel %vm10329, %v10194, %v6895
    %v10452 = vsel %vm10329, %v10195, %v6897
    %v10453 = vsel %vm10329, %v10196, %v6899
    %v10454 = vsel %vm10329, %v10197, %v6901
    %v10455 = vsel %vm10329, %v10198, %v6903
    %v10456 = vsel %vm10329, %v10199, %v6905
    %v10457 = vsel %vm10329, %v10200, %v6907
    %v10458 = vsel %vm10329, %v10201, %v6909
    %v10459 = vsel %vm10329, %v10202, %v6911
    %v10460 = vsel %vm10329, %v10203, %v6913
    %v10461 = vsel %vm10329, %v10204, %v6915
    %v10462 = vsel %vm10329, %v10205, %v6917
    %v10463 = vsel %vm10329, %v10206, %v6919
    %v10464 = vsel %vm10329, %v10207, %v6921
    %v10465 = vsel %vm10329, %v10208, %v6923
    %v10466 = vsel %vm10329, %v10209, %v6925
    %v10467 = vsel %vm10329, %v10210, %v6927
    %v10468 = vsel %vm10329, %v10211, %v6929
    %v10469 = vsel %vm10329, %v10212, %v6931
    %v10470 = vsel %vm10329, %v10213, %v6933
    %v10471 = vsel %vm10329, %v10214, %v6935
    %v10472 = vsel %vm10329, %v10215, %v6937
    %v10473 = vsel %vm10329, %v10216, %v6939
    %v10474 = vsel %vm10329, %v10217, %v6941
    %v10475 = vsel %vm10329, %v10218, %v6943
    %v10476 = vsel %vm10329, %v10219, %v6945
    %v10477 = vsel %vm10329, %v10220, %v6947
    %v10478 = vsel %vm10329, %v10221, %v6949
    %v10479 = vsel %vm10329, %v10222, %v6951
    %v10480 = vsel %vm10329, %v10223, %v6953
    %v10481 = vsel %vm10329, %v10224, %v6955
    %v10482 = vsel %vm10329, %v10225, %v6957
    %v10483 = vsel %vm10329, %v10226, %v6959
    %v10484 = vsel %vm10329, %v10227, %v6961
    %v10485 = vsel %vm10329, %v10228, %v6963
    %v10486 = vsel %vm10329, %v10229, %v6965
    %v10487 = vsel %vm10329, %v10230, %v6967
    %v10488 = vsel %vm10329, %v10231, %v6969
    %v10489 = vsel %vm10329, %v10232, %v6971
    %v10490 = vsel %vm10329, %v10233, %v6973
    %v10491 = vsel %vm10329, %v10234, %v6975
    %v10492 = vsel %vm10329, %v10235, %v6977
    %v10493 = vsel %vm10329, %v10236, %v6979
    %v10494 = vsel %vm10329, %v10237, %v6981
    %v10495 = vsel %vm10329, %v10238, %v6983
    %v10496 = vsel %vm10329, %v10239, %v6985
    %v10497 = vsel %vm10329, %v10240, %v6987
    %v10498 = vsel %vm10329, %v10241, %v6989
    %v10499 = vsel %vm10329, %v10242, %v6991
    %v10500 = vsel %vm10329, %v10243, %v6993
    %v10501 = vsel %vm10329, %v10244, %v6995
    %v10502 = vsel %vm10329, %v10245, %v6997
    %v10503 = vsel %vm10329, %v10246, %v6999
    %v10504 = vsel %vm10329, %v10247, %v7001
    %v10505 = vsel %vm10329, %v10248, %v7003
    %v10506 = vsel %vm10329, %v10249, %v7005
    %v10507 = vsel %vm10329, %v10250, %v7007
    %v10508 = vsel %vm10329, %v10251, %v7009
    %v10509 = vsel %vm10329, %v10252, %v7011
    %v10510 = vsel %vm10329, %v10253, %v7013
    %v10511 = vsel %vm10329, %v10254, %v7015
    %v10512 = vsel %vm10329, %v10255, %v7017
    %v10513 = vsel %vm10329, %v10256, %v7019
    %v10514 = vsel %vm10329, %v10257, %v7021
    %v10515 = vsel %vm10329, %v10258, %v7023
    %v10516 = vsel %vm10329, %v10259, %v7025
    %v10517 = vsel %vm10329, %v10260, %v7027
    %v10518 = vsel %vm10329, %v10261, %v7029
    %v10519 = vsel %vm10329, %v10262, %v7031
    %v10520 = vsel %vm10329, %v10263, %v7033
    %v10521 = vsel %vm10329, %v10264, %v7035
    %v10522 = vsel %vm10329, %v10265, %v7037
    %v10523 = vsel %vm10329, %v10266, %v7039
    %v10524 = vsel %vm10329, %v10267, %v7041
    %v10525 = vsel %vm10329, %v10268, %v7043
    %v10526 = vsel %vm10329, %v10269, %v7045
    %v10527 = vsel %vm10329, %v10270, %v7047
    %v10528 = vsel %vm10329, %v10271, %v7049
    %v10529 = vsel %vm10329, %v10272, %v7051
    %v10530 = vsel %vm10329, %v10273, %v7053
    %v10531 = vsel %vm10329, %v10274, %v7055
    %v10532 = vsel %vm10329, %v10275, %v7057
    %v10533 = vsel %vm10329, %v10276, %v7059
    %v10534 = vsel %vm10329, %v10277, %v7061
    %v10535 = vsel %vm10329, %v10278, %v7063
    %v10536 = vsel %vm10329, %v10279, %v7065
    %v10537 = vsel %vm10329, %v10280, %v7067
    %v10538 = vsel %vm10329, %v10281, %v7069
    %v10539 = vsel %vm10329, %v10282, %v7071
    %v10540 = vsel %vm10329, %v10283, %v7073
    %v10541 = vsel %vm10329, %v10284, %v7075
    %v10542 = vsel %vm10329, %v10285, %v7077
    %v10543 = vsel %vm10329, %v10286, %v7079
    %v10544 = vsel %vm10329, %v10287, %v7081
    %v10545 = vsel %vm10329, %v10288, %v7083
    %v10546 = vsel %vm10329, %v10289, %v7085
    %v10547 = vsel %vm10329, %v10290, %v7087
    %v10548 = vsel %vm10329, %v10291, %v7089
    %v10549 = vsel %vm10329, %v10292, %v7091
    %v10550 = vsel %vm10329, %v10293, %v7093
    %v10551 = vsel %vm10329, %v10294, %v7095
    %v10552 = vsel %vm10329, %v10295, %v7097
    %v10553 = vsel %vm10329, %v10296, %v7099
    %v10554 = vsel %vm10329, %v10297, %v7101
    %v10555 = vsel %vm10329, %v10298, %v7103
    %v10556 = vsel %vm10329, %v10299, %v7105
    %v10557 = vsel %vm10329, %v10300, %v7107
    %v10558 = vsel %vm10329, %v10301, %v7109
    %v10559 = vsel %vm10329, %v10302, %v7111
    %v10560 = vsel %vm10329, %v10303, %v7113
    %v10561 = vsel %vm10329, %v10304, %v7115
    %v10562 = vsel %vm10329, %v10305, %v7117
    %v10563 = vsel %vm10329, %v10306, %v7119
    %v10564 = vsel %vm10329, %v10307, %v7121
    %v10565 = vsel %vm10329, %v10308, %v7123
    %v10566 = vsel %vm10329, %v10309, %v7125
    %v10567 = vsel %vm10329, %v10310, %v7127
    %v10568 = vsel %vm10329, %v10311, %v7129
    %v10569 = vsel %vm10329, %v10312, %v7131
    %v10570 = vsel %vm10329, %v10313, %v7133
    %v10571 = vsel %vm10329, %v10314, %v7135
    %v10572 = vsel %vm10329, %v10315, %v7137
    %v10573 = vsel %vm10329, %v10316, %v7139
    %v10574 = vsel %vm10329, %v10317, %v7141
    %v10575 = vsel %vm10329, %v10318, %v7143
    %v10576 = vsel %vm10329, %v10319, %v7145
    %v10577 = vsel %vm10329, %v10320, %v7147
    %v10578 = vsel %vm10329, %v10321, %v7149
    %v10579 = vsel %vm10329, %v10322, %v7151
    %v10580 = vsel %vm10329, %v10323, %v7153
    %v10581 = vsel %vm10329, %v10324, %v7155
    %v10582 = vsel %vm10329, %v10325, %v7157
    %v10583 = vsel %vm10329, %v10326, %v7159
    %v10584 = vsel %vm10329, %v10327, %v7161
    %v10585 = vsel %vm10329, %v10328, %v7163
    %vm10586 = vcmask 228352
    %v10587 = vsel %vm10586, %v10330, %v7469
    %v10588 = vsel %vm10586, %v10331, %v7471
    %v10589 = vsel %vm10586, %v10332, %v7473
    %v10590 = vsel %vm10586, %v10333, %v7475
    %v10591 = vsel %vm10586, %v10334, %v7477
    %v10592 = vsel %vm10586, %v10335, %v7479
    %v10593 = vsel %vm10586, %v10336, %v7481
    %v10594 = vsel %vm10586, %v10337, %v7483
    %v10595 = vsel %vm10586, %v10338, %v7485
    %v10596 = vsel %vm10586, %v10339, %v7487
    %v10597 = vsel %vm10586, %v10340, %v7489
    %v10598 = vsel %vm10586, %v10341, %v7491
    %v10599 = vsel %vm10586, %v10342, %v7493
    %v10600 = vsel %vm10586, %v10343, %v7495
    %v10601 = vsel %vm10586, %v10344, %v7497
    %v10602 = vsel %vm10586, %v10345, %v7499
    %v10603 = vsel %vm10586, %v10346, %v7501
    %v10604 = vsel %vm10586, %v10347, %v7503
    %v10605 = vsel %vm10586, %v10348, %v7505
    %v10606 = vsel %vm10586, %v10349, %v7507
    %v10607 = vsel %vm10586, %v10350, %v7509
    %v10608 = vsel %vm10586, %v10351, %v7511
    %v10609 = vsel %vm10586, %v10352, %v7513
    %v10610 = vsel %vm10586, %v10353, %v7515
    %v10611 = vsel %vm10586, %v10354, %v7517
    %v10612 = vsel %vm10586, %v10355, %v7519
    %v10613 = vsel %vm10586, %v10356, %v7521
    %v10614 = vsel %vm10586, %v10357, %v7523
    %v10615 = vsel %vm10586, %v10358, %v7525
    %v10616 = vsel %vm10586, %v10359, %v7527
    %v10617 = vsel %vm10586, %v10360, %v7529
    %v10618 = vsel %vm10586, %v10361, %v7531
    %v10619 = vsel %vm10586, %v10362, %v7533
    %v10620 = vsel %vm10586, %v10363, %v7535
    %v10621 = vsel %vm10586, %v10364, %v7537
    %v10622 = vsel %vm10586, %v10365, %v7539
    %v10623 = vsel %vm10586, %v10366, %v7541
    %v10624 = vsel %vm10586, %v10367, %v7543
    %v10625 = vsel %vm10586, %v10368, %v7545
    %v10626 = vsel %vm10586, %v10369, %v7547
    %v10627 = vsel %vm10586, %v10370, %v7549
    %v10628 = vsel %vm10586, %v10371, %v7551
    %v10629 = vsel %vm10586, %v10372, %v7553
    %v10630 = vsel %vm10586, %v10373, %v7555
    %v10631 = vsel %vm10586, %v10374, %v7557
    %v10632 = vsel %vm10586, %v10375, %v7559
    %v10633 = vsel %vm10586, %v10376, %v7561
    %v10634 = vsel %vm10586, %v10377, %v7563
    %v10635 = vsel %vm10586, %v10378, %v7565
    %v10636 = vsel %vm10586, %v10379, %v7567
    %v10637 = vsel %vm10586, %v10380, %v7569
    %v10638 = vsel %vm10586, %v10381, %v7571
    %v10639 = vsel %vm10586, %v10382, %v7573
    %v10640 = vsel %vm10586, %v10383, %v7575
    %v10641 = vsel %vm10586, %v10384, %v7577
    %v10642 = vsel %vm10586, %v10385, %v7579
    %v10643 = vsel %vm10586, %v10386, %v7581
    %v10644 = vsel %vm10586, %v10387, %v7583
    %v10645 = vsel %vm10586, %v10388, %v7585
    %v10646 = vsel %vm10586, %v10389, %v7587
    %v10647 = vsel %vm10586, %v10390, %v7589
    %v10648 = vsel %vm10586, %v10391, %v7591
    %v10649 = vsel %vm10586, %v10392, %v7593
    %v10650 = vsel %vm10586, %v10393, %v7595
    %v10651 = vsel %vm10586, %v10394, %v7597
    %v10652 = vsel %vm10586, %v10395, %v7599
    %v10653 = vsel %vm10586, %v10396, %v7601
    %v10654 = vsel %vm10586, %v10397, %v7603
    %v10655 = vsel %vm10586, %v10398, %v7605
    %v10656 = vsel %vm10586, %v10399, %v7607
    %v10657 = vsel %vm10586, %v10400, %v7609
    %v10658 = vsel %vm10586, %v10401, %v7611
    %v10659 = vsel %vm10586, %v10402, %v7613
    %v10660 = vsel %vm10586, %v10403, %v7615
    %v10661 = vsel %vm10586, %v10404, %v7617
    %v10662 = vsel %vm10586, %v10405, %v7619
    %v10663 = vsel %vm10586, %v10406, %v7621
    %v10664 = vsel %vm10586, %v10407, %v7623
    %v10665 = vsel %vm10586, %v10408, %v7625
    %v10666 = vsel %vm10586, %v10409, %v7627
    %v10667 = vsel %vm10586, %v10410, %v7629
    %v10668 = vsel %vm10586, %v10411, %v7631
    %v10669 = vsel %vm10586, %v10412, %v7633
    %v10670 = vsel %vm10586, %v10413, %v7635
    %v10671 = vsel %vm10586, %v10414, %v7637
    %v10672 = vsel %vm10586, %v10415, %v7639
    %v10673 = vsel %vm10586, %v10416, %v7641
    %v10674 = vsel %vm10586, %v10417, %v7643
    %v10675 = vsel %vm10586, %v10418, %v7645
    %v10676 = vsel %vm10586, %v10419, %v7647
    %v10677 = vsel %vm10586, %v10420, %v7649
    %v10678 = vsel %vm10586, %v10421, %v7651
    %v10679 = vsel %vm10586, %v10422, %v7653
    %v10680 = vsel %vm10586, %v10423, %v7655
    %v10681 = vsel %vm10586, %v10424, %v7657
    %v10682 = vsel %vm10586, %v10425, %v7659
    %v10683 = vsel %vm10586, %v10426, %v7661
    %v10684 = vsel %vm10586, %v10427, %v7663
    %v10685 = vsel %vm10586, %v10428, %v7665
    %v10686 = vsel %vm10586, %v10429, %v7667
    %v10687 = vsel %vm10586, %v10430, %v7669
    %v10688 = vsel %vm10586, %v10431, %v7671
    %v10689 = vsel %vm10586, %v10432, %v7673
    %v10690 = vsel %vm10586, %v10433, %v7675
    %v10691 = vsel %vm10586, %v10434, %v7677
    %v10692 = vsel %vm10586, %v10435, %v7679
    %v10693 = vsel %vm10586, %v10436, %v7681
    %v10694 = vsel %vm10586, %v10437, %v7683
    %v10695 = vsel %vm10586, %v10438, %v7685
    %v10696 = vsel %vm10586, %v10439, %v7687
    %v10697 = vsel %vm10586, %v10440, %v7689
    %v10698 = vsel %vm10586, %v10441, %v7691
    %v10699 = vsel %vm10586, %v10442, %v7693
    %v10700 = vsel %vm10586, %v10443, %v7695
    %v10701 = vsel %vm10586, %v10444, %v7697
    %v10702 = vsel %vm10586, %v10445, %v7699
    %v10703 = vsel %vm10586, %v10446, %v7701
    %v10704 = vsel %vm10586, %v10447, %v7703
    %v10705 = vsel %vm10586, %v10448, %v7705
    %v10706 = vsel %vm10586, %v10449, %v7707
    %v10707 = vsel %vm10586, %v10450, %v7709
    %v10708 = vsel %vm10586, %v10451, %v7711
    %v10709 = vsel %vm10586, %v10452, %v7713
    %v10710 = vsel %vm10586, %v10453, %v7715
    %v10711 = vsel %vm10586, %v10454, %v7717
    %v10712 = vsel %vm10586, %v10455, %v7719
    %v10713 = vsel %vm10586, %v10456, %v7721
    %v10714 = vsel %vm10586, %v10457, %v7723
    %v10715 = vsel %vm10586, %v10458, %v7725
    %v10716 = vsel %vm10586, %v10459, %v7727
    %v10717 = vsel %vm10586, %v10460, %v7729
    %v10718 = vsel %vm10586, %v10461, %v7731
    %v10719 = vsel %vm10586, %v10462, %v7733
    %v10720 = vsel %vm10586, %v10463, %v7735
    %v10721 = vsel %vm10586, %v10464, %v7737
    %v10722 = vsel %vm10586, %v10465, %v7739
    %v10723 = vsel %vm10586, %v10466, %v7741
    %v10724 = vsel %vm10586, %v10467, %v7743
    %v10725 = vsel %vm10586, %v10468, %v7745
    %v10726 = vsel %vm10586, %v10469, %v7747
    %v10727 = vsel %vm10586, %v10470, %v7749
    %v10728 = vsel %vm10586, %v10471, %v7751
    %v10729 = vsel %vm10586, %v10472, %v7753
    %v10730 = vsel %vm10586, %v10473, %v7755
    %v10731 = vsel %vm10586, %v10474, %v7757
    %v10732 = vsel %vm10586, %v10475, %v7759
    %v10733 = vsel %vm10586, %v10476, %v7761
    %v10734 = vsel %vm10586, %v10477, %v7763
    %v10735 = vsel %vm10586, %v10478, %v7765
    %v10736 = vsel %vm10586, %v10479, %v7767
    %v10737 = vsel %vm10586, %v10480, %v7769
    %v10738 = vsel %vm10586, %v10481, %v7771
    %v10739 = vsel %vm10586, %v10482, %v7773
    %v10740 = vsel %vm10586, %v10483, %v7775
    %v10741 = vsel %vm10586, %v10484, %v7777
    %v10742 = vsel %vm10586, %v10485, %v7779
    %v10743 = vsel %vm10586, %v10486, %v7781
    %v10744 = vsel %vm10586, %v10487, %v7783
    %v10745 = vsel %vm10586, %v10488, %v7785
    %v10746 = vsel %vm10586, %v10489, %v7787
    %v10747 = vsel %vm10586, %v10490, %v7789
    %v10748 = vsel %vm10586, %v10491, %v7791
    %v10749 = vsel %vm10586, %v10492, %v7793
    %v10750 = vsel %vm10586, %v10493, %v7795
    %v10751 = vsel %vm10586, %v10494, %v7797
    %v10752 = vsel %vm10586, %v10495, %v7799
    %v10753 = vsel %vm10586, %v10496, %v7801
    %v10754 = vsel %vm10586, %v10497, %v7803
    %v10755 = vsel %vm10586, %v10498, %v7805
    %v10756 = vsel %vm10586, %v10499, %v7807
    %v10757 = vsel %vm10586, %v10500, %v7809
    %v10758 = vsel %vm10586, %v10501, %v7811
    %v10759 = vsel %vm10586, %v10502, %v7813
    %v10760 = vsel %vm10586, %v10503, %v7815
    %v10761 = vsel %vm10586, %v10504, %v7817
    %v10762 = vsel %vm10586, %v10505, %v7819
    %v10763 = vsel %vm10586, %v10506, %v7821
    %v10764 = vsel %vm10586, %v10507, %v7823
    %v10765 = vsel %vm10586, %v10508, %v7825
    %v10766 = vsel %vm10586, %v10509, %v7827
    %v10767 = vsel %vm10586, %v10510, %v7829
    %v10768 = vsel %vm10586, %v10511, %v7831
    %v10769 = vsel %vm10586, %v10512, %v7833
    %v10770 = vsel %vm10586, %v10513, %v7835
    %v10771 = vsel %vm10586, %v10514, %v7837
    %v10772 = vsel %vm10586, %v10515, %v7839
    %v10773 = vsel %vm10586, %v10516, %v7841
    %v10774 = vsel %vm10586, %v10517, %v7843
    %v10775 = vsel %vm10586, %v10518, %v7845
    %v10776 = vsel %vm10586, %v10519, %v7847
    %v10777 = vsel %vm10586, %v10520, %v7849
    %v10778 = vsel %vm10586, %v10521, %v7851
    %v10779 = vsel %vm10586, %v10522, %v7853
    %v10780 = vsel %vm10586, %v10523, %v7855
    %v10781 = vsel %vm10586, %v10524, %v7857
    %v10782 = vsel %vm10586, %v10525, %v7859
    %v10783 = vsel %vm10586, %v10526, %v7861
    %v10784 = vsel %vm10586, %v10527, %v7863
    %v10785 = vsel %vm10586, %v10528, %v7865
    %v10786 = vsel %vm10586, %v10529, %v7867
    %v10787 = vsel %vm10586, %v10530, %v7869
    %v10788 = vsel %vm10586, %v10531, %v7871
    %v10789 = vsel %vm10586, %v10532, %v7873
    %v10790 = vsel %vm10586, %v10533, %v7875
    %v10791 = vsel %vm10586, %v10534, %v7877
    %v10792 = vsel %vm10586, %v10535, %v7879
    %v10793 = vsel %vm10586, %v10536, %v7881
    %v10794 = vsel %vm10586, %v10537, %v7883
    %v10795 = vsel %vm10586, %v10538, %v7885
    %v10796 = vsel %vm10586, %v10539, %v7887
    %v10797 = vsel %vm10586, %v10540, %v7889
    %v10798 = vsel %vm10586, %v10541, %v7891
    %v10799 = vsel %vm10586, %v10542, %v7893
    %v10800 = vsel %vm10586, %v10543, %v7895
    %v10801 = vsel %vm10586, %v10544, %v7897
    %v10802 = vsel %vm10586, %v10545, %v7899
    %v10803 = vsel %vm10586, %v10546, %v7901
    %v10804 = vsel %vm10586, %v10547, %v7903
    %v10805 = vsel %vm10586, %v10548, %v7905
    %v10806 = vsel %vm10586, %v10549, %v7907
    %v10807 = vsel %vm10586, %v10550, %v7909
    %v10808 = vsel %vm10586, %v10551, %v7911
    %v10809 = vsel %vm10586, %v10552, %v7913
    %v10810 = vsel %vm10586, %v10553, %v7915
    %v10811 = vsel %vm10586, %v10554, %v7917
    %v10812 = vsel %vm10586, %v10555, %v7919
    %v10813 = vsel %vm10586, %v10556, %v7921
    %v10814 = vsel %vm10586, %v10557, %v7923
    %v10815 = vsel %vm10586, %v10558, %v7925
    %v10816 = vsel %vm10586, %v10559, %v7927
    %v10817 = vsel %vm10586, %v10560, %v7929
    %v10818 = vsel %vm10586, %v10561, %v7931
    %v10819 = vsel %vm10586, %v10562, %v7933
    %v10820 = vsel %vm10586, %v10563, %v7935
    %v10821 = vsel %vm10586, %v10564, %v7937
    %v10822 = vsel %vm10586, %v10565, %v7939
    %v10823 = vsel %vm10586, %v10566, %v7941
    %v10824 = vsel %vm10586, %v10567, %v7943
    %v10825 = vsel %vm10586, %v10568, %v7945
    %v10826 = vsel %vm10586, %v10569, %v7947
    %v10827 = vsel %vm10586, %v10570, %v7949
    %v10828 = vsel %vm10586, %v10571, %v7951
    %v10829 = vsel %vm10586, %v10572, %v7953
    %v10830 = vsel %vm10586, %v10573, %v7955
    %v10831 = vsel %vm10586, %v10574, %v7957
    %v10832 = vsel %vm10586, %v10575, %v7959
    %v10833 = vsel %vm10586, %v10576, %v7961
    %v10834 = vsel %vm10586, %v10577, %v7963
    %v10835 = vsel %vm10586, %v10578, %v7965
    %v10836 = vsel %vm10586, %v10579, %v7967
    %v10837 = vsel %vm10586, %v10580, %v7969
    %v10838 = vsel %vm10586, %v10581, %v7971
    %v10839 = vsel %vm10586, %v10582, %v7973
    %v10840 = vsel %vm10586, %v10583, %v7975
    %v10841 = vsel %vm10586, %v10584, %v7977
    %v10842 = vsel %vm10586, %v10585, %v7979
    %vm10843 = vcmask 261120
    %v10844 = vsel %vm10843, %v10587, %v8277
    %v10845 = vsel %vm10843, %v10588, %v8279
    %v10846 = vsel %vm10843, %v10589, %v8281
    %v10847 = vsel %vm10843, %v10590, %v8283
    %v10848 = vsel %vm10843, %v10591, %v8285
    %v10849 = vsel %vm10843, %v10592, %v8287
    %v10850 = vsel %vm10843, %v10593, %v8289
    %v10851 = vsel %vm10843, %v10594, %v8291
    %v10852 = vsel %vm10843, %v10595, %v8293
    %v10853 = vsel %vm10843, %v10596, %v8295
    %v10854 = vsel %vm10843, %v10597, %v8297
    %v10855 = vsel %vm10843, %v10598, %v8299
    %v10856 = vsel %vm10843, %v10599, %v8301
    %v10857 = vsel %vm10843, %v10600, %v8303
    %v10858 = vsel %vm10843, %v10601, %v8305
    %v10859 = vsel %vm10843, %v10602, %v8307
    %v10860 = vsel %vm10843, %v10603, %v8309
    %v10861 = vsel %vm10843, %v10604, %v8311
    %v10862 = vsel %vm10843, %v10605, %v8313
    %v10863 = vsel %vm10843, %v10606, %v8315
    %v10864 = vsel %vm10843, %v10607, %v8317
    %v10865 = vsel %vm10843, %v10608, %v8319
    %v10866 = vsel %vm10843, %v10609, %v8321
    %v10867 = vsel %vm10843, %v10610, %v8323
    %v10868 = vsel %vm10843, %v10611, %v8325
    %v10869 = vsel %vm10843, %v10612, %v8327
    %v10870 = vsel %vm10843, %v10613, %v8329
    %v10871 = vsel %vm10843, %v10614, %v8331
    %v10872 = vsel %vm10843, %v10615, %v8333
    %v10873 = vsel %vm10843, %v10616, %v8335
    %v10874 = vsel %vm10843, %v10617, %v8337
    %v10875 = vsel %vm10843, %v10618, %v8339
    %v10876 = vsel %vm10843, %v10619, %v8341
    %v10877 = vsel %vm10843, %v10620, %v8343
    %v10878 = vsel %vm10843, %v10621, %v8345
    %v10879 = vsel %vm10843, %v10622, %v8347
    %v10880 = vsel %vm10843, %v10623, %v8349
    %v10881 = vsel %vm10843, %v10624, %v8351
    %v10882 = vsel %vm10843, %v10625, %v8353
    %v10883 = vsel %vm10843, %v10626, %v8355
    %v10884 = vsel %vm10843, %v10627, %v8357
    %v10885 = vsel %vm10843, %v10628, %v8359
    %v10886 = vsel %vm10843, %v10629, %v8361
    %v10887 = vsel %vm10843, %v10630, %v8363
    %v10888 = vsel %vm10843, %v10631, %v8365
    %v10889 = vsel %vm10843, %v10632, %v8367
    %v10890 = vsel %vm10843, %v10633, %v8369
    %v10891 = vsel %vm10843, %v10634, %v8371
    %v10892 = vsel %vm10843, %v10635, %v8373
    %v10893 = vsel %vm10843, %v10636, %v8375
    %v10894 = vsel %vm10843, %v10637, %v8377
    %v10895 = vsel %vm10843, %v10638, %v8379
    %v10896 = vsel %vm10843, %v10639, %v8381
    %v10897 = vsel %vm10843, %v10640, %v8383
    %v10898 = vsel %vm10843, %v10641, %v8385
    %v10899 = vsel %vm10843, %v10642, %v8387
    %v10900 = vsel %vm10843, %v10643, %v8389
    %v10901 = vsel %vm10843, %v10644, %v8391
    %v10902 = vsel %vm10843, %v10645, %v8393
    %v10903 = vsel %vm10843, %v10646, %v8395
    %v10904 = vsel %vm10843, %v10647, %v8397
    %v10905 = vsel %vm10843, %v10648, %v8399
    %v10906 = vsel %vm10843, %v10649, %v8401
    %v10907 = vsel %vm10843, %v10650, %v8403
    %v10908 = vsel %vm10843, %v10651, %v8405
    %v10909 = vsel %vm10843, %v10652, %v8407
    %v10910 = vsel %vm10843, %v10653, %v8409
    %v10911 = vsel %vm10843, %v10654, %v8411
    %v10912 = vsel %vm10843, %v10655, %v8413
    %v10913 = vsel %vm10843, %v10656, %v8415
    %v10914 = vsel %vm10843, %v10657, %v8417
    %v10915 = vsel %vm10843, %v10658, %v8419
    %v10916 = vsel %vm10843, %v10659, %v8421
    %v10917 = vsel %vm10843, %v10660, %v8423
    %v10918 = vsel %vm10843, %v10661, %v8425
    %v10919 = vsel %vm10843, %v10662, %v8427
    %v10920 = vsel %vm10843, %v10663, %v8429
    %v10921 = vsel %vm10843, %v10664, %v8431
    %v10922 = vsel %vm10843, %v10665, %v8433
    %v10923 = vsel %vm10843, %v10666, %v8435
    %v10924 = vsel %vm10843, %v10667, %v8437
    %v10925 = vsel %vm10843, %v10668, %v8439
    %v10926 = vsel %vm10843, %v10669, %v8441
    %v10927 = vsel %vm10843, %v10670, %v8443
    %v10928 = vsel %vm10843, %v10671, %v8445
    %v10929 = vsel %vm10843, %v10672, %v8447
    %v10930 = vsel %vm10843, %v10673, %v8449
    %v10931 = vsel %vm10843, %v10674, %v8451
    %v10932 = vsel %vm10843, %v10675, %v8453
    %v10933 = vsel %vm10843, %v10676, %v8455
    %v10934 = vsel %vm10843, %v10677, %v8457
    %v10935 = vsel %vm10843, %v10678, %v8459
    %v10936 = vsel %vm10843, %v10679, %v8461
    %v10937 = vsel %vm10843, %v10680, %v8463
    %v10938 = vsel %vm10843, %v10681, %v8465
    %v10939 = vsel %vm10843, %v10682, %v8467
    %v10940 = vsel %vm10843, %v10683, %v8469
    %v10941 = vsel %vm10843, %v10684, %v8471
    %v10942 = vsel %vm10843, %v10685, %v8473
    %v10943 = vsel %vm10843, %v10686, %v8475
    %v10944 = vsel %vm10843, %v10687, %v8477
    %v10945 = vsel %vm10843, %v10688, %v8479
    %v10946 = vsel %vm10843, %v10689, %v8481
    %v10947 = vsel %vm10843, %v10690, %v8483
    %v10948 = vsel %vm10843, %v10691, %v8485
    %v10949 = vsel %vm10843, %v10692, %v8487
    %v10950 = vsel %vm10843, %v10693, %v8489
    %v10951 = vsel %vm10843, %v10694, %v8491
    %v10952 = vsel %vm10843, %v10695, %v8493
    %v10953 = vsel %vm10843, %v10696, %v8495
    %v10954 = vsel %vm10843, %v10697, %v8497
    %v10955 = vsel %vm10843, %v10698, %v8499
    %v10956 = vsel %vm10843, %v10699, %v8501
    %v10957 = vsel %vm10843, %v10700, %v8503
    %v10958 = vsel %vm10843, %v10701, %v8505
    %v10959 = vsel %vm10843, %v10702, %v8507
    %v10960 = vsel %vm10843, %v10703, %v8509
    %v10961 = vsel %vm10843, %v10704, %v8511
    %v10962 = vsel %vm10843, %v10705, %v8513
    %v10963 = vsel %vm10843, %v10706, %v8515
    %v10964 = vsel %vm10843, %v10707, %v8517
    %v10965 = vsel %vm10843, %v10708, %v8519
    %v10966 = vsel %vm10843, %v10709, %v8521
    %v10967 = vsel %vm10843, %v10710, %v8523
    %v10968 = vsel %vm10843, %v10711, %v8525
    %v10969 = vsel %vm10843, %v10712, %v8527
    %v10970 = vsel %vm10843, %v10713, %v8529
    %v10971 = vsel %vm10843, %v10714, %v8531
    %v10972 = vsel %vm10843, %v10715, %v8533
    %v10973 = vsel %vm10843, %v10716, %v8535
    %v10974 = vsel %vm10843, %v10717, %v8537
    %v10975 = vsel %vm10843, %v10718, %v8539
    %v10976 = vsel %vm10843, %v10719, %v8541
    %v10977 = vsel %vm10843, %v10720, %v8543
    %v10978 = vsel %vm10843, %v10721, %v8545
    %v10979 = vsel %vm10843, %v10722, %v8547
    %v10980 = vsel %vm10843, %v10723, %v8549
    %v10981 = vsel %vm10843, %v10724, %v8551
    %v10982 = vsel %vm10843, %v10725, %v8553
    %v10983 = vsel %vm10843, %v10726, %v8555
    %v10984 = vsel %vm10843, %v10727, %v8557
    %v10985 = vsel %vm10843, %v10728, %v8559
    %v10986 = vsel %vm10843, %v10729, %v8561
    %v10987 = vsel %vm10843, %v10730, %v8563
    %v10988 = vsel %vm10843, %v10731, %v8565
    %v10989 = vsel %vm10843, %v10732, %v8567
    %v10990 = vsel %vm10843, %v10733, %v8569
    %v10991 = vsel %vm10843, %v10734, %v8571
    %v10992 = vsel %vm10843, %v10735, %v8573
    %v10993 = vsel %vm10843, %v10736, %v8575
    %v10994 = vsel %vm10843, %v10737, %v8577
    %v10995 = vsel %vm10843, %v10738, %v8579
    %v10996 = vsel %vm10843, %v10739, %v8581
    %v10997 = vsel %vm10843, %v10740, %v8583
    %v10998 = vsel %vm10843, %v10741, %v8585
    %v10999 = vsel %vm10843, %v10742, %v8587
    %v11000 = vsel %vm10843, %v10743, %v8589
    %v11001 = vsel %vm10843, %v10744, %v8591
    %v11002 = vsel %vm10843, %v10745, %v8593
    %v11003 = vsel %vm10843, %v10746, %v8595
    %v11004 = vsel %vm10843, %v10747, %v8597
    %v11005 = vsel %vm10843, %v10748, %v8599
    %v11006 = vsel %vm10843, %v10749, %v8601
    %v11007 = vsel %vm10843, %v10750, %v8603
    %v11008 = vsel %vm10843, %v10751, %v8605
    %v11009 = vsel %vm10843, %v10752, %v8607
    %v11010 = vsel %vm10843, %v10753, %v8609
    %v11011 = vsel %vm10843, %v10754, %v8611
    %v11012 = vsel %vm10843, %v10755, %v8613
    %v11013 = vsel %vm10843, %v10756, %v8615
    %v11014 = vsel %vm10843, %v10757, %v8617
    %v11015 = vsel %vm10843, %v10758, %v8619
    %v11016 = vsel %vm10843, %v10759, %v8621
    %v11017 = vsel %vm10843, %v10760, %v8623
    %v11018 = vsel %vm10843, %v10761, %v8625
    %v11019 = vsel %vm10843, %v10762, %v8627
    %v11020 = vsel %vm10843, %v10763, %v8629
    %v11021 = vsel %vm10843, %v10764, %v8631
    %v11022 = vsel %vm10843, %v10765, %v8633
    %v11023 = vsel %vm10843, %v10766, %v8635
    %v11024 = vsel %vm10843, %v10767, %v8637
    %v11025 = vsel %vm10843, %v10768, %v8639
    %v11026 = vsel %vm10843, %v10769, %v8641
    %v11027 = vsel %vm10843, %v10770, %v8643
    %v11028 = vsel %vm10843, %v10771, %v8645
    %v11029 = vsel %vm10843, %v10772, %v8647
    %v11030 = vsel %vm10843, %v10773, %v8649
    %v11031 = vsel %vm10843, %v10774, %v8651
    %v11032 = vsel %vm10843, %v10775, %v8653
    %v11033 = vsel %vm10843, %v10776, %v8655
    %v11034 = vsel %vm10843, %v10777, %v8657
    %v11035 = vsel %vm10843, %v10778, %v8659
    %v11036 = vsel %vm10843, %v10779, %v8661
    %v11037 = vsel %vm10843, %v10780, %v8663
    %v11038 = vsel %vm10843, %v10781, %v8665
    %v11039 = vsel %vm10843, %v10782, %v8667
    %v11040 = vsel %vm10843, %v10783, %v8669
    %v11041 = vsel %vm10843, %v10784, %v8671
    %v11042 = vsel %vm10843, %v10785, %v8673
    %v11043 = vsel %vm10843, %v10786, %v8675
    %v11044 = vsel %vm10843, %v10787, %v8677
    %v11045 = vsel %vm10843, %v10788, %v8679
    %v11046 = vsel %vm10843, %v10789, %v8681
    %v11047 = vsel %vm10843, %v10790, %v8683
    %v11048 = vsel %vm10843, %v10791, %v8685
    %v11049 = vsel %vm10843, %v10792, %v8687
    %v11050 = vsel %vm10843, %v10793, %v8689
    %v11051 = vsel %vm10843, %v10794, %v8691
    %v11052 = vsel %vm10843, %v10795, %v8693
    %v11053 = vsel %vm10843, %v10796, %v8695
    %v11054 = vsel %vm10843, %v10797, %v8697
    %v11055 = vsel %vm10843, %v10798, %v8699
    %v11056 = vsel %vm10843, %v10799, %v8701
    %v11057 = vsel %vm10843, %v10800, %v8703
    %v11058 = vsel %vm10843, %v10801, %v8705
    %v11059 = vsel %vm10843, %v10802, %v8707
    %v11060 = vsel %vm10843, %v10803, %v8709
    %v11061 = vsel %vm10843, %v10804, %v8711
    %v11062 = vsel %vm10843, %v10805, %v8713
    %v11063 = vsel %vm10843, %v10806, %v8715
    %v11064 = vsel %vm10843, %v10807, %v8717
    %v11065 = vsel %vm10843, %v10808, %v8719
    %v11066 = vsel %vm10843, %v10809, %v8721
    %v11067 = vsel %vm10843, %v10810, %v8723
    %v11068 = vsel %vm10843, %v10811, %v8725
    %v11069 = vsel %vm10843, %v10812, %v8727
    %v11070 = vsel %vm10843, %v10813, %v8729
    %v11071 = vsel %vm10843, %v10814, %v8731
    %v11072 = vsel %vm10843, %v10815, %v8733
    %v11073 = vsel %vm10843, %v10816, %v8735
    %v11074 = vsel %vm10843, %v10817, %v8737
    %v11075 = vsel %vm10843, %v10818, %v8739
    %v11076 = vsel %vm10843, %v10819, %v8741
    %v11077 = vsel %vm10843, %v10820, %v8743
    %v11078 = vsel %vm10843, %v10821, %v8745
    %v11079 = vsel %vm10843, %v10822, %v8747
    %v11080 = vsel %vm10843, %v10823, %v8749
    %v11081 = vsel %vm10843, %v10824, %v8751
    %v11082 = vsel %vm10843, %v10825, %v8753
    %v11083 = vsel %vm10843, %v10826, %v8755
    %v11084 = vsel %vm10843, %v10827, %v8757
    %v11085 = vsel %vm10843, %v10828, %v8759
    %v11086 = vsel %vm10843, %v10829, %v8761
    %v11087 = vsel %vm10843, %v10830, %v8763
    %v11088 = vsel %vm10843, %v10831, %v8765
    %v11089 = vsel %vm10843, %v10832, %v8767
    %v11090 = vsel %vm10843, %v10833, %v8769
    %v11091 = vsel %vm10843, %v10834, %v8771
    %v11092 = vsel %vm10843, %v10835, %v8773
    %v11093 = vsel %vm10843, %v10836, %v8775
    %v11094 = vsel %vm10843, %v10837, %v8777
    %v11095 = vsel %vm10843, %v10838, %v8779
    %v11096 = vsel %vm10843, %v10839, %v8781
    %v11097 = vsel %vm10843, %v10840, %v8783
    %v11098 = vsel %vm10843, %v10841, %v8785
    %v11099 = vsel %vm10843, %v10842, %v8787
    %v11100 = vld [vmem:[#allocation5] sm:$0xff]
    %v11101 = vld [vmem:[#allocation5 + $0x8] sm:$0xff]
    %v11102 = vld [vmem:[#allocation5 + $0x10] sm:$0xff]
    %v11103 = vld [vmem:[#allocation5 + $0x18] sm:$0xff]
    %v11104 = vld [vmem:[#allocation5 + $0x20] sm:$0xf]
    %vm11105 = vcmask 293888
    %v11107 = vsel %vm11105, %v10844, 0
    %v11110 = vsel %vm11105, %v10845, 0
    %v11113 = vsel %vm11105, %v10846, 0
    %v11116 = vsel %vm11105, %v10847, 0
    %v11119 = vsel %vm11105, %v10848, 0
    %v11122 = vsel %vm11105, %v10849, 0
    %v11125 = vsel %vm11105, %v10850, 0
    %v11128 = vsel %vm11105, %v10851, 0
    %v11131 = vsel %vm11105, %v10852, 0
    %v11134 = vsel %vm11105, %v10853, 0
    %v11137 = vsel %vm11105, %v10854, 0
    %v11140 = vsel %vm11105, %v10855, 0
    %v11143 = vsel %vm11105, %v10856, 0
    %v11146 = vsel %vm11105, %v10857, 0
    %v11149 = vsel %vm11105, %v10858, 0
    %v11152 = vsel %vm11105, %v10859, 0
    %v11155 = vsel %vm11105, %v10860, 0
    %v11158 = vsel %vm11105, %v10861, 0
    %v11161 = vsel %vm11105, %v10862, 0
    %v11164 = vsel %vm11105, %v10863, 0
    %v11167 = vsel %vm11105, %v10864, 0
    %v11170 = vsel %vm11105, %v10865, 0
    %v11173 = vsel %vm11105, %v10866, 0
    %v11176 = vsel %vm11105, %v10867, 0
    %v11179 = vsel %vm11105, %v10868, 0
    %v11182 = vsel %vm11105, %v10869, 0
    %v11185 = vsel %vm11105, %v10870, 0
    %v11188 = vsel %vm11105, %v10871, 0
    %v11191 = vsel %vm11105, %v10872, 0
    %v11194 = vsel %vm11105, %v10873, 0
    %v11197 = vsel %vm11105, %v10874, 0
    %v11200 = vsel %vm11105, %v10875, 0
    %v11203 = vsel %vm11105, %v10876, 0
    %v11206 = vsel %vm11105, %v10877, 0
    %v11209 = vsel %vm11105, %v10878, 0
    %v11212 = vsel %vm11105, %v10879, 0
    %v11215 = vsel %vm11105, %v10880, 0
    %v11218 = vsel %vm11105, %v10881, 0
    %v11221 = vsel %vm11105, %v10882, 0
    %v11224 = vsel %vm11105, %v10883, 0
    %v11227 = vsel %vm11105, %v10884, 0
    %v11230 = vsel %vm11105, %v10885, 0
    %v11233 = vsel %vm11105, %v10886, 0
    %v11236 = vsel %vm11105, %v10887, 0
    %v11239 = vsel %vm11105, %v10888, 0
    %v11242 = vsel %vm11105, %v10889, 0
    %v11245 = vsel %vm11105, %v10890, 0
    %v11248 = vsel %vm11105, %v10891, 0
    %v11251 = vsel %vm11105, %v10892, 0
    %v11254 = vsel %vm11105, %v10893, 0
    %v11257 = vsel %vm11105, %v10894, 0
    %v11260 = vsel %vm11105, %v10895, 0
    %v11263 = vsel %vm11105, %v10896, 0
    %v11266 = vsel %vm11105, %v10897, 0
    %v11269 = vsel %vm11105, %v10898, 0
    %v11272 = vsel %vm11105, %v10899, 0
    %v11275 = vsel %vm11105, %v10900, 0
    %v11278 = vsel %vm11105, %v10901, 0
    %v11281 = vsel %vm11105, %v10902, 0
    %v11284 = vsel %vm11105, %v10903, 0
    %v11287 = vsel %vm11105, %v10904, 0
    %v11290 = vsel %vm11105, %v10905, 0
    %v11293 = vsel %vm11105, %v10906, 0
    %v11296 = vsel %vm11105, %v10907, 0
    %v11299 = vsel %vm11105, %v10908, 0
    %v11302 = vsel %vm11105, %v10909, 0
    %v11305 = vsel %vm11105, %v10910, 0
    %v11308 = vsel %vm11105, %v10911, 0
    %v11311 = vsel %vm11105, %v10912, 0
    %v11314 = vsel %vm11105, %v10913, 0
    %v11317 = vsel %vm11105, %v10914, 0
    %v11320 = vsel %vm11105, %v10915, 0
    %v11323 = vsel %vm11105, %v10916, 0
    %v11326 = vsel %vm11105, %v10917, 0
    %v11329 = vsel %vm11105, %v10918, 0
    %v11332 = vsel %vm11105, %v10919, 0
    %v11335 = vsel %vm11105, %v10920, 0
    %v11338 = vsel %vm11105, %v10921, 0
    %v11341 = vsel %vm11105, %v10922, 0
    %v11344 = vsel %vm11105, %v10923, 0
    %v11347 = vsel %vm11105, %v10924, 0
    %v11350 = vsel %vm11105, %v10925, 0
    %v11353 = vsel %vm11105, %v10926, 0
    %v11356 = vsel %vm11105, %v10927, 0
    %v11359 = vsel %vm11105, %v10928, 0
    %v11362 = vsel %vm11105, %v10929, 0
    %v11365 = vsel %vm11105, %v10930, 0
    %v11368 = vsel %vm11105, %v10931, 0
    %v11371 = vsel %vm11105, %v10932, 0
    %v11374 = vsel %vm11105, %v10933, 0
    %v11377 = vsel %vm11105, %v10934, 0
    %v11380 = vsel %vm11105, %v10935, 0
    %v11383 = vsel %vm11105, %v10936, 0
    %v11386 = vsel %vm11105, %v10937, 0
    %v11389 = vsel %vm11105, %v10938, 0
    %v11392 = vsel %vm11105, %v10939, 0
    %v11395 = vsel %vm11105, %v10940, 0
    %v11398 = vsel %vm11105, %v10941, 0
    %v11401 = vsel %vm11105, %v10942, 0
    %v11404 = vsel %vm11105, %v10943, 0
    %v11407 = vsel %vm11105, %v10944, 0
    %v11410 = vsel %vm11105, %v10945, 0
    %v11413 = vsel %vm11105, %v10946, 0
    %v11416 = vsel %vm11105, %v10947, 0
    %v11419 = vsel %vm11105, %v10948, 0
    %v11422 = vsel %vm11105, %v10949, 0
    %v11425 = vsel %vm11105, %v10950, 0
    %v11428 = vsel %vm11105, %v10951, 0
    %v11431 = vsel %vm11105, %v10952, 0
    %v11434 = vsel %vm11105, %v10953, 0
    %v11437 = vsel %vm11105, %v10954, 0
    %v11440 = vsel %vm11105, %v10955, 0
    %v11443 = vsel %vm11105, %v10956, 0
    %v11446 = vsel %vm11105, %v10957, 0
    %v11449 = vsel %vm11105, %v10958, 0
    %v11452 = vsel %vm11105, %v10959, 0
    %v11455 = vsel %vm11105, %v10960, 0
    %v11458 = vsel %vm11105, %v10961, 0
    %v11461 = vsel %vm11105, %v10962, 0
    %v11464 = vsel %vm11105, %v10963, 0
    %v11467 = vsel %vm11105, %v10964, 0
    %v11470 = vsel %vm11105, %v10965, 0
    %v11473 = vsel %vm11105, %v10966, 0
    %v11476 = vsel %vm11105, %v10967, 0
    %v11479 = vsel %vm11105, %v10968, 0
    %v11482 = vsel %vm11105, %v10969, 0
    %v11485 = vsel %vm11105, %v10970, 0
    %v11488 = vsel %vm11105, %v10971, 0
    %v11491 = vsel %vm11105, %v10972, 0
    %v11494 = vsel %vm11105, %v10973, 0
    %v11497 = vsel %vm11105, %v10974, 0
    %v11500 = vsel %vm11105, %v10975, 0
    %v11503 = vsel %vm11105, %v10976, 0
    %v11506 = vsel %vm11105, %v10977, 0
    %v11509 = vsel %vm11105, %v10978, 0
    %v11512 = vsel %vm11105, %v10979, 0
    %v11515 = vsel %vm11105, %v10980, 0
    %v11518 = vsel %vm11105, %v10981, 0
    %v11521 = vsel %vm11105, %v10982, 0
    %v11524 = vsel %vm11105, %v10983, 0
    %v11527 = vsel %vm11105, %v10984, 0
    %v11530 = vsel %vm11105, %v10985, 0
    %v11533 = vsel %vm11105, %v10986, 0
    %v11536 = vsel %vm11105, %v10987, 0
    %v11539 = vsel %vm11105, %v10988, 0
    %v11542 = vsel %vm11105, %v10989, 0
    %v11545 = vsel %vm11105, %v10990, 0
    %v11548 = vsel %vm11105, %v10991, 0
    %v11551 = vsel %vm11105, %v10992, 0
    %v11554 = vsel %vm11105, %v10993, 0
    %v11557 = vsel %vm11105, %v10994, 0
    %v11560 = vsel %vm11105, %v10995, 0
    %v11563 = vsel %vm11105, %v10996, 0
    %v11566 = vsel %vm11105, %v10997, 0
    %v11569 = vsel %vm11105, %v10998, 0
    %v11572 = vsel %vm11105, %v10999, 0
    %v11575 = vsel %vm11105, %v11000, 0
    %v11578 = vsel %vm11105, %v11001, 0
    %v11581 = vsel %vm11105, %v11002, 0
    %v11584 = vsel %vm11105, %v11003, 0
    %v11587 = vsel %vm11105, %v11004, 0
    %v11590 = vsel %vm11105, %v11005, 0
    %v11593 = vsel %vm11105, %v11006, 0
    %v11596 = vsel %vm11105, %v11007, 0
    %v11599 = vsel %vm11105, %v11008, 0
    %v11602 = vsel %vm11105, %v11009, 0
    %v11605 = vsel %vm11105, %v11010, 0
    %v11608 = vsel %vm11105, %v11011, 0
    %v11611 = vsel %vm11105, %v11012, 0
    %v11614 = vsel %vm11105, %v11013, 0
    %v11617 = vsel %vm11105, %v11014, 0
    %v11620 = vsel %vm11105, %v11015, 0
    %v11623 = vsel %vm11105, %v11016, 0
    %v11626 = vsel %vm11105, %v11017, 0
    %v11629 = vsel %vm11105, %v11018, 0
    %v11632 = vsel %vm11105, %v11019, 0
    %v11635 = vsel %vm11105, %v11020, 0
    %v11638 = vsel %vm11105, %v11021, 0
    %v11641 = vsel %vm11105, %v11022, 0
    %v11644 = vsel %vm11105, %v11023, 0
    %v11647 = vsel %vm11105, %v11024, 0
    %v11650 = vsel %vm11105, %v11025, 0
    %v11653 = vsel %vm11105, %v11026, 0
    %v11656 = vsel %vm11105, %v11027, 0
    %v11659 = vsel %vm11105, %v11028, 0
    %v11662 = vsel %vm11105, %v11029, 0
    %v11665 = vsel %vm11105, %v11030, 0
    %v11668 = vsel %vm11105, %v11031, 0
    %v11671 = vsel %vm11105, %v11032, 0
    %v11674 = vsel %vm11105, %v11033, 0
    %v11677 = vsel %vm11105, %v11034, 0
    %v11680 = vsel %vm11105, %v11035, 0
    %v11683 = vsel %vm11105, %v11036, 0
    %v11686 = vsel %vm11105, %v11037, 0
    %v11689 = vsel %vm11105, %v11038, 0
    %v11692 = vsel %vm11105, %v11039, 0
    %v11695 = vsel %vm11105, %v11040, 0
    %v11698 = vsel %vm11105, %v11041, 0
    %v11701 = vsel %vm11105, %v11042, 0
    %v11704 = vsel %vm11105, %v11043, 0
    %v11707 = vsel %vm11105, %v11044, 0
    %v11710 = vsel %vm11105, %v11045, 0
    %v11713 = vsel %vm11105, %v11046, 0
    %v11716 = vsel %vm11105, %v11047, 0
    %v11719 = vsel %vm11105, %v11048, 0
    %v11722 = vsel %vm11105, %v11049, 0
    %v11725 = vsel %vm11105, %v11050, 0
    %v11728 = vsel %vm11105, %v11051, 0
    %v11731 = vsel %vm11105, %v11052, 0
    %v11734 = vsel %vm11105, %v11053, 0
    %v11737 = vsel %vm11105, %v11054, 0
    %v11740 = vsel %vm11105, %v11055, 0
    %v11743 = vsel %vm11105, %v11056, 0
    %v11746 = vsel %vm11105, %v11057, 0
    %v11749 = vsel %vm11105, %v11058, 0
    %v11752 = vsel %vm11105, %v11059, 0
    %v11755 = vsel %vm11105, %v11060, 0
    %v11758 = vsel %vm11105, %v11061, 0
    %v11761 = vsel %vm11105, %v11062, 0
    %v11764 = vsel %vm11105, %v11063, 0
    %v11767 = vsel %vm11105, %v11064, 0
    %v11770 = vsel %vm11105, %v11065, 0
    %v11773 = vsel %vm11105, %v11066, 0
    %v11776 = vsel %vm11105, %v11067, 0
    %v11779 = vsel %vm11105, %v11068, 0
    %v11782 = vsel %vm11105, %v11069, 0
    %v11785 = vsel %vm11105, %v11070, 0
    %v11788 = vsel %vm11105, %v11071, 0
    %v11791 = vsel %vm11105, %v11072, 0
    %v11794 = vsel %vm11105, %v11073, 0
    %v11797 = vsel %vm11105, %v11074, 0
    %v11800 = vsel %vm11105, %v11075, 0
    %v11803 = vsel %vm11105, %v11076, 0
    %v11806 = vsel %vm11105, %v11077, 0
    %v11809 = vsel %vm11105, %v11078, 0
    %v11812 = vsel %vm11105, %v11079, 0
    %v11815 = vsel %vm11105, %v11080, 0
    %v11818 = vsel %vm11105, %v11081, 0
    %v11821 = vsel %vm11105, %v11082, 0
    %v11824 = vsel %vm11105, %v11083, 0
    %v11827 = vsel %vm11105, %v11084, 0
    %v11830 = vsel %vm11105, %v11085, 0
    %v11833 = vsel %vm11105, %v11086, 0
    %v11836 = vsel %vm11105, %v11087, 0
    %v11839 = vsel %vm11105, %v11088, 0
    %v11842 = vsel %vm11105, %v11089, 0
    %v11845 = vsel %vm11105, %v11090, 0
    %v11848 = vsel %vm11105, %v11091, 0
    %v11851 = vsel %vm11105, %v11092, 0
    %v11854 = vsel %vm11105, %v11093, 0
    %v11857 = vsel %vm11105, %v11094, 0
    %v11860 = vsel %vm11105, %v11095, 0
    %v11863 = vsel %vm11105, %v11096, 0
    %v11866 = vsel %vm11105, %v11097, 0
    %v11869 = vsel %vm11105, %v11098, 0
    %v11872 = vsel %vm11105, %v11099, 0
    %vm11874 = vcmask 1043456
    %v11876 = vsel %vm11874, %v11104, 0
    %11878 = vmatprep.subr.mxu0 0.0
    %11879 = vmatpush1.msra.mxu0 %v11100
    %11880 = vmatprep.subr.mxu0 0.0
    %11881 = vmatpush1.msra.mxu0 %v11101
    %11882 = vmatprep.subr.mxu0 0.0
    %11883 = vmatpush1.msra.mxu0 %v11102
    %11884 = vmatprep.subr.mxu0 0.0
    %11885 = vmatpush1.msra.mxu0 %v11103
    %11886 = vmatprep.subr.mxu0 0.0
    %11887 = vmatpush1.msra.mxu0 %v11876
    %11888 = vmatprep.subr.mxu0 0.0
    %11889 = vmatpush1.msra.mxu0 0.0
    %11890 = vmatprep.subr.mxu0 0.0
    %11891 = vmatpush1.msra.mxu0 0.0
    %11892 = vmatprep.subr.mxu0 0.0
    %11893 = vmatpush1.msra.mxu0 0.0
    %11894 = vmatprep.subr.mxu0 0.0
    %11895 = vmatpush1.msra.mxu0 0.0
    %11896 = vmatprep.subr.mxu0 0.0
    %11897 = vmatpush1.msra.mxu0 0.0
    %11898 = vmatprep.subr.mxu0 0.0
    %11899 = vmatpush1.msra.mxu0 0.0
    %11900 = vmatprep.subr.mxu0 0.0
    %11901 = vmatpush1.msra.mxu0 0.0
    %11902 = vmatprep.subr.mxu0 0.0
    %11903 = vmatpush1.msra.mxu0 0.0
    %11904 = vmatprep.subr.mxu0 0.0
    %11905 = vmatpush1.msra.mxu0 0.0
    %11906 = vmatprep.subr.mxu0 0.0
    %11907 = vmatpush1.msra.mxu0 0.0
    %11908 = vmatprep.subr.mxu0 0.0
    %11909 = vmatpush1.msra.mxu0 0.0
    %11910 = vmatprep.subr.mxu0 0.0
    %11911 = vmatpush1.msra.mxu0 0.0
    %11912 = vmatprep.subr.mxu0 0.0
    %11913 = vmatpush1.msra.mxu0 0.0
    %11914 = vmatprep.subr.mxu0 0.0
    %11915 = vmatpush1.msra.mxu0 0.0
    %11916 = vmatprep.subr.mxu0 0.0
    %11917 = vmatpush1.msra.mxu0 0.0
    %11918 = vmatprep.subr.mxu0 0.0
    %11919 = vmatpush1.msra.mxu0 0.0
    %11920 = vmatprep.subr.mxu0 0.0
    %11921 = vmatpush1.msra.mxu0 0.0
    %11922 = vmatprep.subr.mxu0 0.0
    %11923 = vmatpush1.msra.mxu0 0.0
    %11924 = vmatprep.subr.mxu0 0.0
    %11925 = vmatpush1.msra.mxu0 0.0
    %11926 = vmatprep.subr.mxu0 0.0
    %11927 = vmatpush1.msra.mxu0 0.0
    %11928 = vmatprep.subr.mxu0 0.0
    %11929 = vmatpush1.msra.mxu0 0.0
    %11930 = vmatprep.subr.mxu0 0.0
    %11931 = vmatpush1.msra.mxu0 0.0
    %11932 = vmatprep.subr.mxu0 0.0
    %11933 = vmatpush1.msra.mxu0 0.0
    %11934 = vmatprep.subr.mxu0 0.0
    %11935 = vmatpush1.msra.mxu0 0.0
    %11936 = vmatprep.subr.mxu0 0.0
    %11937 = vmatpush1.msra.mxu0 0.0
    %11938 = vmatprep.subr.mxu0 0.0
    %11939 = vmatpush1.msra.mxu0 0.0
    %11940 = vmatprep.subr.mxu0 0.0
    %11941 = vmatpush1.msra.mxu0 0.0
    %11942 = vmatprep.mubr.f32.mxu0 0.0
    %11943 = vmatmul.mubr.f32.gmra.mrb[0].mxu0 %v11107
    %v11944 = vpop.f32.mrb[0].mxu0
    %v11945 = vadd.f32 0.0, %v11944
    %v11946 = vpop.f32.mrb[0].mxu0
    %11947 = vmatprep.mubr.f32.mxu0 0.0
    %11948 = vmatmul.mubr.f32.gmra.mrb[0].mxu0 %v11110
    %v11949 = vpop.f32.mrb[0].mxu0
    %v11950 = vadd.f32 0.0, %v11949
    %v11951 = vpop.f32.mrb[0].mxu0
    %11952 = vmatprep.mubr.f32.mxu0 0.0
    %11953 = vmatmul.mubr.f32.gmra.mrb[0].mxu0 %v11113
    %v11954 = vpop.f32.mrb[0].mxu0
    %v11955 = vadd.f32 0.0, %v11954
    %v11956 = vpop.f32.mrb[0].mxu0
    %11957 = vmatprep.mubr.f32.mxu0 0.0
    %11958 = vmatmul.mubr.f32.gmra.mrb[0].mxu0 %v11116
    %v11959 = vpop.f32.mrb[0].mxu0
    %v11960 = vadd.f32 0.0, %v11959
    %v11961 = vpop.f32.mrb[0].mxu0
    %11962 = vmatprep.mubr.f32.mxu0 0.0
    %11963 = vmatmul.mubr.f32.gmra.mrb[0].mxu0 %v11119
    %v11964 = vpop.f32.mrb[0].mxu0
    %v11965 = vadd.f32 0.0, %v11964
    %v11966 = vpop.f32.mrb[0].mxu0
    %11967 = vmatprep.mubr.f32.mxu0 0.0
    %11968 = vmatmul.mubr.f32.gmra.mrb[0].mxu0 %v11122
    %v11969 = vpop.f32.mrb[0].mxu0
    %v11970 = vadd.f32 0.0, %v11969
    %v11971 = vpop.f32.mrb[0].mxu0
    %11972 = vmatprep.mubr.f32.mxu0 0.0
    %11973 = vmatmul.mubr.f32.gmra.mrb[0].mxu0 %v11125
    %v11974 = vpop.f32.mrb[0].mxu0
    %v11975 = vadd.f32 0.0, %v11974
    %v11976 = vpop.f32.mrb[0].mxu0
    %11977 = vmatprep.mubr.f32.mxu0 0.0
    %11978 = vmatmul.mubr.f32.gmra.mrb[0].mxu0 %v11128
    %v11979 = vpop.f32.mrb[0].mxu0
    %v11980 = vadd.f32 0.0, %v11979
    %v11981 = vpop.f32.mrb[0].mxu0
    %11982 = vmatprep.mubr.f32.mxu0 0.0
    %11983 = vmatmul.mubr.f32.gmra.mrb[0].mxu0 %v11131
    %v11984 = vpop.f32.mrb[0].mxu0
    %v11985 = vadd.f32 0.0, %v11984
    %v11986 = vpop.f32.mrb[0].mxu0
    %11987 = vmatprep.mubr.f32.mxu0 0.0
    %11988 = vmatmul.mubr.f32.gmra.mrb[0].mxu0 %v11134
    %v11989 = vpop.f32.mrb[0].mxu0
    %v11990 = vadd.f32 0.0, %v11989
    %v11991 = vpop.f32.mrb[0].mxu0
    %11992 = vmatprep.mubr.f32.mxu0 0.0
    %11993 = vmatmul.mubr.f32.gmra.mrb[0].mxu0 %v11137
    %v11994 = vpop.f32.mrb[0].mxu0
    %v11995 = vadd.f32 0.0, %v11994
    %v11996 = vpop.f32.mrb[0].mxu0
    %11997 = vmatprep.mubr.f32.mxu0 0.0
    %11998 = vmatmul.mubr.f32.gmra.mrb[0].mxu0 %v11140
    %v11999 = vpop.f32.mrb[0].mxu0
    %v12000 = vadd.f32 0.0, %v11999
    %v12001 = vpop.f32.mrb[0].mxu0
    %12002 = vmatprep.mubr.f32.mxu0 0.0
    %12003 = vmatmul.mubr.f32.gmra.mrb[0].mxu0 %v11143
    %v12004 = vpop.f32.mrb[0].mxu0
    %v12005 = vadd.f32 0.0, %v12004
    %v12006 = vpop.f32.mrb[0].mxu0
    %12007 = vmatprep.mubr.f32.mxu0 0.0
    %12008 = vmatmul.mubr.f32.gmra.mrb[0].mxu0 %v11146
    %v12009 = vpop.f32.mrb[0].mxu0
    %v12010 = vadd.f32 0.0, %v12009
    %v12011 = vpop.f32.mrb[0].mxu0
    %12012 = vmatprep.mubr.f32.mxu0 0.0
    %12013 = vmatmul.mubr.f32.gmra.mrb[0].mxu0 %v11149
    %v12014 = vpop.f32.mrb[0].mxu0
    %v12015 = vadd.f32 0.0, %v12014
    %v12016 = vpop.f32.mrb[0].mxu0
    %12017 = vmatprep.mubr.f32.mxu0 0.0
    %12018 = vmatmul.mubr.f32.gmra.mrb[0].mxu0 %v11152
    %v12019 = vpop.f32.mrb[0].mxu0
    %v12020 = vadd.f32 0.0, %v12019
    %v12021 = vpop.f32.mrb[0].mxu0
    %12022 = vmatprep.mubr.f32.mxu0 0.0
    %12023 = vmatmul.mubr.f32.gmra.mrb[0].mxu0 %v11155
    %v12024 = vpop.f32.mrb[0].mxu0
    %v12025 = vadd.f32 0.0, %v12024
    %v12026 = vpop.f32.mrb[0].mxu0
    %12027 = vmatprep.mubr.f32.mxu0 0.0
    %12028 = vmatmul.mubr.f32.gmra.mrb[0].mxu0 %v11158
    %v12029 = vpop.f32.mrb[0].mxu0
    %v12030 = vadd.f32 0.0, %v12029
    %v12031 = vpop.f32.mrb[0].mxu0
    %12032 = vmatprep.mubr.f32.mxu0 0.0
    %12033 = vmatmul.mubr.f32.gmra.mrb[0].mxu0 %v11161
    %v12034 = vpop.f32.mrb[0].mxu0
    %v12035 = vadd.f32 0.0, %v12034
    %v12036 = vpop.f32.mrb[0].mxu0
    %12037 = vmatprep.mubr.f32.mxu0 0.0
    %12038 = vmatmul.mubr.f32.gmra.mrb[0].mxu0 %v11164
    %v12039 = vpop.f32.mrb[0].mxu0
    %v12040 = vadd.f32 0.0, %v12039
    %v12041 = vpop.f32.mrb[0].mxu0
    %12042 = vmatprep.mubr.f32.mxu0 0.0
    %12043 = vmatmul.mubr.f32.gmra.mrb[0].mxu0 %v11167
    %v12044 = vpop.f32.mrb[0].mxu0
    %v12045 = vadd.f32 0.0, %v12044
    %v12046 = vpop.f32.mrb[0].mxu0
    %12047 = vmatprep.mubr.f32.mxu0 0.0
    %12048 = vmatmul.mubr.f32.gmra.mrb[0].mxu0 %v11170
    %v12049 = vpop.f32.mrb[0].mxu0
    %v12050 = vadd.f32 0.0, %v12049
    %v12051 = vpop.f32.mrb[0].mxu0
    %12052 = vmatprep.mubr.f32.mxu0 0.0
    %12053 = vmatmul.mubr.f32.gmra.mrb[0].mxu0 %v11173
    %v12054 = vpop.f32.mrb[0].mxu0
    %v12055 = vadd.f32 0.0, %v12054
    %v12056 = vpop.f32.mrb[0].mxu0
    %12057 = vmatprep.mubr.f32.mxu0 0.0
    %12058 = vmatmul.mubr.f32.gmra.mrb[0].mxu0 %v11176
    %v12059 = vpop.f32.mrb[0].mxu0
    %v12060 = vadd.f32 0.0, %v12059
    %v12061 = vpop.f32.mrb[0].mxu0
    %12062 = vmatprep.mubr.f32.mxu0 0.0
    %12063 = vmatmul.mubr.f32.gmra.mrb[0].mxu0 %v11179
    %v12064 = vpop.f32.mrb[0].mxu0
    %v12065 = vadd.f32 0.0, %v12064
    %v12066 = vpop.f32.mrb[0].mxu0
    %12067 = vmatprep.mubr.f32.mxu0 0.0
    %12068 = vmatmul.mubr.f32.gmra.mrb[0].mxu0 %v11182
    %v12069 = vpop.f32.mrb[0].mxu0
    %v12070 = vadd.f32 0.0, %v12069
    %v12071 = vpop.f32.mrb[0].mxu0
    %12072 = vmatprep.mubr.f32.mxu0 0.0
    %12073 = vmatmul.mubr.f32.gmra.mrb[0].mxu0 %v11185
    %v12074 = vpop.f32.mrb[0].mxu0
    %v12075 = vadd.f32 0.0, %v12074
    %v12076 = vpop.f32.mrb[0].mxu0
    %12077 = vmatprep.mubr.f32.mxu0 0.0
    %12078 = vmatmul.mubr.f32.gmra.mrb[0].mxu0 %v11188
    %v12079 = vpop.f32.mrb[0].mxu0
    %v12080 = vadd.f32 0.0, %v12079
    %v12081 = vpop.f32.mrb[0].mxu0
    %12082 = vmatprep.mubr.f32.mxu0 0.0
    %12083 = vmatmul.mubr.f32.gmra.mrb[0].mxu0 %v11191
    %v12084 = vpop.f32.mrb[0].mxu0
    %v12085 = vadd.f32 0.0, %v12084
    %v12086 = vpop.f32.mrb[0].mxu0
    %12087 = vmatprep.mubr.f32.mxu0 0.0
    %12088 = vmatmul.mubr.f32.gmra.mrb[0].mxu0 %v11194
    %v12089 = vpop.f32.mrb[0].mxu0
    %v12090 = vadd.f32 0.0, %v12089
    %v12091 = vpop.f32.mrb[0].mxu0
    %12092 = vmatprep.mubr.f32.mxu0 0.0
    %12093 = vmatmul.mubr.f32.gmra.mrb[0].mxu0 %v11197
    %v12094 = vpop.f32.mrb[0].mxu0
    %v12095 = vadd.f32 0.0, %v12094
    %v12096 = vpop.f32.mrb[0].mxu0
    %12097 = vmatprep.mubr.f32.mxu0 0.0
    %12098 = vmatmul.mubr.f32.gmra.mrb[0].mxu0 %v11200
    %v12099 = vpop.f32.mrb[0].mxu0
    %v12100 = vadd.f32 0.0, %v12099
    %v12101 = vpop.f32.mrb[0].mxu0
    %12102 = vmatprep.mubr.f32.mxu0 0.0
    %12103 = vmatmul.mubr.f32.gmra.mrb[0].mxu0 %v11203
    %v12104 = vpop.f32.mrb[0].mxu0
    %v12105 = vadd.f32 0.0, %v12104
    %v12106 = vpop.f32.mrb[0].mxu0
    %12107 = vmatprep.mubr.f32.mxu0 0.0
    %12108 = vmatmul.mubr.f32.gmra.mrb[0].mxu0 %v11206
    %v12109 = vpop.f32.mrb[0].mxu0
    %v12110 = vadd.f32 0.0, %v12109
    %v12111 = vpop.f32.mrb[0].mxu0
    %12112 = vmatprep.mubr.f32.mxu0 0.0
    %12113 = vmatmul.mubr.f32.gmra.mrb[0].mxu0 %v11209
    %v12114 = vpop.f32.mrb[0].mxu0
    %v12115 = vadd.f32 0.0, %v12114
    %v12116 = vpop.f32.mrb[0].mxu0
    %12117 = vmatprep.mubr.f32.mxu0 0.0
    %12118 = vmatmul.mubr.f32.gmra.mrb[0].mxu0 %v11212
    %v12119 = vpop.f32.mrb[0].mxu0
    %v12120 = vadd.f32 0.0, %v12119
    %v12121 = vpop.f32.mrb[0].mxu0
    %12122 = vmatprep.mubr.f32.mxu0 0.0
    %12123 = vmatmul.mubr.f32.gmra.mrb[0].mxu0 %v11215
    %v12124 = vpop.f32.mrb[0].mxu0
    %v12125 = vadd.f32 0.0, %v12124
    %v12126 = vpop.f32.mrb[0].mxu0
    %12127 = vmatprep.mubr.f32.mxu0 0.0
    %12128 = vmatmul.mubr.f32.gmra.mrb[0].mxu0 %v11218
    %v12129 = vpop.f32.mrb[0].mxu0
    %v12130 = vadd.f32 0.0, %v12129
    %v12131 = vpop.f32.mrb[0].mxu0
    %12132 = vmatprep.mubr.f32.mxu0 0.0
    %12133 = vmatmul.mubr.f32.gmra.mrb[0].mxu0 %v11221
    %v12134 = vpop.f32.mrb[0].mxu0
    %v12135 = vadd.f32 0.0, %v12134
    %v12136 = vpop.f32.mrb[0].mxu0
    %12137 = vmatprep.mubr.f32.mxu0 0.0
    %12138 = vmatmul.mubr.f32.gmra.mrb[0].mxu0 %v11224
    %v12139 = vpop.f32.mrb[0].mxu0
    %v12140 = vadd.f32 0.0, %v12139
    %v12141 = vpop.f32.mrb[0].mxu0
    %12142 = vmatprep.mubr.f32.mxu0 0.0
    %12143 = vmatmul.mubr.f32.gmra.mrb[0].mxu0 %v11227
    %v12144 = vpop.f32.mrb[0].mxu0
    %v12145 = vadd.f32 0.0, %v12144
    %v12146 = vpop.f32.mrb[0].mxu0
    %12147 = vmatprep.mubr.f32.mxu0 0.0
    %12148 = vmatmul.mubr.f32.gmra.mrb[0].mxu0 %v11230
    %v12149 = vpop.f32.mrb[0].mxu0
    %v12150 = vadd.f32 0.0, %v12149
    %v12151 = vpop.f32.mrb[0].mxu0
    %12152 = vmatprep.mubr.f32.mxu0 0.0
    %12153 = vmatmul.mubr.f32.gmra.mrb[0].mxu0 %v11233
    %v12154 = vpop.f32.mrb[0].mxu0
    %v12155 = vadd.f32 0.0, %v12154
    %v12156 = vpop.f32.mrb[0].mxu0
    %12157 = vmatprep.mubr.f32.mxu0 0.0
    %12158 = vmatmul.mubr.f32.gmra.mrb[0].mxu0 %v11236
    %v12159 = vpop.f32.mrb[0].mxu0
    %v12160 = vadd.f32 0.0, %v12159
    %v12161 = vpop.f32.mrb[0].mxu0
    %12162 = vmatprep.mubr.f32.mxu0 0.0
    %12163 = vmatmul.mubr.f32.gmra.mrb[0].mxu0 %v11239
    %v12164 = vpop.f32.mrb[0].mxu0
    %v12165 = vadd.f32 0.0, %v12164
    %v12166 = vpop.f32.mrb[0].mxu0
    %12167 = vmatprep.mubr.f32.mxu0 0.0
    %12168 = vmatmul.mubr.f32.gmra.mrb[0].mxu0 %v11242
    %v12169 = vpop.f32.mrb[0].mxu0
    %v12170 = vadd.f32 0.0, %v12169
    %v12171 = vpop.f32.mrb[0].mxu0
    %12172 = vmatprep.mubr.f32.mxu0 0.0
    %12173 = vmatmul.mubr.f32.gmra.mrb[0].mxu0 %v11245
    %v12174 = vpop.f32.mrb[0].mxu0
    %v12175 = vadd.f32 0.0, %v12174
    %v12176 = vpop.f32.mrb[0].mxu0
    %12177 = vmatprep.mubr.f32.mxu0 0.0
    %12178 = vmatmul.mubr.f32.gmra.mrb[0].mxu0 %v11248
    %v12179 = vpop.f32.mrb[0].mxu0
    %v12180 = vadd.f32 0.0, %v12179
    %v12181 = vpop.f32.mrb[0].mxu0
    %12182 = vmatprep.mubr.f32.mxu0 0.0
    %12183 = vmatmul.mubr.f32.gmra.mrb[0].mxu0 %v11251
    %v12184 = vpop.f32.mrb[0].mxu0
    %v12185 = vadd.f32 0.0, %v12184
    %v12186 = vpop.f32.mrb[0].mxu0
    %12187 = vmatprep.mubr.f32.mxu0 0.0
    %12188 = vmatmul.mubr.f32.gmra.mrb[0].mxu0 %v11254
    %v12189 = vpop.f32.mrb[0].mxu0
    %v12190 = vadd.f32 0.0, %v12189
    %v12191 = vpop.f32.mrb[0].mxu0
    %12192 = vmatprep.mubr.f32.mxu0 0.0
    %12193 = vmatmul.mubr.f32.gmra.mrb[0].mxu0 %v11257
    %v12194 = vpop.f32.mrb[0].mxu0
    %v12195 = vadd.f32 0.0, %v12194
    %v12196 = vpop.f32.mrb[0].mxu0
    %12197 = vmatprep.mubr.f32.mxu0 0.0
    %12198 = vmatmul.mubr.f32.gmra.mrb[0].mxu0 %v11260
    %v12199 = vpop.f32.mrb[0].mxu0
    %v12200 = vadd.f32 0.0, %v12199
    %v12201 = vpop.f32.mrb[0].mxu0
    %12202 = vmatprep.mubr.f32.mxu0 0.0
    %12203 = vmatmul.mubr.f32.gmra.mrb[0].mxu0 %v11263
    %v12204 = vpop.f32.mrb[0].mxu0
    %v12205 = vadd.f32 0.0, %v12204
    %v12206 = vpop.f32.mrb[0].mxu0
    %12207 = vmatprep.mubr.f32.mxu0 0.0
    %12208 = vmatmul.mubr.f32.gmra.mrb[0].mxu0 %v11266
    %v12209 = vpop.f32.mrb[0].mxu0
    %v12210 = vadd.f32 0.0, %v12209
    %v12211 = vpop.f32.mrb[0].mxu0
    %12212 = vmatprep.mubr.f32.mxu0 0.0
    %12213 = vmatmul.mubr.f32.gmra.mrb[0].mxu0 %v11269
    %v12214 = vpop.f32.mrb[0].mxu0
    %v12215 = vadd.f32 0.0, %v12214
    %v12216 = vpop.f32.mrb[0].mxu0
    %12217 = vmatprep.mubr.f32.mxu0 0.0
    %12218 = vmatmul.mubr.f32.gmra.mrb[0].mxu0 %v11272
    %v12219 = vpop.f32.mrb[0].mxu0
    %v12220 = vadd.f32 0.0, %v12219
    %v12221 = vpop.f32.mrb[0].mxu0
    %12222 = vmatprep.mubr.f32.mxu0 0.0
    %12223 = vmatmul.mubr.f32.gmra.mrb[0].mxu0 %v11275
    %v12224 = vpop.f32.mrb[0].mxu0
    %v12225 = vadd.f32 0.0, %v12224
    %v12226 = vpop.f32.mrb[0].mxu0
    %12227 = vmatprep.mubr.f32.mxu0 0.0
    %12228 = vmatmul.mubr.f32.gmra.mrb[0].mxu0 %v11278
    %v12229 = vpop.f32.mrb[0].mxu0
    %v12230 = vadd.f32 0.0, %v12229
    %v12231 = vpop.f32.mrb[0].mxu0
    %12232 = vmatprep.mubr.f32.mxu0 0.0
    %12233 = vmatmul.mubr.f32.gmra.mrb[0].mxu0 %v11281
    %v12234 = vpop.f32.mrb[0].mxu0
    %v12235 = vadd.f32 0.0, %v12234
    %v12236 = vpop.f32.mrb[0].mxu0
    %12237 = vmatprep.mubr.f32.mxu0 0.0
    %12238 = vmatmul.mubr.f32.gmra.mrb[0].mxu0 %v11284
    %v12239 = vpop.f32.mrb[0].mxu0
    %v12240 = vadd.f32 0.0, %v12239
    %v12241 = vpop.f32.mrb[0].mxu0
    %12242 = vmatprep.mubr.f32.mxu0 0.0
    %12243 = vmatmul.mubr.f32.gmra.mrb[0].mxu0 %v11287
    %v12244 = vpop.f32.mrb[0].mxu0
    %v12245 = vadd.f32 0.0, %v12244
    %v12246 = vpop.f32.mrb[0].mxu0
    %12247 = vmatprep.mubr.f32.mxu0 0.0
    %12248 = vmatmul.mubr.f32.gmra.mrb[0].mxu0 %v11290
    %v12249 = vpop.f32.mrb[0].mxu0
    %v12250 = vadd.f32 0.0, %v12249
    %v12251 = vpop.f32.mrb[0].mxu0
    %12252 = vmatprep.mubr.f32.mxu0 0.0
    %12253 = vmatmul.mubr.f32.gmra.mrb[0].mxu0 %v11293
    %v12254 = vpop.f32.mrb[0].mxu0
    %v12255 = vadd.f32 0.0, %v12254
    %v12256 = vpop.f32.mrb[0].mxu0
    %12257 = vmatprep.mubr.f32.mxu0 0.0
    %12258 = vmatmul.mubr.f32.gmra.mrb[0].mxu0 %v11296
    %v12259 = vpop.f32.mrb[0].mxu0
    %v12260 = vadd.f32 0.0, %v12259
    %v12261 = vpop.f32.mrb[0].mxu0
    %12262 = vmatprep.mubr.f32.mxu0 0.0
    %12263 = vmatmul.mubr.f32.gmra.mrb[0].mxu0 %v11299
    %v12264 = vpop.f32.mrb[0].mxu0
    %v12265 = vadd.f32 0.0, %v12264
    %v12266 = vpop.f32.mrb[0].mxu0
    %12267 = vmatprep.mubr.f32.mxu0 0.0
    %12268 = vmatmul.mubr.f32.gmra.mrb[0].mxu0 %v11302
    %v12269 = vpop.f32.mrb[0].mxu0
    %v12270 = vadd.f32 0.0, %v12269
    %v12271 = vpop.f32.mrb[0].mxu0
    %12272 = vmatprep.mubr.f32.mxu0 0.0
    %12273 = vmatmul.mubr.f32.gmra.mrb[0].mxu0 %v11305
    %v12274 = vpop.f32.mrb[0].mxu0
    %v12275 = vadd.f32 0.0, %v12274
    %v12276 = vpop.f32.mrb[0].mxu0
    %12277 = vmatprep.mubr.f32.mxu0 0.0
    %12278 = vmatmul.mubr.f32.gmra.mrb[0].mxu0 %v11308
    %v12279 = vpop.f32.mrb[0].mxu0
    %v12280 = vadd.f32 0.0, %v12279
    %v12281 = vpop.f32.mrb[0].mxu0
    %12282 = vmatprep.mubr.f32.mxu0 0.0
    %12283 = vmatmul.mubr.f32.gmra.mrb[0].mxu0 %v11311
    %v12284 = vpop.f32.mrb[0].mxu0
    %v12285 = vadd.f32 0.0, %v12284
    %v12286 = vpop.f32.mrb[0].mxu0
    %12287 = vmatprep.mubr.f32.mxu0 0.0
    %12288 = vmatmul.mubr.f32.gmra.mrb[0].mxu0 %v11314
    %v12289 = vpop.f32.mrb[0].mxu0
    %v12290 = vadd.f32 0.0, %v12289
    %v12291 = vpop.f32.mrb[0].mxu0
    %12292 = vmatprep.mubr.f32.mxu0 0.0
    %12293 = vmatmul.mubr.f32.gmra.mrb[0].mxu0 %v11317
    %v12294 = vpop.f32.mrb[0].mxu0
    %v12295 = vadd.f32 0.0, %v12294
    %v12296 = vpop.f32.mrb[0].mxu0
    %12297 = vmatprep.mubr.f32.mxu0 0.0
    %12298 = vmatmul.mubr.f32.gmra.mrb[0].mxu0 %v11320
    %v12299 = vpop.f32.mrb[0].mxu0
    %v12300 = vadd.f32 0.0, %v12299
    %v12301 = vpop.f32.mrb[0].mxu0
    %12302 = vmatprep.mubr.f32.mxu0 0.0
    %12303 = vmatmul.mubr.f32.gmra.mrb[0].mxu0 %v11323
    %v12304 = vpop.f32.mrb[0].mxu0
    %v12305 = vadd.f32 0.0, %v12304
    %v12306 = vpop.f32.mrb[0].mxu0
    %12307 = vmatprep.mubr.f32.mxu0 0.0
    %12308 = vmatmul.mubr.f32.gmra.mrb[0].mxu0 %v11326
    %v12309 = vpop.f32.mrb[0].mxu0
    %v12310 = vadd.f32 0.0, %v12309
    %v12311 = vpop.f32.mrb[0].mxu0
    %12312 = vmatprep.mubr.f32.mxu0 0.0
    %12313 = vmatmul.mubr.f32.gmra.mrb[0].mxu0 %v11329
    %v12314 = vpop.f32.mrb[0].mxu0
    %v12315 = vadd.f32 0.0, %v12314
    %v12316 = vpop.f32.mrb[0].mxu0
    %12317 = vmatprep.mubr.f32.mxu0 0.0
    %12318 = vmatmul.mubr.f32.gmra.mrb[0].mxu0 %v11332
    %v12319 = vpop.f32.mrb[0].mxu0
    %v12320 = vadd.f32 0.0, %v12319
    %v12321 = vpop.f32.mrb[0].mxu0
    %12322 = vmatprep.mubr.f32.mxu0 0.0
    %12323 = vmatmul.mubr.f32.gmra.mrb[0].mxu0 %v11335
    %v12324 = vpop.f32.mrb[0].mxu0
    %v12325 = vadd.f32 0.0, %v12324
    %v12326 = vpop.f32.mrb[0].mxu0
    %12327 = vmatprep.mubr.f32.mxu0 0.0
    %12328 = vmatmul.mubr.f32.gmra.mrb[0].mxu0 %v11338
    %v12329 = vpop.f32.mrb[0].mxu0
    %v12330 = vadd.f32 0.0, %v12329
    %v12331 = vpop.f32.mrb[0].mxu0
    %12332 = vmatprep.mubr.f32.mxu0 0.0
    %12333 = vmatmul.mubr.f32.gmra.mrb[0].mxu0 %v11341
    %v12334 = vpop.f32.mrb[0].mxu0
    %v12335 = vadd.f32 0.0, %v12334
    %v12336 = vpop.f32.mrb[0].mxu0
    %12337 = vmatprep.mubr.f32.mxu0 0.0
    %12338 = vmatmul.mubr.f32.gmra.mrb[0].mxu0 %v11344
    %v12339 = vpop.f32.mrb[0].mxu0
    %v12340 = vadd.f32 0.0, %v12339
    %v12341 = vpop.f32.mrb[0].mxu0
    %12342 = vmatprep.mubr.f32.mxu0 0.0
    %12343 = vmatmul.mubr.f32.gmra.mrb[0].mxu0 %v11347
    %v12344 = vpop.f32.mrb[0].mxu0
    %v12345 = vadd.f32 0.0, %v12344
    %v12346 = vpop.f32.mrb[0].mxu0
    %12347 = vmatprep.mubr.f32.mxu0 0.0
    %12348 = vmatmul.mubr.f32.gmra.mrb[0].mxu0 %v11350
    %v12349 = vpop.f32.mrb[0].mxu0
    %v12350 = vadd.f32 0.0, %v12349
    %v12351 = vpop.f32.mrb[0].mxu0
    %12352 = vmatprep.mubr.f32.mxu0 0.0
    %12353 = vmatmul.mubr.f32.gmra.mrb[0].mxu0 %v11353
    %v12354 = vpop.f32.mrb[0].mxu0
    %v12355 = vadd.f32 0.0, %v12354
    %v12356 = vpop.f32.mrb[0].mxu0
    %12357 = vmatprep.mubr.f32.mxu0 0.0
    %12358 = vmatmul.mubr.f32.gmra.mrb[0].mxu0 %v11356
    %v12359 = vpop.f32.mrb[0].mxu0
    %v12360 = vadd.f32 0.0, %v12359
    %v12361 = vpop.f32.mrb[0].mxu0
    %12362 = vmatprep.mubr.f32.mxu0 0.0
    %12363 = vmatmul.mubr.f32.gmra.mrb[0].mxu0 %v11359
    %v12364 = vpop.f32.mrb[0].mxu0
    %v12365 = vadd.f32 0.0, %v12364
    %v12366 = vpop.f32.mrb[0].mxu0
    %12367 = vmatprep.mubr.f32.mxu0 0.0
    %12368 = vmatmul.mubr.f32.gmra.mrb[0].mxu0 %v11362
    %v12369 = vpop.f32.mrb[0].mxu0
    %v12370 = vadd.f32 0.0, %v12369
    %v12371 = vpop.f32.mrb[0].mxu0
    %12372 = vmatprep.mubr.f32.mxu0 0.0
    %12373 = vmatmul.mubr.f32.gmra.mrb[0].mxu0 %v11365
    %v12374 = vpop.f32.mrb[0].mxu0
    %v12375 = vadd.f32 0.0, %v12374
    %v12376 = vpop.f32.mrb[0].mxu0
    %12377 = vmatprep.mubr.f32.mxu0 0.0
    %12378 = vmatmul.mubr.f32.gmra.mrb[0].mxu0 %v11368
    %v12379 = vpop.f32.mrb[0].mxu0
    %v12380 = vadd.f32 0.0, %v12379
    %v12381 = vpop.f32.mrb[0].mxu0
    %12382 = vmatprep.mubr.f32.mxu0 0.0
    %12383 = vmatmul.mubr.f32.gmra.mrb[0].mxu0 %v11371
    %v12384 = vpop.f32.mrb[0].mxu0
    %v12385 = vadd.f32 0.0, %v12384
    %v12386 = vpop.f32.mrb[0].mxu0
    %12387 = vmatprep.mubr.f32.mxu0 0.0
    %12388 = vmatmul.mubr.f32.gmra.mrb[0].mxu0 %v11374
    %v12389 = vpop.f32.mrb[0].mxu0
    %v12390 = vadd.f32 0.0, %v12389
    %v12391 = vpop.f32.mrb[0].mxu0
    %12392 = vmatprep.mubr.f32.mxu0 0.0
    %12393 = vmatmul.mubr.f32.gmra.mrb[0].mxu0 %v11377
    %v12394 = vpop.f32.mrb[0].mxu0
    %v12395 = vadd.f32 0.0, %v12394
    %v12396 = vpop.f32.mrb[0].mxu0
    %12397 = vmatprep.mubr.f32.mxu0 0.0
    %12398 = vmatmul.mubr.f32.gmra.mrb[0].mxu0 %v11380
    %v12399 = vpop.f32.mrb[0].mxu0
    %v12400 = vadd.f32 0.0, %v12399
    %v12401 = vpop.f32.mrb[0].mxu0
    %12402 = vmatprep.mubr.f32.mxu0 0.0
    %12403 = vmatmul.mubr.f32.gmra.mrb[0].mxu0 %v11383
    %v12404 = vpop.f32.mrb[0].mxu0
    %v12405 = vadd.f32 0.0, %v12404
    %v12406 = vpop.f32.mrb[0].mxu0
    %12407 = vmatprep.mubr.f32.mxu0 0.0
    %12408 = vmatmul.mubr.f32.gmra.mrb[0].mxu0 %v11386
    %v12409 = vpop.f32.mrb[0].mxu0
    %v12410 = vadd.f32 0.0, %v12409
    %v12411 = vpop.f32.mrb[0].mxu0
    %12412 = vmatprep.mubr.f32.mxu0 0.0
    %12413 = vmatmul.mubr.f32.gmra.mrb[0].mxu0 %v11389
    %v12414 = vpop.f32.mrb[0].mxu0
    %v12415 = vadd.f32 0.0, %v12414
    %v12416 = vpop.f32.mrb[0].mxu0
    %12417 = vmatprep.mubr.f32.mxu0 0.0
    %12418 = vmatmul.mubr.f32.gmra.mrb[0].mxu0 %v11392
    %v12419 = vpop.f32.mrb[0].mxu0
    %v12420 = vadd.f32 0.0, %v12419
    %v12421 = vpop.f32.mrb[0].mxu0
    %12422 = vmatprep.mubr.f32.mxu0 0.0
    %12423 = vmatmul.mubr.f32.gmra.mrb[0].mxu0 %v11395
    %v12424 = vpop.f32.mrb[0].mxu0
    %v12425 = vadd.f32 0.0, %v12424
    %v12426 = vpop.f32.mrb[0].mxu0
    %12427 = vmatprep.mubr.f32.mxu0 0.0
    %12428 = vmatmul.mubr.f32.gmra.mrb[0].mxu0 %v11398
    %v12429 = vpop.f32.mrb[0].mxu0
    %v12430 = vadd.f32 0.0, %v12429
    %v12431 = vpop.f32.mrb[0].mxu0
    %12432 = vmatprep.mubr.f32.mxu0 0.0
    %12433 = vmatmul.mubr.f32.gmra.mrb[0].mxu0 %v11401
    %v12434 = vpop.f32.mrb[0].mxu0
    %v12435 = vadd.f32 0.0, %v12434
    %v12436 = vpop.f32.mrb[0].mxu0
    %12437 = vmatprep.mubr.f32.mxu0 0.0
    %12438 = vmatmul.mubr.f32.gmra.mrb[0].mxu0 %v11404
    %v12439 = vpop.f32.mrb[0].mxu0
    %v12440 = vadd.f32 0.0, %v12439
    %v12441 = vpop.f32.mrb[0].mxu0
    %12442 = vmatprep.mubr.f32.mxu0 0.0
    %12443 = vmatmul.mubr.f32.gmra.mrb[0].mxu0 %v11407
    %v12444 = vpop.f32.mrb[0].mxu0
    %v12445 = vadd.f32 0.0, %v12444
    %v12446 = vpop.f32.mrb[0].mxu0
    %12447 = vmatprep.mubr.f32.mxu0 0.0
    %12448 = vmatmul.mubr.f32.gmra.mrb[0].mxu0 %v11410
    %v12449 = vpop.f32.mrb[0].mxu0
    %v12450 = vadd.f32 0.0, %v12449
    %v12451 = vpop.f32.mrb[0].mxu0
    %12452 = vmatprep.mubr.f32.mxu0 0.0
    %12453 = vmatmul.mubr.f32.gmra.mrb[0].mxu0 %v11413
    %v12454 = vpop.f32.mrb[0].mxu0
    %v12455 = vadd.f32 0.0, %v12454
    %v12456 = vpop.f32.mrb[0].mxu0
    %12457 = vmatprep.mubr.f32.mxu0 0.0
    %12458 = vmatmul.mubr.f32.gmra.mrb[0].mxu0 %v11416
    %v12459 = vpop.f32.mrb[0].mxu0
    %v12460 = vadd.f32 0.0, %v12459
    %v12461 = vpop.f32.mrb[0].mxu0
    %12462 = vmatprep.mubr.f32.mxu0 0.0
    %12463 = vmatmul.mubr.f32.gmra.mrb[0].mxu0 %v11419
    %v12464 = vpop.f32.mrb[0].mxu0
    %v12465 = vadd.f32 0.0, %v12464
    %v12466 = vpop.f32.mrb[0].mxu0
    %12467 = vmatprep.mubr.f32.mxu0 0.0
    %12468 = vmatmul.mubr.f32.gmra.mrb[0].mxu0 %v11422
    %v12469 = vpop.f32.mrb[0].mxu0
    %v12470 = vadd.f32 0.0, %v12469
    %v12471 = vpop.f32.mrb[0].mxu0
    %12472 = vmatprep.mubr.f32.mxu0 0.0
    %12473 = vmatmul.mubr.f32.gmra.mrb[0].mxu0 %v11425
    %v12474 = vpop.f32.mrb[0].mxu0
    %v12475 = vadd.f32 0.0, %v12474
    %v12476 = vpop.f32.mrb[0].mxu0
    %12477 = vmatprep.mubr.f32.mxu0 0.0
    %12478 = vmatmul.mubr.f32.gmra.mrb[0].mxu0 %v11428
    %v12479 = vpop.f32.mrb[0].mxu0
    %v12480 = vadd.f32 0.0, %v12479
    %v12481 = vpop.f32.mrb[0].mxu0
    %12482 = vmatprep.mubr.f32.mxu0 0.0
    %12483 = vmatmul.mubr.f32.gmra.mrb[0].mxu0 %v11431
    %v12484 = vpop.f32.mrb[0].mxu0
    %v12485 = vadd.f32 0.0, %v12484
    %v12486 = vpop.f32.mrb[0].mxu0
    %12487 = vmatprep.mubr.f32.mxu0 0.0
    %12488 = vmatmul.mubr.f32.gmra.mrb[0].mxu0 %v11434
    %v12489 = vpop.f32.mrb[0].mxu0
    %v12490 = vadd.f32 0.0, %v12489
    %v12491 = vpop.f32.mrb[0].mxu0
    %12492 = vmatprep.mubr.f32.mxu0 0.0
    %12493 = vmatmul.mubr.f32.gmra.mrb[0].mxu0 %v11437
    %v12494 = vpop.f32.mrb[0].mxu0
    %v12495 = vadd.f32 0.0, %v12494
    %v12496 = vpop.f32.mrb[0].mxu0
    %12497 = vmatprep.mubr.f32.mxu0 0.0
    %12498 = vmatmul.mubr.f32.gmra.mrb[0].mxu0 %v11440
    %v12499 = vpop.f32.mrb[0].mxu0
    %v12500 = vadd.f32 0.0, %v12499
    %v12501 = vpop.f32.mrb[0].mxu0
    %12502 = vmatprep.mubr.f32.mxu0 0.0
    %12503 = vmatmul.mubr.f32.gmra.mrb[0].mxu0 %v11443
    %v12504 = vpop.f32.mrb[0].mxu0
    %v12505 = vadd.f32 0.0, %v12504
    %v12506 = vpop.f32.mrb[0].mxu0
    %12507 = vmatprep.mubr.f32.mxu0 0.0
    %12508 = vmatmul.mubr.f32.gmra.mrb[0].mxu0 %v11446
    %v12509 = vpop.f32.mrb[0].mxu0
    %v12510 = vadd.f32 0.0, %v12509
    %v12511 = vpop.f32.mrb[0].mxu0
    %12512 = vmatprep.mubr.f32.mxu0 0.0
    %12513 = vmatmul.mubr.f32.gmra.mrb[0].mxu0 %v11449
    %v12514 = vpop.f32.mrb[0].mxu0
    %v12515 = vadd.f32 0.0, %v12514
    %v12516 = vpop.f32.mrb[0].mxu0
    %12517 = vmatprep.mubr.f32.mxu0 0.0
    %12518 = vmatmul.mubr.f32.gmra.mrb[0].mxu0 %v11452
    %v12519 = vpop.f32.mrb[0].mxu0
    %v12520 = vadd.f32 0.0, %v12519
    %v12521 = vpop.f32.mrb[0].mxu0
    %12522 = vmatprep.mubr.f32.mxu0 0.0
    %12523 = vmatmul.mubr.f32.gmra.mrb[0].mxu0 %v11455
    %v12524 = vpop.f32.mrb[0].mxu0
    %v12525 = vadd.f32 0.0, %v12524
    %v12526 = vpop.f32.mrb[0].mxu0
    %12527 = vmatprep.mubr.f32.mxu0 0.0
    %12528 = vmatmul.mubr.f32.gmra.mrb[0].mxu0 %v11458
    %v12529 = vpop.f32.mrb[0].mxu0
    %v12530 = vadd.f32 0.0, %v12529
    %v12531 = vpop.f32.mrb[0].mxu0
    %12532 = vmatprep.mubr.f32.mxu0 0.0
    %12533 = vmatmul.mubr.f32.gmra.mrb[0].mxu0 %v11461
    %v12534 = vpop.f32.mrb[0].mxu0
    %v12535 = vadd.f32 0.0, %v12534
    %v12536 = vpop.f32.mrb[0].mxu0
    %12537 = vmatprep.mubr.f32.mxu0 0.0
    %12538 = vmatmul.mubr.f32.gmra.mrb[0].mxu0 %v11464
    %v12539 = vpop.f32.mrb[0].mxu0
    %v12540 = vadd.f32 0.0, %v12539
    %v12541 = vpop.f32.mrb[0].mxu0
    %12542 = vmatprep.mubr.f32.mxu0 0.0
    %12543 = vmatmul.mubr.f32.gmra.mrb[0].mxu0 %v11467
    %v12544 = vpop.f32.mrb[0].mxu0
    %v12545 = vadd.f32 0.0, %v12544
    %v12546 = vpop.f32.mrb[0].mxu0
    %12547 = vmatprep.mubr.f32.mxu0 0.0
    %12548 = vmatmul.mubr.f32.gmra.mrb[0].mxu0 %v11470
    %v12549 = vpop.f32.mrb[0].mxu0
    %v12550 = vadd.f32 0.0, %v12549
    %v12551 = vpop.f32.mrb[0].mxu0
    %12552 = vmatprep.mubr.f32.mxu0 0.0
    %12553 = vmatmul.mubr.f32.gmra.mrb[0].mxu0 %v11473
    %v12554 = vpop.f32.mrb[0].mxu0
    %v12555 = vadd.f32 0.0, %v12554
    %v12556 = vpop.f32.mrb[0].mxu0
    %12557 = vmatprep.mubr.f32.mxu0 0.0
    %12558 = vmatmul.mubr.f32.gmra.mrb[0].mxu0 %v11476
    %v12559 = vpop.f32.mrb[0].mxu0
    %v12560 = vadd.f32 0.0, %v12559
    %v12561 = vpop.f32.mrb[0].mxu0
    %12562 = vmatprep.mubr.f32.mxu0 0.0
    %12563 = vmatmul.mubr.f32.gmra.mrb[0].mxu0 %v11479
    %v12564 = vpop.f32.mrb[0].mxu0
    %v12565 = vadd.f32 0.0, %v12564
    %v12566 = vpop.f32.mrb[0].mxu0
    %12567 = vmatprep.mubr.f32.mxu0 0.0
    %12568 = vmatmul.mubr.f32.gmra.mrb[0].mxu0 %v11482
    %v12569 = vpop.f32.mrb[0].mxu0
    %v12570 = vadd.f32 0.0, %v12569
    %v12571 = vpop.f32.mrb[0].mxu0
    %12572 = vmatprep.mubr.f32.mxu0 0.0
    %12573 = vmatmul.mubr.f32.gmra.mrb[0].mxu0 %v11485
    %v12574 = vpop.f32.mrb[0].mxu0
    %v12575 = vadd.f32 0.0, %v12574
    %v12576 = vpop.f32.mrb[0].mxu0
    %12577 = vmatprep.mubr.f32.mxu0 0.0
    %12578 = vmatmul.mubr.f32.gmra.mrb[0].mxu0 %v11488
    %v12579 = vpop.f32.mrb[0].mxu0
    %v12580 = vadd.f32 0.0, %v12579
    %v12581 = vpop.f32.mrb[0].mxu0
    %12582 = vmatprep.mubr.f32.mxu0 0.0
    %12583 = vmatmul.mubr.f32.gmra.mrb[0].mxu0 %v11491
    %v12584 = vpop.f32.mrb[0].mxu0
    %v12585 = vadd.f32 0.0, %v12584
    %v12586 = vpop.f32.mrb[0].mxu0
    %12587 = vmatprep.mubr.f32.mxu0 0.0
    %12588 = vmatmul.mubr.f32.gmra.mrb[0].mxu0 %v11494
    %v12589 = vpop.f32.mrb[0].mxu0
    %v12590 = vadd.f32 0.0, %v12589
    %v12591 = vpop.f32.mrb[0].mxu0
    %12592 = vmatprep.mubr.f32.mxu0 0.0
    %12593 = vmatmul.mubr.f32.gmra.mrb[0].mxu0 %v11497
    %v12594 = vpop.f32.mrb[0].mxu0
    %v12595 = vadd.f32 0.0, %v12594
    %v12596 = vpop.f32.mrb[0].mxu0
    %12597 = vmatprep.mubr.f32.mxu0 0.0
    %12598 = vmatmul.mubr.f32.gmra.mrb[0].mxu0 %v11500
    %v12599 = vpop.f32.mrb[0].mxu0
    %v12600 = vadd.f32 0.0, %v12599
    %v12601 = vpop.f32.mrb[0].mxu0
    %12602 = vmatprep.mubr.f32.mxu0 0.0
    %12603 = vmatmul.mubr.f32.gmra.mrb[0].mxu0 %v11503
    %v12604 = vpop.f32.mrb[0].mxu0
    %v12605 = vadd.f32 0.0, %v12604
    %v12606 = vpop.f32.mrb[0].mxu0
    %12607 = vmatprep.mubr.f32.mxu0 0.0
    %12608 = vmatmul.mubr.f32.gmra.mrb[0].mxu0 %v11506
    %v12609 = vpop.f32.mrb[0].mxu0
    %v12610 = vadd.f32 0.0, %v12609
    %v12611 = vpop.f32.mrb[0].mxu0
    %12612 = vmatprep.mubr.f32.mxu0 0.0
    %12613 = vmatmul.mubr.f32.gmra.mrb[0].mxu0 %v11509
    %v12614 = vpop.f32.mrb[0].mxu0
    %v12615 = vadd.f32 0.0, %v12614
    %v12616 = vpop.f32.mrb[0].mxu0
    %12617 = vmatprep.mubr.f32.mxu0 0.0
    %12618 = vmatmul.mubr.f32.gmra.mrb[0].mxu0 %v11512
    %v12619 = vpop.f32.mrb[0].mxu0
    %v12620 = vadd.f32 0.0, %v12619
    %v12621 = vpop.f32.mrb[0].mxu0
    %12622 = vmatprep.mubr.f32.mxu0 0.0
    %12623 = vmatmul.mubr.f32.gmra.mrb[0].mxu0 %v11515
    %v12624 = vpop.f32.mrb[0].mxu0
    %v12625 = vadd.f32 0.0, %v12624
    %v12626 = vpop.f32.mrb[0].mxu0
    %12627 = vmatprep.mubr.f32.mxu0 0.0
    %12628 = vmatmul.mubr.f32.gmra.mrb[0].mxu0 %v11518
    %v12629 = vpop.f32.mrb[0].mxu0
    %v12630 = vadd.f32 0.0, %v12629
    %v12631 = vpop.f32.mrb[0].mxu0
    %12632 = vmatprep.mubr.f32.mxu0 0.0
    %12633 = vmatmul.mubr.f32.gmra.mrb[0].mxu0 %v11521
    %v12634 = vpop.f32.mrb[0].mxu0
    %v12635 = vadd.f32 0.0, %v12634
    %v12636 = vpop.f32.mrb[0].mxu0
    %12637 = vmatprep.mubr.f32.mxu0 0.0
    %12638 = vmatmul.mubr.f32.gmra.mrb[0].mxu0 %v11524
    %v12639 = vpop.f32.mrb[0].mxu0
    %v12640 = vadd.f32 0.0, %v12639
    %v12641 = vpop.f32.mrb[0].mxu0
    %12642 = vmatprep.mubr.f32.mxu0 0.0
    %12643 = vmatmul.mubr.f32.gmra.mrb[0].mxu0 %v11527
    %v12644 = vpop.f32.mrb[0].mxu0
    %v12645 = vadd.f32 0.0, %v12644
    %v12646 = vpop.f32.mrb[0].mxu0
    %12647 = vmatprep.mubr.f32.mxu0 0.0
    %12648 = vmatmul.mubr.f32.gmra.mrb[0].mxu0 %v11530
    %v12649 = vpop.f32.mrb[0].mxu0
    %v12650 = vadd.f32 0.0, %v12649
    %v12651 = vpop.f32.mrb[0].mxu0
    %12652 = vmatprep.mubr.f32.mxu0 0.0
    %12653 = vmatmul.mubr.f32.gmra.mrb[0].mxu0 %v11533
    %v12654 = vpop.f32.mrb[0].mxu0
    %v12655 = vadd.f32 0.0, %v12654
    %v12656 = vpop.f32.mrb[0].mxu0
    %12657 = vmatprep.mubr.f32.mxu0 0.0
    %12658 = vmatmul.mubr.f32.gmra.mrb[0].mxu0 %v11536
    %v12659 = vpop.f32.mrb[0].mxu0
    %v12660 = vadd.f32 0.0, %v12659
    %v12661 = vpop.f32.mrb[0].mxu0
    %12662 = vmatprep.mubr.f32.mxu0 0.0
    %12663 = vmatmul.mubr.f32.gmra.mrb[0].mxu0 %v11539
    %v12664 = vpop.f32.mrb[0].mxu0
    %v12665 = vadd.f32 0.0, %v12664
    %v12666 = vpop.f32.mrb[0].mxu0
    %12667 = vmatprep.mubr.f32.mxu0 0.0
    %12668 = vmatmul.mubr.f32.gmra.mrb[0].mxu0 %v11542
    %v12669 = vpop.f32.mrb[0].mxu0
    %v12670 = vadd.f32 0.0, %v12669
    %v12671 = vpop.f32.mrb[0].mxu0
    %12672 = vmatprep.mubr.f32.mxu0 0.0
    %12673 = vmatmul.mubr.f32.gmra.mrb[0].mxu0 %v11545
    %v12674 = vpop.f32.mrb[0].mxu0
    %v12675 = vadd.f32 0.0, %v12674
    %v12676 = vpop.f32.mrb[0].mxu0
    %12677 = vmatprep.mubr.f32.mxu0 0.0
    %12678 = vmatmul.mubr.f32.gmra.mrb[0].mxu0 %v11548
    %v12679 = vpop.f32.mrb[0].mxu0
    %v12680 = vadd.f32 0.0, %v12679
    %v12681 = vpop.f32.mrb[0].mxu0
    %12682 = vmatprep.mubr.f32.mxu0 0.0
    %12683 = vmatmul.mubr.f32.gmra.mrb[0].mxu0 %v11551
    %v12684 = vpop.f32.mrb[0].mxu0
    %v12685 = vadd.f32 0.0, %v12684
    %v12686 = vpop.f32.mrb[0].mxu0
    %12687 = vmatprep.mubr.f32.mxu0 0.0
    %12688 = vmatmul.mubr.f32.gmra.mrb[0].mxu0 %v11554
    %v12689 = vpop.f32.mrb[0].mxu0
    %v12690 = vadd.f32 0.0, %v12689
    %v12691 = vpop.f32.mrb[0].mxu0
    %12692 = vmatprep.mubr.f32.mxu0 0.0
    %12693 = vmatmul.mubr.f32.gmra.mrb[0].mxu0 %v11557
    %v12694 = vpop.f32.mrb[0].mxu0
    %v12695 = vadd.f32 0.0, %v12694
    %v12696 = vpop.f32.mrb[0].mxu0
    %12697 = vmatprep.mubr.f32.mxu0 0.0
    %12698 = vmatmul.mubr.f32.gmra.mrb[0].mxu0 %v11560
    %v12699 = vpop.f32.mrb[0].mxu0
    %v12700 = vadd.f32 0.0, %v12699
    %v12701 = vpop.f32.mrb[0].mxu0
    %12702 = vmatprep.mubr.f32.mxu0 0.0
    %12703 = vmatmul.mubr.f32.gmra.mrb[0].mxu0 %v11563
    %v12704 = vpop.f32.mrb[0].mxu0
    %v12705 = vadd.f32 0.0, %v12704
    %v12706 = vpop.f32.mrb[0].mxu0
    %12707 = vmatprep.mubr.f32.mxu0 0.0
    %12708 = vmatmul.mubr.f32.gmra.mrb[0].mxu0 %v11566
    %v12709 = vpop.f32.mrb[0].mxu0
    %v12710 = vadd.f32 0.0, %v12709
    %v12711 = vpop.f32.mrb[0].mxu0
    %12712 = vmatprep.mubr.f32.mxu0 0.0
    %12713 = vmatmul.mubr.f32.gmra.mrb[0].mxu0 %v11569
    %v12714 = vpop.f32.mrb[0].mxu0
    %v12715 = vadd.f32 0.0, %v12714
    %v12716 = vpop.f32.mrb[0].mxu0
    %12717 = vmatprep.mubr.f32.mxu0 0.0
    %12718 = vmatmul.mubr.f32.gmra.mrb[0].mxu0 %v11572
    %v12719 = vpop.f32.mrb[0].mxu0
    %v12720 = vadd.f32 0.0, %v12719
    %v12721 = vpop.f32.mrb[0].mxu0
    %12722 = vmatprep.mubr.f32.mxu0 0.0
    %12723 = vmatmul.mubr.f32.gmra.mrb[0].mxu0 %v11575
    %v12724 = vpop.f32.mrb[0].mxu0
    %v12725 = vadd.f32 0.0, %v12724
    %v12726 = vpop.f32.mrb[0].mxu0
    %12727 = vmatprep.mubr.f32.mxu0 0.0
    %12728 = vmatmul.mubr.f32.gmra.mrb[0].mxu0 %v11578
    %v12729 = vpop.f32.mrb[0].mxu0
    %v12730 = vadd.f32 0.0, %v12729
    %v12731 = vpop.f32.mrb[0].mxu0
    %12732 = vmatprep.mubr.f32.mxu0 0.0
    %12733 = vmatmul.mubr.f32.gmra.mrb[0].mxu0 %v11581
    %v12734 = vpop.f32.mrb[0].mxu0
    %v12735 = vadd.f32 0.0, %v12734
    %v12736 = vpop.f32.mrb[0].mxu0
    %12737 = vmatprep.mubr.f32.mxu0 0.0
    %12738 = vmatmul.mubr.f32.gmra.mrb[0].mxu0 %v11584
    %v12739 = vpop.f32.mrb[0].mxu0
    %v12740 = vadd.f32 0.0, %v12739
    %v12741 = vpop.f32.mrb[0].mxu0
    %12742 = vmatprep.mubr.f32.mxu0 0.0
    %12743 = vmatmul.mubr.f32.gmra.mrb[0].mxu0 %v11587
    %v12744 = vpop.f32.mrb[0].mxu0
    %v12745 = vadd.f32 0.0, %v12744
    %v12746 = vpop.f32.mrb[0].mxu0
    %12747 = vmatprep.mubr.f32.mxu0 0.0
    %12748 = vmatmul.mubr.f32.gmra.mrb[0].mxu0 %v11590
    %v12749 = vpop.f32.mrb[0].mxu0
    %v12750 = vadd.f32 0.0, %v12749
    %v12751 = vpop.f32.mrb[0].mxu0
    %12752 = vmatprep.mubr.f32.mxu0 0.0
    %12753 = vmatmul.mubr.f32.gmra.mrb[0].mxu0 %v11593
    %v12754 = vpop.f32.mrb[0].mxu0
    %v12755 = vadd.f32 0.0, %v12754
    %v12756 = vpop.f32.mrb[0].mxu0
    %12757 = vmatprep.mubr.f32.mxu0 0.0
    %12758 = vmatmul.mubr.f32.gmra.mrb[0].mxu0 %v11596
    %v12759 = vpop.f32.mrb[0].mxu0
    %v12760 = vadd.f32 0.0, %v12759
    %v12761 = vpop.f32.mrb[0].mxu0
    %12762 = vmatprep.mubr.f32.mxu0 0.0
    %12763 = vmatmul.mubr.f32.gmra.mrb[0].mxu0 %v11599
    %v12764 = vpop.f32.mrb[0].mxu0
    %v12765 = vadd.f32 0.0, %v12764
    %v12766 = vpop.f32.mrb[0].mxu0
    %12767 = vmatprep.mubr.f32.mxu0 0.0
    %12768 = vmatmul.mubr.f32.gmra.mrb[0].mxu0 %v11602
    %v12769 = vpop.f32.mrb[0].mxu0
    %v12770 = vadd.f32 0.0, %v12769
    %v12771 = vpop.f32.mrb[0].mxu0
    %12772 = vmatprep.mubr.f32.mxu0 0.0
    %12773 = vmatmul.mubr.f32.gmra.mrb[0].mxu0 %v11605
    %v12774 = vpop.f32.mrb[0].mxu0
    %v12775 = vadd.f32 0.0, %v12774
    %v12776 = vpop.f32.mrb[0].mxu0
    %12777 = vmatprep.mubr.f32.mxu0 0.0
    %12778 = vmatmul.mubr.f32.gmra.mrb[0].mxu0 %v11608
    %v12779 = vpop.f32.mrb[0].mxu0
    %v12780 = vadd.f32 0.0, %v12779
    %v12781 = vpop.f32.mrb[0].mxu0
    %12782 = vmatprep.mubr.f32.mxu0 0.0
    %12783 = vmatmul.mubr.f32.gmra.mrb[0].mxu0 %v11611
    %v12784 = vpop.f32.mrb[0].mxu0
    %v12785 = vadd.f32 0.0, %v12784
    %v12786 = vpop.f32.mrb[0].mxu0
    %12787 = vmatprep.mubr.f32.mxu0 0.0
    %12788 = vmatmul.mubr.f32.gmra.mrb[0].mxu0 %v11614
    %v12789 = vpop.f32.mrb[0].mxu0
    %v12790 = vadd.f32 0.0, %v12789
    %v12791 = vpop.f32.mrb[0].mxu0
    %12792 = vmatprep.mubr.f32.mxu0 0.0
    %12793 = vmatmul.mubr.f32.gmra.mrb[0].mxu0 %v11617
    %v12794 = vpop.f32.mrb[0].mxu0
    %v12795 = vadd.f32 0.0, %v12794
    %v12796 = vpop.f32.mrb[0].mxu0
    %12797 = vmatprep.mubr.f32.mxu0 0.0
    %12798 = vmatmul.mubr.f32.gmra.mrb[0].mxu0 %v11620
    %v12799 = vpop.f32.mrb[0].mxu0
    %v12800 = vadd.f32 0.0, %v12799
    %v12801 = vpop.f32.mrb[0].mxu0
    %12802 = vmatprep.mubr.f32.mxu0 0.0
    %12803 = vmatmul.mubr.f32.gmra.mrb[0].mxu0 %v11623
    %v12804 = vpop.f32.mrb[0].mxu0
    %v12805 = vadd.f32 0.0, %v12804
    %v12806 = vpop.f32.mrb[0].mxu0
    %12807 = vmatprep.mubr.f32.mxu0 0.0
    %12808 = vmatmul.mubr.f32.gmra.mrb[0].mxu0 %v11626
    %v12809 = vpop.f32.mrb[0].mxu0
    %v12810 = vadd.f32 0.0, %v12809
    %v12811 = vpop.f32.mrb[0].mxu0
    %12812 = vmatprep.mubr.f32.mxu0 0.0
    %12813 = vmatmul.mubr.f32.gmra.mrb[0].mxu0 %v11629
    %v12814 = vpop.f32.mrb[0].mxu0
    %v12815 = vadd.f32 0.0, %v12814
    %v12816 = vpop.f32.mrb[0].mxu0
    %12817 = vmatprep.mubr.f32.mxu0 0.0
    %12818 = vmatmul.mubr.f32.gmra.mrb[0].mxu0 %v11632
    %v12819 = vpop.f32.mrb[0].mxu0
    %v12820 = vadd.f32 0.0, %v12819
    %v12821 = vpop.f32.mrb[0].mxu0
    %12822 = vmatprep.mubr.f32.mxu0 0.0
    %12823 = vmatmul.mubr.f32.gmra.mrb[0].mxu0 %v11635
    %v12824 = vpop.f32.mrb[0].mxu0
    %v12825 = vadd.f32 0.0, %v12824
    %v12826 = vpop.f32.mrb[0].mxu0
    %12827 = vmatprep.mubr.f32.mxu0 0.0
    %12828 = vmatmul.mubr.f32.gmra.mrb[0].mxu0 %v11638
    %v12829 = vpop.f32.mrb[0].mxu0
    %v12830 = vadd.f32 0.0, %v12829
    %v12831 = vpop.f32.mrb[0].mxu0
    %12832 = vmatprep.mubr.f32.mxu0 0.0
    %12833 = vmatmul.mubr.f32.gmra.mrb[0].mxu0 %v11641
    %v12834 = vpop.f32.mrb[0].mxu0
    %v12835 = vadd.f32 0.0, %v12834
    %v12836 = vpop.f32.mrb[0].mxu0
    %12837 = vmatprep.mubr.f32.mxu0 0.0
    %12838 = vmatmul.mubr.f32.gmra.mrb[0].mxu0 %v11644
    %v12839 = vpop.f32.mrb[0].mxu0
    %v12840 = vadd.f32 0.0, %v12839
    %v12841 = vpop.f32.mrb[0].mxu0
    %12842 = vmatprep.mubr.f32.mxu0 0.0
    %12843 = vmatmul.mubr.f32.gmra.mrb[0].mxu0 %v11647
    %v12844 = vpop.f32.mrb[0].mxu0
    %v12845 = vadd.f32 0.0, %v12844
    %v12846 = vpop.f32.mrb[0].mxu0
    %12847 = vmatprep.mubr.f32.mxu0 0.0
    %12848 = vmatmul.mubr.f32.gmra.mrb[0].mxu0 %v11650
    %v12849 = vpop.f32.mrb[0].mxu0
    %v12850 = vadd.f32 0.0, %v12849
    %v12851 = vpop.f32.mrb[0].mxu0
    %12852 = vmatprep.mubr.f32.mxu0 0.0
    %12853 = vmatmul.mubr.f32.gmra.mrb[0].mxu0 %v11653
    %v12854 = vpop.f32.mrb[0].mxu0
    %v12855 = vadd.f32 0.0, %v12854
    %v12856 = vpop.f32.mrb[0].mxu0
    %12857 = vmatprep.mubr.f32.mxu0 0.0
    %12858 = vmatmul.mubr.f32.gmra.mrb[0].mxu0 %v11656
    %v12859 = vpop.f32.mrb[0].mxu0
    %v12860 = vadd.f32 0.0, %v12859
    %v12861 = vpop.f32.mrb[0].mxu0
    %12862 = vmatprep.mubr.f32.mxu0 0.0
    %12863 = vmatmul.mubr.f32.gmra.mrb[0].mxu0 %v11659
    %v12864 = vpop.f32.mrb[0].mxu0
    %v12865 = vadd.f32 0.0, %v12864
    %v12866 = vpop.f32.mrb[0].mxu0
    %12867 = vmatprep.mubr.f32.mxu0 0.0
    %12868 = vmatmul.mubr.f32.gmra.mrb[0].mxu0 %v11662
    %v12869 = vpop.f32.mrb[0].mxu0
    %v12870 = vadd.f32 0.0, %v12869
    %v12871 = vpop.f32.mrb[0].mxu0
    %12872 = vmatprep.mubr.f32.mxu0 0.0
    %12873 = vmatmul.mubr.f32.gmra.mrb[0].mxu0 %v11665
    %v12874 = vpop.f32.mrb[0].mxu0
    %v12875 = vadd.f32 0.0, %v12874
    %v12876 = vpop.f32.mrb[0].mxu0
    %12877 = vmatprep.mubr.f32.mxu0 0.0
    %12878 = vmatmul.mubr.f32.gmra.mrb[0].mxu0 %v11668
    %v12879 = vpop.f32.mrb[0].mxu0
    %v12880 = vadd.f32 0.0, %v12879
    %v12881 = vpop.f32.mrb[0].mxu0
    %12882 = vmatprep.mubr.f32.mxu0 0.0
    %12883 = vmatmul.mubr.f32.gmra.mrb[0].mxu0 %v11671
    %v12884 = vpop.f32.mrb[0].mxu0
    %v12885 = vadd.f32 0.0, %v12884
    %v12886 = vpop.f32.mrb[0].mxu0
    %12887 = vmatprep.mubr.f32.mxu0 0.0
    %12888 = vmatmul.mubr.f32.gmra.mrb[0].mxu0 %v11674
    %v12889 = vpop.f32.mrb[0].mxu0
    %v12890 = vadd.f32 0.0, %v12889
    %v12891 = vpop.f32.mrb[0].mxu0
    %12892 = vmatprep.mubr.f32.mxu0 0.0
    %12893 = vmatmul.mubr.f32.gmra.mrb[0].mxu0 %v11677
    %v12894 = vpop.f32.mrb[0].mxu0
    %v12895 = vadd.f32 0.0, %v12894
    %v12896 = vpop.f32.mrb[0].mxu0
    %12897 = vmatprep.mubr.f32.mxu0 0.0
    %12898 = vmatmul.mubr.f32.gmra.mrb[0].mxu0 %v11680
    %v12899 = vpop.f32.mrb[0].mxu0
    %v12900 = vadd.f32 0.0, %v12899
    %v12901 = vpop.f32.mrb[0].mxu0
    %12902 = vmatprep.mubr.f32.mxu0 0.0
    %12903 = vmatmul.mubr.f32.gmra.mrb[0].mxu0 %v11683
    %v12904 = vpop.f32.mrb[0].mxu0
    %v12905 = vadd.f32 0.0, %v12904
    %v12906 = vpop.f32.mrb[0].mxu0
    %12907 = vmatprep.mubr.f32.mxu0 0.0
    %12908 = vmatmul.mubr.f32.gmra.mrb[0].mxu0 %v11686
    %v12909 = vpop.f32.mrb[0].mxu0
    %v12910 = vadd.f32 0.0, %v12909
    %v12911 = vpop.f32.mrb[0].mxu0
    %12912 = vmatprep.mubr.f32.mxu0 0.0
    %12913 = vmatmul.mubr.f32.gmra.mrb[0].mxu0 %v11689
    %v12914 = vpop.f32.mrb[0].mxu0
    %v12915 = vadd.f32 0.0, %v12914
    %v12916 = vpop.f32.mrb[0].mxu0
    %12917 = vmatprep.mubr.f32.mxu0 0.0
    %12918 = vmatmul.mubr.f32.gmra.mrb[0].mxu0 %v11692
    %v12919 = vpop.f32.mrb[0].mxu0
    %v12920 = vadd.f32 0.0, %v12919
    %v12921 = vpop.f32.mrb[0].mxu0
    %12922 = vmatprep.mubr.f32.mxu0 0.0
    %12923 = vmatmul.mubr.f32.gmra.mrb[0].mxu0 %v11695
    %v12924 = vpop.f32.mrb[0].mxu0
    %v12925 = vadd.f32 0.0, %v12924
    %v12926 = vpop.f32.mrb[0].mxu0
    %12927 = vmatprep.mubr.f32.mxu0 0.0
    %12928 = vmatmul.mubr.f32.gmra.mrb[0].mxu0 %v11698
    %v12929 = vpop.f32.mrb[0].mxu0
    %v12930 = vadd.f32 0.0, %v12929
    %v12931 = vpop.f32.mrb[0].mxu0
    %12932 = vmatprep.mubr.f32.mxu0 0.0
    %12933 = vmatmul.mubr.f32.gmra.mrb[0].mxu0 %v11701
    %v12934 = vpop.f32.mrb[0].mxu0
    %v12935 = vadd.f32 0.0, %v12934
    %v12936 = vpop.f32.mrb[0].mxu0
    %12937 = vmatprep.mubr.f32.mxu0 0.0
    %12938 = vmatmul.mubr.f32.gmra.mrb[0].mxu0 %v11704
    %v12939 = vpop.f32.mrb[0].mxu0
    %v12940 = vadd.f32 0.0, %v12939
    %v12941 = vpop.f32.mrb[0].mxu0
    %12942 = vmatprep.mubr.f32.mxu0 0.0
    %12943 = vmatmul.mubr.f32.gmra.mrb[0].mxu0 %v11707
    %v12944 = vpop.f32.mrb[0].mxu0
    %v12945 = vadd.f32 0.0, %v12944
    %v12946 = vpop.f32.mrb[0].mxu0
    %12947 = vmatprep.mubr.f32.mxu0 0.0
    %12948 = vmatmul.mubr.f32.gmra.mrb[0].mxu0 %v11710
    %v12949 = vpop.f32.mrb[0].mxu0
    %v12950 = vadd.f32 0.0, %v12949
    %v12951 = vpop.f32.mrb[0].mxu0
    %12952 = vmatprep.mubr.f32.mxu0 0.0
    %12953 = vmatmul.mubr.f32.gmra.mrb[0].mxu0 %v11713
    %v12954 = vpop.f32.mrb[0].mxu0
    %v12955 = vadd.f32 0.0, %v12954
    %v12956 = vpop.f32.mrb[0].mxu0
    %12957 = vmatprep.mubr.f32.mxu0 0.0
    %12958 = vmatmul.mubr.f32.gmra.mrb[0].mxu0 %v11716
    %v12959 = vpop.f32.mrb[0].mxu0
    %v12960 = vadd.f32 0.0, %v12959
    %v12961 = vpop.f32.mrb[0].mxu0
    %12962 = vmatprep.mubr.f32.mxu0 0.0
    %12963 = vmatmul.mubr.f32.gmra.mrb[0].mxu0 %v11719
    %v12964 = vpop.f32.mrb[0].mxu0
    %v12965 = vadd.f32 0.0, %v12964
    %v12966 = vpop.f32.mrb[0].mxu0
    %12967 = vmatprep.mubr.f32.mxu0 0.0
    %12968 = vmatmul.mubr.f32.gmra.mrb[0].mxu0 %v11722
    %v12969 = vpop.f32.mrb[0].mxu0
    %v12970 = vadd.f32 0.0, %v12969
    %v12971 = vpop.f32.mrb[0].mxu0
    %12972 = vmatprep.mubr.f32.mxu0 0.0
    %12973 = vmatmul.mubr.f32.gmra.mrb[0].mxu0 %v11725
    %v12974 = vpop.f32.mrb[0].mxu0
    %v12975 = vadd.f32 0.0, %v12974
    %v12976 = vpop.f32.mrb[0].mxu0
    %12977 = vmatprep.mubr.f32.mxu0 0.0
    %12978 = vmatmul.mubr.f32.gmra.mrb[0].mxu0 %v11728
    %v12979 = vpop.f32.mrb[0].mxu0
    %v12980 = vadd.f32 0.0, %v12979
    %v12981 = vpop.f32.mrb[0].mxu0
    %12982 = vmatprep.mubr.f32.mxu0 0.0
    %12983 = vmatmul.mubr.f32.gmra.mrb[0].mxu0 %v11731
    %v12984 = vpop.f32.mrb[0].mxu0
    %v12985 = vadd.f32 0.0, %v12984
    %v12986 = vpop.f32.mrb[0].mxu0
    %12987 = vmatprep.mubr.f32.mxu0 0.0
    %12988 = vmatmul.mubr.f32.gmra.mrb[0].mxu0 %v11734
    %v12989 = vpop.f32.mrb[0].mxu0
    %v12990 = vadd.f32 0.0, %v12989
    %v12991 = vpop.f32.mrb[0].mxu0
    %12992 = vmatprep.mubr.f32.mxu0 0.0
    %12993 = vmatmul.mubr.f32.gmra.mrb[0].mxu0 %v11737
    %v12994 = vpop.f32.mrb[0].mxu0
    %v12995 = vadd.f32 0.0, %v12994
    %v12996 = vpop.f32.mrb[0].mxu0
    %12997 = vmatprep.mubr.f32.mxu0 0.0
    %12998 = vmatmul.mubr.f32.gmra.mrb[0].mxu0 %v11740
    %v12999 = vpop.f32.mrb[0].mxu0
    %v13000 = vadd.f32 0.0, %v12999
    %v13001 = vpop.f32.mrb[0].mxu0
    %13002 = vmatprep.mubr.f32.mxu0 0.0
    %13003 = vmatmul.mubr.f32.gmra.mrb[0].mxu0 %v11743
    %v13004 = vpop.f32.mrb[0].mxu0
    %v13005 = vadd.f32 0.0, %v13004
    %v13006 = vpop.f32.mrb[0].mxu0
    %13007 = vmatprep.mubr.f32.mxu0 0.0
    %13008 = vmatmul.mubr.f32.gmra.mrb[0].mxu0 %v11746
    %v13009 = vpop.f32.mrb[0].mxu0
    %v13010 = vadd.f32 0.0, %v13009
    %v13011 = vpop.f32.mrb[0].mxu0
    %13012 = vmatprep.mubr.f32.mxu0 0.0
    %13013 = vmatmul.mubr.f32.gmra.mrb[0].mxu0 %v11749
    %v13014 = vpop.f32.mrb[0].mxu0
    %v13015 = vadd.f32 0.0, %v13014
    %v13016 = vpop.f32.mrb[0].mxu0
    %13017 = vmatprep.mubr.f32.mxu0 0.0
    %13018 = vmatmul.mubr.f32.gmra.mrb[0].mxu0 %v11752
    %v13019 = vpop.f32.mrb[0].mxu0
    %v13020 = vadd.f32 0.0, %v13019
    %v13021 = vpop.f32.mrb[0].mxu0
    %13022 = vmatprep.mubr.f32.mxu0 0.0
    %13023 = vmatmul.mubr.f32.gmra.mrb[0].mxu0 %v11755
    %v13024 = vpop.f32.mrb[0].mxu0
    %v13025 = vadd.f32 0.0, %v13024
    %v13026 = vpop.f32.mrb[0].mxu0
    %13027 = vmatprep.mubr.f32.mxu0 0.0
    %13028 = vmatmul.mubr.f32.gmra.mrb[0].mxu0 %v11758
    %v13029 = vpop.f32.mrb[0].mxu0
    %v13030 = vadd.f32 0.0, %v13029
    %v13031 = vpop.f32.mrb[0].mxu0
    %13032 = vmatprep.mubr.f32.mxu0 0.0
    %13033 = vmatmul.mubr.f32.gmra.mrb[0].mxu0 %v11761
    %v13034 = vpop.f32.mrb[0].mxu0
    %v13035 = vadd.f32 0.0, %v13034
    %v13036 = vpop.f32.mrb[0].mxu0
    %13037 = vmatprep.mubr.f32.mxu0 0.0
    %13038 = vmatmul.mubr.f32.gmra.mrb[0].mxu0 %v11764
    %v13039 = vpop.f32.mrb[0].mxu0
    %v13040 = vadd.f32 0.0, %v13039
    %v13041 = vpop.f32.mrb[0].mxu0
    %13042 = vmatprep.mubr.f32.mxu0 0.0
    %13043 = vmatmul.mubr.f32.gmra.mrb[0].mxu0 %v11767
    %v13044 = vpop.f32.mrb[0].mxu0
    %v13045 = vadd.f32 0.0, %v13044
    %v13046 = vpop.f32.mrb[0].mxu0
    %13047 = vmatprep.mubr.f32.mxu0 0.0
    %13048 = vmatmul.mubr.f32.gmra.mrb[0].mxu0 %v11770
    %v13049 = vpop.f32.mrb[0].mxu0
    %v13050 = vadd.f32 0.0, %v13049
    %v13051 = vpop.f32.mrb[0].mxu0
    %13052 = vmatprep.mubr.f32.mxu0 0.0
    %13053 = vmatmul.mubr.f32.gmra.mrb[0].mxu0 %v11773
    %v13054 = vpop.f32.mrb[0].mxu0
    %v13055 = vadd.f32 0.0, %v13054
    %v13056 = vpop.f32.mrb[0].mxu0
    %13057 = vmatprep.mubr.f32.mxu0 0.0
    %13058 = vmatmul.mubr.f32.gmra.mrb[0].mxu0 %v11776
    %v13059 = vpop.f32.mrb[0].mxu0
    %v13060 = vadd.f32 0.0, %v13059
    %v13061 = vpop.f32.mrb[0].mxu0
    %13062 = vmatprep.mubr.f32.mxu0 0.0
    %13063 = vmatmul.mubr.f32.gmra.mrb[0].mxu0 %v11779
    %v13064 = vpop.f32.mrb[0].mxu0
    %v13065 = vadd.f32 0.0, %v13064
    %v13066 = vpop.f32.mrb[0].mxu0
    %13067 = vmatprep.mubr.f32.mxu0 0.0
    %13068 = vmatmul.mubr.f32.gmra.mrb[0].mxu0 %v11782
    %v13069 = vpop.f32.mrb[0].mxu0
    %v13070 = vadd.f32 0.0, %v13069
    %v13071 = vpop.f32.mrb[0].mxu0
    %13072 = vmatprep.mubr.f32.mxu0 0.0
    %13073 = vmatmul.mubr.f32.gmra.mrb[0].mxu0 %v11785
    %v13074 = vpop.f32.mrb[0].mxu0
    %v13075 = vadd.f32 0.0, %v13074
    %v13076 = vpop.f32.mrb[0].mxu0
    %13077 = vmatprep.mubr.f32.mxu0 0.0
    %13078 = vmatmul.mubr.f32.gmra.mrb[0].mxu0 %v11788
    %v13079 = vpop.f32.mrb[0].mxu0
    %v13080 = vadd.f32 0.0, %v13079
    %v13081 = vpop.f32.mrb[0].mxu0
    %13082 = vmatprep.mubr.f32.mxu0 0.0
    %13083 = vmatmul.mubr.f32.gmra.mrb[0].mxu0 %v11791
    %v13084 = vpop.f32.mrb[0].mxu0
    %v13085 = vadd.f32 0.0, %v13084
    %v13086 = vpop.f32.mrb[0].mxu0
    %13087 = vmatprep.mubr.f32.mxu0 0.0
    %13088 = vmatmul.mubr.f32.gmra.mrb[0].mxu0 %v11794
    %v13089 = vpop.f32.mrb[0].mxu0
    %v13090 = vadd.f32 0.0, %v13089
    %v13091 = vpop.f32.mrb[0].mxu0
    %13092 = vmatprep.mubr.f32.mxu0 0.0
    %13093 = vmatmul.mubr.f32.gmra.mrb[0].mxu0 %v11797
    %v13094 = vpop.f32.mrb[0].mxu0
    %v13095 = vadd.f32 0.0, %v13094
    %v13096 = vpop.f32.mrb[0].mxu0
    %13097 = vmatprep.mubr.f32.mxu0 0.0
    %13098 = vmatmul.mubr.f32.gmra.mrb[0].mxu0 %v11800
    %v13099 = vpop.f32.mrb[0].mxu0
    %v13100 = vadd.f32 0.0, %v13099
    %v13101 = vpop.f32.mrb[0].mxu0
    %13102 = vmatprep.mubr.f32.mxu0 0.0
    %13103 = vmatmul.mubr.f32.gmra.mrb[0].mxu0 %v11803
    %v13104 = vpop.f32.mrb[0].mxu0
    %v13105 = vadd.f32 0.0, %v13104
    %v13106 = vpop.f32.mrb[0].mxu0
    %13107 = vmatprep.mubr.f32.mxu0 0.0
    %13108 = vmatmul.mubr.f32.gmra.mrb[0].mxu0 %v11806
    %v13109 = vpop.f32.mrb[0].mxu0
    %v13110 = vadd.f32 0.0, %v13109
    %v13111 = vpop.f32.mrb[0].mxu0
    %13112 = vmatprep.mubr.f32.mxu0 0.0
    %13113 = vmatmul.mubr.f32.gmra.mrb[0].mxu0 %v11809
    %v13114 = vpop.f32.mrb[0].mxu0
    %v13115 = vadd.f32 0.0, %v13114
    %v13116 = vpop.f32.mrb[0].mxu0
    %13117 = vmatprep.mubr.f32.mxu0 0.0
    %13118 = vmatmul.mubr.f32.gmra.mrb[0].mxu0 %v11812
    %v13119 = vpop.f32.mrb[0].mxu0
    %v13120 = vadd.f32 0.0, %v13119
    %v13121 = vpop.f32.mrb[0].mxu0
    %13122 = vmatprep.mubr.f32.mxu0 0.0
    %13123 = vmatmul.mubr.f32.gmra.mrb[0].mxu0 %v11815
    %v13124 = vpop.f32.mrb[0].mxu0
    %v13125 = vadd.f32 0.0, %v13124
    %v13126 = vpop.f32.mrb[0].mxu0
    %13127 = vmatprep.mubr.f32.mxu0 0.0
    %13128 = vmatmul.mubr.f32.gmra.mrb[0].mxu0 %v11818
    %v13129 = vpop.f32.mrb[0].mxu0
    %v13130 = vadd.f32 0.0, %v13129
    %v13131 = vpop.f32.mrb[0].mxu0
    %13132 = vmatprep.mubr.f32.mxu0 0.0
    %13133 = vmatmul.mubr.f32.gmra.mrb[0].mxu0 %v11821
    %v13134 = vpop.f32.mrb[0].mxu0
    %v13135 = vadd.f32 0.0, %v13134
    %v13136 = vpop.f32.mrb[0].mxu0
    %13137 = vmatprep.mubr.f32.mxu0 0.0
    %13138 = vmatmul.mubr.f32.gmra.mrb[0].mxu0 %v11824
    %v13139 = vpop.f32.mrb[0].mxu0
    %v13140 = vadd.f32 0.0, %v13139
    %v13141 = vpop.f32.mrb[0].mxu0
    %13142 = vmatprep.mubr.f32.mxu0 0.0
    %13143 = vmatmul.mubr.f32.gmra.mrb[0].mxu0 %v11827
    %v13144 = vpop.f32.mrb[0].mxu0
    %v13145 = vadd.f32 0.0, %v13144
    %v13146 = vpop.f32.mrb[0].mxu0
    %13147 = vmatprep.mubr.f32.mxu0 0.0
    %13148 = vmatmul.mubr.f32.gmra.mrb[0].mxu0 %v11830
    %v13149 = vpop.f32.mrb[0].mxu0
    %v13150 = vadd.f32 0.0, %v13149
    %v13151 = vpop.f32.mrb[0].mxu0
    %13152 = vmatprep.mubr.f32.mxu0 0.0
    %13153 = vmatmul.mubr.f32.gmra.mrb[0].mxu0 %v11833
    %v13154 = vpop.f32.mrb[0].mxu0
    %v13155 = vadd.f32 0.0, %v13154
    %v13156 = vpop.f32.mrb[0].mxu0
    %13157 = vmatprep.mubr.f32.mxu0 0.0
    %13158 = vmatmul.mubr.f32.gmra.mrb[0].mxu0 %v11836
    %v13159 = vpop.f32.mrb[0].mxu0
    %v13160 = vadd.f32 0.0, %v13159
    %v13161 = vpop.f32.mrb[0].mxu0
    %13162 = vmatprep.mubr.f32.mxu0 0.0
    %13163 = vmatmul.mubr.f32.gmra.mrb[0].mxu0 %v11839
    %v13164 = vpop.f32.mrb[0].mxu0
    %v13165 = vadd.f32 0.0, %v13164
    %v13166 = vpop.f32.mrb[0].mxu0
    %13167 = vmatprep.mubr.f32.mxu0 0.0
    %13168 = vmatmul.mubr.f32.gmra.mrb[0].mxu0 %v11842
    %v13169 = vpop.f32.mrb[0].mxu0
    %v13170 = vadd.f32 0.0, %v13169
    %v13171 = vpop.f32.mrb[0].mxu0
    %13172 = vmatprep.mubr.f32.mxu0 0.0
    %13173 = vmatmul.mubr.f32.gmra.mrb[0].mxu0 %v11845
    %v13174 = vpop.f32.mrb[0].mxu0
    %v13175 = vadd.f32 0.0, %v13174
    %v13176 = vpop.f32.mrb[0].mxu0
    %13177 = vmatprep.mubr.f32.mxu0 0.0
    %13178 = vmatmul.mubr.f32.gmra.mrb[0].mxu0 %v11848
    %v13179 = vpop.f32.mrb[0].mxu0
    %v13180 = vadd.f32 0.0, %v13179
    %v13181 = vpop.f32.mrb[0].mxu0
    %13182 = vmatprep.mubr.f32.mxu0 0.0
    %13183 = vmatmul.mubr.f32.gmra.mrb[0].mxu0 %v11851
    %v13184 = vpop.f32.mrb[0].mxu0
    %v13185 = vadd.f32 0.0, %v13184
    %v13186 = vpop.f32.mrb[0].mxu0
    %13187 = vmatprep.mubr.f32.mxu0 0.0
    %13188 = vmatmul.mubr.f32.gmra.mrb[0].mxu0 %v11854
    %v13189 = vpop.f32.mrb[0].mxu0
    %v13190 = vadd.f32 0.0, %v13189
    %v13191 = vpop.f32.mrb[0].mxu0
    %13192 = vmatprep.mubr.f32.mxu0 0.0
    %13193 = vmatmul.mubr.f32.gmra.mrb[0].mxu0 %v11857
    %v13194 = vpop.f32.mrb[0].mxu0
    %v13195 = vadd.f32 0.0, %v13194
    %v13196 = vpop.f32.mrb[0].mxu0
    %13197 = vmatprep.mubr.f32.mxu0 0.0
    %13198 = vmatmul.mubr.f32.gmra.mrb[0].mxu0 %v11860
    %v13199 = vpop.f32.mrb[0].mxu0
    %v13200 = vadd.f32 0.0, %v13199
    %v13201 = vpop.f32.mrb[0].mxu0
    %13202 = vmatprep.mubr.f32.mxu0 0.0
    %13203 = vmatmul.mubr.f32.gmra.mrb[0].mxu0 %v11863
    %v13204 = vpop.f32.mrb[0].mxu0
    %v13205 = vadd.f32 0.0, %v13204
    %v13206 = vpop.f32.mrb[0].mxu0
    %13207 = vmatprep.mubr.f32.mxu0 0.0
    %13208 = vmatmul.mubr.f32.gmra.mrb[0].mxu0 %v11866
    %v13209 = vpop.f32.mrb[0].mxu0
    %v13210 = vadd.f32 0.0, %v13209
    %v13211 = vpop.f32.mrb[0].mxu0
    %13212 = vmatprep.mubr.f32.mxu0 0.0
    %13213 = vmatmul.mubr.f32.gmra.mrb[0].mxu0 %v11869
    %v13214 = vpop.f32.mrb[0].mxu0
    %v13215 = vadd.f32 0.0, %v13214
    %v13216 = vpop.f32.mrb[0].mxu0
    %13217 = vmatprep.mubr.f32.mxu0 0.0
    %13218 = vmatmul.mubr.f32.gmra.mrb[0].mxu0 %v11872
    %v13219 = vpop.f32.mrb[0].mxu0
    %v13220 = vadd.f32 0.0, %v13219
    %v13221 = vpop.f32.mrb[0].mxu0
    %13222 = vdwg.mxu0
    %v13223 = vld [vmem:[#allocation8] sm:$0x3]
    %v13224 = vld [vmem:[#allocation8 + $0x2] sm:$0x3]
    %v13225 = vld [vmem:[#allocation8 + $0x4] sm:$0x3]
    %v13226 = vld [vmem:[#allocation8 + $0x6] sm:$0x3]
    %v13227 = vld [vmem:[#allocation8 + $0x8] sm:$0x3]
    %v13228 = vld [vmem:[#allocation8 + $0xa] sm:$0x3]
    %v13229 = vld [vmem:[#allocation8 + $0xc] sm:$0x3]
    %v13230 = vld [vmem:[#allocation8 + $0xe] sm:$0x3]
    %v13231 = vlaneseq
    %v13232 = vshrl.u32 %v13231, 7
    %v13233 = vsub.s32 0, %v13232
    %v13234 = vrot.slane %v13223, %v13233
    %v13235 = vlaneseq
    %v13236 = vshrl.u32 %v13235, 7
    %v13237 = vsub.s32 0, %v13236
    %v13238 = vrot.slane %v13224, %v13237
    %v13239 = vlaneseq
    %v13240 = vshrl.u32 %v13239, 7
    %v13241 = vsub.s32 0, %v13240
    %v13242 = vrot.slane %v13225, %v13241
    %v13243 = vlaneseq
    %v13244 = vshrl.u32 %v13243, 7
    %v13245 = vsub.s32 0, %v13244
    %v13246 = vrot.slane %v13226, %v13245
    %v13247 = vlaneseq
    %v13248 = vshrl.u32 %v13247, 7
    %v13249 = vsub.s32 0, %v13248
    %v13250 = vrot.slane %v13227, %v13249
    %v13251 = vlaneseq
    %v13252 = vshrl.u32 %v13251, 7
    %v13253 = vsub.s32 0, %v13252
    %v13254 = vrot.slane %v13228, %v13253
    %v13255 = vlaneseq
    %v13256 = vshrl.u32 %v13255, 7
    %v13257 = vsub.s32 0, %v13256
    %v13258 = vrot.slane %v13229, %v13257
    %v13259 = vlaneseq
    %v13260 = vshrl.u32 %v13259, 7
    %v13261 = vsub.s32 0, %v13260
    %v13262 = vrot.slane %v13230, %v13261
    %v13263 = vmul.f32 %v11945, %v13234
    %v13264 = vmul.f32 %v11950, %v13234
    %v13265 = vmul.f32 %v11955, %v13234
    %v13266 = vmul.f32 %v11960, %v13234
    %v13267 = vmul.f32 %v11965, %v13234
    %v13268 = vmul.f32 %v11970, %v13234
    %v13269 = vmul.f32 %v11975, %v13234
    %v13270 = vmul.f32 %v11980, %v13234
    %v13271 = vmul.f32 %v11985, %v13234
    %v13272 = vmul.f32 %v11990, %v13234
    %v13273 = vmul.f32 %v11995, %v13234
    %v13274 = vmul.f32 %v12000, %v13234
    %v13275 = vmul.f32 %v12005, %v13234
    %v13276 = vmul.f32 %v12010, %v13234
    %v13277 = vmul.f32 %v12015, %v13234
    %v13278 = vmul.f32 %v12020, %v13234
    %v13279 = vmul.f32 %v12025, %v13234
    %v13280 = vmul.f32 %v12030, %v13234
    %v13281 = vmul.f32 %v12035, %v13234
    %v13282 = vmul.f32 %v12040, %v13234
    %v13283 = vmul.f32 %v12045, %v13234
    %v13284 = vmul.f32 %v12050, %v13234
    %v13285 = vmul.f32 %v12055, %v13234
    %v13286 = vmul.f32 %v12060, %v13234
    %v13287 = vmul.f32 %v12065, %v13234
    %v13288 = vmul.f32 %v12070, %v13234
    %v13289 = vmul.f32 %v12075, %v13234
    %v13290 = vmul.f32 %v12080, %v13234
    %v13291 = vmul.f32 %v12085, %v13234
    %v13292 = vmul.f32 %v12090, %v13234
    %v13293 = vmul.f32 %v12095, %v13234
    %v13294 = vmul.f32 %v12100, %v13234
    %v13295 = vmul.f32 %v12105, %v13238
    %v13296 = vmul.f32 %v12110, %v13238
    %v13297 = vmul.f32 %v12115, %v13238
    %v13298 = vmul.f32 %v12120, %v13238
    %v13299 = vmul.f32 %v12125, %v13238
    %v13300 = vmul.f32 %v12130, %v13238
    %v13301 = vmul.f32 %v12135, %v13238
    %v13302 = vmul.f32 %v12140, %v13238
    %v13303 = vmul.f32 %v12145, %v13238
    %v13304 = vmul.f32 %v12150, %v13238
    %v13305 = vmul.f32 %v12155, %v13238
    %v13306 = vmul.f32 %v12160, %v13238
    %v13307 = vmul.f32 %v12165, %v13238
    %v13308 = vmul.f32 %v12170, %v13238
    %v13309 = vmul.f32 %v12175, %v13238
    %v13310 = vmul.f32 %v12180, %v13238
    %v13311 = vmul.f32 %v12185, %v13238
    %v13312 = vmul.f32 %v12190, %v13238
    %v13313 = vmul.f32 %v12195, %v13238
    %v13314 = vmul.f32 %v12200, %v13238
    %v13315 = vmul.f32 %v12205, %v13238
    %v13316 = vmul.f32 %v12210, %v13238
    %v13317 = vmul.f32 %v12215, %v13238
    %v13318 = vmul.f32 %v12220, %v13238
    %v13319 = vmul.f32 %v12225, %v13238
    %v13320 = vmul.f32 %v12230, %v13238
    %v13321 = vmul.f32 %v12235, %v13238
    %v13322 = vmul.f32 %v12240, %v13238
    %v13323 = vmul.f32 %v12245, %v13238
    %v13324 = vmul.f32 %v12250, %v13238
    %v13325 = vmul.f32 %v12255, %v13238
    %v13326 = vmul.f32 %v12260, %v13238
    %v13327 = vmul.f32 %v12265, %v13242
    %v13328 = vmul.f32 %v12270, %v13242
    %v13329 = vmul.f32 %v12275, %v13242
    %v13330 = vmul.f32 %v12280, %v13242
    %v13331 = vmul.f32 %v12285, %v13242
    %v13332 = vmul.f32 %v12290, %v13242
    %v13333 = vmul.f32 %v12295, %v13242
    %v13334 = vmul.f32 %v12300, %v13242
    %v13335 = vmul.f32 %v12305, %v13242
    %v13336 = vmul.f32 %v12310, %v13242
    %v13337 = vmul.f32 %v12315, %v13242
    %v13338 = vmul.f32 %v12320, %v13242
    %v13339 = vmul.f32 %v12325, %v13242
    %v13340 = vmul.f32 %v12330, %v13242
    %v13341 = vmul.f32 %v12335, %v13242
    %v13342 = vmul.f32 %v12340, %v13242
    %v13343 = vmul.f32 %v12345, %v13242
    %v13344 = vmul.f32 %v12350, %v13242
    %v13345 = vmul.f32 %v12355, %v13242
    %v13346 = vmul.f32 %v12360, %v13242
    %v13347 = vmul.f32 %v12365, %v13242
    %v13348 = vmul.f32 %v12370, %v13242
    %v13349 = vmul.f32 %v12375, %v13242
    %v13350 = vmul.f32 %v12380, %v13242
    %v13351 = vmul.f32 %v12385, %v13242
    %v13352 = vmul.f32 %v12390, %v13242
    %v13353 = vmul.f32 %v12395, %v13242
    %v13354 = vmul.f32 %v12400, %v13242
    %v13355 = vmul.f32 %v12405, %v13242
    %v13356 = vmul.f32 %v12410, %v13242
    %v13357 = vmul.f32 %v12415, %v13242
    %v13358 = vmul.f32 %v12420, %v13242
    %v13359 = vmul.f32 %v12425, %v13246
    %v13360 = vmul.f32 %v12430, %v13246
    %v13361 = vmul.f32 %v12435, %v13246
    %v13362 = vmul.f32 %v12440, %v13246
    %v13363 = vmul.f32 %v12445, %v13246
    %v13364 = vmul.f32 %v12450, %v13246
    %v13365 = vmul.f32 %v12455, %v13246
    %v13366 = vmul.f32 %v12460, %v13246
    %v13367 = vmul.f32 %v12465, %v13246
    %v13368 = vmul.f32 %v12470, %v13246
    %v13369 = vmul.f32 %v12475, %v13246
    %v13370 = vmul.f32 %v12480, %v13246
    %v13371 = vmul.f32 %v12485, %v13246
    %v13372 = vmul.f32 %v12490, %v13246
    %v13373 = vmul.f32 %v12495, %v13246
    %v13374 = vmul.f32 %v12500, %v13246
    %v13375 = vmul.f32 %v12505, %v13246
    %v13376 = vmul.f32 %v12510, %v13246
    %v13377 = vmul.f32 %v12515, %v13246
    %v13378 = vmul.f32 %v12520, %v13246
    %v13379 = vmul.f32 %v12525, %v13246
    %v13380 = vmul.f32 %v12530, %v13246
    %v13381 = vmul.f32 %v12535, %v13246
    %v13382 = vmul.f32 %v12540, %v13246
    %v13383 = vmul.f32 %v12545, %v13246
    %v13384 = vmul.f32 %v12550, %v13246
    %v13385 = vmul.f32 %v12555, %v13246
    %v13386 = vmul.f32 %v12560, %v13246
    %v13387 = vmul.f32 %v12565, %v13246
    %v13388 = vmul.f32 %v12570, %v13246
    %v13389 = vmul.f32 %v12575, %v13246
    %v13390 = vmul.f32 %v12580, %v13246
    %v13391 = vmul.f32 %v12585, %v13250
    %v13392 = vmul.f32 %v12590, %v13250
    %v13393 = vmul.f32 %v12595, %v13250
    %v13394 = vmul.f32 %v12600, %v13250
    %v13395 = vmul.f32 %v12605, %v13250
    %v13396 = vmul.f32 %v12610, %v13250
    %v13397 = vmul.f32 %v12615, %v13250
    %v13398 = vmul.f32 %v12620, %v13250
    %v13399 = vmul.f32 %v12625, %v13250
    %v13400 = vmul.f32 %v12630, %v13250
    %v13401 = vmul.f32 %v12635, %v13250
    %v13402 = vmul.f32 %v12640, %v13250
    %v13403 = vmul.f32 %v12645, %v13250
    %v13404 = vmul.f32 %v12650, %v13250
    %v13405 = vmul.f32 %v12655, %v13250
    %v13406 = vmul.f32 %v12660, %v13250
    %v13407 = vmul.f32 %v12665, %v13250
    %v13408 = vmul.f32 %v12670, %v13250
    %v13409 = vmul.f32 %v12675, %v13250
    %v13410 = vmul.f32 %v12680, %v13250
    %v13411 = vmul.f32 %v12685, %v13250
    %v13412 = vmul.f32 %v12690, %v13250
    %v13413 = vmul.f32 %v12695, %v13250
    %v13414 = vmul.f32 %v12700, %v13250
    %v13415 = vmul.f32 %v12705, %v13250
    %v13416 = vmul.f32 %v12710, %v13250
    %v13417 = vmul.f32 %v12715, %v13250
    %v13418 = vmul.f32 %v12720, %v13250
    %v13419 = vmul.f32 %v12725, %v13250
    %v13420 = vmul.f32 %v12730, %v13250
    %v13421 = vmul.f32 %v12735, %v13250
    %v13422 = vmul.f32 %v12740, %v13250
    %v13423 = vmul.f32 %v12745, %v13254
    %v13424 = vmul.f32 %v12750, %v13254
    %v13425 = vmul.f32 %v12755, %v13254
    %v13426 = vmul.f32 %v12760, %v13254
    %v13427 = vmul.f32 %v12765, %v13254
    %v13428 = vmul.f32 %v12770, %v13254
    %v13429 = vmul.f32 %v12775, %v13254
    %v13430 = vmul.f32 %v12780, %v13254
    %v13431 = vmul.f32 %v12785, %v13254
    %v13432 = vmul.f32 %v12790, %v13254
    %v13433 = vmul.f32 %v12795, %v13254
    %v13434 = vmul.f32 %v12800, %v13254
    %v13435 = vmul.f32 %v12805, %v13254
    %v13436 = vmul.f32 %v12810, %v13254
    %v13437 = vmul.f32 %v12815, %v13254
    %v13438 = vmul.f32 %v12820, %v13254
    %v13439 = vmul.f32 %v12825, %v13254
    %v13440 = vmul.f32 %v12830, %v13254
    %v13441 = vmul.f32 %v12835, %v13254
    %v13442 = vmul.f32 %v12840, %v13254
    %v13443 = vmul.f32 %v12845, %v13254
    %v13444 = vmul.f32 %v12850, %v13254
    %v13445 = vmul.f32 %v12855, %v13254
    %v13446 = vmul.f32 %v12860, %v13254
    %v13447 = vmul.f32 %v12865, %v13254
    %v13448 = vmul.f32 %v12870, %v13254
    %v13449 = vmul.f32 %v12875, %v13254
    %v13450 = vmul.f32 %v12880, %v13254
    %v13451 = vmul.f32 %v12885, %v13254
    %v13452 = vmul.f32 %v12890, %v13254
    %v13453 = vmul.f32 %v12895, %v13254
    %v13454 = vmul.f32 %v12900, %v13254
    %v13455 = vmul.f32 %v12905, %v13258
    %v13456 = vmul.f32 %v12910, %v13258
    %v13457 = vmul.f32 %v12915, %v13258
    %v13458 = vmul.f32 %v12920, %v13258
    %v13459 = vmul.f32 %v12925, %v13258
    %v13460 = vmul.f32 %v12930, %v13258
    %v13461 = vmul.f32 %v12935, %v13258
    %v13462 = vmul.f32 %v12940, %v13258
    %v13463 = vmul.f32 %v12945, %v13258
    %v13464 = vmul.f32 %v12950, %v13258
    %v13465 = vmul.f32 %v12955, %v13258
    %v13466 = vmul.f32 %v12960, %v13258
    %v13467 = vmul.f32 %v12965, %v13258
    %v13468 = vmul.f32 %v12970, %v13258
    %v13469 = vmul.f32 %v12975, %v13258
    %v13470 = vmul.f32 %v12980, %v13258
    %v13471 = vmul.f32 %v12985, %v13258
    %v13472 = vmul.f32 %v12990, %v13258
    %v13473 = vmul.f32 %v12995, %v13258
    %v13474 = vmul.f32 %v13000, %v13258
    %v13475 = vmul.f32 %v13005, %v13258
    %v13476 = vmul.f32 %v13010, %v13258
    %v13477 = vmul.f32 %v13015, %v13258
    %v13478 = vmul.f32 %v13020, %v13258
    %v13479 = vmul.f32 %v13025, %v13258
    %v13480 = vmul.f32 %v13030, %v13258
    %v13481 = vmul.f32 %v13035, %v13258
    %v13482 = vmul.f32 %v13040, %v13258
    %v13483 = vmul.f32 %v13045, %v13258
    %v13484 = vmul.f32 %v13050, %v13258
    %v13485 = vmul.f32 %v13055, %v13258
    %v13486 = vmul.f32 %v13060, %v13258
    %v13487 = vmul.f32 %v13065, %v13262
    %v13488 = vmul.f32 %v13070, %v13262
    %v13489 = vmul.f32 %v13075, %v13262
    %v13490 = vmul.f32 %v13080, %v13262
    %v13491 = vmul.f32 %v13085, %v13262
    %v13492 = vmul.f32 %v13090, %v13262
    %v13493 = vmul.f32 %v13095, %v13262
    %v13494 = vmul.f32 %v13100, %v13262
    %v13495 = vmul.f32 %v13105, %v13262
    %v13496 = vmul.f32 %v13110, %v13262
    %v13497 = vmul.f32 %v13115, %v13262
    %v13498 = vmul.f32 %v13120, %v13262
    %v13499 = vmul.f32 %v13125, %v13262
    %v13500 = vmul.f32 %v13130, %v13262
    %v13501 = vmul.f32 %v13135, %v13262
    %v13502 = vmul.f32 %v13140, %v13262
    %v13503 = vmul.f32 %v13145, %v13262
    %v13504 = vmul.f32 %v13150, %v13262
    %v13505 = vmul.f32 %v13155, %v13262
    %v13506 = vmul.f32 %v13160, %v13262
    %v13507 = vmul.f32 %v13165, %v13262
    %v13508 = vmul.f32 %v13170, %v13262
    %v13509 = vmul.f32 %v13175, %v13262
    %v13510 = vmul.f32 %v13180, %v13262
    %v13511 = vmul.f32 %v13185, %v13262
    %v13512 = vmul.f32 %v13190, %v13262
    %v13513 = vmul.f32 %v13195, %v13262
    %v13514 = vmul.f32 %v13200, %v13262
    %v13515 = vmul.f32 %v13205, %v13262
    %v13516 = vmul.f32 %v13210, %v13262
    %v13517 = vmul.f32 %v13215, %v13262
    %v13518 = vmul.f32 %v13220, %v13262
    %v13519 = vlaneseq
    %v13520 = vshrl.u32 %v13519, 7
    %v13521 = vsub.s32 1, %v13520
    %v13522 = vrot.slane %v13223, %v13521
    %v13523 = vlaneseq
    %v13524 = vshrl.u32 %v13523, 7
    %v13525 = vsub.s32 1, %v13524
    %v13526 = vrot.slane %v13224, %v13525
    %v13527 = vlaneseq
    %v13528 = vshrl.u32 %v13527, 7
    %v13529 = vsub.s32 1, %v13528
    %v13530 = vrot.slane %v13225, %v13529
    %v13531 = vlaneseq
    %v13532 = vshrl.u32 %v13531, 7
    %v13533 = vsub.s32 1, %v13532
    %v13534 = vrot.slane %v13226, %v13533
    %v13535 = vlaneseq
    %v13536 = vshrl.u32 %v13535, 7
    %v13537 = vsub.s32 1, %v13536
    %v13538 = vrot.slane %v13227, %v13537
    %v13539 = vlaneseq
    %v13540 = vshrl.u32 %v13539, 7
    %v13541 = vsub.s32 1, %v13540
    %v13542 = vrot.slane %v13228, %v13541
    %v13543 = vlaneseq
    %v13544 = vshrl.u32 %v13543, 7
    %v13545 = vsub.s32 1, %v13544
    %v13546 = vrot.slane %v13229, %v13545
    %v13547 = vlaneseq
    %v13548 = vshrl.u32 %v13547, 7
    %v13549 = vsub.s32 1, %v13548
    %v13550 = vrot.slane %v13230, %v13549
    %v13551 = vadd.f32 %v13263, %v13522
    %v13552 = vadd.f32 %v13264, %v13522
    %v13553 = vadd.f32 %v13265, %v13522
    %v13554 = vadd.f32 %v13266, %v13522
    %v13555 = vadd.f32 %v13267, %v13522
    %v13556 = vadd.f32 %v13268, %v13522
    %v13557 = vadd.f32 %v13269, %v13522
    %v13558 = vadd.f32 %v13270, %v13522
    %v13559 = vadd.f32 %v13271, %v13522
    %v13560 = vadd.f32 %v13272, %v13522
    %v13561 = vadd.f32 %v13273, %v13522
    %v13562 = vadd.f32 %v13274, %v13522
    %v13563 = vadd.f32 %v13275, %v13522
    %v13564 = vadd.f32 %v13276, %v13522
    %v13565 = vadd.f32 %v13277, %v13522
    %v13566 = vadd.f32 %v13278, %v13522
    %v13567 = vadd.f32 %v13279, %v13522
    %v13568 = vadd.f32 %v13280, %v13522
    %v13569 = vadd.f32 %v13281, %v13522
    %v13570 = vadd.f32 %v13282, %v13522
    %v13571 = vadd.f32 %v13283, %v13522
    %v13572 = vadd.f32 %v13284, %v13522
    %v13573 = vadd.f32 %v13285, %v13522
    %v13574 = vadd.f32 %v13286, %v13522
    %v13575 = vadd.f32 %v13287, %v13522
    %v13576 = vadd.f32 %v13288, %v13522
    %v13577 = vadd.f32 %v13289, %v13522
    %v13578 = vadd.f32 %v13290, %v13522
    %v13579 = vadd.f32 %v13291, %v13522
    %v13580 = vadd.f32 %v13292, %v13522
    %v13581 = vadd.f32 %v13293, %v13522
    %v13582 = vadd.f32 %v13294, %v13522
    %v13583 = vadd.f32 %v13295, %v13526
    %v13584 = vadd.f32 %v13296, %v13526
    %v13585 = vadd.f32 %v13297, %v13526
    %v13586 = vadd.f32 %v13298, %v13526
    %v13587 = vadd.f32 %v13299, %v13526
    %v13588 = vadd.f32 %v13300, %v13526
    %v13589 = vadd.f32 %v13301, %v13526
    %v13590 = vadd.f32 %v13302, %v13526
    %v13591 = vadd.f32 %v13303, %v13526
    %v13592 = vadd.f32 %v13304, %v13526
    %v13593 = vadd.f32 %v13305, %v13526
    %v13594 = vadd.f32 %v13306, %v13526
    %v13595 = vadd.f32 %v13307, %v13526
    %v13596 = vadd.f32 %v13308, %v13526
    %v13597 = vadd.f32 %v13309, %v13526
    %v13598 = vadd.f32 %v13310, %v13526
    %v13599 = vadd.f32 %v13311, %v13526
    %v13600 = vadd.f32 %v13312, %v13526
    %v13601 = vadd.f32 %v13313, %v13526
    %v13602 = vadd.f32 %v13314, %v13526
    %v13603 = vadd.f32 %v13315, %v13526
    %v13604 = vadd.f32 %v13316, %v13526
    %v13605 = vadd.f32 %v13317, %v13526
    %v13606 = vadd.f32 %v13318, %v13526
    %v13607 = vadd.f32 %v13319, %v13526
    %v13608 = vadd.f32 %v13320, %v13526
    %v13609 = vadd.f32 %v13321, %v13526
    %v13610 = vadd.f32 %v13322, %v13526
    %v13611 = vadd.f32 %v13323, %v13526
    %v13612 = vadd.f32 %v13324, %v13526
    %v13613 = vadd.f32 %v13325, %v13526
    %v13614 = vadd.f32 %v13326, %v13526
    %v13615 = vadd.f32 %v13327, %v13530
    %v13616 = vadd.f32 %v13328, %v13530
    %v13617 = vadd.f32 %v13329, %v13530
    %v13618 = vadd.f32 %v13330, %v13530
    %v13619 = vadd.f32 %v13331, %v13530
    %v13620 = vadd.f32 %v13332, %v13530
    %v13621 = vadd.f32 %v13333, %v13530
    %v13622 = vadd.f32 %v13334, %v13530
    %v13623 = vadd.f32 %v13335, %v13530
    %v13624 = vadd.f32 %v13336, %v13530
    %v13625 = vadd.f32 %v13337, %v13530
    %v13626 = vadd.f32 %v13338, %v13530
    %v13627 = vadd.f32 %v13339, %v13530
    %v13628 = vadd.f32 %v13340, %v13530
    %v13629 = vadd.f32 %v13341, %v13530
    %v13630 = vadd.f32 %v13342, %v13530
    %v13631 = vadd.f32 %v13343, %v13530
    %v13632 = vadd.f32 %v13344, %v13530
    %v13633 = vadd.f32 %v13345, %v13530
    %v13634 = vadd.f32 %v13346, %v13530
    %v13635 = vadd.f32 %v13347, %v13530
    %v13636 = vadd.f32 %v13348, %v13530
    %v13637 = vadd.f32 %v13349, %v13530
    %v13638 = vadd.f32 %v13350, %v13530
    %v13639 = vadd.f32 %v13351, %v13530
    %v13640 = vadd.f32 %v13352, %v13530
    %v13641 = vadd.f32 %v13353, %v13530
    %v13642 = vadd.f32 %v13354, %v13530
    %v13643 = vadd.f32 %v13355, %v13530
    %v13644 = vadd.f32 %v13356, %v13530
    %v13645 = vadd.f32 %v13357, %v13530
    %v13646 = vadd.f32 %v13358, %v13530
    %v13647 = vadd.f32 %v13359, %v13534
    %v13648 = vadd.f32 %v13360, %v13534
    %v13649 = vadd.f32 %v13361, %v13534
    %v13650 = vadd.f32 %v13362, %v13534
    %v13651 = vadd.f32 %v13363, %v13534
    %v13652 = vadd.f32 %v13364, %v13534
    %v13653 = vadd.f32 %v13365, %v13534
    %v13654 = vadd.f32 %v13366, %v13534
    %v13655 = vadd.f32 %v13367, %v13534
    %v13656 = vadd.f32 %v13368, %v13534
    %v13657 = vadd.f32 %v13369, %v13534
    %v13658 = vadd.f32 %v13370, %v13534
    %v13659 = vadd.f32 %v13371, %v13534
    %v13660 = vadd.f32 %v13372, %v13534
    %v13661 = vadd.f32 %v13373, %v13534
    %v13662 = vadd.f32 %v13374, %v13534
    %v13663 = vadd.f32 %v13375, %v13534
    %v13664 = vadd.f32 %v13376, %v13534
    %v13665 = vadd.f32 %v13377, %v13534
    %v13666 = vadd.f32 %v13378, %v13534
    %v13667 = vadd.f32 %v13379, %v13534
    %v13668 = vadd.f32 %v13380, %v13534
    %v13669 = vadd.f32 %v13381, %v13534
    %v13670 = vadd.f32 %v13382, %v13534
    %v13671 = vadd.f32 %v13383, %v13534
    %v13672 = vadd.f32 %v13384, %v13534
    %v13673 = vadd.f32 %v13385, %v13534
    %v13674 = vadd.f32 %v13386, %v13534
    %v13675 = vadd.f32 %v13387, %v13534
    %v13676 = vadd.f32 %v13388, %v13534
    %v13677 = vadd.f32 %v13389, %v13534
    %v13678 = vadd.f32 %v13390, %v13534
    %v13679 = vadd.f32 %v13391, %v13538
    %v13680 = vadd.f32 %v13392, %v13538
    %v13681 = vadd.f32 %v13393, %v13538
    %v13682 = vadd.f32 %v13394, %v13538
    %v13683 = vadd.f32 %v13395, %v13538
    %v13684 = vadd.f32 %v13396, %v13538
    %v13685 = vadd.f32 %v13397, %v13538
    %v13686 = vadd.f32 %v13398, %v13538
    %v13687 = vadd.f32 %v13399, %v13538
    %v13688 = vadd.f32 %v13400, %v13538
    %v13689 = vadd.f32 %v13401, %v13538
    %v13690 = vadd.f32 %v13402, %v13538
    %v13691 = vadd.f32 %v13403, %v13538
    %v13692 = vadd.f32 %v13404, %v13538
    %v13693 = vadd.f32 %v13405, %v13538
    %v13694 = vadd.f32 %v13406, %v13538
    %v13695 = vadd.f32 %v13407, %v13538
    %v13696 = vadd.f32 %v13408, %v13538
    %v13697 = vadd.f32 %v13409, %v13538
    %v13698 = vadd.f32 %v13410, %v13538
    %v13699 = vadd.f32 %v13411, %v13538
    %v13700 = vadd.f32 %v13412, %v13538
    %v13701 = vadd.f32 %v13413, %v13538
    %v13702 = vadd.f32 %v13414, %v13538
    %v13703 = vadd.f32 %v13415, %v13538
    %v13704 = vadd.f32 %v13416, %v13538
    %v13705 = vadd.f32 %v13417, %v13538
    %v13706 = vadd.f32 %v13418, %v13538
    %v13707 = vadd.f32 %v13419, %v13538
    %v13708 = vadd.f32 %v13420, %v13538
    %v13709 = vadd.f32 %v13421, %v13538
    %v13710 = vadd.f32 %v13422, %v13538
    %v13711 = vadd.f32 %v13423, %v13542
    %v13712 = vadd.f32 %v13424, %v13542
    %v13713 = vadd.f32 %v13425, %v13542
    %v13714 = vadd.f32 %v13426, %v13542
    %v13715 = vadd.f32 %v13427, %v13542
    %v13716 = vadd.f32 %v13428, %v13542
    %v13717 = vadd.f32 %v13429, %v13542
    %v13718 = vadd.f32 %v13430, %v13542
    %v13719 = vadd.f32 %v13431, %v13542
    %v13720 = vadd.f32 %v13432, %v13542
    %v13721 = vadd.f32 %v13433, %v13542
    %v13722 = vadd.f32 %v13434, %v13542
    %v13723 = vadd.f32 %v13435, %v13542
    %v13724 = vadd.f32 %v13436, %v13542
    %v13725 = vadd.f32 %v13437, %v13542
    %v13726 = vadd.f32 %v13438, %v13542
    %v13727 = vadd.f32 %v13439, %v13542
    %v13728 = vadd.f32 %v13440, %v13542
    %v13729 = vadd.f32 %v13441, %v13542
    %v13730 = vadd.f32 %v13442, %v13542
    %v13731 = vadd.f32 %v13443, %v13542
    %v13732 = vadd.f32 %v13444, %v13542
    %v13733 = vadd.f32 %v13445, %v13542
    %v13734 = vadd.f32 %v13446, %v13542
    %v13735 = vadd.f32 %v13447, %v13542
    %v13736 = vadd.f32 %v13448, %v13542
    %v13737 = vadd.f32 %v13449, %v13542
    %v13738 = vadd.f32 %v13450, %v13542
    %v13739 = vadd.f32 %v13451, %v13542
    %v13740 = vadd.f32 %v13452, %v13542
    %v13741 = vadd.f32 %v13453, %v13542
    %v13742 = vadd.f32 %v13454, %v13542
    %v13743 = vadd.f32 %v13455, %v13546
    %v13744 = vadd.f32 %v13456, %v13546
    %v13745 = vadd.f32 %v13457, %v13546
    %v13746 = vadd.f32 %v13458, %v13546
    %v13747 = vadd.f32 %v13459, %v13546
    %v13748 = vadd.f32 %v13460, %v13546
    %v13749 = vadd.f32 %v13461, %v13546
    %v13750 = vadd.f32 %v13462, %v13546
    %v13751 = vadd.f32 %v13463, %v13546
    %v13752 = vadd.f32 %v13464, %v13546
    %v13753 = vadd.f32 %v13465, %v13546
    %v13754 = vadd.f32 %v13466, %v13546
    %v13755 = vadd.f32 %v13467, %v13546
    %v13756 = vadd.f32 %v13468, %v13546
    %v13757 = vadd.f32 %v13469, %v13546
    %v13758 = vadd.f32 %v13470, %v13546
    %v13759 = vadd.f32 %v13471, %v13546
    %v13760 = vadd.f32 %v13472, %v13546
    %v13761 = vadd.f32 %v13473, %v13546
    %v13762 = vadd.f32 %v13474, %v13546
    %v13763 = vadd.f32 %v13475, %v13546
    %v13764 = vadd.f32 %v13476, %v13546
    %v13765 = vadd.f32 %v13477, %v13546
    %v13766 = vadd.f32 %v13478, %v13546
    %v13767 = vadd.f32 %v13479, %v13546
    %v13768 = vadd.f32 %v13480, %v13546
    %v13769 = vadd.f32 %v13481, %v13546
    %v13770 = vadd.f32 %v13482, %v13546
    %v13771 = vadd.f32 %v13483, %v13546
    %v13772 = vadd.f32 %v13484, %v13546
    %v13773 = vadd.f32 %v13485, %v13546
    %v13774 = vadd.f32 %v13486, %v13546
    %v13775 = vadd.f32 %v13487, %v13550
    %v13776 = vadd.f32 %v13488, %v13550
    %v13777 = vadd.f32 %v13489, %v13550
    %v13778 = vadd.f32 %v13490, %v13550
    %v13779 = vadd.f32 %v13491, %v13550
    %v13780 = vadd.f32 %v13492, %v13550
    %v13781 = vadd.f32 %v13493, %v13550
    %v13782 = vadd.f32 %v13494, %v13550
    %v13783 = vadd.f32 %v13495, %v13550
    %v13784 = vadd.f32 %v13496, %v13550
    %v13785 = vadd.f32 %v13497, %v13550
    %v13786 = vadd.f32 %v13498, %v13550
    %v13787 = vadd.f32 %v13499, %v13550
    %v13788 = vadd.f32 %v13500, %v13550
    %v13789 = vadd.f32 %v13501, %v13550
    %v13790 = vadd.f32 %v13502, %v13550
    %v13791 = vadd.f32 %v13503, %v13550
    %v13792 = vadd.f32 %v13504, %v13550
    %v13793 = vadd.f32 %v13505, %v13550
    %v13794 = vadd.f32 %v13506, %v13550
    %v13795 = vadd.f32 %v13507, %v13550
    %v13796 = vadd.f32 %v13508, %v13550
    %v13797 = vadd.f32 %v13509, %v13550
    %v13798 = vadd.f32 %v13510, %v13550
    %v13799 = vadd.f32 %v13511, %v13550
    %v13800 = vadd.f32 %v13512, %v13550
    %v13801 = vadd.f32 %v13513, %v13550
    %v13802 = vadd.f32 %v13514, %v13550
    %v13803 = vadd.f32 %v13515, %v13550
    %v13804 = vadd.f32 %v13516, %v13550
    %v13805 = vadd.f32 %v13517, %v13550
    %v13806 = vadd.f32 %v13518, %v13550
    %13807 = vst.msk [vmem:[#allocation10] sm:$0xff] %vm9301, %v13551
    %13808 = vst.msk [vmem:[#allocation10 + $0x8] sm:$0xff] %vm9301, %v13552
    %13809 = vst.msk [vmem:[#allocation10 + $0x10] sm:$0xff] %vm9301, %v13553
    %13810 = vst.msk [vmem:[#allocation10 + $0x18] sm:$0xff] %vm9301, %v13554
    %13811 = vst.msk [vmem:[#allocation10 + $0x20] sm:$0xff] %vm9301, %v13555
    %13812 = vst.msk [vmem:[#allocation10 + $0x28] sm:$0xff] %vm9301, %v13556
    %13813 = vst.msk [vmem:[#allocation10 + $0x30] sm:$0xff] %vm9301, %v13557
    %13814 = vst.msk [vmem:[#allocation10 + $0x38] sm:$0xff] %vm9301, %v13558
    %13815 = vst.msk [vmem:[#allocation10 + $0x40] sm:$0xff] %vm9301, %v13559
    %13816 = vst.msk [vmem:[#allocation10 + $0x48] sm:$0xff] %vm9301, %v13560
    %13817 = vst.msk [vmem:[#allocation10 + $0x50] sm:$0xff] %vm9301, %v13561
    %13818 = vst.msk [vmem:[#allocation10 + $0x58] sm:$0xff] %vm9301, %v13562
    %13819 = vst.msk [vmem:[#allocation10 + $0x60] sm:$0xff] %vm9301, %v13563
    %13820 = vst.msk [vmem:[#allocation10 + $0x68] sm:$0xff] %vm9301, %v13564
    %13821 = vst.msk [vmem:[#allocation10 + $0x70] sm:$0xff] %vm9301, %v13565
    %13822 = vst.msk [vmem:[#allocation10 + $0x78] sm:$0xff] %vm9301, %v13566
    %13823 = vst.msk [vmem:[#allocation10 + $0x80] sm:$0xff] %vm9301, %v13567
    %13824 = vst.msk [vmem:[#allocation10 + $0x88] sm:$0xff] %vm9301, %v13568
    %13825 = vst.msk [vmem:[#allocation10 + $0x90] sm:$0xff] %vm9301, %v13569
    %13826 = vst.msk [vmem:[#allocation10 + $0x98] sm:$0xff] %vm9301, %v13570
    %13827 = vst.msk [vmem:[#allocation10 + $0xa0] sm:$0xff] %vm9301, %v13571
    %13828 = vst.msk [vmem:[#allocation10 + $0xa8] sm:$0xff] %vm9301, %v13572
    %13829 = vst.msk [vmem:[#allocation10 + $0xb0] sm:$0xff] %vm9301, %v13573
    %13830 = vst.msk [vmem:[#allocation10 + $0xb8] sm:$0xff] %vm9301, %v13574
    %13831 = vst.msk [vmem:[#allocation10 + $0xc0] sm:$0xff] %vm9301, %v13575
    %13832 = vst.msk [vmem:[#allocation10 + $0xc8] sm:$0xff] %vm9301, %v13576
    %13833 = vst.msk [vmem:[#allocation10 + $0xd0] sm:$0xff] %vm9301, %v13577
    %13834 = vst.msk [vmem:[#allocation10 + $0xd8] sm:$0xff] %vm9301, %v13578
    %13835 = vst.msk [vmem:[#allocation10 + $0xe0] sm:$0xff] %vm9301, %v13579
    %13836 = vst.msk [vmem:[#allocation10 + $0xe8] sm:$0xff] %vm9301, %v13580
    %13837 = vst.msk [vmem:[#allocation10 + $0xf0] sm:$0xff] %vm9301, %v13581
    %13838 = vst.msk [vmem:[#allocation10 + $0xf8] sm:$0xff] %vm9301, %v13582
    %13839 = vst.msk [vmem:[#allocation10 + $0x100] sm:$0xff] %vm9301, %v13583
    %13840 = vst.msk [vmem:[#allocation10 + $0x108] sm:$0xff] %vm9301, %v13584
    %13841 = vst.msk [vmem:[#allocation10 + $0x110] sm:$0xff] %vm9301, %v13585
    %13842 = vst.msk [vmem:[#allocation10 + $0x118] sm:$0xff] %vm9301, %v13586
    %13843 = vst.msk [vmem:[#allocation10 + $0x120] sm:$0xff] %vm9301, %v13587
    %13844 = vst.msk [vmem:[#allocation10 + $0x128] sm:$0xff] %vm9301, %v13588
    %13845 = vst.msk [vmem:[#allocation10 + $0x130] sm:$0xff] %vm9301, %v13589
    %13846 = vst.msk [vmem:[#allocation10 + $0x138] sm:$0xff] %vm9301, %v13590
    %13847 = vst.msk [vmem:[#allocation10 + $0x140] sm:$0xff] %vm9301, %v13591
    %13848 = vst.msk [vmem:[#allocation10 + $0x148] sm:$0xff] %vm9301, %v13592
    %13849 = vst.msk [vmem:[#allocation10 + $0x150] sm:$0xff] %vm9301, %v13593
    %13850 = vst.msk [vmem:[#allocation10 + $0x158] sm:$0xff] %vm9301, %v13594
    %13851 = vst.msk [vmem:[#allocation10 + $0x160] sm:$0xff] %vm9301, %v13595
    %13852 = vst.msk [vmem:[#allocation10 + $0x168] sm:$0xff] %vm9301, %v13596
    %13853 = vst.msk [vmem:[#allocation10 + $0x170] sm:$0xff] %vm9301, %v13597
    %13854 = vst.msk [vmem:[#allocation10 + $0x178] sm:$0xff] %vm9301, %v13598
    %13855 = vst.msk [vmem:[#allocation10 + $0x180] sm:$0xff] %vm9301, %v13599
    %13856 = vst.msk [vmem:[#allocation10 + $0x188] sm:$0xff] %vm9301, %v13600
    %13857 = vst.msk [vmem:[#allocation10 + $0x190] sm:$0xff] %vm9301, %v13601
    %13858 = vst.msk [vmem:[#allocation10 + $0x198] sm:$0xff] %vm9301, %v13602
    %13859 = vst.msk [vmem:[#allocation10 + $0x1a0] sm:$0xff] %vm9301, %v13603
    %13860 = vst.msk [vmem:[#allocation10 + $0x1a8] sm:$0xff] %vm9301, %v13604
    %13861 = vst.msk [vmem:[#allocation10 + $0x1b0] sm:$0xff] %vm9301, %v13605
    %13862 = vst.msk [vmem:[#allocation10 + $0x1b8] sm:$0xff] %vm9301, %v13606
    %13863 = vst.msk [vmem:[#allocation10 + $0x1c0] sm:$0xff] %vm9301, %v13607
    %13864 = vst.msk [vmem:[#allocation10 + $0x1c8] sm:$0xff] %vm9301, %v13608
    %13865 = vst.msk [vmem:[#allocation10 + $0x1d0] sm:$0xff] %vm9301, %v13609
    %13866 = vst.msk [vmem:[#allocation10 + $0x1d8] sm:$0xff] %vm9301, %v13610
    %13867 = vst.msk [vmem:[#allocation10 + $0x1e0] sm:$0xff] %vm9301, %v13611
    %13868 = vst.msk [vmem:[#allocation10 + $0x1e8] sm:$0xff] %vm9301, %v13612
    %13869 = vst.msk [vmem:[#allocation10 + $0x1f0] sm:$0xff] %vm9301, %v13613
    %13870 = vst.msk [vmem:[#allocation10 + $0x1f8] sm:$0xff] %vm9301, %v13614
    %13871 = vst.msk [vmem:[#allocation10 + $0x200] sm:$0xff] %vm9301, %v13615
    %13872 = vst.msk [vmem:[#allocation10 + $0x208] sm:$0xff] %vm9301, %v13616
    %13873 = vst.msk [vmem:[#allocation10 + $0x210] sm:$0xff] %vm9301, %v13617
    %13874 = vst.msk [vmem:[#allocation10 + $0x218] sm:$0xff] %vm9301, %v13618
    %13875 = vst.msk [vmem:[#allocation10 + $0x220] sm:$0xff] %vm9301, %v13619
    %13876 = vst.msk [vmem:[#allocation10 + $0x228] sm:$0xff] %vm9301, %v13620
    %13877 = vst.msk [vmem:[#allocation10 + $0x230] sm:$0xff] %vm9301, %v13621
    %13878 = vst.msk [vmem:[#allocation10 + $0x238] sm:$0xff] %vm9301, %v13622
    %13879 = vst.msk [vmem:[#allocation10 + $0x240] sm:$0xff] %vm9301, %v13623
    %13880 = vst.msk [vmem:[#allocation10 + $0x248] sm:$0xff] %vm9301, %v13624
    %13881 = vst.msk [vmem:[#allocation10 + $0x250] sm:$0xff] %vm9301, %v13625
    %13882 = vst.msk [vmem:[#allocation10 + $0x258] sm:$0xff] %vm9301, %v13626
    %13883 = vst.msk [vmem:[#allocation10 + $0x260] sm:$0xff] %vm9301, %v13627
    %13884 = vst.msk [vmem:[#allocation10 + $0x268] sm:$0xff] %vm9301, %v13628
    %13885 = vst.msk [vmem:[#allocation10 + $0x270] sm:$0xff] %vm9301, %v13629
    %13886 = vst.msk [vmem:[#allocation10 + $0x278] sm:$0xff] %vm9301, %v13630
    %13887 = vst.msk [vmem:[#allocation10 + $0x280] sm:$0xff] %vm9301, %v13631
    %13888 = vst.msk [vmem:[#allocation10 + $0x288] sm:$0xff] %vm9301, %v13632
    %13889 = vst.msk [vmem:[#allocation10 + $0x290] sm:$0xff] %vm9301, %v13633
    %13890 = vst.msk [vmem:[#allocation10 + $0x298] sm:$0xff] %vm9301, %v13634
    %13891 = vst.msk [vmem:[#allocation10 + $0x2a0] sm:$0xff] %vm9301, %v13635
    %13892 = vst.msk [vmem:[#allocation10 + $0x2a8] sm:$0xff] %vm9301, %v13636
    %13893 = vst.msk [vmem:[#allocation10 + $0x2b0] sm:$0xff] %vm9301, %v13637
    %13894 = vst.msk [vmem:[#allocation10 + $0x2b8] sm:$0xff] %vm9301, %v13638
    %13895 = vst.msk [vmem:[#allocation10 + $0x2c0] sm:$0xff] %vm9301, %v13639
    %13896 = vst.msk [vmem:[#allocation10 + $0x2c8] sm:$0xff] %vm9301, %v13640
    %13897 = vst.msk [vmem:[#allocation10 + $0x2d0] sm:$0xff] %vm9301, %v13641
    %13898 = vst.msk [vmem:[#allocation10 + $0x2d8] sm:$0xff] %vm9301, %v13642
    %13899 = vst.msk [vmem:[#allocation10 + $0x2e0] sm:$0xff] %vm9301, %v13643
    %13900 = vst.msk [vmem:[#allocation10 + $0x2e8] sm:$0xff] %vm9301, %v13644
    %13901 = vst.msk [vmem:[#allocation10 + $0x2f0] sm:$0xff] %vm9301, %v13645
    %13902 = vst.msk [vmem:[#allocation10 + $0x2f8] sm:$0xff] %vm9301, %v13646
    %13903 = vst.msk [vmem:[#allocation10 + $0x300] sm:$0xff] %vm9301, %v13647
    %13904 = vst.msk [vmem:[#allocation10 + $0x308] sm:$0xff] %vm9301, %v13648
    %13905 = vst.msk [vmem:[#allocation10 + $0x310] sm:$0xff] %vm9301, %v13649
    %13906 = vst.msk [vmem:[#allocation10 + $0x318] sm:$0xff] %vm9301, %v13650
    %13907 = vst.msk [vmem:[#allocation10 + $0x320] sm:$0xff] %vm9301, %v13651
    %13908 = vst.msk [vmem:[#allocation10 + $0x328] sm:$0xff] %vm9301, %v13652
    %13909 = vst.msk [vmem:[#allocation10 + $0x330] sm:$0xff] %vm9301, %v13653
    %13910 = vst.msk [vmem:[#allocation10 + $0x338] sm:$0xff] %vm9301, %v13654
    %13911 = vst.msk [vmem:[#allocation10 + $0x340] sm:$0xff] %vm9301, %v13655
    %13912 = vst.msk [vmem:[#allocation10 + $0x348] sm:$0xff] %vm9301, %v13656
    %13913 = vst.msk [vmem:[#allocation10 + $0x350] sm:$0xff] %vm9301, %v13657
    %13914 = vst.msk [vmem:[#allocation10 + $0x358] sm:$0xff] %vm9301, %v13658
    %13915 = vst.msk [vmem:[#allocation10 + $0x360] sm:$0xff] %vm9301, %v13659
    %13916 = vst.msk [vmem:[#allocation10 + $0x368] sm:$0xff] %vm9301, %v13660
    %13917 = vst.msk [vmem:[#allocation10 + $0x370] sm:$0xff] %vm9301, %v13661
    %13918 = vst.msk [vmem:[#allocation10 + $0x378] sm:$0xff] %vm9301, %v13662
    %13919 = vst.msk [vmem:[#allocation10 + $0x380] sm:$0xff] %vm9301, %v13663
    %13920 = vst.msk [vmem:[#allocation10 + $0x388] sm:$0xff] %vm9301, %v13664
    %13921 = vst.msk [vmem:[#allocation10 + $0x390] sm:$0xff] %vm9301, %v13665
    %13922 = vst.msk [vmem:[#allocation10 + $0x398] sm:$0xff] %vm9301, %v13666
    %13923 = vst.msk [vmem:[#allocation10 + $0x3a0] sm:$0xff] %vm9301, %v13667
    %13924 = vst.msk [vmem:[#allocation10 + $0x3a8] sm:$0xff] %vm9301, %v13668
    %13925 = vst.msk [vmem:[#allocation10 + $0x3b0] sm:$0xff] %vm9301, %v13669
    %13926 = vst.msk [vmem:[#allocation10 + $0x3b8] sm:$0xff] %vm9301, %v13670
    %13927 = vst.msk [vmem:[#allocation10 + $0x3c0] sm:$0xff] %vm9301, %v13671
    %13928 = vst.msk [vmem:[#allocation10 + $0x3c8] sm:$0xff] %vm9301, %v13672
    %13929 = vst.msk [vmem:[#allocation10 + $0x3d0] sm:$0xff] %vm9301, %v13673
    %13930 = vst.msk [vmem:[#allocation10 + $0x3d8] sm:$0xff] %vm9301, %v13674
    %13931 = vst.msk [vmem:[#allocation10 + $0x3e0] sm:$0xff] %vm9301, %v13675
    %13932 = vst.msk [vmem:[#allocation10 + $0x3e8] sm:$0xff] %vm9301, %v13676
    %13933 = vst.msk [vmem:[#allocation10 + $0x3f0] sm:$0xff] %vm9301, %v13677
    %13934 = vst.msk [vmem:[#allocation10 + $0x3f8] sm:$0xff] %vm9301, %v13678
    %13935 = vst.msk [vmem:[#allocation10 + $0x400] sm:$0xff] %vm9301, %v13679
    %13936 = vst.msk [vmem:[#allocation10 + $0x408] sm:$0xff] %vm9301, %v13680
    %13937 = vst.msk [vmem:[#allocation10 + $0x410] sm:$0xff] %vm9301, %v13681
    %13938 = vst.msk [vmem:[#allocation10 + $0x418] sm:$0xff] %vm9301, %v13682
    %13939 = vst.msk [vmem:[#allocation10 + $0x420] sm:$0xff] %vm9301, %v13683
    %13940 = vst.msk [vmem:[#allocation10 + $0x428] sm:$0xff] %vm9301, %v13684
    %13941 = vst.msk [vmem:[#allocation10 + $0x430] sm:$0xff] %vm9301, %v13685
    %13942 = vst.msk [vmem:[#allocation10 + $0x438] sm:$0xff] %vm9301, %v13686
    %13943 = vst.msk [vmem:[#allocation10 + $0x440] sm:$0xff] %vm9301, %v13687
    %13944 = vst.msk [vmem:[#allocation10 + $0x448] sm:$0xff] %vm9301, %v13688
    %13945 = vst.msk [vmem:[#allocation10 + $0x450] sm:$0xff] %vm9301, %v13689
    %13946 = vst.msk [vmem:[#allocation10 + $0x458] sm:$0xff] %vm9301, %v13690
    %13947 = vst.msk [vmem:[#allocation10 + $0x460] sm:$0xff] %vm9301, %v13691
    %13948 = vst.msk [vmem:[#allocation10 + $0x468] sm:$0xff] %vm9301, %v13692
    %13949 = vst.msk [vmem:[#allocation10 + $0x470] sm:$0xff] %vm9301, %v13693
    %13950 = vst.msk [vmem:[#allocation10 + $0x478] sm:$0xff] %vm9301, %v13694
    %13951 = vst.msk [vmem:[#allocation10 + $0x480] sm:$0xff] %vm9301, %v13695
    %13952 = vst.msk [vmem:[#allocation10 + $0x488] sm:$0xff] %vm9301, %v13696
    %13953 = vst.msk [vmem:[#allocation10 + $0x490] sm:$0xff] %vm9301, %v13697
    %13954 = vst.msk [vmem:[#allocation10 + $0x498] sm:$0xff] %vm9301, %v13698
    %13955 = vst.msk [vmem:[#allocation10 + $0x4a0] sm:$0xff] %vm9301, %v13699
    %13956 = vst.msk [vmem:[#allocation10 + $0x4a8] sm:$0xff] %vm9301, %v13700
    %13957 = vst.msk [vmem:[#allocation10 + $0x4b0] sm:$0xff] %vm9301, %v13701
    %13958 = vst.msk [vmem:[#allocation10 + $0x4b8] sm:$0xff] %vm9301, %v13702
    %13959 = vst.msk [vmem:[#allocation10 + $0x4c0] sm:$0xff] %vm9301, %v13703
    %13960 = vst.msk [vmem:[#allocation10 + $0x4c8] sm:$0xff] %vm9301, %v13704
    %13961 = vst.msk [vmem:[#allocation10 + $0x4d0] sm:$0xff] %vm9301, %v13705
    %13962 = vst.msk [vmem:[#allocation10 + $0x4d8] sm:$0xff] %vm9301, %v13706
    %13963 = vst.msk [vmem:[#allocation10 + $0x4e0] sm:$0xff] %vm9301, %v13707
    %13964 = vst.msk [vmem:[#allocation10 + $0x4e8] sm:$0xff] %vm9301, %v13708
    %13965 = vst.msk [vmem:[#allocation10 + $0x4f0] sm:$0xff] %vm9301, %v13709
    %13966 = vst.msk [vmem:[#allocation10 + $0x4f8] sm:$0xff] %vm9301, %v13710
    %13967 = vst.msk [vmem:[#allocation10 + $0x500] sm:$0xff] %vm9301, %v13711
    %13968 = vst.msk [vmem:[#allocation10 + $0x508] sm:$0xff] %vm9301, %v13712
    %13969 = vst.msk [vmem:[#allocation10 + $0x510] sm:$0xff] %vm9301, %v13713
    %13970 = vst.msk [vmem:[#allocation10 + $0x518] sm:$0xff] %vm9301, %v13714
    %13971 = vst.msk [vmem:[#allocation10 + $0x520] sm:$0xff] %vm9301, %v13715
    %13972 = vst.msk [vmem:[#allocation10 + $0x528] sm:$0xff] %vm9301, %v13716
    %13973 = vst.msk [vmem:[#allocation10 + $0x530] sm:$0xff] %vm9301, %v13717
    %13974 = vst.msk [vmem:[#allocation10 + $0x538] sm:$0xff] %vm9301, %v13718
    %13975 = vst.msk [vmem:[#allocation10 + $0x540] sm:$0xff] %vm9301, %v13719
    %13976 = vst.msk [vmem:[#allocation10 + $0x548] sm:$0xff] %vm9301, %v13720
    %13977 = vst.msk [vmem:[#allocation10 + $0x550] sm:$0xff] %vm9301, %v13721
    %13978 = vst.msk [vmem:[#allocation10 + $0x558] sm:$0xff] %vm9301, %v13722
    %13979 = vst.msk [vmem:[#allocation10 + $0x560] sm:$0xff] %vm9301, %v13723
    %13980 = vst.msk [vmem:[#allocation10 + $0x568] sm:$0xff] %vm9301, %v13724
    %13981 = vst.msk [vmem:[#allocation10 + $0x570] sm:$0xff] %vm9301, %v13725
    %13982 = vst.msk [vmem:[#allocation10 + $0x578] sm:$0xff] %vm9301, %v13726
    %13983 = vst.msk [vmem:[#allocation10 + $0x580] sm:$0xff] %vm9301, %v13727
    %13984 = vst.msk [vmem:[#allocation10 + $0x588] sm:$0xff] %vm9301, %v13728
    %13985 = vst.msk [vmem:[#allocation10 + $0x590] sm:$0xff] %vm9301, %v13729
    %13986 = vst.msk [vmem:[#allocation10 + $0x598] sm:$0xff] %vm9301, %v13730
    %13987 = vst.msk [vmem:[#allocation10 + $0x5a0] sm:$0xff] %vm9301, %v13731
    %13988 = vst.msk [vmem:[#allocation10 + $0x5a8] sm:$0xff] %vm9301, %v13732
    %13989 = vst.msk [vmem:[#allocation10 + $0x5b0] sm:$0xff] %vm9301, %v13733
    %13990 = vst.msk [vmem:[#allocation10 + $0x5b8] sm:$0xff] %vm9301, %v13734
    %13991 = vst.msk [vmem:[#allocation10 + $0x5c0] sm:$0xff] %vm9301, %v13735
    %13992 = vst.msk [vmem:[#allocation10 + $0x5c8] sm:$0xff] %vm9301, %v13736
    %13993 = vst.msk [vmem:[#allocation10 + $0x5d0] sm:$0xff] %vm9301, %v13737
    %13994 = vst.msk [vmem:[#allocation10 + $0x5d8] sm:$0xff] %vm9301, %v13738
    %13995 = vst.msk [vmem:[#allocation10 + $0x5e0] sm:$0xff] %vm9301, %v13739
    %13996 = vst.msk [vmem:[#allocation10 + $0x5e8] sm:$0xff] %vm9301, %v13740
    %13997 = vst.msk [vmem:[#allocation10 + $0x5f0] sm:$0xff] %vm9301, %v13741
    %13998 = vst.msk [vmem:[#allocation10 + $0x5f8] sm:$0xff] %vm9301, %v13742
    %13999 = vst.msk [vmem:[#allocation10 + $0x600] sm:$0xff] %vm9301, %v13743
    %14000 = vst.msk [vmem:[#allocation10 + $0x608] sm:$0xff] %vm9301, %v13744
    %14001 = vst.msk [vmem:[#allocation10 + $0x610] sm:$0xff] %vm9301, %v13745
    %14002 = vst.msk [vmem:[#allocation10 + $0x618] sm:$0xff] %vm9301, %v13746
    %14003 = vst.msk [vmem:[#allocation10 + $0x620] sm:$0xff] %vm9301, %v13747
    %14004 = vst.msk [vmem:[#allocation10 + $0x628] sm:$0xff] %vm9301, %v13748
    %14005 = vst.msk [vmem:[#allocation10 + $0x630] sm:$0xff] %vm9301, %v13749
    %14006 = vst.msk [vmem:[#allocation10 + $0x638] sm:$0xff] %vm9301, %v13750
    %14007 = vst.msk [vmem:[#allocation10 + $0x640] sm:$0xff] %vm9301, %v13751
    %14008 = vst.msk [vmem:[#allocation10 + $0x648] sm:$0xff] %vm9301, %v13752
    %14009 = vst.msk [vmem:[#allocation10 + $0x650] sm:$0xff] %vm9301, %v13753
    %14010 = vst.msk [vmem:[#allocation10 + $0x658] sm:$0xff] %vm9301, %v13754
    %14011 = vst.msk [vmem:[#allocation10 + $0x660] sm:$0xff] %vm9301, %v13755
    %14012 = vst.msk [vmem:[#allocation10 + $0x668] sm:$0xff] %vm9301, %v13756
    %14013 = vst.msk [vmem:[#allocation10 + $0x670] sm:$0xff] %vm9301, %v13757
    %14014 = vst.msk [vmem:[#allocation10 + $0x678] sm:$0xff] %vm9301, %v13758
    %14015 = vst.msk [vmem:[#allocation10 + $0x680] sm:$0xff] %vm9301, %v13759
    %14016 = vst.msk [vmem:[#allocation10 + $0x688] sm:$0xff] %vm9301, %v13760
    %14017 = vst.msk [vmem:[#allocation10 + $0x690] sm:$0xff] %vm9301, %v13761
    %14018 = vst.msk [vmem:[#allocation10 + $0x698] sm:$0xff] %vm9301, %v13762
    %14019 = vst.msk [vmem:[#allocation10 + $0x6a0] sm:$0xff] %vm9301, %v13763
    %14020 = vst.msk [vmem:[#allocation10 + $0x6a8] sm:$0xff] %vm9301, %v13764
    %14021 = vst.msk [vmem:[#allocation10 + $0x6b0] sm:$0xff] %vm9301, %v13765
    %14022 = vst.msk [vmem:[#allocation10 + $0x6b8] sm:$0xff] %vm9301, %v13766
    %14023 = vst.msk [vmem:[#allocation10 + $0x6c0] sm:$0xff] %vm9301, %v13767
    %14024 = vst.msk [vmem:[#allocation10 + $0x6c8] sm:$0xff] %vm9301, %v13768
    %14025 = vst.msk [vmem:[#allocation10 + $0x6d0] sm:$0xff] %vm9301, %v13769
    %14026 = vst.msk [vmem:[#allocation10 + $0x6d8] sm:$0xff] %vm9301, %v13770
    %14027 = vst.msk [vmem:[#allocation10 + $0x6e0] sm:$0xff] %vm9301, %v13771
    %14028 = vst.msk [vmem:[#allocation10 + $0x6e8] sm:$0xff] %vm9301, %v13772
    %14029 = vst.msk [vmem:[#allocation10 + $0x6f0] sm:$0xff] %vm9301, %v13773
    %14030 = vst.msk [vmem:[#allocation10 + $0x6f8] sm:$0xff] %vm9301, %v13774
    %14031 = vst.msk [vmem:[#allocation10 + $0x700] sm:$0xff] %vm9301, %v13775
    %14032 = vst.msk [vmem:[#allocation10 + $0x708] sm:$0xff] %vm9301, %v13776
    %14033 = vst.msk [vmem:[#allocation10 + $0x710] sm:$0xff] %vm9301, %v13777
    %14034 = vst.msk [vmem:[#allocation10 + $0x718] sm:$0xff] %vm9301, %v13778
    %14035 = vst.msk [vmem:[#allocation10 + $0x720] sm:$0xff] %vm9301, %v13779
    %14036 = vst.msk [vmem:[#allocation10 + $0x728] sm:$0xff] %vm9301, %v13780
    %14037 = vst.msk [vmem:[#allocation10 + $0x730] sm:$0xff] %vm9301, %v13781
    %14038 = vst.msk [vmem:[#allocation10 + $0x738] sm:$0xff] %vm9301, %v13782
    %14039 = vst.msk [vmem:[#allocation10 + $0x740] sm:$0xff] %vm9301, %v13783
    %14040 = vst.msk [vmem:[#allocation10 + $0x748] sm:$0xff] %vm9301, %v13784
    %14041 = vst.msk [vmem:[#allocation10 + $0x750] sm:$0xff] %vm9301, %v13785
    %14042 = vst.msk [vmem:[#allocation10 + $0x758] sm:$0xff] %vm9301, %v13786
    %14043 = vst.msk [vmem:[#allocation10 + $0x760] sm:$0xff] %vm9301, %v13787
    %14044 = vst.msk [vmem:[#allocation10 + $0x768] sm:$0xff] %vm9301, %v13788
    %14045 = vst.msk [vmem:[#allocation10 + $0x770] sm:$0xff] %vm9301, %v13789
    %14046 = vst.msk [vmem:[#allocation10 + $0x778] sm:$0xff] %vm9301, %v13790
    %14047 = vst.msk [vmem:[#allocation10 + $0x780] sm:$0xff] %vm9301, %v13791
    %14048 = vst.msk [vmem:[#allocation10 + $0x788] sm:$0xff] %vm9301, %v13792
    %14049 = vst.msk [vmem:[#allocation10 + $0x790] sm:$0xff] %vm9301, %v13793
    %14050 = vst.msk [vmem:[#allocation10 + $0x798] sm:$0xff] %vm9301, %v13794
    %14051 = vst.msk [vmem:[#allocation10 + $0x7a0] sm:$0xff] %vm9301, %v13795
    %14052 = vst.msk [vmem:[#allocation10 + $0x7a8] sm:$0xff] %vm9301, %v13796
    %14053 = vst.msk [vmem:[#allocation10 + $0x7b0] sm:$0xff] %vm9301, %v13797
    %14054 = vst.msk [vmem:[#allocation10 + $0x7b8] sm:$0xff] %vm9301, %v13798
    %14055 = vst.msk [vmem:[#allocation10 + $0x7c0] sm:$0xff] %vm9301, %v13799
    %14056 = vst.msk [vmem:[#allocation10 + $0x7c8] sm:$0xff] %vm9301, %v13800
    %14057 = vst.msk [vmem:[#allocation10 + $0x7d0] sm:$0xff] %vm9301, %v13801
    %14058 = vst.msk [vmem:[#allocation10 + $0x7d8] sm:$0xff] %vm9301, %v13802
    %14059 = vst.msk [vmem:[#allocation10 + $0x7e0] sm:$0xff] %vm9301, %v13803
    %14060 = vst.msk [vmem:[#allocation10 + $0x7e8] sm:$0xff] %vm9301, %v13804
    %14061 = vst.msk [vmem:[#allocation10 + $0x7f0] sm:$0xff] %vm9301, %v13805
    %14062 = vst.msk [vmem:[#allocation10 + $0x7f8] sm:$0xff] %vm9301, %v13806
    // Predicated region
    $region34: #{tpu_custom_call.1} parent=1 // pred_check
      _
    $region35: #{tpu_custom_call.1} parent=1 // pred_check_branch
      %14064 = sbr.rel (0) target = $region37
    $region36: #{tpu_custom_call.1} parent=1 // pred_region
      %s14066 = ssub.s32 32768, 32768
      %14067 = vsyncadd [#allocation4], %s14066
      %s14068 = sshll.u32 [#allocation10], 4
      %s14069 = int_to_ptr.vmem [resolvable:$true] %s14068
      %14074 = dma.vmem_to_hbm [thread:$0]  %s14069, 32768, %s4, [#allocation4], 128, 128, 8
    $region37: #{tpu_custom_call.1} parent=1 // pred_fallthru
      _
    // Predicated region
    $region38: #{tpu_custom_call.1} parent=1 // pred_check
      _
    $region39: #{tpu_custom_call.1} parent=1 // pred_check_branch
      %14076 = sbr.rel (0) target = $region41
    $region40: #{tpu_custom_call.1} parent=1 // pred_region
      %14077 = dma.done [#allocation4], 32768
    $region41: #{tpu_custom_call.1} parent=1 // pred_fallthru
      _
    %14078 = vsyncpa [#allocation3], 1
    %14079 = vsyncpa [#allocation6], 1
    %14080 = vsyncpa [#allocation9], 1
    %14081 = vsyncpa [#allocation4], 1

</llo_original>
